<compile_context>
chip_gen: v6e
topology: v6e:2x2x1
jax: 0.10.0
libtpu: 0.0.40
codegen_flags: <defaults>
</compile_context>

<pallas_src>
import functools

import jax
import jax.numpy as jnp
import numpy as np
from jax.experimental import pallas as pl
from jax.experimental.pallas import tpu as pltpu


# --------------------------------------------------------------------------- kernel


def _srcnn_fused_kernel(x_ref, w1_ref, b1_ref, w2_ref, b2_ref, w3_ref, b3_ref,
                        o_ref, *, H, W, TH, F1, F3, N1, N2):
    """One (batch, row-tile) grid step of the fused SRCNN forward.

    x_ref : (1, 1, TH + 2*(p1+p3), W + 2*(p1+p3))  halo'd input rows, bf16
    w1_ref: (N1, F1*F1) bf16     b1_ref: (N1, 1) f32
    w2_ref: (N2, N1)    bf16     b2_ref: (N2, 1) f32
    w3_ref: (F3, F3*N2) bf16     b3_ref: (1, 1)  f32
    o_ref : (1, 1, TH, W) f32
    """
    f32, bf16 = jnp.float32, jnp.bfloat16
    PAD3 = (F3 - 1) // 2
    EH, EW = TH + 2 * PAD3, W + 2 * PAD3       # extended rows/cols conv3 reads

    r0 = pl.program_id(1) * TH                 # first output row of this tile

    x = x_ref[0, 0]                            # (HIN, WIN) bf16 (cast in wrapper)

    # ---- conv1: F1 x F1, Cin=1 -> N1 -------------------------------------------
    # kw-shifted row copies (lane shifts only): xkw[r, kw, w] = x[r, w + kw]
    xkw = jnp.stack([x[:, kw:kw + EW] for kw in range(F1)], axis=1)       # (HIN,F1,EW)
    # full 81-tap patches; row shifts are free outer-dim slices of xkw:
    #   p1[e, kh*F1 + kw, w] = x[e + kh, w + kw]
    p1 = jnp.concatenate([xkw[kh:kh + EH] for kh in range(F1)], axis=1)   # (EH,81,EW)
    w1b = jnp.broadcast_to(w1_ref[...], (EH, N1, F1 * F1))
    y1 = jnp.einsum('eck,ekw->ecw', w1b, p1,
                    preferred_element_type=f32)                           # (EH,N1,EW)
    y1 = jnp.maximum(y1 + b1_ref[...], 0.0).astype(bf16)                  # f32 epilogue

    # ---- conv2: 1x1, N1 -> N2 ----------------------------------------------------
    w2b = jnp.broadcast_to(w2_ref[...], (EH, N2, N1))
    y2 = jnp.einsum('edc,ecw->edw', w2b, y1,
                    preferred_element_type=f32)                           # (EH,N2,EW)
    y2 = jnp.maximum(y2 + b2_ref[...], 0.0)

    # ---- zero the conv3 halo ring that falls outside the image -------------------
    col = jax.lax.broadcasted_iota(jnp.int32, (1, 1, EW), 2)
    col_ok = (col >= PAD3) & (col < W + PAD3)                 # static column mask
    row = jax.lax.broadcasted_iota(jnp.int32, (EH, 1, 1), 0) + (r0 - PAD3)
    row_ok = (row >= 0) & (row < H)                           # only edge tiles hit it
    y2 = jnp.where(row_ok & col_ok, y2, 0.0).astype(bf16)     # (EH,N2,EW) bf16 (once)

    # ---- conv3: F3 x F3, N2 -> 1 --------------------------------------------------
    # kw-concat patches built once (32-channel pieces -> sublane-aligned concat):
    #   p3[e, kw*N2 + c, w] = y2[e, c, w + kw]
    p3 = jnp.concatenate([y2[:, :, kw:kw + W] for kw in range(F3)], axis=1)  # (EH,F3*N2,W)
    acc = jnp.zeros((TH, 1, W), f32)
    for kh in range(F3):
        wk = jnp.broadcast_to(w3_ref[kh:kh + 1, :], (TH, 1, F3 * N2))
        acc = acc + jnp.einsum('eck,ekw->ecw', wk, p3[kh:kh + TH],
                               preferred_element_type=f32)                   # (TH,1,W)
    out = acc[:, 0, :] + b3_ref[0, 0]                                        # (TH, W)
    o_ref[0, 0] = out.astype(o_ref.dtype)


# --------------------------------------------------------------------------- tiling


def _round_up(x, m):
    return (x + m - 1) // m * m


def _cdiv(a, b):
    return -(-a // b)


def _tile_vmem_bytes(th, W, F1=9, F3=5, N1=64, N2=32):
    """Conservative per-tile VMEM footprint, including (8,128) sublane/lane padding."""
    p1d, p3d = (F1 - 1) // 2, (F3 - 1) // 2
    EH, EW = th + 2 * p3d, W + 2 * p3d
    HIN, WIN = th + 2 * (p1d + p3d), W + 2 * (p1d + p3d)
    lanes = lambda n: _round_up(n, 128)
    sub = lambda n: _round_up(n, 8)
    b = 0
    b += 2 * sub(HIN) * lanes(WIN) * 2                 # input tile (bf16, 2x buffered)
    b += HIN * sub(F1) * lanes(EW) * 2                 # xkw
    b += EH * sub(F1 * F1) * lanes(EW) * 2             # p1 patches (bf16)
    b += EH * sub(N1) * lanes(F1 * F1) * 2             # broadcast w1
    b += EH * sub(N1) * lanes(EW) * (4 + 2)            # y1 f32 + bf16
    b += EH * sub(N2) * lanes(N1) * 2                  # broadcast w2
    b += EH * sub(N2) * lanes(EW) * (4 + 2)            # y2 f32 + bf16
    b += EH * sub(F3 * N2) * lanes(W) * 2              # p3 patches (bf16)
    b += th * sub(1) * lanes(W) * 4                    # conv3 accumulator
    b += 2 * sub(th) * lanes(W) * 4                    # output tile (2x buffered)
    return b


def _vmem_capacity_bytes():
    try:
        return int(pltpu.get_tpu_info().vmem_capacity_bytes)
    except Exception:
        return 64 * 1024 * 1024   # conservative (v7x-sized) fallback


def _pick_tile_h(H, W, N, budget):
    """Largest row tile (multiple of 8, <= 256) whose VMEM estimate fits `budget`;
    prefers an even total tile count so both v7x TensorCores stay busy."""
    cap = min(256, _round_up(H, 8))
    th = 8
    for cand in range(8, cap + 1, 8):
        if _tile_vmem_bytes(cand, W) <= budget:
            th = cand
        else:
            break
    # TODO(synk): add a width-tile grid axis for extreme W where even TH=8 overflows.
    n_tiles = N * _cdiv(H, th)
    if n_tiles % 2 == 1 and th > 8:
        nH = _cdiv(H, th)
        alt = max(8, _round_up(_cdiv(H, nH + 1), 8))
        if alt < th and (N * _cdiv(H, alt)) % 2 == 0:
            th = alt
    return th


# --------------------------------------------------------------------------- wrapper


def _srcnn_pallas(params, x_nchw, tile_h, vmem_limit_bytes):
    N, C, H, W = x_nchw.shape
    assert C == 1, "SRCNN expects a single input channel"
    w1, b1 = params["w1"], params["b1"]
    w2, b2 = params["w2"], params["b2"]
    w3, b3 = params["w3"], params["b3"]
    F1, _, Cin1, N1 = w1.shape
    F2, _, _, N2 = w2.shape
    F3, _, _, Cout3 = w3.shape
    assert Cin1 == 1 and F2 == 1 and Cout3 == 1

    PAD1, PAD3 = (F1 - 1) // 2, (F3 - 1) // 2
    PADT = PAD1 + PAD3

    cap = _vmem_capacity_bytes()                      # chip-aware VMEM budget
    vmem_limit = int(cap * 3 // 4) if vmem_limit_bytes is None else vmem_limit_bytes
    TH = _pick_tile_h(H, W, N, budget=int(vmem_limit * 0.85)) if tile_h is None else tile_h

    nH = _cdiv(H, TH)
    Hp = nH * TH                                      # padded rows: any H supported
    HIN, WIN = TH + 2 * PADT, W + 2 * PADT

    # Halo'd row tiles of the zero-padded single-channel input, already bf16 (the
    # matmul operand dtype), so the kernel never re-casts x.
    xim = x_nchw[:, 0].astype(jnp.bfloat16)                                   # (N,H,W)
    xp = jnp.pad(xim, ((0, 0), (PADT, PADT + Hp - H), (PADT, PADT)))
    xt = jnp.stack([xp[:, i * TH: i * TH + HIN, :] for i in range(nH)], axis=1)
    # TODO(synk): feed overlapping windows of xp straight from HBM (manual DMA)
    # instead of materializing the halo'd copy; minor win since the input is 1-ch.

    # Channel-major 2-D weights (Cout, K) in bf16; biases as (Cout, 1) f32 columns.
    bf16, f32 = jnp.bfloat16, jnp.float32
    w1t = w1.reshape(F1 * F1, N1).T.astype(bf16)             # (N1, F1*F1)
    w2t = w2.reshape(N1, N2).T.astype(bf16)                  # (N2, N1)
    w3t = w3[:, :, :, 0].reshape(F3, F3 * N2).astype(bf16)   # (F3, F3*N2)
    b1c = b1.reshape(N1, 1).astype(f32)
    b2c = b2.reshape(N2, 1).astype(f32)
    b3c = b3.reshape(1, 1).astype(f32)

    kern = functools.partial(_srcnn_fused_kernel, H=H, W=W, TH=TH,
                             F1=F1, F3=F3, N1=N1, N2=N2)

    out = pl.pallas_call(
        kern,
        out_shape=jax.ShapeDtypeStruct((N, 1, Hp, W), jnp.float32),
        grid=(N, nH),
        in_specs=[
            pl.BlockSpec((1, 1, HIN, WIN), lambda n, t: (n, t, 0, 0)),
            pl.BlockSpec((N1, F1 * F1), lambda n, t: (0, 0)),
            pl.BlockSpec((N1, 1), lambda n, t: (0, 0)),
            pl.BlockSpec((N2, N1), lambda n, t: (0, 0)),
            pl.BlockSpec((N2, 1), lambda n, t: (0, 0)),
            pl.BlockSpec((F3, F3 * N2), lambda n, t: (0, 0)),
            pl.BlockSpec((1, 1), lambda n, t: (0, 0)),
        ],
        out_specs=pl.BlockSpec((1, 1, TH, W), lambda n, t: (n, 0, t, 0)),
        compiler_params=pltpu.CompilerParams(
            dimension_semantics=("parallel", "parallel"),
            vmem_limit_bytes=vmem_limit),
    )(xt, w1t, b1c, w2t, b2c, w3t, b3c)

    return out[:, :, :H, :]


@functools.partial(jax.jit, static_argnames=("tile_h", "vmem_limit_bytes"))
def srcnn_forward(params, x_nchw, *, tile_h=None, vmem_limit_bytes=None):
    """SRCNN forward: relu(conv1) -> relu(conv2) -> conv3.  x: (N, 1, H, W) f32."""
    return _srcnn_pallas(params, x_nchw, tile_h, vmem_limit_bytes)


# --------------------------------------------------------------------------- params / reference


def init_srcnn_params(key, f1=9, f2=1, f3=5, n1=64, n2=32, std=0.001):
    """Matches the PyTorch module: N(0, 0.001) weights (HWIO layout), zero biases."""
    k1, k2, k3 = jax.random.split(key, 3)
    return {
        "w1": jax.random.normal(k1, (f1, f1, 1, n1), jnp.float32) * std,
        "b1": jnp.zeros((n1,), jnp.float32),
        "w2": jax.random.normal(k2, (f2, f2, n1, n2), jnp.float32) * std,
        "b2": jnp.zeros((n2,), jnp.float32),
        "w3": jax.random.normal(k3, (f3, f3, n2, 1), jnp.float32) * std,
        "b3": jnp.zeros((1,), jnp.float32),
    }


def _reference_forward(params, x_nchw):
    """Pure-JAX reference (lax.conv).  Mirrors the kernel's bf16 matmul operands
    (f32 accumulation) so the comparison isolates kernel correctness."""
    def rnd(a):  # round through bf16 like the kernel's matmul operands
        return a.astype(jnp.bfloat16).astype(jnp.float32)

    def conv(x, w, b):
        pad = (w.shape[0] - 1) // 2
        y = jax.lax.conv_general_dilated(
            rnd(x), rnd(w), window_strides=(1, 1),
            padding=[(pad, pad), (pad, pad)],
            dimension_numbers=("NCHW", "HWIO", "NCHW"),
            precision=jax.lax.Precision.HIGHEST)
        return y + b.reshape(1, -1, 1, 1)

    x = jax.nn.relu(conv(x_nchw, params["w1"], params["b1"]))
    x = jax.nn.relu(conv(x, params["w2"], params["b2"]))
    return conv(x, params["w3"], params["b3"])


# --------------------------------------------------------------------------- self-test


if __name__ == "__main__":
    key = jax.random.PRNGKey(0)
    k_params, k_x = jax.random.split(key)

    params = init_srcnn_params(k_params)
    x = jax.random.normal(k_x, (2, 1, 16, 16), jnp.float32)   # N=2, C=1, 16x16

    out = jax.block_until_ready(srcnn_forward(params, x))
    assert out.shape == (2, 1, 16, 16), out.shape

    ref = _reference_forward(params, x)
    np.testing.assert_allclose(np.asarray(out), np.asarray(ref),
                               rtol=2e-3, atol=1e-8)
    print("KERNEL_OK")
</pallas_src>

<mosaic_0001>
module attributes {stable_mosaic.version = 11 : i64} {
  func.func @_srcnn_fused_kernel(%arg0: i32, %arg1: i32, %arg2: memref<1x1x28x28xbf16, #tpu.memory_space<vmem>>, %arg3: memref<64x81xbf16, #tpu.memory_space<vmem>>, %arg4: memref<64x1xf32, #tpu.memory_space<vmem>>, %arg5: memref<32x64xbf16, #tpu.memory_space<vmem>>, %arg6: memref<32x1xf32, #tpu.memory_space<vmem>>, %arg7: memref<5x160xbf16, #tpu.memory_space<vmem>>, %arg8: memref<1x1xf32, #tpu.memory_space<vmem>>, %arg9: memref<1x1x16x16xf32, #tpu.memory_space<vmem>>) attributes {dimension_semantics = [#tpu.dimension_semantics<parallel>, #tpu.dimension_semantics<parallel>], iteration_bounds = array<i64: 2, 1>, scalar_prefetch = 0 : i64, scratch_operands = 0 : i64, tpu.core_type = #tpu.core_type<tc>, window_params = [{transform_indices = @transform_0, window_bounds = array<i64: 1, 1, 28, 28>}, {pipeline_mode = #tpu.pipeline_mode<synchronous>, transform_indices = @transform_1, window_bounds = array<i64: 64, 81>}, {pipeline_mode = #tpu.pipeline_mode<synchronous>, transform_indices = @transform_2, window_bounds = array<i64: 64, 1>}, {pipeline_mode = #tpu.pipeline_mode<synchronous>, transform_indices = @transform_3, window_bounds = array<i64: 32, 64>}, {pipeline_mode = #tpu.pipeline_mode<synchronous>, transform_indices = @transform_4, window_bounds = array<i64: 32, 1>}, {pipeline_mode = #tpu.pipeline_mode<synchronous>, transform_indices = @transform_5, window_bounds = array<i64: 5, 160>}, {pipeline_mode = #tpu.pipeline_mode<synchronous>, transform_indices = @transform_6, window_bounds = array<i64: 1, 1>}, {transform_indices = @transform_7, window_bounds = array<i64: 1, 1, 16, 16>}]} {
    %c16_i32 = arith.constant 16 : i32
    %0 = arith.muli %arg1, %c16_i32 : i32
    %c0 = arith.constant 0 : index
    %c0_0 = arith.constant 0 : index
    %c0_1 = arith.constant 0 : index
    %c0_2 = arith.constant 0 : index
    %1 = vector.load %arg2[%c0, %c0_0, %c0_1, %c0_2] : memref<1x1x28x28xbf16, #tpu.memory_space<vmem>>, vector<1x1x28x28xbf16>
    %2 = vector.shape_cast %1 : vector<1x1x28x28xbf16> to vector<28x28xbf16>
    %3 = vector.extract_strided_slice %2 {offsets = [0, 0], sizes = [28, 20], strides = [1, 1]} : vector<28x28xbf16> to vector<28x20xbf16>
    %4 = vector.extract_strided_slice %2 {offsets = [0, 1], sizes = [28, 20], strides = [1, 1]} : vector<28x28xbf16> to vector<28x20xbf16>
    %5 = vector.extract_strided_slice %2 {offsets = [0, 2], sizes = [28, 20], strides = [1, 1]} : vector<28x28xbf16> to vector<28x20xbf16>
    %6 = vector.extract_strided_slice %2 {offsets = [0, 3], sizes = [28, 20], strides = [1, 1]} : vector<28x28xbf16> to vector<28x20xbf16>
    %7 = vector.extract_strided_slice %2 {offsets = [0, 4], sizes = [28, 20], strides = [1, 1]} : vector<28x28xbf16> to vector<28x20xbf16>
    %8 = vector.extract_strided_slice %2 {offsets = [0, 5], sizes = [28, 20], strides = [1, 1]} : vector<28x28xbf16> to vector<28x20xbf16>
    %9 = vector.extract_strided_slice %2 {offsets = [0, 6], sizes = [28, 20], strides = [1, 1]} : vector<28x28xbf16> to vector<28x20xbf16>
    %10 = vector.extract_strided_slice %2 {offsets = [0, 7], sizes = [28, 20], strides = [1, 1]} : vector<28x28xbf16> to vector<28x20xbf16>
    %11 = vector.extract_strided_slice %2 {offsets = [0, 8], sizes = [28, 20], strides = [1, 1]} : vector<28x28xbf16> to vector<28x20xbf16>
    %12 = vector.shape_cast %3 : vector<28x20xbf16> to vector<28x1x20xbf16>
    %13 = vector.shape_cast %4 : vector<28x20xbf16> to vector<28x1x20xbf16>
    %14 = vector.shape_cast %5 : vector<28x20xbf16> to vector<28x1x20xbf16>
    %15 = vector.shape_cast %6 : vector<28x20xbf16> to vector<28x1x20xbf16>
    %16 = vector.shape_cast %7 : vector<28x20xbf16> to vector<28x1x20xbf16>
    %17 = vector.shape_cast %8 : vector<28x20xbf16> to vector<28x1x20xbf16>
    %18 = vector.shape_cast %9 : vector<28x20xbf16> to vector<28x1x20xbf16>
    %19 = vector.shape_cast %10 : vector<28x20xbf16> to vector<28x1x20xbf16>
    %20 = vector.shape_cast %11 : vector<28x20xbf16> to vector<28x1x20xbf16>
    %21 = tpu.concatenate %12, %13, %14, %15, %16, %17, %18, %19, %20 in 1 : vector<28x1x20xbf16>, vector<28x1x20xbf16>, vector<28x1x20xbf16>, vector<28x1x20xbf16>, vector<28x1x20xbf16>, vector<28x1x20xbf16>, vector<28x1x20xbf16>, vector<28x1x20xbf16>, vector<28x1x20xbf16> -> vector<28x9x20xbf16>
    %22 = vector.extract_strided_slice %21 {offsets = [0, 0, 0], sizes = [20, 9, 20], strides = [1, 1, 1]} : vector<28x9x20xbf16> to vector<20x9x20xbf16>
    %23 = vector.extract_strided_slice %21 {offsets = [1, 0, 0], sizes = [20, 9, 20], strides = [1, 1, 1]} : vector<28x9x20xbf16> to vector<20x9x20xbf16>
    %24 = vector.extract_strided_slice %21 {offsets = [2, 0, 0], sizes = [20, 9, 20], strides = [1, 1, 1]} : vector<28x9x20xbf16> to vector<20x9x20xbf16>
    %25 = vector.extract_strided_slice %21 {offsets = [3, 0, 0], sizes = [20, 9, 20], strides = [1, 1, 1]} : vector<28x9x20xbf16> to vector<20x9x20xbf16>
    %26 = vector.extract_strided_slice %21 {offsets = [4, 0, 0], sizes = [20, 9, 20], strides = [1, 1, 1]} : vector<28x9x20xbf16> to vector<20x9x20xbf16>
    %27 = vector.extract_strided_slice %21 {offsets = [5, 0, 0], sizes = [20, 9, 20], strides = [1, 1, 1]} : vector<28x9x20xbf16> to vector<20x9x20xbf16>
    %28 = vector.extract_strided_slice %21 {offsets = [6, 0, 0], sizes = [20, 9, 20], strides = [1, 1, 1]} : vector<28x9x20xbf16> to vector<20x9x20xbf16>
    %29 = vector.extract_strided_slice %21 {offsets = [7, 0, 0], sizes = [20, 9, 20], strides = [1, 1, 1]} : vector<28x9x20xbf16> to vector<20x9x20xbf16>
    %30 = vector.extract_strided_slice %21 {offsets = [8, 0, 0], sizes = [20, 9, 20], strides = [1, 1, 1]} : vector<28x9x20xbf16> to vector<20x9x20xbf16>
    %31 = tpu.concatenate %22, %23, %24, %25, %26, %27, %28, %29, %30 in 1 : vector<20x9x20xbf16>, vector<20x9x20xbf16>, vector<20x9x20xbf16>, vector<20x9x20xbf16>, vector<20x9x20xbf16>, vector<20x9x20xbf16>, vector<20x9x20xbf16>, vector<20x9x20xbf16>, vector<20x9x20xbf16> -> vector<20x81x20xbf16>
    %c0_3 = arith.constant 0 : index
    %c0_4 = arith.constant 0 : index
    %32 = vector.load %arg3[%c0_3, %c0_4] : memref<64x81xbf16, #tpu.memory_space<vmem>>, vector<64x81xbf16>
    %33 = vector.shape_cast %32 : vector<64x81xbf16> to vector<1x64x81xbf16>
    %34 = vector.broadcast %33 : vector<1x64x81xbf16> to vector<20x64x81xbf16>
    "tpu.trace_start"() <{level = 10 : i32, message = "eck,ekw->ecw"}> : () -> ()
    %cst = arith.constant dense<0.000000e+00> : vector<20x64x20xf32>
    %35 = tpu.matmul %34, %31, %cst {dimension_numbers = #tpu.dot_dimension_numbers<[2], [1], [1], [2], [0, 0, 0, 1, 1, 2], [0], [0]>} : vector<20x64x81xbf16>, vector<20x81x20xbf16>, vector<20x64x20xf32> -> vector<20x64x20xf32>
    "tpu.trace_stop"() : () -> ()
    %c0_5 = arith.constant 0 : index
    %c0_6 = arith.constant 0 : index
    %36 = vector.load %arg4[%c0_5, %c0_6] : memref<64x1xf32, #tpu.memory_space<vmem>>, vector<64x1xf32>
    %37 = vector.shape_cast %36 : vector<64x1xf32> to vector<1x64x1xf32>
    %38 = vector.broadcast %37 : vector<1x64x1xf32> to vector<20x64x20xf32>
    %39 = arith.addf %35, %38 : vector<20x64x20xf32>
    %cst_7 = arith.constant 0.000000e+00 : f32
    %40 = vector.broadcast %cst_7 : f32 to vector<20x64x20xf32>
    %41 = arith.maximumf %39, %40 : vector<20x64x20xf32>
    %42 = arith.truncf %41 : vector<20x64x20xf32> to vector<20x64x20xbf16>
    %c0_8 = arith.constant 0 : index
    %c0_9 = arith.constant 0 : index
    %43 = vector.load %arg5[%c0_8, %c0_9] : memref<32x64xbf16, #tpu.memory_space<vmem>>, vector<32x64xbf16>
    %44 = vector.shape_cast %43 : vector<32x64xbf16> to vector<1x32x64xbf16>
    %45 = vector.broadcast %44 : vector<1x32x64xbf16> to vector<20x32x64xbf16>
    "tpu.trace_start"() <{level = 10 : i32, message = "edc,ecw->edw"}> : () -> ()
    %cst_10 = arith.constant dense<0.000000e+00> : vector<20x32x20xf32>
    %46 = tpu.matmul %45, %42, %cst_10 {dimension_numbers = #tpu.dot_dimension_numbers<[2], [1], [1], [2], [0, 0, 0, 1, 1, 2], [0], [0]>} : vector<20x32x64xbf16>, vector<20x64x20xbf16>, vector<20x32x20xf32> -> vector<20x32x20xf32>
    "tpu.trace_stop"() : () -> ()
    %c0_11 = arith.constant 0 : index
    %c0_12 = arith.constant 0 : index
    %47 = vector.load %arg6[%c0_11, %c0_12] : memref<32x1xf32, #tpu.memory_space<vmem>>, vector<32x1xf32>
    %48 = vector.shape_cast %47 : vector<32x1xf32> to vector<1x32x1xf32>
    %49 = vector.broadcast %48 : vector<1x32x1xf32> to vector<20x32x20xf32>
    %50 = arith.addf %46, %49 : vector<20x32x20xf32>
    %cst_13 = arith.constant 0.000000e+00 : f32
    %51 = vector.broadcast %cst_13 : f32 to vector<20x32x20xf32>
    %52 = arith.maximumf %50, %51 : vector<20x32x20xf32>
    %53 = tpu.iota {dimensions = array<i32: 2>} : vector<1x1x20xi32>
    %c2_i32 = arith.constant 2 : i32
    %54 = vector.broadcast %c2_i32 : i32 to vector<1x1x20xi32>
    %55 = arith.cmpi sge, %53, %54 : vector<1x1x20xi32>
    %c18_i32 = arith.constant 18 : i32
    %56 = vector.broadcast %c18_i32 : i32 to vector<1x1x20xi32>
    %57 = arith.cmpi slt, %53, %56 : vector<1x1x20xi32>
    %58 = arith.andi %55, %57 : vector<1x1x20xi1>
    %59 = tpu.iota {dimensions = array<i32: 0>} : vector<20x1x1xi32>
    %c2_i32_14 = arith.constant 2 : i32
    %60 = arith.subi %0, %c2_i32_14 : i32
    %61 = vector.broadcast %60 : i32 to vector<20x1x1xi32>
    %62 = arith.addi %59, %61 : vector<20x1x1xi32>
    %c0_i32 = arith.constant 0 : i32
    %63 = vector.broadcast %c0_i32 : i32 to vector<20x1x1xi32>
    %64 = arith.cmpi sge, %62, %63 : vector<20x1x1xi32>
    %c16_i32_15 = arith.constant 16 : i32
    %65 = vector.broadcast %c16_i32_15 : i32 to vector<20x1x1xi32>
    %66 = arith.cmpi slt, %62, %65 : vector<20x1x1xi32>
    %67 = arith.andi %64, %66 : vector<20x1x1xi1>
    %68 = vector.broadcast %67 : vector<20x1x1xi1> to vector<20x1x20xi1>
    %69 = vector.broadcast %58 : vector<1x1x20xi1> to vector<20x1x20xi1>
    %70 = arith.andi %68, %69 : vector<20x1x20xi1>
    %cst_16 = arith.constant 0.000000e+00 : f32
    %71 = vector.shape_cast %70 : vector<20x1x20xi1> to vector<20x1x20xi1>
    %72 = vector.broadcast %71 : vector<20x1x20xi1> to vector<20x32x20xi1>
    %73 = vector.broadcast %cst_16 : f32 to vector<20x32x20xf32>
    %74 = arith.select %72, %52, %73 : vector<20x32x20xi1>, vector<20x32x20xf32>
    %75 = arith.truncf %74 : vector<20x32x20xf32> to vector<20x32x20xbf16>
    %76 = vector.extract_strided_slice %75 {offsets = [0, 0, 0], sizes = [20, 32, 16], strides = [1, 1, 1]} : vector<20x32x20xbf16> to vector<20x32x16xbf16>
    %77 = vector.extract_strided_slice %75 {offsets = [0, 0, 1], sizes = [20, 32, 16], strides = [1, 1, 1]} : vector<20x32x20xbf16> to vector<20x32x16xbf16>
    %78 = vector.extract_strided_slice %75 {offsets = [0, 0, 2], sizes = [20, 32, 16], strides = [1, 1, 1]} : vector<20x32x20xbf16> to vector<20x32x16xbf16>
    %79 = vector.extract_strided_slice %75 {offsets = [0, 0, 3], sizes = [20, 32, 16], strides = [1, 1, 1]} : vector<20x32x20xbf16> to vector<20x32x16xbf16>
    %80 = vector.extract_strided_slice %75 {offsets = [0, 0, 4], sizes = [20, 32, 16], strides = [1, 1, 1]} : vector<20x32x20xbf16> to vector<20x32x16xbf16>
    %81 = tpu.concatenate %76, %77, %78, %79, %80 in 1 : vector<20x32x16xbf16>, vector<20x32x16xbf16>, vector<20x32x16xbf16>, vector<20x32x16xbf16>, vector<20x32x16xbf16> -> vector<20x160x16xbf16>
    %cst_17 = arith.constant 0.000000e+00 : f32
    %82 = vector.broadcast %cst_17 : f32 to vector<16x1x16xf32>
    %c0_18 = arith.constant 0 : index
    %c0_19 = arith.constant 0 : index
    %83 = vector.load %arg7[%c0_18, %c0_19] : memref<5x160xbf16, #tpu.memory_space<vmem>>, vector<1x160xbf16>
    %84 = vector.shape_cast %83 : vector<1x160xbf16> to vector<1x1x160xbf16>
    %85 = vector.broadcast %84 : vector<1x1x160xbf16> to vector<16x1x160xbf16>
    %86 = vector.extract_strided_slice %81 {offsets = [0, 0, 0], sizes = [16, 160, 16], strides = [1, 1, 1]} : vector<20x160x16xbf16> to vector<16x160x16xbf16>
    "tpu.trace_start"() <{level = 10 : i32, message = "eck,ekw->ecw"}> : () -> ()
    %cst_20 = arith.constant dense<0.000000e+00> : vector<16x1x16xf32>
    %87 = tpu.matmul %85, %86, %cst_20 {dimension_numbers = #tpu.dot_dimension_numbers<[2], [1], [1], [2], [0, 0, 0, 1, 1, 2], [0], [0]>} : vector<16x1x160xbf16>, vector<16x160x16xbf16>, vector<16x1x16xf32> -> vector<16x1x16xf32>
    "tpu.trace_stop"() : () -> ()
    %88 = arith.addf %82, %87 : vector<16x1x16xf32>
    %c1 = arith.constant 1 : index
    %c0_21 = arith.constant 0 : index
    %89 = vector.load %arg7[%c1, %c0_21] : memref<5x160xbf16, #tpu.memory_space<vmem>>, vector<1x160xbf16>
    %90 = vector.shape_cast %89 : vector<1x160xbf16> to vector<1x1x160xbf16>
    %91 = vector.broadcast %90 : vector<1x1x160xbf16> to vector<16x1x160xbf16>
    %92 = vector.extract_strided_slice %81 {offsets = [1, 0, 0], sizes = [16, 160, 16], strides = [1, 1, 1]} : vector<20x160x16xbf16> to vector<16x160x16xbf16>
    "tpu.trace_start"() <{level = 10 : i32, message = "eck,ekw->ecw"}> : () -> ()
    %cst_22 = arith.constant dense<0.000000e+00> : vector<16x1x16xf32>
    %93 = tpu.matmul %91, %92, %cst_22 {dimension_numbers = #tpu.dot_dimension_numbers<[2], [1], [1], [2], [0, 0, 0, 1, 1, 2], [0], [0]>} : vector<16x1x160xbf16>, vector<16x160x16xbf16>, vector<16x1x16xf32> -> vector<16x1x16xf32>
    "tpu.trace_stop"() : () -> ()
    %94 = arith.addf %88, %93 : vector<16x1x16xf32>
    %c2 = arith.constant 2 : index
    %c0_23 = arith.constant 0 : index
    %95 = vector.load %arg7[%c2, %c0_23] : memref<5x160xbf16, #tpu.memory_space<vmem>>, vector<1x160xbf16>
    %96 = vector.shape_cast %95 : vector<1x160xbf16> to vector<1x1x160xbf16>
    %97 = vector.broadcast %96 : vector<1x1x160xbf16> to vector<16x1x160xbf16>
    %98 = vector.extract_strided_slice %81 {offsets = [2, 0, 0], sizes = [16, 160, 16], strides = [1, 1, 1]} : vector<20x160x16xbf16> to vector<16x160x16xbf16>
    "tpu.trace_start"() <{level = 10 : i32, message = "eck,ekw->ecw"}> : () -> ()
    %cst_24 = arith.constant dense<0.000000e+00> : vector<16x1x16xf32>
    %99 = tpu.matmul %97, %98, %cst_24 {dimension_numbers = #tpu.dot_dimension_numbers<[2], [1], [1], [2], [0, 0, 0, 1, 1, 2], [0], [0]>} : vector<16x1x160xbf16>, vector<16x160x16xbf16>, vector<16x1x16xf32> -> vector<16x1x16xf32>
    "tpu.trace_stop"() : () -> ()
    %100 = arith.addf %94, %99 : vector<16x1x16xf32>
    %c3 = arith.constant 3 : index
    %c0_25 = arith.constant 0 : index
    %101 = vector.load %arg7[%c3, %c0_25] : memref<5x160xbf16, #tpu.memory_space<vmem>>, vector<1x160xbf16>
    %102 = vector.shape_cast %101 : vector<1x160xbf16> to vector<1x1x160xbf16>
    %103 = vector.broadcast %102 : vector<1x1x160xbf16> to vector<16x1x160xbf16>
    %104 = vector.extract_strided_slice %81 {offsets = [3, 0, 0], sizes = [16, 160, 16], strides = [1, 1, 1]} : vector<20x160x16xbf16> to vector<16x160x16xbf16>
    "tpu.trace_start"() <{level = 10 : i32, message = "eck,ekw->ecw"}> : () -> ()
    %cst_26 = arith.constant dense<0.000000e+00> : vector<16x1x16xf32>
    %105 = tpu.matmul %103, %104, %cst_26 {dimension_numbers = #tpu.dot_dimension_numbers<[2], [1], [1], [2], [0, 0, 0, 1, 1, 2], [0], [0]>} : vector<16x1x160xbf16>, vector<16x160x16xbf16>, vector<16x1x16xf32> -> vector<16x1x16xf32>
    "tpu.trace_stop"() : () -> ()
    %106 = arith.addf %100, %105 : vector<16x1x16xf32>
    %c4 = arith.constant 4 : index
    %c0_27 = arith.constant 0 : index
    %107 = vector.load %arg7[%c4, %c0_27] : memref<5x160xbf16, #tpu.memory_space<vmem>>, vector<1x160xbf16>
    %108 = vector.shape_cast %107 : vector<1x160xbf16> to vector<1x1x160xbf16>
    %109 = vector.broadcast %108 : vector<1x1x160xbf16> to vector<16x1x160xbf16>
    %110 = vector.extract_strided_slice %81 {offsets = [4, 0, 0], sizes = [16, 160, 16], strides = [1, 1, 1]} : vector<20x160x16xbf16> to vector<16x160x16xbf16>
    "tpu.trace_start"() <{level = 10 : i32, message = "eck,ekw->ecw"}> : () -> ()
    %cst_28 = arith.constant dense<0.000000e+00> : vector<16x1x16xf32>
    %111 = tpu.matmul %109, %110, %cst_28 {dimension_numbers = #tpu.dot_dimension_numbers<[2], [1], [1], [2], [0, 0, 0, 1, 1, 2], [0], [0]>} : vector<16x1x160xbf16>, vector<16x160x16xbf16>, vector<16x1x16xf32> -> vector<16x1x16xf32>
    "tpu.trace_stop"() : () -> ()
    %112 = arith.addf %106, %111 : vector<16x1x16xf32>
    %113 = vector.shape_cast %112 : vector<16x1x16xf32> to vector<16x16xf32>
    %c0_29 = arith.constant 0 : index
    %c0_30 = arith.constant 0 : index
    %114 = vector.load %arg8[%c0_29, %c0_30] : memref<1x1xf32, #tpu.memory_space<vmem>>, vector<1x1xf32>
    %115 = vector.extract %114[0, 0] : f32 from vector<1x1xf32>
    %116 = vector.broadcast %115 : f32 to vector<16x16xf32>
    %117 = arith.addf %113, %116 : vector<16x16xf32>
    %c0_31 = arith.constant 0 : index
    %c0_32 = arith.constant 0 : index
    %c0_33 = arith.constant 0 : index
    %c0_34 = arith.constant 0 : index
    %118 = vector.load %arg9[%c0_31, %c0_32, %c0_33, %c0_34] : memref<1x1x16x16xf32, #tpu.memory_space<vmem>>, vector<1x1x16x16xf32>
    %119 = vector.shape_cast %118 : vector<1x1x16x16xf32> to vector<16x16xf32>
    %120 = vector.shape_cast %117 : vector<16x16xf32> to vector<1x1x16x16xf32>
    tpu.vector_store %arg9[%c0_31, %c0_32, %c0_33, %c0_34], %120 {strides = array<i32>} : memref<1x1x16x16xf32, #tpu.memory_space<vmem>>, vector<1x1x16x16xf32>,
    return
  }
  func.func @transform_0(%arg0: i32, %arg1: i32) -> (i32, i32, i32, i32) {
    %c0_i32 = arith.constant 0 : i32
    %c0_i32_0 = arith.constant 0 : i32
    %c0_i32_1 = arith.constant 0 : i32
    return %arg0, %arg1, %c0_i32, %c0_i32_0 : i32, i32, i32, i32
  }
  func.func @transform_1(%arg0: i32, %arg1: i32) -> (i32, i32) {
    %c0_i32 = arith.constant 0 : i32
    %c0_i32_0 = arith.constant 0 : i32
    %c0_i32_1 = arith.constant 0 : i32
    return %c0_i32, %c0_i32_0 : i32, i32
  }
  func.func @transform_2(%arg0: i32, %arg1: i32) -> (i32, i32) {
    %c0_i32 = arith.constant 0 : i32
    %c0_i32_0 = arith.constant 0 : i32
    %c0_i32_1 = arith.constant 0 : i32
    return %c0_i32, %c0_i32_0 : i32, i32
  }
  func.func @transform_3(%arg0: i32, %arg1: i32) -> (i32, i32) {
    %c0_i32 = arith.constant 0 : i32
    %c0_i32_0 = arith.constant 0 : i32
    %c0_i32_1 = arith.constant 0 : i32
    return %c0_i32, %c0_i32_0 : i32, i32
  }
  func.func @transform_4(%arg0: i32, %arg1: i32) -> (i32, i32) {
    %c0_i32 = arith.constant 0 : i32
    %c0_i32_0 = arith.constant 0 : i32
    %c0_i32_1 = arith.constant 0 : i32
    return %c0_i32, %c0_i32_0 : i32, i32
  }
  func.func @transform_5(%arg0: i32, %arg1: i32) -> (i32, i32) {
    %c0_i32 = arith.constant 0 : i32
    %c0_i32_0 = arith.constant 0 : i32
    %c0_i32_1 = arith.constant 0 : i32
    return %c0_i32, %c0_i32_0 : i32, i32
  }
  func.func @transform_6(%arg0: i32, %arg1: i32) -> (i32, i32) {
    %c0_i32 = arith.constant 0 : i32
    %c0_i32_0 = arith.constant 0 : i32
    %c0_i32_1 = arith.constant 0 : i32
    return %c0_i32, %c0_i32_0 : i32, i32
  }
  func.func @transform_7(%arg0: i32, %arg1: i32) -> (i32, i32, i32, i32) {
    %c0_i32 = arith.constant 0 : i32
    %c0_i32_0 = arith.constant 0 : i32
    %c0_i32_1 = arith.constant 0 : i32
    return %arg0, %c0_i32, %arg1, %c0_i32_0 : i32, i32, i32, i32
  }
}

</mosaic_0001>

<llo_original>
// kernel: srcnn_forward.1
$region0: #{srcnn_forward.1}
  #allocation0 [shape = 'u32[]', space=smem, size = 0x4, offset = 0x4, fixed_abs, tag = 'smem constant byte address 0x4 - core index']
  #allocation1 [shape = 'u32[144,128]{1,0:T(1,128)}', space=vmem, size = 0x12000, scoped, tag = 'internal scratch']
  #allocation2 [shape = 'f32[1,1]{1,0:T(1,128)S(1)}', space=vmem, size = 0x200, scoped, tag = 'scoped memory for srcnn_forward.1']
  %s0 = inlined_call_operand.vmem [shape: bf16[2,1,28,28], index: 0, kind: input, shape index: {}]
  %s1 = inlined_call_operand.vmem [shape: bf16[64,81], index: 1, kind: input, shape index: {}]
  %s2 = inlined_call_operand.vmem [shape: f32[64,1], index: 2, kind: input, shape index: {}]
  %s3 = inlined_call_operand.vmem [shape: bf16[32,64], index: 3, kind: input, shape index: {}]
  %s4 = inlined_call_operand.vmem [shape: f32[32,1], index: 4, kind: input, shape index: {}]
  %s5 = inlined_call_operand.vmem [shape: bf16[5,160], index: 5, kind: input, shape index: {}]
  %s6 = inlined_call_operand.<no memory space> [shape: f32[1,1], index: 6, kind: input, shape index: {}]
  %s7 = inlined_call_operand.hbm [shape: f32[2,1,16,16], index: 7, kind: output, shape index: {}]
  %s8 = sld [smem:[#allocation0]]
  $region61: #{srcnn_forward.1} parent=0
    _
  %s10 = ssub.s32 1, %s8
  %s11 = scalar_select 0, %s10, %s8
  %v12 = vstv %s6
  %13 = vst [vmem:[#allocation2] sm:$0x1] %v12
  $region1: #{srcnn_forward.1} parent=0
    #allocation3 [shape = 'u8[16384]{0}', space=vmem, size = 0x4000, scoped, tag = 'output window, operand 0']
    #allocation4 [shape = 's32[2]{0}', space=sflag, size = 0x8, scoped, tag = 'scoped memory for srcnn_forward.1']
    %14 = vsyncpa [#allocation4], 0
    %s15 = scalar_lea.sflag [#allocation4], 1
    %16 = vsyncpa %s15, 0
    loop: start=0, step=1, limit=4
    $region2: #{srcnn_forward.1} parent=1 // loop_pre_header
      _
    $region3: #{srcnn_forward.1} parent=1 // loop_header
      %s18 = sphi 0, %s22
      %p19 = scmp.ge.s32.totalorder %s18, 4
      %s25 = sphi 0, %s37
      %s26 = sphi 0, %s33
      %s27 = sphi 0, %s25
      %s28 = sphi 0, %s26
      %s29 = sphi 0, %s27
      %s30 = sphi 0, %s28
      %s42 = sphi 0, %s44
      %s45 = sphi 0, %s42
      %s46 = sphi 0, %s45
      %s62 = sphi 0, %s46
      %s66 = sphi 0, %s66
      %s68 = sphi 0, %s66
      %s69 = sphi 0, %s68
      %s83 = sphi 0, %s69
      %s87 = sphi 0, %s87
      %s89 = sphi 0, %s87
      %s90 = sphi 0, %s89
      %s104 = sphi 0, %s90
      %s108 = sphi 0, %s108
      %s110 = sphi 0, %s108
      %s111 = sphi 0, %s110
      %s125 = sphi 0, %s111
      %s129 = sphi 0, %s129
      %s131 = sphi 0, %s129
      %s132 = sphi 0, %s131
      %s146 = sphi 0, %s132
      %s150 = sphi 0, %s150
      %s152 = sphi 0, %s150
      %s153 = sphi 0, %s152
      %s167 = sphi 0, %s153
      %s171 = sphi 0, %s171
      %s173 = sphi 0, %s171
      %s174 = sphi 0, %s173
      %s188 = sphi 0, %s174
      %s196 = sphi 0, %s198
      %s199 = sphi 0, %s196
      %s200 = sphi 0, %s199
      %s216 = sphi 0, %s200
    $region4: #{srcnn_forward.1} parent=1 // loop_header_branch
      %21 = sbr.rel (%p19) target = $region8
    $region5: #{srcnn_forward.1} parent=1 // loop_body
      %s23 = ssub.s32 %s18, 1
      %s24 = ssub.s32 %s18, 2
      %s31 = sadd.s32 1, %s26
      %p32 = scmp.ge.s32.totalorder %s31, 1
      %s33 = scalar_select %p32, 0, %s31
      %s34 = sadd.s32 1, %s25
      %s35 = scalar_select %p32, %s34, %s25
      %p36 = scmp.ge.s32.totalorder %s35, 2
      %s37 = scalar_select %p36, 0, %s35
      %s38 = ssub.s32 %s25, %s37
      %s39 = ssub.s32 %s26, %s33
      %s40 = sor.u32 %s38, %s39
      %p41 = scmp.eq.s32.totalorder %s40, 0
      %s43 = sadd.s32 %s42, 1
      %s44 = scalar_select %p41, %s42, %s43
      %p47 = pneg %p41
      %p48 = scmp.eq.s32.totalorder %s18, 1
      %p49 = por %p47, %p48
      %p50 = scmp.ne.s32.totalorder %s42, %s45
      %p51 = scmp.eq.s32.totalorder %s18, 0
      %p52 = por %p50, %p51
      %p53 = scmp.ne.s32.totalorder %s42, %s45
      %p54 = scmp.eq.s32.totalorder %s23, 1
      %p55 = por %p53, %p54
      %p56 = scmp.ne.s32.totalorder %s45, %s46
      %p57 = scmp.eq.s32.totalorder %s23, 0
      %p58 = por %p56, %p57
      %p59 = scmp.ne.s32.totalorder %s45, %s46
      %p60 = scmp.eq.s32.totalorder %s24, 1
      %p61 = por %p59, %p60
      %p63 = scmp.ne.s32.totalorder %s46, %s62
      %p64 = scmp.eq.s32.totalorder %s24, 0
      %p65 = por %p63, %p64
      %s67 = sadd.s32 %s66, 1
      %p70 = scmp.eq.s32.totalorder %s18, 1
      %p71 = scmp.ne.s32.totalorder %s66, %s68
      %p72 = scmp.eq.s32.totalorder %s18, 0
      %p73 = por %p71, %p72
      %p74 = scmp.ne.s32.totalorder %s66, %s68
      %p75 = scmp.eq.s32.totalorder %s23, 1
      %p76 = por %p74, %p75
      %p77 = scmp.ne.s32.totalorder %s68, %s69
      %p78 = scmp.eq.s32.totalorder %s23, 0
      %p79 = por %p77, %p78
      %p80 = scmp.ne.s32.totalorder %s68, %s69
      %p81 = scmp.eq.s32.totalorder %s24, 1
      %p82 = por %p80, %p81
      %p84 = scmp.ne.s32.totalorder %s69, %s83
      %p85 = scmp.eq.s32.totalorder %s24, 0
      %p86 = por %p84, %p85
      %s88 = sadd.s32 %s87, 1
      %p91 = scmp.eq.s32.totalorder %s18, 1
      %p92 = scmp.ne.s32.totalorder %s87, %s89
      %p93 = scmp.eq.s32.totalorder %s18, 0
      %p94 = por %p92, %p93
      %p95 = scmp.ne.s32.totalorder %s87, %s89
      %p96 = scmp.eq.s32.totalorder %s23, 1
      %p97 = por %p95, %p96
      %p98 = scmp.ne.s32.totalorder %s89, %s90
      %p99 = scmp.eq.s32.totalorder %s23, 0
      %p100 = por %p98, %p99
      %p101 = scmp.ne.s32.totalorder %s89, %s90
      %p102 = scmp.eq.s32.totalorder %s24, 1
      %p103 = por %p101, %p102
      %p105 = scmp.ne.s32.totalorder %s90, %s104
      %p106 = scmp.eq.s32.totalorder %s24, 0
      %p107 = por %p105, %p106
      %s109 = sadd.s32 %s108, 1
      %p112 = scmp.eq.s32.totalorder %s18, 1
      %p113 = scmp.ne.s32.totalorder %s108, %s110
      %p114 = scmp.eq.s32.totalorder %s18, 0
      %p115 = por %p113, %p114
      %p116 = scmp.ne.s32.totalorder %s108, %s110
      %p117 = scmp.eq.s32.totalorder %s23, 1
      %p118 = por %p116, %p117
      %p119 = scmp.ne.s32.totalorder %s110, %s111
      %p120 = scmp.eq.s32.totalorder %s23, 0
      %p121 = por %p119, %p120
      %p122 = scmp.ne.s32.totalorder %s110, %s111
      %p123 = scmp.eq.s32.totalorder %s24, 1
      %p124 = por %p122, %p123
      %p126 = scmp.ne.s32.totalorder %s111, %s125
      %p127 = scmp.eq.s32.totalorder %s24, 0
      %p128 = por %p126, %p127
      %s130 = sadd.s32 %s129, 1
      %p133 = scmp.eq.s32.totalorder %s18, 1
      %p134 = scmp.ne.s32.totalorder %s129, %s131
      %p135 = scmp.eq.s32.totalorder %s18, 0
      %p136 = por %p134, %p135
      %p137 = scmp.ne.s32.totalorder %s129, %s131
      %p138 = scmp.eq.s32.totalorder %s23, 1
      %p139 = por %p137, %p138
      %p140 = scmp.ne.s32.totalorder %s131, %s132
      %p141 = scmp.eq.s32.totalorder %s23, 0
      %p142 = por %p140, %p141
      %p143 = scmp.ne.s32.totalorder %s131, %s132
      %p144 = scmp.eq.s32.totalorder %s24, 1
      %p145 = por %p143, %p144
      %p147 = scmp.ne.s32.totalorder %s132, %s146
      %p148 = scmp.eq.s32.totalorder %s24, 0
      %p149 = por %p147, %p148
      %s151 = sadd.s32 %s150, 1
      %p154 = scmp.eq.s32.totalorder %s18, 1
      %p155 = scmp.ne.s32.totalorder %s150, %s152
      %p156 = scmp.eq.s32.totalorder %s18, 0
      %p157 = por %p155, %p156
      %p158 = scmp.ne.s32.totalorder %s150, %s152
      %p159 = scmp.eq.s32.totalorder %s23, 1
      %p160 = por %p158, %p159
      %p161 = scmp.ne.s32.totalorder %s152, %s153
      %p162 = scmp.eq.s32.totalorder %s23, 0
      %p163 = por %p161, %p162
      %p164 = scmp.ne.s32.totalorder %s152, %s153
      %p165 = scmp.eq.s32.totalorder %s24, 1
      %p166 = por %p164, %p165
      %p168 = scmp.ne.s32.totalorder %s153, %s167
      %p169 = scmp.eq.s32.totalorder %s24, 0
      %p170 = por %p168, %p169
      %s172 = sadd.s32 %s171, 1
      %p175 = scmp.eq.s32.totalorder %s18, 1
      %p176 = scmp.ne.s32.totalorder %s171, %s173
      %p177 = scmp.eq.s32.totalorder %s18, 0
      %p178 = por %p176, %p177
      %p179 = scmp.ne.s32.totalorder %s171, %s173
      %p180 = scmp.eq.s32.totalorder %s23, 1
      %p181 = por %p179, %p180
      %p182 = scmp.ne.s32.totalorder %s173, %s174
      %p183 = scmp.eq.s32.totalorder %s23, 0
      %p184 = por %p182, %p183
      %p185 = scmp.ne.s32.totalorder %s173, %s174
      %p186 = scmp.eq.s32.totalorder %s24, 1
      %p187 = por %p185, %p186
      %p189 = scmp.ne.s32.totalorder %s174, %s188
      %p190 = scmp.eq.s32.totalorder %s24, 0
      %p191 = por %p189, %p190
      %s192 = ssub.s32 %s25, %s37
      %s193 = ssub.s32 %s26, %s33
      %s194 = sor.u32 %s192, %s193
      %p195 = scmp.eq.s32.totalorder %s194, 0
      %s197 = sadd.s32 %s196, 1
      %s198 = scalar_select %p195, %s196, %s197
      %p201 = pneg %p195
      %p202 = scmp.eq.s32.totalorder %s18, 1
      %p203 = por %p201, %p202
      %p204 = scmp.ne.s32.totalorder %s196, %s199
      %p205 = scmp.eq.s32.totalorder %s18, 0
      %p206 = por %p204, %p205
      %p207 = scmp.ne.s32.totalorder %s196, %s199
      %p208 = scmp.eq.s32.totalorder %s23, 1
      %p209 = por %p207, %p208
      %p210 = scmp.ne.s32.totalorder %s199, %s200
      %p211 = scmp.eq.s32.totalorder %s23, 0
      %p212 = por %p210, %p211
      %p213 = scmp.ne.s32.totalorder %s199, %s200
      %p214 = scmp.eq.s32.totalorder %s24, 1
      %p215 = por %p213, %p214
      %p217 = scmp.ne.s32.totalorder %s200, %s216
      %p218 = scmp.eq.s32.totalorder %s24, 0
      %p219 = por %p217, %p218
      %p220 = scmp.le.s32.totalorder 1, %s18
      %p221 = scmp.lt.s32.totalorder %s18, 3
      %p222 = pnand %p220, %p221
      %p223 = pneg %p222
      // Predicated region
      $region9: #{srcnn_forward.1} parent=5 // pred_check
        _
      $region10: #{srcnn_forward.1} parent=5 // pred_check_branch
        %225 = sbr.rel (%p222) target = $region12
      $region11: #{srcnn_forward.1} parent=5 // pred_region
        %s226 = ssub.s32 %s18, 1
        // Predicated region
        $region13: #{srcnn_forward.1} parent=11 // pred_check
          %p227 = pneg %p79
        $region14: #{srcnn_forward.1} parent=11 // pred_check_branch
          %229 = sbr.rel (%p227) target = $region16
        $region15: #{srcnn_forward.1} parent=11 // pred_region
          _
        $region16: #{srcnn_forward.1} parent=11 // pred_fallthru
          _
        // Predicated region
        $region17: #{srcnn_forward.1} parent=11 // pred_check
          %p230 = pneg %p100
        $region18: #{srcnn_forward.1} parent=11 // pred_check_branch
          %232 = sbr.rel (%p230) target = $region20
        $region19: #{srcnn_forward.1} parent=11 // pred_region
          _
        $region20: #{srcnn_forward.1} parent=11 // pred_fallthru
          _
        // Predicated region
        $region21: #{srcnn_forward.1} parent=11 // pred_check
          %p233 = pneg %p121
        $region22: #{srcnn_forward.1} parent=11 // pred_check_branch
          %235 = sbr.rel (%p233) target = $region24
        $region23: #{srcnn_forward.1} parent=11 // pred_region
          _
        $region24: #{srcnn_forward.1} parent=11 // pred_fallthru
          _
        // Predicated region
        $region25: #{srcnn_forward.1} parent=11 // pred_check
          %p236 = pneg %p142
        $region26: #{srcnn_forward.1} parent=11 // pred_check_branch
          %238 = sbr.rel (%p236) target = $region28
        $region27: #{srcnn_forward.1} parent=11 // pred_region
          _
        $region28: #{srcnn_forward.1} parent=11 // pred_fallthru
          _
        // Predicated region
        $region29: #{srcnn_forward.1} parent=11 // pred_check
          %p239 = pneg %p163
        $region30: #{srcnn_forward.1} parent=11 // pred_check_branch
          %241 = sbr.rel (%p239) target = $region32
        $region31: #{srcnn_forward.1} parent=11 // pred_region
          _
        $region32: #{srcnn_forward.1} parent=11 // pred_fallthru
          _
        // Predicated region
        $region33: #{srcnn_forward.1} parent=11 // pred_check
          %p242 = pneg %p184
        $region34: #{srcnn_forward.1} parent=11 // pred_check_branch
          %244 = sbr.rel (%p242) target = $region36
        $region35: #{srcnn_forward.1} parent=11 // pred_region
          _
        $region36: #{srcnn_forward.1} parent=11 // pred_fallthru
          _
      $region12: #{srcnn_forward.1} parent=5 // pred_fallthru
        _
      %p245 = scmp.lt.s32.totalorder %s18, 2
      // Predicated region
      $region37: #{srcnn_forward.1} parent=5 // pred_check
        %p246 = pneg %p245
      $region38: #{srcnn_forward.1} parent=5 // pred_check_branch
        %248 = sbr.rel (%p246) target = $region40
      $region39: #{srcnn_forward.1} parent=5 // pred_region
        // Predicated region
        $region41: #{srcnn_forward.1} parent=39 // pred_check
          %p249 = pneg %p52
        $region42: #{srcnn_forward.1} parent=39 // pred_check_branch
          %251 = sbr.rel (%p249) target = $region44
        $region43: #{srcnn_forward.1} parent=39 // pred_region
          %p252 = scmp.lt.s32.totalorder %s25, 1
          %s253 = scalar_select %p252, %s25, 1
          %p254 = scmp.lt.s32.totalorder %s26, 0
          %s255 = scalar_select %p254, %s26, 0
          %s256 = smul.addr %s255, 4
          %s257 = smul.addr %s253, 4
          %s258 = sadd.s32 %s256, %s257
          %s259 = smul.addr %s258, 4
          %s260 = scalar_lea.vmem %s0, %s259
        $region44: #{srcnn_forward.1} parent=39 // pred_fallthru
          _
      $region40: #{srcnn_forward.1} parent=5 // pred_fallthru
        _
      %p261 = scmp.le.s32.totalorder 1, %s18
      %p262 = scmp.lt.s32.totalorder %s18, 3
      %p263 = pnand %p261, %p262
      %p264 = pneg %p263
      // Predicated region
      $region45: #{srcnn_forward.1} parent=5 // pred_check
        _
      $region46: #{srcnn_forward.1} parent=5 // pred_check_branch
        %266 = sbr.rel (%p263) target = $region48
      $region47: #{srcnn_forward.1} parent=5 // pred_region
        %s267 = ssub.s32 %s18, 1
        %p268 = scmp.lt.s32.totalorder %s27, 1
        %s269 = scalar_select %p268, %s27, 1
        %p270 = scmp.lt.s32.totalorder %s28, 0
        %s271 = scalar_select %p270, %s28, 0
        %s272 = smul.addr %s271, 4
        %s273 = smul.addr %s269, 4
        %s274 = sadd.s32 %s272, %s273
        %s275 = smul.addr %s274, 4
        %s276 = scalar_lea.vmem %s0, %s275
        %p277 = pneg %p58
        %p278 = pneg %p55
        %p279 = pneg %p79
        %p280 = pneg %p76
        %p281 = pneg %p100
        %p282 = pneg %p97
        %p283 = pneg %p121
        %p284 = pneg %p118
        %p285 = pneg %p142
        %p286 = pneg %p139
        %p287 = pneg %p163
        %p288 = pneg %p160
        %p289 = pneg %p184
        %p290 = pneg %p181
        %p291 = pneg %p212
        %p292 = pneg %p209
        %s293 = sand.u32 %s199, 1
        %s294 = scalar_lea.sflag [#allocation4], %s293
        %s295 = sand.u32 %s199, 1
        %s296 = smul.addr %s295, 16
        %s297 = scalar_lea.vmem [#allocation3], %s296
        %p298 = scmp.lt.s32.totalorder %s27, 1
        %s299 = scalar_select %p298, %s27, 1
        %p300 = scmp.lt.s32.totalorder %s28, 0
        %s301 = scalar_select %p300, %s28, 0
        %s302 = smul.addr %s301, 4
        %s303 = smul.addr %s299, 4
        %s304 = sadd.s32 %s302, %s303
        %s305 = smul.addr %s304, 4
        %s306 = scalar_lea.vmem %s0, %s305
        %s307 = smul.u32 2, %s28
        %s309 = smul.u32 %s28, 16
        %v310 = vld [vmem:[%s306] sm:$0xf]
        %v311 = vld [vmem:[%s306 + $0x4] sm:$0xf]
        %v312 = vld [vmem:[%s306 + $0x8] sm:$0xf]
        %v313 = vld [vmem:[%s306 + $0xc] sm:$0x3]
        %v319 = vunpack.c.l.s4 1966171168
        %v320 = vunpack.c.0.s8 %v319
        %v321 = vlaneseq
        %v322 = vshrl.u32 %v321, 7
        %v323 = vsub.s32 %v320, %v322
        %v324 = vrot.slane %v310, %v323
        %v325 = vcombine.high %v324, %v324
        %v327 = vunpack.c.l.s4 1966171168
        %v328 = vunpack.c.0.s8 %v327
        %v329 = vlaneseq
        %v330 = vshrl.u32 %v329, 7
        %v331 = vsub.s32 %v328, %v330
        %v332 = vrot.slane %v324, %v331
        %v334 = vunpack.c.l.s4 1966171168
        %v335 = vunpack.c.0.s8 %v334
        %v336 = vlaneseq
        %v337 = vshrl.u32 %v336, 7
        %v338 = vsub.s32 %v335, %v337
        %v339 = vrot.slane %v325, %v338
        %v340 = vcombine.high %v332, %v332
        %v341 = vcombine.high %v339, %v339
        %v343 = vunpack.c.l.s4 1966171168
        %v344 = vunpack.c.0.s8 %v343
        %v345 = vlaneseq
        %v346 = vshrl.u32 %v345, 7
        %v347 = vsub.s32 %v344, %v346
        %v348 = vrot.slane %v311, %v347
        %v349 = vcombine.high %v348, %v348
        %v351 = vunpack.c.l.s4 1966171168
        %v352 = vunpack.c.0.s8 %v351
        %v353 = vlaneseq
        %v354 = vshrl.u32 %v353, 7
        %v355 = vsub.s32 %v352, %v354
        %v356 = vrot.slane %v348, %v355
        %v358 = vunpack.c.l.s4 1966171168
        %v359 = vunpack.c.0.s8 %v358
        %v360 = vlaneseq
        %v361 = vshrl.u32 %v360, 7
        %v362 = vsub.s32 %v359, %v361
        %v363 = vrot.slane %v349, %v362
        %v364 = vcombine.high %v356, %v356
        %v365 = vcombine.high %v363, %v363
        %v367 = vunpack.c.l.s4 1966171168
        %v368 = vunpack.c.0.s8 %v367
        %v369 = vlaneseq
        %v370 = vshrl.u32 %v369, 7
        %v371 = vsub.s32 %v368, %v370
        %v372 = vrot.slane %v312, %v371
        %v373 = vcombine.high %v372, %v372
        %v375 = vunpack.c.l.s4 1966171168
        %v376 = vunpack.c.0.s8 %v375
        %v377 = vlaneseq
        %v378 = vshrl.u32 %v377, 7
        %v379 = vsub.s32 %v376, %v378
        %v380 = vrot.slane %v372, %v379
        %v382 = vunpack.c.l.s4 1966171168
        %v383 = vunpack.c.0.s8 %v382
        %v384 = vlaneseq
        %v385 = vshrl.u32 %v384, 7
        %v386 = vsub.s32 %v383, %v385
        %v387 = vrot.slane %v373, %v386
        %v388 = vcombine.high %v380, %v380
        %v389 = vcombine.high %v387, %v387
        %v391 = vunpack.c.l.s4 1966171168
        %v392 = vunpack.c.0.s8 %v391
        %v393 = vlaneseq
        %v394 = vshrl.u32 %v393, 7
        %v395 = vsub.s32 %v392, %v394
        %v396 = vrot.slane %v313, %v395
        %v397 = vcombine.high %v396, %v396
        %v399 = vunpack.c.l.s4 1966171168
        %v400 = vunpack.c.0.s8 %v399
        %v401 = vlaneseq
        %v402 = vshrl.u32 %v401, 7
        %v403 = vsub.s32 %v400, %v402
        %v404 = vrot.slane %v396, %v403
        %v406 = vunpack.c.l.s4 1966171168
        %v407 = vunpack.c.0.s8 %v406
        %v408 = vlaneseq
        %v409 = vshrl.u32 %v408, 7
        %v410 = vsub.s32 %v407, %v409
        %v411 = vrot.slane %v397, %v410
        %v412 = vunpack.i.l.s16 %v332
        %v413 = vunpack.i.h.s16 %v332
        %v414 = vunpack.i.l.s16 %v339
        %v415 = vunpack.i.h.s16 %v339
        %v416 = vunpack.i.l.s16 %v340
        %v417 = vunpack.i.h.s16 %v340
        %v418 = vunpack.i.l.s16 %v341
        %v419 = vunpack.i.h.s16 %v341
        %v420 = vunpack.i.l.s16 %v356
        %v421 = vunpack.i.h.s16 %v356
        %v422 = vunpack.i.l.s16 %v363
        %v423 = vunpack.i.h.s16 %v363
        %v424 = vunpack.i.l.s16 %v364
        %v425 = vunpack.i.h.s16 %v364
        %v426 = vunpack.i.l.s16 %v365
        %v427 = vunpack.i.h.s16 %v365
        %v428 = vunpack.i.l.s16 %v380
        %v429 = vunpack.i.h.s16 %v380
        %v430 = vunpack.i.l.s16 %v387
        %v431 = vunpack.i.h.s16 %v387
        %v432 = vunpack.i.l.s16 %v388
        %v433 = vunpack.i.h.s16 %v388
        %v434 = vunpack.i.l.s16 %v389
        %v435 = vunpack.i.h.s16 %v389
        %v436 = vunpack.i.l.s16 %v404
        %v437 = vunpack.i.h.s16 %v404
        %v438 = vunpack.i.l.s16 %v411
        %v439 = vunpack.i.h.s16 %v411
        %v440 = vpack.i.b16 %v412, %v412
        %v441 = vpack.i.b16 %v413, %v413
        %v442 = vpack.i.b16 %v414, %v414
        %v443 = vpack.i.b16 %v415, %v415
        %v444 = vpack.i.b16 %v416, %v416
        %v445 = vpack.i.b16 %v417, %v417
        %v446 = vpack.i.b16 %v418, %v418
        %v447 = vpack.i.b16 %v419, %v419
        %v448 = vpack.i.b16 %v420, %v420
        %v449 = vpack.i.b16 %v421, %v421
        %v450 = vpack.i.b16 %v422, %v422
        %v451 = vpack.i.b16 %v423, %v423
        %v452 = vpack.i.b16 %v424, %v424
        %v453 = vpack.i.b16 %v425, %v425
        %v454 = vpack.i.b16 %v426, %v426
        %v455 = vpack.i.b16 %v427, %v427
        %v456 = vpack.i.b16 %v428, %v428
        %v457 = vpack.i.b16 %v429, %v429
        %v458 = vpack.i.b16 %v430, %v430
        %v459 = vpack.i.b16 %v431, %v431
        %v460 = vpack.i.b16 %v432, %v432
        %v461 = vpack.i.b16 %v433, %v433
        %v462 = vpack.i.b16 %v434, %v434
        %v463 = vpack.i.b16 %v435, %v435
        %v464 = vpack.i.b16 %v436, %v436
        %v465 = vpack.i.b16 %v437, %v437
        %v466 = vpack.i.b16 %v438, %v438
        %v467 = vpack.i.b16 %v439, %v439
        %v468 = vlaneseq
        %v469 = vshrl.u32 %v468, 7
        %v470 = vsub.s32 0, %v469
        %v471 = vrot.slane %v440, %v470
        %v472 = vlaneseq
        %v473 = vshrl.u32 %v472, 7
        %v474 = vsub.s32 0, %v473
        %v475 = vrot.slane %v441, %v474
        %v476 = vlaneseq
        %v477 = vshrl.u32 %v476, 7
        %v478 = vsub.s32 0, %v477
        %v479 = vrot.slane %v442, %v478
        %v480 = vlaneseq
        %v481 = vshrl.u32 %v480, 7
        %v482 = vsub.s32 0, %v481
        %v483 = vrot.slane %v443, %v482
        %v484 = vlaneseq
        %v485 = vshrl.u32 %v484, 7
        %v486 = vsub.s32 0, %v485
        %v487 = vrot.slane %v444, %v486
        %v488 = vlaneseq
        %v489 = vshrl.u32 %v488, 7
        %v490 = vsub.s32 0, %v489
        %v491 = vrot.slane %v445, %v490
        %v492 = vlaneseq
        %v493 = vshrl.u32 %v492, 7
        %v494 = vsub.s32 0, %v493
        %v495 = vrot.slane %v446, %v494
        %v496 = vlaneseq
        %v497 = vshrl.u32 %v496, 7
        %v498 = vsub.s32 0, %v497
        %v499 = vrot.slane %v447, %v498
        %v500 = vlaneseq
        %v501 = vshrl.u32 %v500, 7
        %v502 = vsub.s32 0, %v501
        %v503 = vrot.slane %v448, %v502
        %v504 = vlaneseq
        %v505 = vshrl.u32 %v504, 7
        %v506 = vsub.s32 0, %v505
        %v507 = vrot.slane %v449, %v506
        %v508 = vlaneseq
        %v509 = vshrl.u32 %v508, 7
        %v510 = vsub.s32 0, %v509
        %v511 = vrot.slane %v450, %v510
        %v512 = vlaneseq
        %v513 = vshrl.u32 %v512, 7
        %v514 = vsub.s32 0, %v513
        %v515 = vrot.slane %v451, %v514
        %v516 = vlaneseq
        %v517 = vshrl.u32 %v516, 7
        %v518 = vsub.s32 0, %v517
        %v519 = vrot.slane %v452, %v518
        %v520 = vlaneseq
        %v521 = vshrl.u32 %v520, 7
        %v522 = vsub.s32 0, %v521
        %v523 = vrot.slane %v453, %v522
        %v524 = vlaneseq
        %v525 = vshrl.u32 %v524, 7
        %v526 = vsub.s32 0, %v525
        %v527 = vrot.slane %v454, %v526
        %v528 = vlaneseq
        %v529 = vshrl.u32 %v528, 7
        %v530 = vsub.s32 0, %v529
        %v531 = vrot.slane %v455, %v530
        %v532 = vlaneseq
        %v533 = vshrl.u32 %v532, 7
        %v534 = vsub.s32 0, %v533
        %v535 = vrot.slane %v456, %v534
        %v536 = vlaneseq
        %v537 = vshrl.u32 %v536, 7
        %v538 = vsub.s32 0, %v537
        %v539 = vrot.slane %v457, %v538
        %v540 = vlaneseq
        %v541 = vshrl.u32 %v540, 7
        %v542 = vsub.s32 0, %v541
        %v543 = vrot.slane %v458, %v542
        %v544 = vlaneseq
        %v545 = vshrl.u32 %v544, 7
        %v546 = vsub.s32 0, %v545
        %v547 = vrot.slane %v459, %v546
        %v548 = vlaneseq
        %v549 = vshrl.u32 %v548, 7
        %v550 = vsub.s32 0, %v549
        %v551 = vrot.slane %v460, %v550
        %v552 = vlaneseq
        %v553 = vshrl.u32 %v552, 7
        %v554 = vsub.s32 0, %v553
        %v555 = vrot.slane %v461, %v554
        %v556 = vlaneseq
        %v557 = vshrl.u32 %v556, 7
        %v558 = vsub.s32 0, %v557
        %v559 = vrot.slane %v462, %v558
        %v560 = vlaneseq
        %v561 = vshrl.u32 %v560, 7
        %v562 = vsub.s32 0, %v561
        %v563 = vrot.slane %v463, %v562
        %v564 = vlaneseq
        %v565 = vshrl.u32 %v564, 7
        %v566 = vsub.s32 0, %v565
        %v567 = vrot.slane %v464, %v566
        %v568 = vlaneseq
        %v569 = vshrl.u32 %v568, 7
        %v570 = vsub.s32 0, %v569
        %v571 = vrot.slane %v465, %v570
        %v572 = vlaneseq
        %v573 = vshrl.u32 %v572, 7
        %v574 = vsub.s32 0, %v573
        %v575 = vrot.slane %v466, %v574
        %v576 = vlaneseq
        %v577 = vshrl.u32 %v576, 7
        %v578 = vsub.s32 0, %v577
        %v579 = vrot.slane %v467, %v578
        %608 = vrot.lane.b32.xlu0 %v471, 127
        %v609 = vpop.permute.xlu0 %608
        %610 = vrot.lane.b32.xlu0 %v475, 127
        %v611 = vpop.permute.xlu0 %610
        %612 = vrot.lane.b32.xlu0 %v479, 127
        %v613 = vpop.permute.xlu0 %612
        %614 = vrot.lane.b32.xlu0 %v483, 127
        %v615 = vpop.permute.xlu0 %614
        %616 = vrot.lane.b32.xlu0 %v487, 127
        %v617 = vpop.permute.xlu0 %616
        %618 = vrot.lane.b32.xlu0 %v491, 127
        %v619 = vpop.permute.xlu0 %618
        %620 = vrot.lane.b32.xlu0 %v495, 127
        %v621 = vpop.permute.xlu0 %620
        %622 = vrot.lane.b32.xlu0 %v499, 127
        %v623 = vpop.permute.xlu0 %622
        %624 = vrot.lane.b32.xlu0 %v503, 127
        %v625 = vpop.permute.xlu0 %624
        %626 = vrot.lane.b32.xlu0 %v507, 127
        %v627 = vpop.permute.xlu0 %626
        %628 = vrot.lane.b32.xlu0 %v511, 127
        %v629 = vpop.permute.xlu0 %628
        %630 = vrot.lane.b32.xlu0 %v515, 127
        %v631 = vpop.permute.xlu0 %630
        %632 = vrot.lane.b32.xlu0 %v519, 127
        %v633 = vpop.permute.xlu0 %632
        %634 = vrot.lane.b32.xlu0 %v523, 127
        %v635 = vpop.permute.xlu0 %634
        %636 = vrot.lane.b32.xlu0 %v527, 127
        %v637 = vpop.permute.xlu0 %636
        %638 = vrot.lane.b32.xlu0 %v531, 127
        %v639 = vpop.permute.xlu0 %638
        %640 = vrot.lane.b32.xlu0 %v535, 127
        %v641 = vpop.permute.xlu0 %640
        %642 = vrot.lane.b32.xlu0 %v539, 127
        %v643 = vpop.permute.xlu0 %642
        %644 = vrot.lane.b32.xlu0 %v543, 127
        %v645 = vpop.permute.xlu0 %644
        %646 = vrot.lane.b32.xlu0 %v547, 127
        %v647 = vpop.permute.xlu0 %646
        %648 = vrot.lane.b32.xlu0 %v551, 127
        %v649 = vpop.permute.xlu0 %648
        %650 = vrot.lane.b32.xlu0 %v555, 127
        %v651 = vpop.permute.xlu0 %650
        %652 = vrot.lane.b32.xlu0 %v559, 127
        %v653 = vpop.permute.xlu0 %652
        %654 = vrot.lane.b32.xlu0 %v563, 127
        %v655 = vpop.permute.xlu0 %654
        %656 = vrot.lane.b32.xlu0 %v567, 127
        %v657 = vpop.permute.xlu0 %656
        %658 = vrot.lane.b32.xlu0 %v571, 127
        %v659 = vpop.permute.xlu0 %658
        %660 = vrot.lane.b32.xlu0 %v575, 127
        %v661 = vpop.permute.xlu0 %660
        %662 = vrot.lane.b32.xlu0 %v579, 127
        %v663 = vpop.permute.xlu0 %662
        %692 = vrot.lane.b32.xlu0 %v471, 126
        %v693 = vpop.permute.xlu0 %692
        %694 = vrot.lane.b32.xlu0 %v475, 126
        %v695 = vpop.permute.xlu0 %694
        %696 = vrot.lane.b32.xlu0 %v479, 126
        %v697 = vpop.permute.xlu0 %696
        %698 = vrot.lane.b32.xlu0 %v483, 126
        %v699 = vpop.permute.xlu0 %698
        %700 = vrot.lane.b32.xlu0 %v487, 126
        %v701 = vpop.permute.xlu0 %700
        %702 = vrot.lane.b32.xlu0 %v491, 126
        %v703 = vpop.permute.xlu0 %702
        %704 = vrot.lane.b32.xlu0 %v495, 126
        %v705 = vpop.permute.xlu0 %704
        %706 = vrot.lane.b32.xlu0 %v499, 126
        %v707 = vpop.permute.xlu0 %706
        %708 = vrot.lane.b32.xlu0 %v503, 126
        %v709 = vpop.permute.xlu0 %708
        %710 = vrot.lane.b32.xlu0 %v507, 126
        %v711 = vpop.permute.xlu0 %710
        %712 = vrot.lane.b32.xlu0 %v511, 126
        %v713 = vpop.permute.xlu0 %712
        %714 = vrot.lane.b32.xlu0 %v515, 126
        %v715 = vpop.permute.xlu0 %714
        %716 = vrot.lane.b32.xlu0 %v519, 126
        %v717 = vpop.permute.xlu0 %716
        %718 = vrot.lane.b32.xlu0 %v523, 126
        %v719 = vpop.permute.xlu0 %718
        %720 = vrot.lane.b32.xlu0 %v527, 126
        %v721 = vpop.permute.xlu0 %720
        %722 = vrot.lane.b32.xlu0 %v531, 126
        %v723 = vpop.permute.xlu0 %722
        %724 = vrot.lane.b32.xlu0 %v535, 126
        %v725 = vpop.permute.xlu0 %724
        %726 = vrot.lane.b32.xlu0 %v539, 126
        %v727 = vpop.permute.xlu0 %726
        %728 = vrot.lane.b32.xlu0 %v543, 126
        %v729 = vpop.permute.xlu0 %728
        %730 = vrot.lane.b32.xlu0 %v547, 126
        %v731 = vpop.permute.xlu0 %730
        %732 = vrot.lane.b32.xlu0 %v551, 126
        %v733 = vpop.permute.xlu0 %732
        %734 = vrot.lane.b32.xlu0 %v555, 126
        %v735 = vpop.permute.xlu0 %734
        %736 = vrot.lane.b32.xlu0 %v559, 126
        %v737 = vpop.permute.xlu0 %736
        %738 = vrot.lane.b32.xlu0 %v563, 126
        %v739 = vpop.permute.xlu0 %738
        %740 = vrot.lane.b32.xlu0 %v567, 126
        %v741 = vpop.permute.xlu0 %740
        %742 = vrot.lane.b32.xlu0 %v571, 126
        %v743 = vpop.permute.xlu0 %742
        %744 = vrot.lane.b32.xlu0 %v575, 126
        %v745 = vpop.permute.xlu0 %744
        %746 = vrot.lane.b32.xlu0 %v579, 126
        %v747 = vpop.permute.xlu0 %746
        %748 = vrot.lane.b32.xlu0 %v471, 125
        %v749 = vpop.permute.xlu0 %748
        %750 = vrot.lane.b32.xlu0 %v475, 125
        %v751 = vpop.permute.xlu0 %750
        %752 = vrot.lane.b32.xlu0 %v479, 125
        %v753 = vpop.permute.xlu0 %752
        %754 = vrot.lane.b32.xlu0 %v483, 125
        %v755 = vpop.permute.xlu0 %754
        %756 = vrot.lane.b32.xlu0 %v487, 125
        %v757 = vpop.permute.xlu0 %756
        %758 = vrot.lane.b32.xlu0 %v491, 125
        %v759 = vpop.permute.xlu0 %758
        %760 = vrot.lane.b32.xlu0 %v495, 125
        %v761 = vpop.permute.xlu0 %760
        %762 = vrot.lane.b32.xlu0 %v499, 125
        %v763 = vpop.permute.xlu0 %762
        %764 = vrot.lane.b32.xlu0 %v503, 125
        %v765 = vpop.permute.xlu0 %764
        %766 = vrot.lane.b32.xlu0 %v507, 125
        %v767 = vpop.permute.xlu0 %766
        %768 = vrot.lane.b32.xlu0 %v511, 125
        %v769 = vpop.permute.xlu0 %768
        %770 = vrot.lane.b32.xlu0 %v515, 125
        %v771 = vpop.permute.xlu0 %770
        %772 = vrot.lane.b32.xlu0 %v519, 125
        %v773 = vpop.permute.xlu0 %772
        %774 = vrot.lane.b32.xlu0 %v523, 125
        %v775 = vpop.permute.xlu0 %774
        %776 = vrot.lane.b32.xlu0 %v527, 125
        %v777 = vpop.permute.xlu0 %776
        %778 = vrot.lane.b32.xlu0 %v531, 125
        %v779 = vpop.permute.xlu0 %778
        %780 = vrot.lane.b32.xlu0 %v535, 125
        %v781 = vpop.permute.xlu0 %780
        %782 = vrot.lane.b32.xlu0 %v539, 125
        %v783 = vpop.permute.xlu0 %782
        %784 = vrot.lane.b32.xlu0 %v543, 125
        %v785 = vpop.permute.xlu0 %784
        %786 = vrot.lane.b32.xlu0 %v547, 125
        %v787 = vpop.permute.xlu0 %786
        %788 = vrot.lane.b32.xlu0 %v551, 125
        %v789 = vpop.permute.xlu0 %788
        %790 = vrot.lane.b32.xlu0 %v555, 125
        %v791 = vpop.permute.xlu0 %790
        %792 = vrot.lane.b32.xlu0 %v559, 125
        %v793 = vpop.permute.xlu0 %792
        %794 = vrot.lane.b32.xlu0 %v563, 125
        %v795 = vpop.permute.xlu0 %794
        %796 = vrot.lane.b32.xlu0 %v567, 125
        %v797 = vpop.permute.xlu0 %796
        %798 = vrot.lane.b32.xlu0 %v571, 125
        %v799 = vpop.permute.xlu0 %798
        %800 = vrot.lane.b32.xlu0 %v575, 125
        %v801 = vpop.permute.xlu0 %800
        %802 = vrot.lane.b32.xlu0 %v579, 125
        %v803 = vpop.permute.xlu0 %802
        %832 = vrot.lane.b32.xlu0 %v471, 124
        %v833 = vpop.permute.xlu0 %832
        %834 = vrot.lane.b32.xlu0 %v475, 124
        %v835 = vpop.permute.xlu0 %834
        %836 = vrot.lane.b32.xlu0 %v479, 124
        %v837 = vpop.permute.xlu0 %836
        %838 = vrot.lane.b32.xlu0 %v483, 124
        %v839 = vpop.permute.xlu0 %838
        %840 = vrot.lane.b32.xlu0 %v487, 124
        %v841 = vpop.permute.xlu0 %840
        %842 = vrot.lane.b32.xlu0 %v491, 124
        %v843 = vpop.permute.xlu0 %842
        %844 = vrot.lane.b32.xlu0 %v495, 124
        %v845 = vpop.permute.xlu0 %844
        %846 = vrot.lane.b32.xlu0 %v499, 124
        %v847 = vpop.permute.xlu0 %846
        %848 = vrot.lane.b32.xlu0 %v503, 124
        %v849 = vpop.permute.xlu0 %848
        %850 = vrot.lane.b32.xlu0 %v507, 124
        %v851 = vpop.permute.xlu0 %850
        %852 = vrot.lane.b32.xlu0 %v511, 124
        %v853 = vpop.permute.xlu0 %852
        %854 = vrot.lane.b32.xlu0 %v515, 124
        %v855 = vpop.permute.xlu0 %854
        %856 = vrot.lane.b32.xlu0 %v519, 124
        %v857 = vpop.permute.xlu0 %856
        %858 = vrot.lane.b32.xlu0 %v523, 124
        %v859 = vpop.permute.xlu0 %858
        %860 = vrot.lane.b32.xlu0 %v527, 124
        %v861 = vpop.permute.xlu0 %860
        %862 = vrot.lane.b32.xlu0 %v531, 124
        %v863 = vpop.permute.xlu0 %862
        %864 = vrot.lane.b32.xlu0 %v535, 124
        %v865 = vpop.permute.xlu0 %864
        %866 = vrot.lane.b32.xlu0 %v539, 124
        %v867 = vpop.permute.xlu0 %866
        %868 = vrot.lane.b32.xlu0 %v543, 124
        %v869 = vpop.permute.xlu0 %868
        %870 = vrot.lane.b32.xlu0 %v547, 124
        %v871 = vpop.permute.xlu0 %870
        %872 = vrot.lane.b32.xlu0 %v551, 124
        %v873 = vpop.permute.xlu0 %872
        %874 = vrot.lane.b32.xlu0 %v555, 124
        %v875 = vpop.permute.xlu0 %874
        %876 = vrot.lane.b32.xlu0 %v559, 124
        %v877 = vpop.permute.xlu0 %876
        %878 = vrot.lane.b32.xlu0 %v563, 124
        %v879 = vpop.permute.xlu0 %878
        %880 = vrot.lane.b32.xlu0 %v567, 124
        %v881 = vpop.permute.xlu0 %880
        %882 = vrot.lane.b32.xlu0 %v571, 124
        %v883 = vpop.permute.xlu0 %882
        %884 = vrot.lane.b32.xlu0 %v575, 124
        %v885 = vpop.permute.xlu0 %884
        %886 = vrot.lane.b32.xlu0 %v579, 124
        %v887 = vpop.permute.xlu0 %886
        %888 = vrot.lane.b32.xlu0 %v471, 123
        %v889 = vpop.permute.xlu0 %888
        %890 = vrot.lane.b32.xlu0 %v475, 123
        %v891 = vpop.permute.xlu0 %890
        %892 = vrot.lane.b32.xlu0 %v479, 123
        %v893 = vpop.permute.xlu0 %892
        %894 = vrot.lane.b32.xlu0 %v483, 123
        %v895 = vpop.permute.xlu0 %894
        %896 = vrot.lane.b32.xlu0 %v487, 123
        %v897 = vpop.permute.xlu0 %896
        %898 = vrot.lane.b32.xlu0 %v491, 123
        %v899 = vpop.permute.xlu0 %898
        %900 = vrot.lane.b32.xlu0 %v495, 123
        %v901 = vpop.permute.xlu0 %900
        %902 = vrot.lane.b32.xlu0 %v499, 123
        %v903 = vpop.permute.xlu0 %902
        %904 = vrot.lane.b32.xlu0 %v503, 123
        %v905 = vpop.permute.xlu0 %904
        %906 = vrot.lane.b32.xlu0 %v507, 123
        %v907 = vpop.permute.xlu0 %906
        %908 = vrot.lane.b32.xlu0 %v511, 123
        %v909 = vpop.permute.xlu0 %908
        %910 = vrot.lane.b32.xlu0 %v515, 123
        %v911 = vpop.permute.xlu0 %910
        %912 = vrot.lane.b32.xlu0 %v519, 123
        %v913 = vpop.permute.xlu0 %912
        %914 = vrot.lane.b32.xlu0 %v523, 123
        %v915 = vpop.permute.xlu0 %914
        %916 = vrot.lane.b32.xlu0 %v527, 123
        %v917 = vpop.permute.xlu0 %916
        %918 = vrot.lane.b32.xlu0 %v531, 123
        %v919 = vpop.permute.xlu0 %918
        %920 = vrot.lane.b32.xlu0 %v535, 123
        %v921 = vpop.permute.xlu0 %920
        %922 = vrot.lane.b32.xlu0 %v539, 123
        %v923 = vpop.permute.xlu0 %922
        %924 = vrot.lane.b32.xlu0 %v543, 123
        %v925 = vpop.permute.xlu0 %924
        %926 = vrot.lane.b32.xlu0 %v547, 123
        %v927 = vpop.permute.xlu0 %926
        %928 = vrot.lane.b32.xlu0 %v551, 123
        %v929 = vpop.permute.xlu0 %928
        %930 = vrot.lane.b32.xlu0 %v555, 123
        %v931 = vpop.permute.xlu0 %930
        %932 = vrot.lane.b32.xlu0 %v559, 123
        %v933 = vpop.permute.xlu0 %932
        %934 = vrot.lane.b32.xlu0 %v563, 123
        %v935 = vpop.permute.xlu0 %934
        %936 = vrot.lane.b32.xlu0 %v567, 123
        %v937 = vpop.permute.xlu0 %936
        %938 = vrot.lane.b32.xlu0 %v571, 123
        %v939 = vpop.permute.xlu0 %938
        %940 = vrot.lane.b32.xlu0 %v575, 123
        %v941 = vpop.permute.xlu0 %940
        %942 = vrot.lane.b32.xlu0 %v579, 123
        %v943 = vpop.permute.xlu0 %942
        %972 = vrot.lane.b32.xlu0 %v471, 122
        %v973 = vpop.permute.xlu0 %972
        %974 = vrot.lane.b32.xlu0 %v475, 122
        %v975 = vpop.permute.xlu0 %974
        %976 = vrot.lane.b32.xlu0 %v479, 122
        %v977 = vpop.permute.xlu0 %976
        %978 = vrot.lane.b32.xlu0 %v483, 122
        %v979 = vpop.permute.xlu0 %978
        %980 = vrot.lane.b32.xlu0 %v487, 122
        %v981 = vpop.permute.xlu0 %980
        %982 = vrot.lane.b32.xlu0 %v491, 122
        %v983 = vpop.permute.xlu0 %982
        %984 = vrot.lane.b32.xlu0 %v495, 122
        %v985 = vpop.permute.xlu0 %984
        %986 = vrot.lane.b32.xlu0 %v499, 122
        %v987 = vpop.permute.xlu0 %986
        %988 = vrot.lane.b32.xlu0 %v503, 122
        %v989 = vpop.permute.xlu0 %988
        %990 = vrot.lane.b32.xlu0 %v507, 122
        %v991 = vpop.permute.xlu0 %990
        %992 = vrot.lane.b32.xlu0 %v511, 122
        %v993 = vpop.permute.xlu0 %992
        %994 = vrot.lane.b32.xlu0 %v515, 122
        %v995 = vpop.permute.xlu0 %994
        %996 = vrot.lane.b32.xlu0 %v519, 122
        %v997 = vpop.permute.xlu0 %996
        %998 = vrot.lane.b32.xlu0 %v523, 122
        %v999 = vpop.permute.xlu0 %998
        %1000 = vrot.lane.b32.xlu0 %v527, 122
        %v1001 = vpop.permute.xlu0 %1000
        %1002 = vrot.lane.b32.xlu0 %v531, 122
        %v1003 = vpop.permute.xlu0 %1002
        %1004 = vrot.lane.b32.xlu0 %v535, 122
        %v1005 = vpop.permute.xlu0 %1004
        %1006 = vrot.lane.b32.xlu0 %v539, 122
        %v1007 = vpop.permute.xlu0 %1006
        %1008 = vrot.lane.b32.xlu0 %v543, 122
        %v1009 = vpop.permute.xlu0 %1008
        %1010 = vrot.lane.b32.xlu0 %v547, 122
        %v1011 = vpop.permute.xlu0 %1010
        %1012 = vrot.lane.b32.xlu0 %v551, 122
        %v1013 = vpop.permute.xlu0 %1012
        %1014 = vrot.lane.b32.xlu0 %v555, 122
        %v1015 = vpop.permute.xlu0 %1014
        %1016 = vrot.lane.b32.xlu0 %v559, 122
        %v1017 = vpop.permute.xlu0 %1016
        %1018 = vrot.lane.b32.xlu0 %v563, 122
        %v1019 = vpop.permute.xlu0 %1018
        %1020 = vrot.lane.b32.xlu0 %v567, 122
        %v1021 = vpop.permute.xlu0 %1020
        %1022 = vrot.lane.b32.xlu0 %v571, 122
        %v1023 = vpop.permute.xlu0 %1022
        %1024 = vrot.lane.b32.xlu0 %v575, 122
        %v1025 = vpop.permute.xlu0 %1024
        %1026 = vrot.lane.b32.xlu0 %v579, 122
        %v1027 = vpop.permute.xlu0 %1026
        %1028 = vrot.lane.b32.xlu0 %v471, 121
        %v1029 = vpop.permute.xlu0 %1028
        %1030 = vrot.lane.b32.xlu0 %v475, 121
        %v1031 = vpop.permute.xlu0 %1030
        %1032 = vrot.lane.b32.xlu0 %v479, 121
        %v1033 = vpop.permute.xlu0 %1032
        %1034 = vrot.lane.b32.xlu0 %v483, 121
        %v1035 = vpop.permute.xlu0 %1034
        %1036 = vrot.lane.b32.xlu0 %v487, 121
        %v1037 = vpop.permute.xlu0 %1036
        %1038 = vrot.lane.b32.xlu0 %v491, 121
        %v1039 = vpop.permute.xlu0 %1038
        %1040 = vrot.lane.b32.xlu0 %v495, 121
        %v1041 = vpop.permute.xlu0 %1040
        %1042 = vrot.lane.b32.xlu0 %v499, 121
        %v1043 = vpop.permute.xlu0 %1042
        %1044 = vrot.lane.b32.xlu0 %v503, 121
        %v1045 = vpop.permute.xlu0 %1044
        %1046 = vrot.lane.b32.xlu0 %v507, 121
        %v1047 = vpop.permute.xlu0 %1046
        %1048 = vrot.lane.b32.xlu0 %v511, 121
        %v1049 = vpop.permute.xlu0 %1048
        %1050 = vrot.lane.b32.xlu0 %v515, 121
        %v1051 = vpop.permute.xlu0 %1050
        %1052 = vrot.lane.b32.xlu0 %v519, 121
        %v1053 = vpop.permute.xlu0 %1052
        %1054 = vrot.lane.b32.xlu0 %v523, 121
        %v1055 = vpop.permute.xlu0 %1054
        %1056 = vrot.lane.b32.xlu0 %v527, 121
        %v1057 = vpop.permute.xlu0 %1056
        %1058 = vrot.lane.b32.xlu0 %v531, 121
        %v1059 = vpop.permute.xlu0 %1058
        %1060 = vrot.lane.b32.xlu0 %v535, 121
        %v1061 = vpop.permute.xlu0 %1060
        %1062 = vrot.lane.b32.xlu0 %v539, 121
        %v1063 = vpop.permute.xlu0 %1062
        %1064 = vrot.lane.b32.xlu0 %v543, 121
        %v1065 = vpop.permute.xlu0 %1064
        %1066 = vrot.lane.b32.xlu0 %v547, 121
        %v1067 = vpop.permute.xlu0 %1066
        %1068 = vrot.lane.b32.xlu0 %v551, 121
        %v1069 = vpop.permute.xlu0 %1068
        %1070 = vrot.lane.b32.xlu0 %v555, 121
        %v1071 = vpop.permute.xlu0 %1070
        %1072 = vrot.lane.b32.xlu0 %v559, 121
        %v1073 = vpop.permute.xlu0 %1072
        %1074 = vrot.lane.b32.xlu0 %v563, 121
        %v1075 = vpop.permute.xlu0 %1074
        %1076 = vrot.lane.b32.xlu0 %v567, 121
        %v1077 = vpop.permute.xlu0 %1076
        %1078 = vrot.lane.b32.xlu0 %v571, 121
        %v1079 = vpop.permute.xlu0 %1078
        %1080 = vrot.lane.b32.xlu0 %v575, 121
        %v1081 = vpop.permute.xlu0 %1080
        %1082 = vrot.lane.b32.xlu0 %v579, 121
        %v1083 = vpop.permute.xlu0 %1082
        %1112 = vrot.lane.b32.xlu0 %v471, 120
        %v1113 = vpop.permute.xlu0 %1112
        %1114 = vrot.lane.b32.xlu0 %v475, 120
        %v1115 = vpop.permute.xlu0 %1114
        %1116 = vrot.lane.b32.xlu0 %v479, 120
        %v1117 = vpop.permute.xlu0 %1116
        %1118 = vrot.lane.b32.xlu0 %v483, 120
        %v1119 = vpop.permute.xlu0 %1118
        %1120 = vrot.lane.b32.xlu0 %v487, 120
        %v1121 = vpop.permute.xlu0 %1120
        %1122 = vrot.lane.b32.xlu0 %v491, 120
        %v1123 = vpop.permute.xlu0 %1122
        %1124 = vrot.lane.b32.xlu0 %v495, 120
        %v1125 = vpop.permute.xlu0 %1124
        %1126 = vrot.lane.b32.xlu0 %v499, 120
        %v1127 = vpop.permute.xlu0 %1126
        %1128 = vrot.lane.b32.xlu0 %v503, 120
        %v1129 = vpop.permute.xlu0 %1128
        %1130 = vrot.lane.b32.xlu0 %v507, 120
        %v1131 = vpop.permute.xlu0 %1130
        %1132 = vrot.lane.b32.xlu0 %v511, 120
        %v1133 = vpop.permute.xlu0 %1132
        %1134 = vrot.lane.b32.xlu0 %v515, 120
        %v1135 = vpop.permute.xlu0 %1134
        %1136 = vrot.lane.b32.xlu0 %v519, 120
        %v1137 = vpop.permute.xlu0 %1136
        %1138 = vrot.lane.b32.xlu0 %v523, 120
        %v1139 = vpop.permute.xlu0 %1138
        %1140 = vrot.lane.b32.xlu0 %v527, 120
        %v1141 = vpop.permute.xlu0 %1140
        %1142 = vrot.lane.b32.xlu0 %v531, 120
        %v1143 = vpop.permute.xlu0 %1142
        %1144 = vrot.lane.b32.xlu0 %v535, 120
        %v1145 = vpop.permute.xlu0 %1144
        %1146 = vrot.lane.b32.xlu0 %v539, 120
        %v1147 = vpop.permute.xlu0 %1146
        %1148 = vrot.lane.b32.xlu0 %v543, 120
        %v1149 = vpop.permute.xlu0 %1148
        %1150 = vrot.lane.b32.xlu0 %v547, 120
        %v1151 = vpop.permute.xlu0 %1150
        %1152 = vrot.lane.b32.xlu0 %v551, 120
        %v1153 = vpop.permute.xlu0 %1152
        %1154 = vrot.lane.b32.xlu0 %v555, 120
        %v1155 = vpop.permute.xlu0 %1154
        %1156 = vrot.lane.b32.xlu0 %v559, 120
        %v1157 = vpop.permute.xlu0 %1156
        %1158 = vrot.lane.b32.xlu0 %v563, 120
        %v1159 = vpop.permute.xlu0 %1158
        %1160 = vrot.lane.b32.xlu0 %v567, 120
        %v1161 = vpop.permute.xlu0 %1160
        %1162 = vrot.lane.b32.xlu0 %v571, 120
        %v1163 = vpop.permute.xlu0 %1162
        %1164 = vrot.lane.b32.xlu0 %v575, 120
        %v1165 = vpop.permute.xlu0 %1164
        %1166 = vrot.lane.b32.xlu0 %v579, 120
        %v1167 = vpop.permute.xlu0 %1166
        %vm1168 = vcmask 1040384
        %vm1169 = vsmask.f32 256
        %vm1170 = vmand %vm1168, %vm1169
        %v1171 = vsel %vm1170, %v471, %v609
        %v1172 = vsel %vm1170, %v475, %v611
        %v1173 = vsel %vm1170, %v479, %v613
        %v1174 = vsel %vm1170, %v483, %v615
        %v1175 = vsel %vm1170, %v487, %v617
        %v1176 = vsel %vm1170, %v491, %v619
        %v1177 = vsel %vm1170, %v495, %v621
        %v1178 = vsel %vm1170, %v499, %v623
        %v1179 = vsel %vm1170, %v503, %v625
        %v1180 = vsel %vm1170, %v507, %v627
        %v1181 = vsel %vm1170, %v511, %v629
        %v1182 = vsel %vm1170, %v515, %v631
        %v1183 = vsel %vm1170, %v519, %v633
        %v1184 = vsel %vm1170, %v523, %v635
        %v1185 = vsel %vm1170, %v527, %v637
        %v1186 = vsel %vm1170, %v531, %v639
        %v1187 = vsel %vm1170, %v535, %v641
        %v1188 = vsel %vm1170, %v539, %v643
        %v1189 = vsel %vm1170, %v543, %v645
        %v1190 = vsel %vm1170, %v547, %v647
        %v1191 = vsel %vm1170, %v551, %v649
        %v1192 = vsel %vm1170, %v555, %v651
        %v1193 = vsel %vm1170, %v559, %v653
        %v1194 = vsel %vm1170, %v563, %v655
        %v1195 = vsel %vm1170, %v567, %v657
        %v1196 = vsel %vm1170, %v571, %v659
        %v1197 = vsel %vm1170, %v575, %v661
        %v1198 = vsel %vm1170, %v579, %v663
        %vm1199 = vcmask 1040384
        %v1202 = vsel %vm1199, %v1171, %v693
        %v1206 = vsel %vm1199, %v1172, %v695
        %v1210 = vsel %vm1199, %v1173, %v697
        %v1214 = vsel %vm1199, %v1174, %v699
        %v1218 = vsel %vm1199, %v1175, %v701
        %v1222 = vsel %vm1199, %v1176, %v703
        %v1226 = vsel %vm1199, %v1177, %v705
        %v1230 = vsel %vm1199, %v1178, %v707
        %v1234 = vsel %vm1199, %v1179, %v709
        %v1238 = vsel %vm1199, %v1180, %v711
        %v1242 = vsel %vm1199, %v1181, %v713
        %v1246 = vsel %vm1199, %v1182, %v715
        %v1250 = vsel %vm1199, %v1183, %v717
        %v1254 = vsel %vm1199, %v1184, %v719
        %v1258 = vsel %vm1199, %v1185, %v721
        %v1262 = vsel %vm1199, %v1186, %v723
        %v1266 = vsel %vm1199, %v1187, %v725
        %v1270 = vsel %vm1199, %v1188, %v727
        %v1274 = vsel %vm1199, %v1189, %v729
        %v1278 = vsel %vm1199, %v1190, %v731
        %v1282 = vsel %vm1199, %v1191, %v733
        %v1286 = vsel %vm1199, %v1192, %v735
        %v1290 = vsel %vm1199, %v1193, %v737
        %v1294 = vsel %vm1199, %v1194, %v739
        %v1298 = vsel %vm1199, %v1195, %v741
        %v1302 = vsel %vm1199, %v1196, %v743
        %v1306 = vsel %vm1199, %v1197, %v745
        %v1310 = vsel %vm1199, %v1198, %v747
        %vm1312 = vcmask 1041408
        %vm1313 = vsmask.f32 1280
        %vm1314 = vmand %vm1312, %vm1313
        %v1315 = vsel %vm1314, %v1202, %v749
        %v1316 = vsel %vm1314, %v1206, %v751
        %v1317 = vsel %vm1314, %v1210, %v753
        %v1318 = vsel %vm1314, %v1214, %v755
        %v1319 = vsel %vm1314, %v1218, %v757
        %v1320 = vsel %vm1314, %v1222, %v759
        %v1321 = vsel %vm1314, %v1226, %v761
        %v1322 = vsel %vm1314, %v1230, %v763
        %v1323 = vsel %vm1314, %v1234, %v765
        %v1324 = vsel %vm1314, %v1238, %v767
        %v1325 = vsel %vm1314, %v1242, %v769
        %v1326 = vsel %vm1314, %v1246, %v771
        %v1327 = vsel %vm1314, %v1250, %v773
        %v1328 = vsel %vm1314, %v1254, %v775
        %v1329 = vsel %vm1314, %v1258, %v777
        %v1330 = vsel %vm1314, %v1262, %v779
        %v1331 = vsel %vm1314, %v1266, %v781
        %v1332 = vsel %vm1314, %v1270, %v783
        %v1333 = vsel %vm1314, %v1274, %v785
        %v1334 = vsel %vm1314, %v1278, %v787
        %v1335 = vsel %vm1314, %v1282, %v789
        %v1336 = vsel %vm1314, %v1286, %v791
        %v1337 = vsel %vm1314, %v1290, %v793
        %v1338 = vsel %vm1314, %v1294, %v795
        %v1339 = vsel %vm1314, %v1298, %v797
        %v1340 = vsel %vm1314, %v1302, %v799
        %v1341 = vsel %vm1314, %v1306, %v801
        %v1342 = vsel %vm1314, %v1310, %v803
        %vm1343 = vcmask 1041408
        %v1346 = vsel %vm1343, %v1315, %v833
        %v1350 = vsel %vm1343, %v1316, %v835
        %v1354 = vsel %vm1343, %v1317, %v837
        %v1358 = vsel %vm1343, %v1318, %v839
        %v1362 = vsel %vm1343, %v1319, %v841
        %v1366 = vsel %vm1343, %v1320, %v843
        %v1370 = vsel %vm1343, %v1321, %v845
        %v1374 = vsel %vm1343, %v1322, %v847
        %v1378 = vsel %vm1343, %v1323, %v849
        %v1382 = vsel %vm1343, %v1324, %v851
        %v1386 = vsel %vm1343, %v1325, %v853
        %v1390 = vsel %vm1343, %v1326, %v855
        %v1394 = vsel %vm1343, %v1327, %v857
        %v1398 = vsel %vm1343, %v1328, %v859
        %v1402 = vsel %vm1343, %v1329, %v861
        %v1406 = vsel %vm1343, %v1330, %v863
        %v1410 = vsel %vm1343, %v1331, %v865
        %v1414 = vsel %vm1343, %v1332, %v867
        %v1418 = vsel %vm1343, %v1333, %v869
        %v1422 = vsel %vm1343, %v1334, %v871
        %v1426 = vsel %vm1343, %v1335, %v873
        %v1430 = vsel %vm1343, %v1336, %v875
        %v1434 = vsel %vm1343, %v1337, %v877
        %v1438 = vsel %vm1343, %v1338, %v879
        %v1442 = vsel %vm1343, %v1339, %v881
        %v1446 = vsel %vm1343, %v1340, %v883
        %v1450 = vsel %vm1343, %v1341, %v885
        %v1454 = vsel %vm1343, %v1342, %v887
        %vm1456 = vcmask 1042432
        %vm1457 = vsmask.f32 2304
        %vm1458 = vmand %vm1456, %vm1457
        %v1459 = vsel %vm1458, %v1346, %v889
        %v1460 = vsel %vm1458, %v1350, %v891
        %v1461 = vsel %vm1458, %v1354, %v893
        %v1462 = vsel %vm1458, %v1358, %v895
        %v1463 = vsel %vm1458, %v1362, %v897
        %v1464 = vsel %vm1458, %v1366, %v899
        %v1465 = vsel %vm1458, %v1370, %v901
        %v1466 = vsel %vm1458, %v1374, %v903
        %v1467 = vsel %vm1458, %v1378, %v905
        %v1468 = vsel %vm1458, %v1382, %v907
        %v1469 = vsel %vm1458, %v1386, %v909
        %v1470 = vsel %vm1458, %v1390, %v911
        %v1471 = vsel %vm1458, %v1394, %v913
        %v1472 = vsel %vm1458, %v1398, %v915
        %v1473 = vsel %vm1458, %v1402, %v917
        %v1474 = vsel %vm1458, %v1406, %v919
        %v1475 = vsel %vm1458, %v1410, %v921
        %v1476 = vsel %vm1458, %v1414, %v923
        %v1477 = vsel %vm1458, %v1418, %v925
        %v1478 = vsel %vm1458, %v1422, %v927
        %v1479 = vsel %vm1458, %v1426, %v929
        %v1480 = vsel %vm1458, %v1430, %v931
        %v1481 = vsel %vm1458, %v1434, %v933
        %v1482 = vsel %vm1458, %v1438, %v935
        %v1483 = vsel %vm1458, %v1442, %v937
        %v1484 = vsel %vm1458, %v1446, %v939
        %v1485 = vsel %vm1458, %v1450, %v941
        %v1486 = vsel %vm1458, %v1454, %v943
        %vm1487 = vcmask 1042432
        %v1490 = vsel %vm1487, %v1459, %v973
        %v1494 = vsel %vm1487, %v1460, %v975
        %v1498 = vsel %vm1487, %v1461, %v977
        %v1502 = vsel %vm1487, %v1462, %v979
        %v1506 = vsel %vm1487, %v1463, %v981
        %v1510 = vsel %vm1487, %v1464, %v983
        %v1514 = vsel %vm1487, %v1465, %v985
        %v1518 = vsel %vm1487, %v1466, %v987
        %v1522 = vsel %vm1487, %v1467, %v989
        %v1526 = vsel %vm1487, %v1468, %v991
        %v1530 = vsel %vm1487, %v1469, %v993
        %v1534 = vsel %vm1487, %v1470, %v995
        %v1538 = vsel %vm1487, %v1471, %v997
        %v1542 = vsel %vm1487, %v1472, %v999
        %v1546 = vsel %vm1487, %v1473, %v1001
        %v1550 = vsel %vm1487, %v1474, %v1003
        %v1554 = vsel %vm1487, %v1475, %v1005
        %v1558 = vsel %vm1487, %v1476, %v1007
        %v1562 = vsel %vm1487, %v1477, %v1009
        %v1566 = vsel %vm1487, %v1478, %v1011
        %v1570 = vsel %vm1487, %v1479, %v1013
        %v1574 = vsel %vm1487, %v1480, %v1015
        %v1578 = vsel %vm1487, %v1481, %v1017
        %v1582 = vsel %vm1487, %v1482, %v1019
        %v1586 = vsel %vm1487, %v1483, %v1021
        %v1590 = vsel %vm1487, %v1484, %v1023
        %v1594 = vsel %vm1487, %v1485, %v1025
        %v1598 = vsel %vm1487, %v1486, %v1027
        %vm1600 = vcmask 1043456
        %vm1601 = vsmask.f32 3328
        %vm1602 = vmand %vm1600, %vm1601
        %v1603 = vsel %vm1602, %v1490, %v1029
        %v1604 = vsel %vm1602, %v1494, %v1031
        %v1605 = vsel %vm1602, %v1498, %v1033
        %v1606 = vsel %vm1602, %v1502, %v1035
        %v1607 = vsel %vm1602, %v1506, %v1037
        %v1608 = vsel %vm1602, %v1510, %v1039
        %v1609 = vsel %vm1602, %v1514, %v1041
        %v1610 = vsel %vm1602, %v1518, %v1043
        %v1611 = vsel %vm1602, %v1522, %v1045
        %v1612 = vsel %vm1602, %v1526, %v1047
        %v1613 = vsel %vm1602, %v1530, %v1049
        %v1614 = vsel %vm1602, %v1534, %v1051
        %v1615 = vsel %vm1602, %v1538, %v1053
        %v1616 = vsel %vm1602, %v1542, %v1055
        %v1617 = vsel %vm1602, %v1546, %v1057
        %v1618 = vsel %vm1602, %v1550, %v1059
        %v1619 = vsel %vm1602, %v1554, %v1061
        %v1620 = vsel %vm1602, %v1558, %v1063
        %v1621 = vsel %vm1602, %v1562, %v1065
        %v1622 = vsel %vm1602, %v1566, %v1067
        %v1623 = vsel %vm1602, %v1570, %v1069
        %v1624 = vsel %vm1602, %v1574, %v1071
        %v1625 = vsel %vm1602, %v1578, %v1073
        %v1626 = vsel %vm1602, %v1582, %v1075
        %v1627 = vsel %vm1602, %v1586, %v1077
        %v1628 = vsel %vm1602, %v1590, %v1079
        %v1629 = vsel %vm1602, %v1594, %v1081
        %v1630 = vsel %vm1602, %v1598, %v1083
        %vm1631 = vcmask 1043456
        %v1634 = vsel %vm1631, %v1603, %v1113
        %v1638 = vsel %vm1631, %v1604, %v1115
        %v1642 = vsel %vm1631, %v1605, %v1117
        %v1646 = vsel %vm1631, %v1606, %v1119
        %v1650 = vsel %vm1631, %v1607, %v1121
        %v1654 = vsel %vm1631, %v1608, %v1123
        %v1658 = vsel %vm1631, %v1609, %v1125
        %v1662 = vsel %vm1631, %v1610, %v1127
        %v1666 = vsel %vm1631, %v1611, %v1129
        %v1670 = vsel %vm1631, %v1612, %v1131
        %v1674 = vsel %vm1631, %v1613, %v1133
        %v1678 = vsel %vm1631, %v1614, %v1135
        %v1682 = vsel %vm1631, %v1615, %v1137
        %v1686 = vsel %vm1631, %v1616, %v1139
        %v1690 = vsel %vm1631, %v1617, %v1141
        %v1694 = vsel %vm1631, %v1618, %v1143
        %v1698 = vsel %vm1631, %v1619, %v1145
        %v1702 = vsel %vm1631, %v1620, %v1147
        %v1706 = vsel %vm1631, %v1621, %v1149
        %v1710 = vsel %vm1631, %v1622, %v1151
        %v1714 = vsel %vm1631, %v1623, %v1153
        %v1717 = vsel %vm1631, %v1624, %v1155
        %v1720 = vsel %vm1631, %v1625, %v1157
        %v1723 = vsel %vm1631, %v1626, %v1159
        %v1726 = vsel %vm1631, %v1627, %v1161
        %v1729 = vsel %vm1631, %v1628, %v1163
        %v1732 = vsel %vm1631, %v1629, %v1165
        %v1735 = vsel %vm1631, %v1630, %v1167
        %v1736 = vshrl.u32 %v1638, 16
        %v1738 = vrot.slane %v1736, 3
        %v1739 = vshll.u32 %v1638, 16
        %v1741 = vrot.slane %v1739, 4
        %v1742 = vor.u32 %v1738, %v1741
        %v1743 = vshrl.u32 %v1642, 16
        %v1745 = vrot.slane %v1743, 3
        %v1746 = vshll.u32 %v1642, 16
        %v1748 = vrot.slane %v1746, 4
        %v1749 = vor.u32 %v1745, %v1748
        %v1750 = vshrl.u32 %v1646, 16
        %v1752 = vrot.slane %v1750, 3
        %v1753 = vshll.u32 %v1646, 16
        %v1755 = vrot.slane %v1753, 4
        %v1756 = vor.u32 %v1752, %v1755
        %v1757 = vshrl.u32 %v1650, 16
        %v1759 = vrot.slane %v1757, 3
        %v1760 = vshll.u32 %v1650, 16
        %v1762 = vrot.slane %v1760, 4
        %v1763 = vor.u32 %v1759, %v1762
        %v1764 = vshrl.u32 %v1654, 16
        %v1766 = vrot.slane %v1764, 3
        %v1767 = vshll.u32 %v1654, 16
        %v1769 = vrot.slane %v1767, 4
        %v1770 = vor.u32 %v1766, %v1769
        %v1771 = vshrl.u32 %v1658, 16
        %v1773 = vrot.slane %v1771, 3
        %v1774 = vshll.u32 %v1658, 16
        %v1776 = vrot.slane %v1774, 4
        %v1777 = vor.u32 %v1773, %v1776
        %v1778 = vshrl.u32 %v1662, 16
        %v1780 = vrot.slane %v1778, 3
        %v1781 = vshll.u32 %v1662, 16
        %v1783 = vrot.slane %v1781, 4
        %v1784 = vor.u32 %v1780, %v1783
        %v1785 = vshrl.u32 %v1666, 16
        %v1787 = vrot.slane %v1785, 3
        %v1788 = vshll.u32 %v1666, 16
        %v1790 = vrot.slane %v1788, 4
        %v1791 = vor.u32 %v1787, %v1790
        %v1792 = vshrl.u32 %v1670, 16
        %v1794 = vrot.slane %v1792, 3
        %v1795 = vshll.u32 %v1670, 16
        %v1797 = vrot.slane %v1795, 4
        %v1798 = vor.u32 %v1794, %v1797
        %v1799 = vshrl.u32 %v1674, 16
        %v1801 = vrot.slane %v1799, 3
        %v1802 = vshll.u32 %v1674, 16
        %v1804 = vrot.slane %v1802, 4
        %v1805 = vor.u32 %v1801, %v1804
        %v1806 = vshrl.u32 %v1678, 16
        %v1808 = vrot.slane %v1806, 3
        %v1809 = vshll.u32 %v1678, 16
        %v1811 = vrot.slane %v1809, 4
        %v1812 = vor.u32 %v1808, %v1811
        %v1813 = vshrl.u32 %v1682, 16
        %v1815 = vrot.slane %v1813, 3
        %v1816 = vshll.u32 %v1682, 16
        %v1818 = vrot.slane %v1816, 4
        %v1819 = vor.u32 %v1815, %v1818
        %v1820 = vshrl.u32 %v1686, 16
        %v1822 = vrot.slane %v1820, 3
        %v1823 = vshll.u32 %v1686, 16
        %v1825 = vrot.slane %v1823, 4
        %v1826 = vor.u32 %v1822, %v1825
        %v1827 = vshrl.u32 %v1690, 16
        %v1829 = vrot.slane %v1827, 3
        %v1830 = vshll.u32 %v1690, 16
        %v1832 = vrot.slane %v1830, 4
        %v1833 = vor.u32 %v1829, %v1832
        %v1834 = vshrl.u32 %v1694, 16
        %v1836 = vrot.slane %v1834, 3
        %v1837 = vshll.u32 %v1694, 16
        %v1839 = vrot.slane %v1837, 4
        %v1840 = vor.u32 %v1836, %v1839
        %v1841 = vshrl.u32 %v1698, 16
        %v1843 = vrot.slane %v1841, 3
        %v1844 = vshll.u32 %v1698, 16
        %v1846 = vrot.slane %v1844, 4
        %v1847 = vor.u32 %v1843, %v1846
        %v1848 = vshrl.u32 %v1702, 16
        %v1850 = vrot.slane %v1848, 3
        %v1851 = vshll.u32 %v1702, 16
        %v1853 = vrot.slane %v1851, 4
        %v1854 = vor.u32 %v1850, %v1853
        %v1855 = vshrl.u32 %v1706, 16
        %v1857 = vrot.slane %v1855, 3
        %v1858 = vshll.u32 %v1706, 16
        %v1860 = vrot.slane %v1858, 4
        %v1861 = vor.u32 %v1857, %v1860
        %v1862 = vshrl.u32 %v1710, 16
        %v1864 = vrot.slane %v1862, 3
        %v1865 = vshll.u32 %v1710, 16
        %v1867 = vrot.slane %v1865, 4
        %v1868 = vor.u32 %v1864, %v1867
        %v1869 = vshrl.u32 %v1714, 16
        %v1871 = vrot.slane %v1869, 3
        %v1872 = vshll.u32 %v1714, 16
        %v1874 = vrot.slane %v1872, 4
        %v1875 = vor.u32 %v1871, %v1874
        %v1916 = vrot.slane %v1642, 7
        %v1917 = vrot.slane %v1646, 7
        %v1918 = vrot.slane %v1650, 7
        %v1919 = vrot.slane %v1654, 7
        %v1920 = vrot.slane %v1658, 7
        %v1921 = vrot.slane %v1662, 7
        %v1922 = vrot.slane %v1666, 7
        %v1923 = vrot.slane %v1670, 7
        %v1924 = vrot.slane %v1674, 7
        %v1925 = vrot.slane %v1678, 7
        %v1926 = vrot.slane %v1682, 7
        %v1927 = vrot.slane %v1686, 7
        %v1928 = vrot.slane %v1690, 7
        %v1929 = vrot.slane %v1694, 7
        %v1930 = vrot.slane %v1698, 7
        %v1931 = vrot.slane %v1702, 7
        %v1932 = vrot.slane %v1706, 7
        %v1933 = vrot.slane %v1710, 7
        %v1934 = vrot.slane %v1714, 7
        %v1935 = vrot.slane %v1717, 7
        %v1936 = vrot.slane %v1750, 2
        %v1937 = vrot.slane %v1753, 3
        %v1938 = vor.u32 %v1936, %v1937
        %v1939 = vrot.slane %v1757, 2
        %v1940 = vrot.slane %v1760, 3
        %v1941 = vor.u32 %v1939, %v1940
        %v1942 = vrot.slane %v1764, 2
        %v1943 = vrot.slane %v1767, 3
        %v1944 = vor.u32 %v1942, %v1943
        %v1945 = vrot.slane %v1771, 2
        %v1946 = vrot.slane %v1774, 3
        %v1947 = vor.u32 %v1945, %v1946
        %v1948 = vrot.slane %v1778, 2
        %v1949 = vrot.slane %v1781, 3
        %v1950 = vor.u32 %v1948, %v1949
        %v1951 = vrot.slane %v1785, 2
        %v1952 = vrot.slane %v1788, 3
        %v1953 = vor.u32 %v1951, %v1952
        %v1954 = vrot.slane %v1792, 2
        %v1955 = vrot.slane %v1795, 3
        %v1956 = vor.u32 %v1954, %v1955
        %v1957 = vrot.slane %v1799, 2
        %v1958 = vrot.slane %v1802, 3
        %v1959 = vor.u32 %v1957, %v1958
        %v1960 = vrot.slane %v1806, 2
        %v1961 = vrot.slane %v1809, 3
        %v1962 = vor.u32 %v1960, %v1961
        %v1963 = vrot.slane %v1813, 2
        %v1964 = vrot.slane %v1816, 3
        %v1965 = vor.u32 %v1963, %v1964
        %v1966 = vrot.slane %v1820, 2
        %v1967 = vrot.slane %v1823, 3
        %v1968 = vor.u32 %v1966, %v1967
        %v1969 = vrot.slane %v1827, 2
        %v1970 = vrot.slane %v1830, 3
        %v1971 = vor.u32 %v1969, %v1970
        %v1972 = vrot.slane %v1834, 2
        %v1973 = vrot.slane %v1837, 3
        %v1974 = vor.u32 %v1972, %v1973
        %v1975 = vrot.slane %v1841, 2
        %v1976 = vrot.slane %v1844, 3
        %v1977 = vor.u32 %v1975, %v1976
        %v1978 = vrot.slane %v1848, 2
        %v1979 = vrot.slane %v1851, 3
        %v1980 = vor.u32 %v1978, %v1979
        %v1981 = vrot.slane %v1855, 2
        %v1982 = vrot.slane %v1858, 3
        %v1983 = vor.u32 %v1981, %v1982
        %v1984 = vrot.slane %v1862, 2
        %v1985 = vrot.slane %v1865, 3
        %v1986 = vor.u32 %v1984, %v1985
        %v1987 = vrot.slane %v1869, 2
        %v1988 = vrot.slane %v1872, 3
        %v1989 = vor.u32 %v1987, %v1988
        %v1990 = vshrl.u32 %v1717, 16
        %v1992 = vrot.slane %v1990, 2
        %v1993 = vshll.u32 %v1717, 16
        %v1995 = vrot.slane %v1993, 3
        %v1996 = vor.u32 %v1992, %v1995
        %v1997 = vshrl.u32 %v1720, 16
        %v1999 = vrot.slane %v1997, 2
        %v2000 = vshll.u32 %v1720, 16
        %v2002 = vrot.slane %v2000, 3
        %v2003 = vor.u32 %v1999, %v2002
        %v2026 = vrot.slane %v1650, 6
        %v2027 = vrot.slane %v1654, 6
        %v2028 = vrot.slane %v1658, 6
        %v2029 = vrot.slane %v1662, 6
        %v2030 = vrot.slane %v1666, 6
        %v2031 = vrot.slane %v1670, 6
        %v2032 = vrot.slane %v1674, 6
        %v2033 = vrot.slane %v1678, 6
        %v2034 = vrot.slane %v1682, 6
        %v2035 = vrot.slane %v1686, 6
        %v2036 = vrot.slane %v1690, 6
        %v2037 = vrot.slane %v1694, 6
        %v2038 = vrot.slane %v1698, 6
        %v2039 = vrot.slane %v1702, 6
        %v2040 = vrot.slane %v1706, 6
        %v2041 = vrot.slane %v1710, 6
        %v2042 = vrot.slane %v1714, 6
        %v2043 = vrot.slane %v1717, 6
        %v2044 = vrot.slane %v1720, 6
        %v2045 = vrot.slane %v1723, 6
        %v2046 = vrot.slane %v1764, 1
        %v2047 = vrot.slane %v1767, 2
        %v2048 = vor.u32 %v2046, %v2047
        %v2049 = vrot.slane %v1771, 1
        %v2050 = vrot.slane %v1774, 2
        %v2051 = vor.u32 %v2049, %v2050
        %v2052 = vrot.slane %v1778, 1
        %v2053 = vrot.slane %v1781, 2
        %v2054 = vor.u32 %v2052, %v2053
        %v2055 = vrot.slane %v1785, 1
        %v2056 = vrot.slane %v1788, 2
        %v2057 = vor.u32 %v2055, %v2056
        %v2058 = vrot.slane %v1792, 1
        %v2059 = vrot.slane %v1795, 2
        %v2060 = vor.u32 %v2058, %v2059
        %v2061 = vrot.slane %v1799, 1
        %v2062 = vrot.slane %v1802, 2
        %v2063 = vor.u32 %v2061, %v2062
        %v2064 = vrot.slane %v1806, 1
        %v2065 = vrot.slane %v1809, 2
        %v2066 = vor.u32 %v2064, %v2065
        %v2067 = vrot.slane %v1813, 1
        %v2068 = vrot.slane %v1816, 2
        %v2069 = vor.u32 %v2067, %v2068
        %v2070 = vrot.slane %v1820, 1
        %v2071 = vrot.slane %v1823, 2
        %v2072 = vor.u32 %v2070, %v2071
        %v2073 = vrot.slane %v1827, 1
        %v2074 = vrot.slane %v1830, 2
        %v2075 = vor.u32 %v2073, %v2074
        %v2076 = vrot.slane %v1834, 1
        %v2077 = vrot.slane %v1837, 2
        %v2078 = vor.u32 %v2076, %v2077
        %v2079 = vrot.slane %v1841, 1
        %v2080 = vrot.slane %v1844, 2
        %v2081 = vor.u32 %v2079, %v2080
        %v2082 = vrot.slane %v1848, 1
        %v2083 = vrot.slane %v1851, 2
        %v2084 = vor.u32 %v2082, %v2083
        %v2085 = vrot.slane %v1855, 1
        %v2086 = vrot.slane %v1858, 2
        %v2087 = vor.u32 %v2085, %v2086
        %v2088 = vrot.slane %v1862, 1
        %v2089 = vrot.slane %v1865, 2
        %v2090 = vor.u32 %v2088, %v2089
        %v2091 = vrot.slane %v1869, 1
        %v2092 = vrot.slane %v1872, 2
        %v2093 = vor.u32 %v2091, %v2092
        %v2094 = vrot.slane %v1990, 1
        %v2095 = vrot.slane %v1993, 2
        %v2096 = vor.u32 %v2094, %v2095
        %v2097 = vrot.slane %v1997, 1
        %v2098 = vrot.slane %v2000, 2
        %v2099 = vor.u32 %v2097, %v2098
        %v2100 = vshrl.u32 %v1723, 16
        %v2102 = vrot.slane %v2100, 1
        %v2103 = vshll.u32 %v1723, 16
        %v2105 = vrot.slane %v2103, 2
        %v2106 = vor.u32 %v2102, %v2105
        %v2107 = vshrl.u32 %v1726, 16
        %v2109 = vrot.slane %v2107, 1
        %v2110 = vshll.u32 %v1726, 16
        %v2112 = vrot.slane %v2110, 2
        %v2113 = vor.u32 %v2109, %v2112
        %v2136 = vrot.slane %v1658, 5
        %v2137 = vrot.slane %v1662, 5
        %v2138 = vrot.slane %v1666, 5
        %v2139 = vrot.slane %v1670, 5
        %v2140 = vrot.slane %v1674, 5
        %v2141 = vrot.slane %v1678, 5
        %v2142 = vrot.slane %v1682, 5
        %v2143 = vrot.slane %v1686, 5
        %v2144 = vrot.slane %v1690, 5
        %v2145 = vrot.slane %v1694, 5
        %v2146 = vrot.slane %v1698, 5
        %v2147 = vrot.slane %v1702, 5
        %v2148 = vrot.slane %v1706, 5
        %v2149 = vrot.slane %v1710, 5
        %v2150 = vrot.slane %v1714, 5
        %v2151 = vrot.slane %v1717, 5
        %v2152 = vrot.slane %v1720, 5
        %v2153 = vrot.slane %v1723, 5
        %v2154 = vrot.slane %v1726, 5
        %v2155 = vrot.slane %v1729, 5
        %v2156 = vrot.slane %v1781, 1
        %v2157 = vor.u32 %v1778, %v2156
        %v2158 = vrot.slane %v1788, 1
        %v2159 = vor.u32 %v1785, %v2158
        %v2160 = vrot.slane %v1795, 1
        %v2161 = vor.u32 %v1792, %v2160
        %v2162 = vrot.slane %v1802, 1
        %v2163 = vor.u32 %v1799, %v2162
        %v2164 = vrot.slane %v1809, 1
        %v2165 = vor.u32 %v1806, %v2164
        %v2166 = vrot.slane %v1816, 1
        %v2167 = vor.u32 %v1813, %v2166
        %v2168 = vrot.slane %v1823, 1
        %v2169 = vor.u32 %v1820, %v2168
        %v2170 = vrot.slane %v1830, 1
        %v2171 = vor.u32 %v1827, %v2170
        %v2172 = vrot.slane %v1837, 1
        %v2173 = vor.u32 %v1834, %v2172
        %v2174 = vrot.slane %v1844, 1
        %v2175 = vor.u32 %v1841, %v2174
        %v2176 = vrot.slane %v1851, 1
        %v2177 = vor.u32 %v1848, %v2176
        %v2178 = vrot.slane %v1858, 1
        %v2179 = vor.u32 %v1855, %v2178
        %v2180 = vrot.slane %v1865, 1
        %v2181 = vor.u32 %v1862, %v2180
        %v2182 = vrot.slane %v1872, 1
        %v2183 = vor.u32 %v1869, %v2182
        %v2184 = vrot.slane %v1993, 1
        %v2185 = vor.u32 %v1990, %v2184
        %v2186 = vrot.slane %v2000, 1
        %v2187 = vor.u32 %v1997, %v2186
        %v2188 = vrot.slane %v2103, 1
        %v2189 = vor.u32 %v2100, %v2188
        %v2190 = vrot.slane %v2110, 1
        %v2191 = vor.u32 %v2107, %v2190
        %v2192 = vshll.u32 %v1729, 16
        %v2194 = vrot.slane %v2192, 1
        %v2195 = vshrl.u32 %v1729, 16
        %v2197 = vor.u32 %v2195, %v2194
        %v2198 = vshll.u32 %v1732, 16
        %v2200 = vrot.slane %v2198, 1
        %v2201 = vshrl.u32 %v1732, 16
        %v2203 = vor.u32 %v2201, %v2200
        %v2226 = vrot.slane %v1666, 4
        %v2227 = vrot.slane %v1670, 4
        %v2228 = vrot.slane %v1674, 4
        %v2229 = vrot.slane %v1678, 4
        %v2230 = vrot.slane %v1682, 4
        %v2231 = vrot.slane %v1686, 4
        %v2232 = vrot.slane %v1690, 4
        %v2233 = vrot.slane %v1694, 4
        %v2234 = vrot.slane %v1698, 4
        %v2235 = vrot.slane %v1702, 4
        %v2236 = vrot.slane %v1706, 4
        %v2237 = vrot.slane %v1710, 4
        %v2238 = vrot.slane %v1714, 4
        %v2239 = vrot.slane %v1717, 4
        %v2240 = vrot.slane %v1720, 4
        %v2241 = vrot.slane %v1723, 4
        %v2242 = vrot.slane %v1726, 4
        %v2243 = vrot.slane %v1729, 4
        %v2244 = vrot.slane %v1732, 4
        %v2245 = vrot.slane %v1735, 4
        %vm2246 = vcmask 1044480
        %vm2247 = vsmask.f32 4352
        %vm2248 = vmand %vm2246, %vm2247
        %v2249 = vsel %vm2248, %v1634, %v1742
        %v2250 = vsel %vm2248, %v1638, %v1749
        %v2251 = vsel %vm2248, %v1642, %v1756
        %v2252 = vsel %vm2248, %v1646, %v1763
        %v2253 = vsel %vm2248, %v1650, %v1770
        %v2254 = vsel %vm2248, %v1654, %v1777
        %v2255 = vsel %vm2248, %v1658, %v1784
        %v2256 = vsel %vm2248, %v1662, %v1791
        %v2257 = vsel %vm2248, %v1666, %v1798
        %v2258 = vsel %vm2248, %v1670, %v1805
        %v2259 = vsel %vm2248, %v1674, %v1812
        %v2260 = vsel %vm2248, %v1678, %v1819
        %v2261 = vsel %vm2248, %v1682, %v1826
        %v2262 = vsel %vm2248, %v1686, %v1833
        %v2263 = vsel %vm2248, %v1690, %v1840
        %v2264 = vsel %vm2248, %v1694, %v1847
        %v2265 = vsel %vm2248, %v1698, %v1854
        %v2266 = vsel %vm2248, %v1702, %v1861
        %v2267 = vsel %vm2248, %v1706, %v1868
        %v2268 = vsel %vm2248, %v1710, %v1875
        %v2271 = vsel %vm1199, %v1742, %v1916
        %v2275 = vsel %vm1199, %v1749, %v1917
        %v2279 = vsel %vm1199, %v1756, %v1918
        %v2283 = vsel %vm1199, %v1763, %v1919
        %v2287 = vsel %vm1199, %v1770, %v1920
        %v2291 = vsel %vm1199, %v1777, %v1921
        %v2295 = vsel %vm1199, %v1784, %v1922
        %v2299 = vsel %vm1199, %v1791, %v1923
        %v2303 = vsel %vm1199, %v1798, %v1924
        %v2307 = vsel %vm1199, %v1805, %v1925
        %v2311 = vsel %vm1199, %v1812, %v1926
        %v2315 = vsel %vm1199, %v1819, %v1927
        %v2319 = vsel %vm1199, %v1826, %v1928
        %v2323 = vsel %vm1199, %v1833, %v1929
        %v2327 = vsel %vm1199, %v1840, %v1930
        %v2331 = vsel %vm1199, %v1847, %v1931
        %v2335 = vsel %vm1199, %v1854, %v1932
        %v2339 = vsel %vm1199, %v1861, %v1933
        %v2343 = vsel %vm1199, %v1868, %v1934
        %v2347 = vsel %vm1199, %v1875, %v1935
        %vm2349 = vcmask 1045504
        %vm2350 = vsmask.f32 5376
        %vm2351 = vmand %vm2349, %vm2350
        %v2352 = vsel %vm2351, %v2271, %v1938
        %v2353 = vsel %vm2351, %v2275, %v1941
        %v2354 = vsel %vm2351, %v2279, %v1944
        %v2355 = vsel %vm2351, %v2283, %v1947
        %v2356 = vsel %vm2351, %v2287, %v1950
        %v2357 = vsel %vm2351, %v2291, %v1953
        %v2358 = vsel %vm2351, %v2295, %v1956
        %v2359 = vsel %vm2351, %v2299, %v1959
        %v2360 = vsel %vm2351, %v2303, %v1962
        %v2361 = vsel %vm2351, %v2307, %v1965
        %v2362 = vsel %vm2351, %v2311, %v1968
        %v2363 = vsel %vm2351, %v2315, %v1971
        %v2364 = vsel %vm2351, %v2319, %v1974
        %v2365 = vsel %vm2351, %v2323, %v1977
        %v2366 = vsel %vm2351, %v2327, %v1980
        %v2367 = vsel %vm2351, %v2331, %v1983
        %v2368 = vsel %vm2351, %v2335, %v1986
        %v2369 = vsel %vm2351, %v2339, %v1989
        %v2370 = vsel %vm2351, %v2343, %v1996
        %v2371 = vsel %vm2351, %v2347, %v2003
        %v2374 = vsel %vm1343, %v1938, %v2026
        %v2378 = vsel %vm1343, %v1941, %v2027
        %v2382 = vsel %vm1343, %v1944, %v2028
        %v2386 = vsel %vm1343, %v1947, %v2029
        %v2390 = vsel %vm1343, %v1950, %v2030
        %v2394 = vsel %vm1343, %v1953, %v2031
        %v2398 = vsel %vm1343, %v1956, %v2032
        %v2402 = vsel %vm1343, %v1959, %v2033
        %v2406 = vsel %vm1343, %v1962, %v2034
        %v2410 = vsel %vm1343, %v1965, %v2035
        %v2414 = vsel %vm1343, %v1968, %v2036
        %v2418 = vsel %vm1343, %v1971, %v2037
        %v2422 = vsel %vm1343, %v1974, %v2038
        %v2426 = vsel %vm1343, %v1977, %v2039
        %v2430 = vsel %vm1343, %v1980, %v2040
        %v2434 = vsel %vm1343, %v1983, %v2041
        %v2438 = vsel %vm1343, %v1986, %v2042
        %v2442 = vsel %vm1343, %v1989, %v2043
        %v2446 = vsel %vm1343, %v1996, %v2044
        %v2450 = vsel %vm1343, %v2003, %v2045
        %vm2452 = vcmask 1046528
        %vm2453 = vsmask.f32 6400
        %vm2454 = vmand %vm2452, %vm2453
        %v2455 = vsel %vm2454, %v2374, %v2048
        %v2456 = vsel %vm2454, %v2378, %v2051
        %v2457 = vsel %vm2454, %v2382, %v2054
        %v2458 = vsel %vm2454, %v2386, %v2057
        %v2459 = vsel %vm2454, %v2390, %v2060
        %v2460 = vsel %vm2454, %v2394, %v2063
        %v2461 = vsel %vm2454, %v2398, %v2066
        %v2462 = vsel %vm2454, %v2402, %v2069
        %v2463 = vsel %vm2454, %v2406, %v2072
        %v2464 = vsel %vm2454, %v2410, %v2075
        %v2465 = vsel %vm2454, %v2414, %v2078
        %v2466 = vsel %vm2454, %v2418, %v2081
        %v2467 = vsel %vm2454, %v2422, %v2084
        %v2468 = vsel %vm2454, %v2426, %v2087
        %v2469 = vsel %vm2454, %v2430, %v2090
        %v2470 = vsel %vm2454, %v2434, %v2093
        %v2471 = vsel %vm2454, %v2438, %v2096
        %v2472 = vsel %vm2454, %v2442, %v2099
        %v2473 = vsel %vm2454, %v2446, %v2106
        %v2474 = vsel %vm2454, %v2450, %v2113
        %v2477 = vsel %vm1487, %v2048, %v2136
        %v2481 = vsel %vm1487, %v2051, %v2137
        %v2485 = vsel %vm1487, %v2054, %v2138
        %v2489 = vsel %vm1487, %v2057, %v2139
        %v2493 = vsel %vm1487, %v2060, %v2140
        %v2497 = vsel %vm1487, %v2063, %v2141
        %v2501 = vsel %vm1487, %v2066, %v2142
        %v2505 = vsel %vm1487, %v2069, %v2143
        %v2509 = vsel %vm1487, %v2072, %v2144
        %v2513 = vsel %vm1487, %v2075, %v2145
        %v2517 = vsel %vm1487, %v2078, %v2146
        %v2521 = vsel %vm1487, %v2081, %v2147
        %v2525 = vsel %vm1487, %v2084, %v2148
        %v2529 = vsel %vm1487, %v2087, %v2149
        %v2533 = vsel %vm1487, %v2090, %v2150
        %v2537 = vsel %vm1487, %v2093, %v2151
        %v2541 = vsel %vm1487, %v2096, %v2152
        %v2545 = vsel %vm1487, %v2099, %v2153
        %v2549 = vsel %vm1487, %v2106, %v2154
        %v2553 = vsel %vm1487, %v2113, %v2155
        %vm2555 = vcmask 1047552
        %vm2556 = vsmask.f32 7424
        %vm2557 = vmand %vm2555, %vm2556
        %v2558 = vsel %vm2557, %v2477, %v2156
        %v2559 = vsel %vm2557, %v2481, %v2158
        %v2560 = vsel %vm2557, %v2485, %v2160
        %v2561 = vsel %vm2557, %v2489, %v2162
        %v2562 = vsel %vm2557, %v2493, %v2164
        %v2563 = vsel %vm2557, %v2497, %v2166
        %v2564 = vsel %vm2557, %v2501, %v2168
        %v2565 = vsel %vm2557, %v2505, %v2170
        %v2566 = vsel %vm2557, %v2509, %v2172
        %v2567 = vsel %vm2557, %v2513, %v2174
        %v2568 = vsel %vm2557, %v2517, %v2176
        %v2569 = vsel %vm2557, %v2521, %v2178
        %v2570 = vsel %vm2557, %v2525, %v2180
        %v2571 = vsel %vm2557, %v2529, %v2182
        %v2572 = vsel %vm2557, %v2533, %v2184
        %v2573 = vsel %vm2557, %v2537, %v2186
        %v2574 = vsel %vm2557, %v2541, %v2188
        %v2575 = vsel %vm2557, %v2545, %v2190
        %v2576 = vsel %vm2557, %v2549, %v2194
        %v2577 = vsel %vm2557, %v2553, %v2200
        %v2580 = vsel %vm1631, %v2157, %v2226
        %v2584 = vsel %vm1631, %v2159, %v2227
        %v2588 = vsel %vm1631, %v2161, %v2228
        %v2592 = vsel %vm1631, %v2163, %v2229
        %v2596 = vsel %vm1631, %v2165, %v2230
        %v2600 = vsel %vm1631, %v2167, %v2231
        %v2604 = vsel %vm1631, %v2169, %v2232
        %v2608 = vsel %vm1631, %v2171, %v2233
        %v2612 = vsel %vm1631, %v2173, %v2234
        %v2616 = vsel %vm1631, %v2175, %v2235
        %v2620 = vsel %vm1631, %v2177, %v2236
        %v2624 = vsel %vm1631, %v2179, %v2237
        %v2628 = vsel %vm1631, %v2181, %v2238
        %v2632 = vsel %vm1631, %v2183, %v2239
        %v2636 = vsel %vm1631, %v2185, %v2240
        %v2640 = vsel %vm1631, %v2187, %v2241
        %v2644 = vsel %vm1631, %v2189, %v2242
        %v2648 = vsel %vm1631, %v2191, %v2243
        %v2652 = vsel %vm1631, %v2197, %v2244
        %v2656 = vsel %vm1631, %v2203, %v2245
        %v2658 = vld [vmem:[%s1] sm:$0xf]
        %v2659 = vld [vmem:[%s1 + $0x4] sm:$0xf]
        %v2660 = vld [vmem:[%s1 + $0x8] sm:$0xf]
        %v2661 = vld [vmem:[%s1 + $0xc] sm:$0xf]
        %v2662 = vld [vmem:[%s1 + $0x10] sm:$0xf]
        %v2663 = vld [vmem:[%s1 + $0x14] sm:$0xf]
        %v2664 = vld [vmem:[%s1 + $0x18] sm:$0xf]
        %v2665 = vld [vmem:[%s1 + $0x1c] sm:$0xf]
        %v2666 = vld [vmem:[%s2] sm:$0xff]
        %v2667 = vld [vmem:[%s2 + $0x8] sm:$0xff]
        %v2668 = vld [vmem:[%s2 + $0x10] sm:$0xff]
        %v2669 = vld [vmem:[%s2 + $0x18] sm:$0xff]
        %v2670 = vld [vmem:[%s2 + $0x20] sm:$0xff]
        %v2671 = vld [vmem:[%s2 + $0x28] sm:$0xff]
        %v2672 = vld [vmem:[%s2 + $0x30] sm:$0xff]
        %v2673 = vld [vmem:[%s2 + $0x38] sm:$0xff]
        %2675 = vset.pattern.permute.xlu0 0
        %2676 = vperm.xlu0 %2675, %v2666
        %v2677 = vpop.permute.xlu0 %2676
        %2680 = vset.pattern.permute.xlu0 0
        %2681 = vperm.xlu0 %2680, %v2667
        %v2682 = vpop.permute.xlu0 %2681
        %2685 = vset.pattern.permute.xlu0 0
        %2686 = vperm.xlu0 %2685, %v2668
        %v2687 = vpop.permute.xlu0 %2686
        %2690 = vset.pattern.permute.xlu0 0
        %2691 = vperm.xlu0 %2690, %v2669
        %v2692 = vpop.permute.xlu0 %2691
        %2695 = vset.pattern.permute.xlu0 0
        %2696 = vperm.xlu0 %2695, %v2670
        %v2697 = vpop.permute.xlu0 %2696
        %2700 = vset.pattern.permute.xlu0 0
        %2701 = vperm.xlu0 %2700, %v2671
        %v2702 = vpop.permute.xlu0 %2701
        %2705 = vset.pattern.permute.xlu0 0
        %2706 = vperm.xlu0 %2705, %v2672
        %v2707 = vpop.permute.xlu0 %2706
        %2710 = vset.pattern.permute.xlu0 0
        %2711 = vperm.xlu0 %2710, %v2673
        %v2712 = vpop.permute.xlu0 %2711
        %v2722 = vunpack.c.l.b16 %v2658
        %v2723 = vunpack.c.l.b16 %v2659
        %v2724 = vunpack.c.l.b16 %v2660
        %v2725 = vunpack.c.l.b16 %v2661
        %v2726 = vunpack.c.l.b16 %v2662
        %v2727 = vunpack.c.l.b16 %v2663
        %v2728 = vunpack.c.l.b16 %v2664
        %v2729 = vunpack.c.l.b16 %v2665
        %v2730 = vpack.c.b16 %v2723, %v2722
        %v2731 = vpack.c.b16 %v2725, %v2724
        %v2732 = vpack.c.b16 %v2727, %v2726
        %v2733 = vpack.c.b16 %v2729, %v2728
        %vm2734 = vcmask 662528
        %v2736 = vsel %vm2734, %v2730, 0
        %v2739 = vsel %vm2734, %v2731, 0
        %v2742 = vsel %vm2734, %v2732, 0
        %v2745 = vsel %vm2734, %v2733, 0
        %v2747 = vsel 0, 4294967295, 65535
        %v2748 = vsel %vm1199, %v2747, 0
        %v2749 = vand.u32 %v2226, %v2748
        %2751 = vmatprep.subr.bf16.mxu0 0
        %2752 = vmatpush1.bf16.msra.mxu0 0
        %2753 = vmatprep.subr.bf16.mxu0 0
        %2754 = vmatpush1.bf16.msra.mxu0 0
        %2755 = vmatprep.subr.bf16.mxu0 0
        %2756 = vmatpush1.bf16.msra.mxu0 %v2749
        %2757 = vmatprep.subr.bf16.mxu0 0
        %2758 = vmatpush1.bf16.msra.mxu0 %v2580
        %2759 = vmatprep.subr.bf16.mxu0 0
        %2760 = vmatpush1.bf16.msra.mxu0 %v2558
        %2761 = vmatprep.subr.bf16.mxu0 0
        %2762 = vmatpush1.bf16.msra.mxu0 %v2455
        %2763 = vmatprep.subr.bf16.mxu0 0
        %2764 = vmatpush1.bf16.msra.mxu0 %v2352
        %2765 = vmatprep.subr.bf16.mxu0 0
        %2766 = vmatpush1.bf16.msra.mxu0 %v2249
        %2767 = vmatprep.subr.bf16.mxu0 0
        %2768 = vmatpush2.bf16.msra.mxu0 0
        %2769 = vmatprep.subr.bf16.mxu0 0
        %2770 = vmatpush2.bf16.msra.mxu0 0
        %2771 = vmatprep.subr.bf16.mxu0 0
        %2772 = vmatpush2.bf16.msra.mxu0 0
        %2773 = vmatprep.subr.bf16.mxu0 0
        %2774 = vmatpush2.bf16.msra.mxu0 0
        %2775 = vmatprep.subr.bf16.mxu0 0
        %2776 = vmatpush2.bf16.msra.mxu0 0
        %2777 = vmatprep.subr.bf16.mxu0 0
        %2778 = vmatpush2.bf16.msra.mxu0 0
        %2779 = vmatprep.subr.bf16.mxu0 0
        %2780 = vmatpush2.bf16.msra.mxu0 0
        %2781 = vmatprep.subr.bf16.mxu0 0
        %2782 = vmatpush2.bf16.msra.mxu0 0
        %2783 = vmatprep.mubr.bf16.mxu0 0
        %2784 = vmatmul.mubr.bf16.gmra.mxu0 %v2736
        %v2785 = vpop.f32.mrf.mxu0
        %v2786 = vadd.f32 %v2677, %v2785
        %v2787 = vpop.f32.mrf.mxu0
        %v2788 = vpop.f32.mrf.mxu0
        %v2789 = vadd.f32 %v2682, %v2788
        %v2790 = vpop.f32.mrf.mxu0
        %2791 = vmatprep.mubr.bf16.mxu0 0
        %2792 = vmatmul.mubr.bf16.gmra.mxu0 %v2739
        %v2793 = vpop.f32.mrf.mxu0
        %v2794 = vadd.f32 %v2687, %v2793
        %v2795 = vpop.f32.mrf.mxu0
        %v2796 = vpop.f32.mrf.mxu0
        %v2797 = vadd.f32 %v2692, %v2796
        %v2798 = vpop.f32.mrf.mxu0
        %2799 = vmatprep.mubr.bf16.mxu0 0
        %2800 = vmatmul.mubr.bf16.gmra.mxu0 %v2742
        %v2801 = vpop.f32.mrf.mxu0
        %v2802 = vadd.f32 %v2697, %v2801
        %v2803 = vpop.f32.mrf.mxu0
        %v2804 = vpop.f32.mrf.mxu0
        %v2805 = vadd.f32 %v2702, %v2804
        %v2806 = vpop.f32.mrf.mxu0
        %2807 = vmatprep.mubr.bf16.mxu0 0
        %2808 = vmatmul.mubr.bf16.gmra.mxu0 %v2745
        %v2809 = vpop.f32.mrf.mxu0
        %v2810 = vadd.f32 %v2707, %v2809
        %v2811 = vpop.f32.mrf.mxu0
        %v2812 = vpop.f32.mrf.mxu0
        %v2813 = vadd.f32 %v2712, %v2812
        %v2814 = vpop.f32.mrf.mxu0
        %2815 = vdwg.mxu0
        %v2816 = vand.u32 %v2227, %v2748
        %2818 = vmatprep.subr.bf16.mxu0 0
        %2819 = vmatpush1.bf16.msra.mxu0 0
        %2820 = vmatprep.subr.bf16.mxu0 0
        %2821 = vmatpush1.bf16.msra.mxu0 0
        %2822 = vmatprep.subr.bf16.mxu0 0
        %2823 = vmatpush1.bf16.msra.mxu0 %v2816
        %2824 = vmatprep.subr.bf16.mxu0 0
        %2825 = vmatpush1.bf16.msra.mxu0 %v2584
        %2826 = vmatprep.subr.bf16.mxu0 0
        %2827 = vmatpush1.bf16.msra.mxu0 %v2559
        %2828 = vmatprep.subr.bf16.mxu0 0
        %2829 = vmatpush1.bf16.msra.mxu0 %v2456
        %2830 = vmatprep.subr.bf16.mxu0 0
        %2831 = vmatpush1.bf16.msra.mxu0 %v2353
        %2832 = vmatprep.subr.bf16.mxu0 0
        %2833 = vmatpush1.bf16.msra.mxu0 %v2250
        %2834 = vmatprep.subr.bf16.mxu0 0
        %2835 = vmatpush2.bf16.msra.mxu0 0
        %2836 = vmatprep.subr.bf16.mxu0 0
        %2837 = vmatpush2.bf16.msra.mxu0 0
        %2838 = vmatprep.subr.bf16.mxu0 0
        %2839 = vmatpush2.bf16.msra.mxu0 0
        %2840 = vmatprep.subr.bf16.mxu0 0
        %2841 = vmatpush2.bf16.msra.mxu0 0
        %2842 = vmatprep.subr.bf16.mxu0 0
        %2843 = vmatpush2.bf16.msra.mxu0 0
        %2844 = vmatprep.subr.bf16.mxu0 0
        %2845 = vmatpush2.bf16.msra.mxu0 0
        %2846 = vmatprep.subr.bf16.mxu0 0
        %2847 = vmatpush2.bf16.msra.mxu0 0
        %2848 = vmatprep.subr.bf16.mxu0 0
        %2849 = vmatpush2.bf16.msra.mxu0 0
        %2850 = vmatprep.mubr.bf16.mxu0 0
        %2851 = vmatmul.mubr.bf16.gmra.mxu0 %v2736
        %v2852 = vpop.f32.mrf.mxu0
        %v2853 = vadd.f32 %v2677, %v2852
        %v2854 = vpop.f32.mrf.mxu0
        %v2855 = vpop.f32.mrf.mxu0
        %v2856 = vadd.f32 %v2682, %v2855
        %v2857 = vpop.f32.mrf.mxu0
        %2858 = vmatprep.mubr.bf16.mxu0 0
        %2859 = vmatmul.mubr.bf16.gmra.mxu0 %v2739
        %v2860 = vpop.f32.mrf.mxu0
        %v2861 = vadd.f32 %v2687, %v2860
        %v2862 = vpop.f32.mrf.mxu0
        %v2863 = vpop.f32.mrf.mxu0
        %v2864 = vadd.f32 %v2692, %v2863
        %v2865 = vpop.f32.mrf.mxu0
        %2866 = vmatprep.mubr.bf16.mxu0 0
        %2867 = vmatmul.mubr.bf16.gmra.mxu0 %v2742
        %v2868 = vpop.f32.mrf.mxu0
        %v2869 = vadd.f32 %v2697, %v2868
        %v2870 = vpop.f32.mrf.mxu0
        %v2871 = vpop.f32.mrf.mxu0
        %v2872 = vadd.f32 %v2702, %v2871
        %v2873 = vpop.f32.mrf.mxu0
        %2874 = vmatprep.mubr.bf16.mxu0 0
        %2875 = vmatmul.mubr.bf16.gmra.mxu0 %v2745
        %v2876 = vpop.f32.mrf.mxu0
        %v2877 = vadd.f32 %v2707, %v2876
        %v2878 = vpop.f32.mrf.mxu0
        %v2879 = vpop.f32.mrf.mxu0
        %v2880 = vadd.f32 %v2712, %v2879
        %v2881 = vpop.f32.mrf.mxu0
        %2882 = vdwg.mxu0
        %v2883 = vand.u32 %v2228, %v2748
        %2885 = vmatprep.subr.bf16.mxu0 0
        %2886 = vmatpush1.bf16.msra.mxu0 0
        %2887 = vmatprep.subr.bf16.mxu0 0
        %2888 = vmatpush1.bf16.msra.mxu0 0
        %2889 = vmatprep.subr.bf16.mxu0 0
        %2890 = vmatpush1.bf16.msra.mxu0 %v2883
        %2891 = vmatprep.subr.bf16.mxu0 0
        %2892 = vmatpush1.bf16.msra.mxu0 %v2588
        %2893 = vmatprep.subr.bf16.mxu0 0
        %2894 = vmatpush1.bf16.msra.mxu0 %v2560
        %2895 = vmatprep.subr.bf16.mxu0 0
        %2896 = vmatpush1.bf16.msra.mxu0 %v2457
        %2897 = vmatprep.subr.bf16.mxu0 0
        %2898 = vmatpush1.bf16.msra.mxu0 %v2354
        %2899 = vmatprep.subr.bf16.mxu0 0
        %2900 = vmatpush1.bf16.msra.mxu0 %v2251
        %2901 = vmatprep.subr.bf16.mxu0 0
        %2902 = vmatpush2.bf16.msra.mxu0 0
        %2903 = vmatprep.subr.bf16.mxu0 0
        %2904 = vmatpush2.bf16.msra.mxu0 0
        %2905 = vmatprep.subr.bf16.mxu0 0
        %2906 = vmatpush2.bf16.msra.mxu0 0
        %2907 = vmatprep.subr.bf16.mxu0 0
        %2908 = vmatpush2.bf16.msra.mxu0 0
        %2909 = vmatprep.subr.bf16.mxu0 0
        %2910 = vmatpush2.bf16.msra.mxu0 0
        %2911 = vmatprep.subr.bf16.mxu0 0
        %2912 = vmatpush2.bf16.msra.mxu0 0
        %2913 = vmatprep.subr.bf16.mxu0 0
        %2914 = vmatpush2.bf16.msra.mxu0 0
        %2915 = vmatprep.subr.bf16.mxu0 0
        %2916 = vmatpush2.bf16.msra.mxu0 0
        %2917 = vmatprep.mubr.bf16.mxu0 0
        %2918 = vmatmul.mubr.bf16.gmra.mxu0 %v2736
        %v2919 = vpop.f32.mrf.mxu0
        %v2920 = vadd.f32 %v2677, %v2919
        %v2921 = vpop.f32.mrf.mxu0
        %v2922 = vpop.f32.mrf.mxu0
        %v2923 = vadd.f32 %v2682, %v2922
        %v2924 = vpop.f32.mrf.mxu0
        %2925 = vmatprep.mubr.bf16.mxu0 0
        %2926 = vmatmul.mubr.bf16.gmra.mxu0 %v2739
        %v2927 = vpop.f32.mrf.mxu0
        %v2928 = vadd.f32 %v2687, %v2927
        %v2929 = vpop.f32.mrf.mxu0
        %v2930 = vpop.f32.mrf.mxu0
        %v2931 = vadd.f32 %v2692, %v2930
        %v2932 = vpop.f32.mrf.mxu0
        %2933 = vmatprep.mubr.bf16.mxu0 0
        %2934 = vmatmul.mubr.bf16.gmra.mxu0 %v2742
        %v2935 = vpop.f32.mrf.mxu0
        %v2936 = vadd.f32 %v2697, %v2935
        %v2937 = vpop.f32.mrf.mxu0
        %v2938 = vpop.f32.mrf.mxu0
        %v2939 = vadd.f32 %v2702, %v2938
        %v2940 = vpop.f32.mrf.mxu0
        %2941 = vmatprep.mubr.bf16.mxu0 0
        %2942 = vmatmul.mubr.bf16.gmra.mxu0 %v2745
        %v2943 = vpop.f32.mrf.mxu0
        %v2944 = vadd.f32 %v2707, %v2943
        %v2945 = vpop.f32.mrf.mxu0
        %v2946 = vpop.f32.mrf.mxu0
        %v2947 = vadd.f32 %v2712, %v2946
        %v2948 = vpop.f32.mrf.mxu0
        %2949 = vdwg.mxu0
        %v2950 = vand.u32 %v2229, %v2748
        %2952 = vmatprep.subr.bf16.mxu0 0
        %2953 = vmatpush1.bf16.msra.mxu0 0
        %2954 = vmatprep.subr.bf16.mxu0 0
        %2955 = vmatpush1.bf16.msra.mxu0 0
        %2956 = vmatprep.subr.bf16.mxu0 0
        %2957 = vmatpush1.bf16.msra.mxu0 %v2950
        %2958 = vmatprep.subr.bf16.mxu0 0
        %2959 = vmatpush1.bf16.msra.mxu0 %v2592
        %2960 = vmatprep.subr.bf16.mxu0 0
        %2961 = vmatpush1.bf16.msra.mxu0 %v2561
        %2962 = vmatprep.subr.bf16.mxu0 0
        %2963 = vmatpush1.bf16.msra.mxu0 %v2458
        %2964 = vmatprep.subr.bf16.mxu0 0
        %2965 = vmatpush1.bf16.msra.mxu0 %v2355
        %2966 = vmatprep.subr.bf16.mxu0 0
        %2967 = vmatpush1.bf16.msra.mxu0 %v2252
        %2968 = vmatprep.subr.bf16.mxu0 0
        %2969 = vmatpush2.bf16.msra.mxu0 0
        %2970 = vmatprep.subr.bf16.mxu0 0
        %2971 = vmatpush2.bf16.msra.mxu0 0
        %2972 = vmatprep.subr.bf16.mxu0 0
        %2973 = vmatpush2.bf16.msra.mxu0 0
        %2974 = vmatprep.subr.bf16.mxu0 0
        %2975 = vmatpush2.bf16.msra.mxu0 0
        %2976 = vmatprep.subr.bf16.mxu0 0
        %2977 = vmatpush2.bf16.msra.mxu0 0
        %2978 = vmatprep.subr.bf16.mxu0 0
        %2979 = vmatpush2.bf16.msra.mxu0 0
        %2980 = vmatprep.subr.bf16.mxu0 0
        %2981 = vmatpush2.bf16.msra.mxu0 0
        %2982 = vmatprep.subr.bf16.mxu0 0
        %2983 = vmatpush2.bf16.msra.mxu0 0
        %2984 = vmatprep.mubr.bf16.mxu0 0
        %2985 = vmatmul.mubr.bf16.gmra.mxu0 %v2736
        %v2986 = vpop.f32.mrf.mxu0
        %v2987 = vadd.f32 %v2677, %v2986
        %v2988 = vpop.f32.mrf.mxu0
        %v2989 = vpop.f32.mrf.mxu0
        %v2990 = vadd.f32 %v2682, %v2989
        %v2991 = vpop.f32.mrf.mxu0
        %2992 = vmatprep.mubr.bf16.mxu0 0
        %2993 = vmatmul.mubr.bf16.gmra.mxu0 %v2739
        %v2994 = vpop.f32.mrf.mxu0
        %v2995 = vadd.f32 %v2687, %v2994
        %v2996 = vpop.f32.mrf.mxu0
        %v2997 = vpop.f32.mrf.mxu0
        %v2998 = vadd.f32 %v2692, %v2997
        %v2999 = vpop.f32.mrf.mxu0
        %3000 = vmatprep.mubr.bf16.mxu0 0
        %3001 = vmatmul.mubr.bf16.gmra.mxu0 %v2742
        %v3002 = vpop.f32.mrf.mxu0
        %v3003 = vadd.f32 %v2697, %v3002
        %v3004 = vpop.f32.mrf.mxu0
        %v3005 = vpop.f32.mrf.mxu0
        %v3006 = vadd.f32 %v2702, %v3005
        %v3007 = vpop.f32.mrf.mxu0
        %3008 = vmatprep.mubr.bf16.mxu0 0
        %3009 = vmatmul.mubr.bf16.gmra.mxu0 %v2745
        %v3010 = vpop.f32.mrf.mxu0
        %v3011 = vadd.f32 %v2707, %v3010
        %v3012 = vpop.f32.mrf.mxu0
        %v3013 = vpop.f32.mrf.mxu0
        %v3014 = vadd.f32 %v2712, %v3013
        %v3015 = vpop.f32.mrf.mxu0
        %3016 = vdwg.mxu0
        %v3017 = vand.u32 %v2230, %v2748
        %3019 = vmatprep.subr.bf16.mxu0 0
        %3020 = vmatpush1.bf16.msra.mxu0 0
        %3021 = vmatprep.subr.bf16.mxu0 0
        %3022 = vmatpush1.bf16.msra.mxu0 0
        %3023 = vmatprep.subr.bf16.mxu0 0
        %3024 = vmatpush1.bf16.msra.mxu0 %v3017
        %3025 = vmatprep.subr.bf16.mxu0 0
        %3026 = vmatpush1.bf16.msra.mxu0 %v2596
        %3027 = vmatprep.subr.bf16.mxu0 0
        %3028 = vmatpush1.bf16.msra.mxu0 %v2562
        %3029 = vmatprep.subr.bf16.mxu0 0
        %3030 = vmatpush1.bf16.msra.mxu0 %v2459
        %3031 = vmatprep.subr.bf16.mxu0 0
        %3032 = vmatpush1.bf16.msra.mxu0 %v2356
        %3033 = vmatprep.subr.bf16.mxu0 0
        %3034 = vmatpush1.bf16.msra.mxu0 %v2253
        %3035 = vmatprep.subr.bf16.mxu0 0
        %3036 = vmatpush2.bf16.msra.mxu0 0
        %3037 = vmatprep.subr.bf16.mxu0 0
        %3038 = vmatpush2.bf16.msra.mxu0 0
        %3039 = vmatprep.subr.bf16.mxu0 0
        %3040 = vmatpush2.bf16.msra.mxu0 0
        %3041 = vmatprep.subr.bf16.mxu0 0
        %3042 = vmatpush2.bf16.msra.mxu0 0
        %3043 = vmatprep.subr.bf16.mxu0 0
        %3044 = vmatpush2.bf16.msra.mxu0 0
        %3045 = vmatprep.subr.bf16.mxu0 0
        %3046 = vmatpush2.bf16.msra.mxu0 0
        %3047 = vmatprep.subr.bf16.mxu0 0
        %3048 = vmatpush2.bf16.msra.mxu0 0
        %3049 = vmatprep.subr.bf16.mxu0 0
        %3050 = vmatpush2.bf16.msra.mxu0 0
        %3051 = vmatprep.mubr.bf16.mxu0 0
        %3052 = vmatmul.mubr.bf16.gmra.mxu0 %v2736
        %v3053 = vpop.f32.mrf.mxu0
        %v3054 = vadd.f32 %v2677, %v3053
        %v3055 = vpop.f32.mrf.mxu0
        %v3056 = vpop.f32.mrf.mxu0
        %v3057 = vadd.f32 %v2682, %v3056
        %v3058 = vpop.f32.mrf.mxu0
        %3059 = vmatprep.mubr.bf16.mxu0 0
        %3060 = vmatmul.mubr.bf16.gmra.mxu0 %v2739
        %v3061 = vpop.f32.mrf.mxu0
        %v3062 = vadd.f32 %v2687, %v3061
        %v3063 = vpop.f32.mrf.mxu0
        %v3064 = vpop.f32.mrf.mxu0
        %v3065 = vadd.f32 %v2692, %v3064
        %v3066 = vpop.f32.mrf.mxu0
        %3067 = vmatprep.mubr.bf16.mxu0 0
        %3068 = vmatmul.mubr.bf16.gmra.mxu0 %v2742
        %v3069 = vpop.f32.mrf.mxu0
        %v3070 = vadd.f32 %v2697, %v3069
        %v3071 = vpop.f32.mrf.mxu0
        %v3072 = vpop.f32.mrf.mxu0
        %v3073 = vadd.f32 %v2702, %v3072
        %v3074 = vpop.f32.mrf.mxu0
        %3075 = vmatprep.mubr.bf16.mxu0 0
        %3076 = vmatmul.mubr.bf16.gmra.mxu0 %v2745
        %v3077 = vpop.f32.mrf.mxu0
        %v3078 = vadd.f32 %v2707, %v3077
        %v3079 = vpop.f32.mrf.mxu0
        %v3080 = vpop.f32.mrf.mxu0
        %v3081 = vadd.f32 %v2712, %v3080
        %v3082 = vpop.f32.mrf.mxu0
        %3083 = vdwg.mxu0
        %v3084 = vand.u32 %v2231, %v2748
        %3086 = vmatprep.subr.bf16.mxu0 0
        %3087 = vmatpush1.bf16.msra.mxu0 0
        %3088 = vmatprep.subr.bf16.mxu0 0
        %3089 = vmatpush1.bf16.msra.mxu0 0
        %3090 = vmatprep.subr.bf16.mxu0 0
        %3091 = vmatpush1.bf16.msra.mxu0 %v3084
        %3092 = vmatprep.subr.bf16.mxu0 0
        %3093 = vmatpush1.bf16.msra.mxu0 %v2600
        %3094 = vmatprep.subr.bf16.mxu0 0
        %3095 = vmatpush1.bf16.msra.mxu0 %v2563
        %3096 = vmatprep.subr.bf16.mxu0 0
        %3097 = vmatpush1.bf16.msra.mxu0 %v2460
        %3098 = vmatprep.subr.bf16.mxu0 0
        %3099 = vmatpush1.bf16.msra.mxu0 %v2357
        %3100 = vmatprep.subr.bf16.mxu0 0
        %3101 = vmatpush1.bf16.msra.mxu0 %v2254
        %3102 = vmatprep.subr.bf16.mxu0 0
        %3103 = vmatpush2.bf16.msra.mxu0 0
        %3104 = vmatprep.subr.bf16.mxu0 0
        %3105 = vmatpush2.bf16.msra.mxu0 0
        %3106 = vmatprep.subr.bf16.mxu0 0
        %3107 = vmatpush2.bf16.msra.mxu0 0
        %3108 = vmatprep.subr.bf16.mxu0 0
        %3109 = vmatpush2.bf16.msra.mxu0 0
        %3110 = vmatprep.subr.bf16.mxu0 0
        %3111 = vmatpush2.bf16.msra.mxu0 0
        %3112 = vmatprep.subr.bf16.mxu0 0
        %3113 = vmatpush2.bf16.msra.mxu0 0
        %3114 = vmatprep.subr.bf16.mxu0 0
        %3115 = vmatpush2.bf16.msra.mxu0 0
        %3116 = vmatprep.subr.bf16.mxu0 0
        %3117 = vmatpush2.bf16.msra.mxu0 0
        %3118 = vmatprep.mubr.bf16.mxu0 0
        %3119 = vmatmul.mubr.bf16.gmra.mxu0 %v2736
        %v3120 = vpop.f32.mrf.mxu0
        %v3121 = vadd.f32 %v2677, %v3120
        %v3122 = vpop.f32.mrf.mxu0
        %v3123 = vpop.f32.mrf.mxu0
        %v3124 = vadd.f32 %v2682, %v3123
        %v3125 = vpop.f32.mrf.mxu0
        %3126 = vmatprep.mubr.bf16.mxu0 0
        %3127 = vmatmul.mubr.bf16.gmra.mxu0 %v2739
        %v3128 = vpop.f32.mrf.mxu0
        %v3129 = vadd.f32 %v2687, %v3128
        %v3130 = vpop.f32.mrf.mxu0
        %v3131 = vpop.f32.mrf.mxu0
        %v3132 = vadd.f32 %v2692, %v3131
        %v3133 = vpop.f32.mrf.mxu0
        %3134 = vmatprep.mubr.bf16.mxu0 0
        %3135 = vmatmul.mubr.bf16.gmra.mxu0 %v2742
        %v3136 = vpop.f32.mrf.mxu0
        %v3137 = vadd.f32 %v2697, %v3136
        %v3138 = vpop.f32.mrf.mxu0
        %v3139 = vpop.f32.mrf.mxu0
        %v3140 = vadd.f32 %v2702, %v3139
        %v3141 = vpop.f32.mrf.mxu0
        %3142 = vmatprep.mubr.bf16.mxu0 0
        %3143 = vmatmul.mubr.bf16.gmra.mxu0 %v2745
        %v3144 = vpop.f32.mrf.mxu0
        %v3145 = vadd.f32 %v2707, %v3144
        %v3146 = vpop.f32.mrf.mxu0
        %v3147 = vpop.f32.mrf.mxu0
        %v3148 = vadd.f32 %v2712, %v3147
        %v3149 = vpop.f32.mrf.mxu0
        %3150 = vdwg.mxu0
        %v3151 = vand.u32 %v2232, %v2748
        %3153 = vmatprep.subr.bf16.mxu0 0
        %3154 = vmatpush1.bf16.msra.mxu0 0
        %3155 = vmatprep.subr.bf16.mxu0 0
        %3156 = vmatpush1.bf16.msra.mxu0 0
        %3157 = vmatprep.subr.bf16.mxu0 0
        %3158 = vmatpush1.bf16.msra.mxu0 %v3151
        %3159 = vmatprep.subr.bf16.mxu0 0
        %3160 = vmatpush1.bf16.msra.mxu0 %v2604
        %3161 = vmatprep.subr.bf16.mxu0 0
        %3162 = vmatpush1.bf16.msra.mxu0 %v2564
        %3163 = vmatprep.subr.bf16.mxu0 0
        %3164 = vmatpush1.bf16.msra.mxu0 %v2461
        %3165 = vmatprep.subr.bf16.mxu0 0
        %3166 = vmatpush1.bf16.msra.mxu0 %v2358
        %3167 = vmatprep.subr.bf16.mxu0 0
        %3168 = vmatpush1.bf16.msra.mxu0 %v2255
        %3169 = vmatprep.subr.bf16.mxu0 0
        %3170 = vmatpush2.bf16.msra.mxu0 0
        %3171 = vmatprep.subr.bf16.mxu0 0
        %3172 = vmatpush2.bf16.msra.mxu0 0
        %3173 = vmatprep.subr.bf16.mxu0 0
        %3174 = vmatpush2.bf16.msra.mxu0 0
        %3175 = vmatprep.subr.bf16.mxu0 0
        %3176 = vmatpush2.bf16.msra.mxu0 0
        %3177 = vmatprep.subr.bf16.mxu0 0
        %3178 = vmatpush2.bf16.msra.mxu0 0
        %3179 = vmatprep.subr.bf16.mxu0 0
        %3180 = vmatpush2.bf16.msra.mxu0 0
        %3181 = vmatprep.subr.bf16.mxu0 0
        %3182 = vmatpush2.bf16.msra.mxu0 0
        %3183 = vmatprep.subr.bf16.mxu0 0
        %3184 = vmatpush2.bf16.msra.mxu0 0
        %3185 = vmatprep.mubr.bf16.mxu0 0
        %3186 = vmatmul.mubr.bf16.gmra.mxu0 %v2736
        %v3187 = vpop.f32.mrf.mxu0
        %v3188 = vadd.f32 %v2677, %v3187
        %v3189 = vpop.f32.mrf.mxu0
        %v3190 = vpop.f32.mrf.mxu0
        %v3191 = vadd.f32 %v2682, %v3190
        %v3192 = vpop.f32.mrf.mxu0
        %3193 = vmatprep.mubr.bf16.mxu0 0
        %3194 = vmatmul.mubr.bf16.gmra.mxu0 %v2739
        %v3195 = vpop.f32.mrf.mxu0
        %v3196 = vadd.f32 %v2687, %v3195
        %v3197 = vpop.f32.mrf.mxu0
        %v3198 = vpop.f32.mrf.mxu0
        %v3199 = vadd.f32 %v2692, %v3198
        %v3200 = vpop.f32.mrf.mxu0
        %3201 = vmatprep.mubr.bf16.mxu0 0
        %3202 = vmatmul.mubr.bf16.gmra.mxu0 %v2742
        %v3203 = vpop.f32.mrf.mxu0
        %v3204 = vadd.f32 %v2697, %v3203
        %v3205 = vpop.f32.mrf.mxu0
        %v3206 = vpop.f32.mrf.mxu0
        %v3207 = vadd.f32 %v2702, %v3206
        %v3208 = vpop.f32.mrf.mxu0
        %3209 = vmatprep.mubr.bf16.mxu0 0
        %3210 = vmatmul.mubr.bf16.gmra.mxu0 %v2745
        %v3211 = vpop.f32.mrf.mxu0
        %v3212 = vadd.f32 %v2707, %v3211
        %v3213 = vpop.f32.mrf.mxu0
        %v3214 = vpop.f32.mrf.mxu0
        %v3215 = vadd.f32 %v2712, %v3214
        %v3216 = vpop.f32.mrf.mxu0
        %3217 = vdwg.mxu0
        %v3218 = vand.u32 %v2233, %v2748
        %3220 = vmatprep.subr.bf16.mxu0 0
        %3221 = vmatpush1.bf16.msra.mxu0 0
        %3222 = vmatprep.subr.bf16.mxu0 0
        %3223 = vmatpush1.bf16.msra.mxu0 0
        %3224 = vmatprep.subr.bf16.mxu0 0
        %3225 = vmatpush1.bf16.msra.mxu0 %v3218
        %3226 = vmatprep.subr.bf16.mxu0 0
        %3227 = vmatpush1.bf16.msra.mxu0 %v2608
        %3228 = vmatprep.subr.bf16.mxu0 0
        %3229 = vmatpush1.bf16.msra.mxu0 %v2565
        %3230 = vmatprep.subr.bf16.mxu0 0
        %3231 = vmatpush1.bf16.msra.mxu0 %v2462
        %3232 = vmatprep.subr.bf16.mxu0 0
        %3233 = vmatpush1.bf16.msra.mxu0 %v2359
        %3234 = vmatprep.subr.bf16.mxu0 0
        %3235 = vmatpush1.bf16.msra.mxu0 %v2256
        %3236 = vmatprep.subr.bf16.mxu0 0
        %3237 = vmatpush2.bf16.msra.mxu0 0
        %3238 = vmatprep.subr.bf16.mxu0 0
        %3239 = vmatpush2.bf16.msra.mxu0 0
        %3240 = vmatprep.subr.bf16.mxu0 0
        %3241 = vmatpush2.bf16.msra.mxu0 0
        %3242 = vmatprep.subr.bf16.mxu0 0
        %3243 = vmatpush2.bf16.msra.mxu0 0
        %3244 = vmatprep.subr.bf16.mxu0 0
        %3245 = vmatpush2.bf16.msra.mxu0 0
        %3246 = vmatprep.subr.bf16.mxu0 0
        %3247 = vmatpush2.bf16.msra.mxu0 0
        %3248 = vmatprep.subr.bf16.mxu0 0
        %3249 = vmatpush2.bf16.msra.mxu0 0
        %3250 = vmatprep.subr.bf16.mxu0 0
        %3251 = vmatpush2.bf16.msra.mxu0 0
        %3252 = vmatprep.mubr.bf16.mxu0 0
        %3253 = vmatmul.mubr.bf16.gmra.mxu0 %v2736
        %v3254 = vpop.f32.mrf.mxu0
        %v3255 = vadd.f32 %v2677, %v3254
        %v3256 = vpop.f32.mrf.mxu0
        %v3257 = vpop.f32.mrf.mxu0
        %v3258 = vadd.f32 %v2682, %v3257
        %v3259 = vpop.f32.mrf.mxu0
        %3260 = vmatprep.mubr.bf16.mxu0 0
        %3261 = vmatmul.mubr.bf16.gmra.mxu0 %v2739
        %v3262 = vpop.f32.mrf.mxu0
        %v3263 = vadd.f32 %v2687, %v3262
        %v3264 = vpop.f32.mrf.mxu0
        %v3265 = vpop.f32.mrf.mxu0
        %v3266 = vadd.f32 %v2692, %v3265
        %v3267 = vpop.f32.mrf.mxu0
        %3268 = vmatprep.mubr.bf16.mxu0 0
        %3269 = vmatmul.mubr.bf16.gmra.mxu0 %v2742
        %v3270 = vpop.f32.mrf.mxu0
        %v3271 = vadd.f32 %v2697, %v3270
        %v3272 = vpop.f32.mrf.mxu0
        %v3273 = vpop.f32.mrf.mxu0
        %v3274 = vadd.f32 %v2702, %v3273
        %v3275 = vpop.f32.mrf.mxu0
        %3276 = vmatprep.mubr.bf16.mxu0 0
        %3277 = vmatmul.mubr.bf16.gmra.mxu0 %v2745
        %v3278 = vpop.f32.mrf.mxu0
        %v3279 = vadd.f32 %v2707, %v3278
        %v3280 = vpop.f32.mrf.mxu0
        %v3281 = vpop.f32.mrf.mxu0
        %v3282 = vadd.f32 %v2712, %v3281
        %v3283 = vpop.f32.mrf.mxu0
        %3284 = vdwg.mxu0
        %v3285 = vand.u32 %v2234, %v2748
        %3287 = vmatprep.subr.bf16.mxu0 0
        %3288 = vmatpush1.bf16.msra.mxu0 0
        %3289 = vmatprep.subr.bf16.mxu0 0
        %3290 = vmatpush1.bf16.msra.mxu0 0
        %3291 = vmatprep.subr.bf16.mxu0 0
        %3292 = vmatpush1.bf16.msra.mxu0 %v3285
        %3293 = vmatprep.subr.bf16.mxu0 0
        %3294 = vmatpush1.bf16.msra.mxu0 %v2612
        %3295 = vmatprep.subr.bf16.mxu0 0
        %3296 = vmatpush1.bf16.msra.mxu0 %v2566
        %3297 = vmatprep.subr.bf16.mxu0 0
        %3298 = vmatpush1.bf16.msra.mxu0 %v2463
        %3299 = vmatprep.subr.bf16.mxu0 0
        %3300 = vmatpush1.bf16.msra.mxu0 %v2360
        %3301 = vmatprep.subr.bf16.mxu0 0
        %3302 = vmatpush1.bf16.msra.mxu0 %v2257
        %3303 = vmatprep.subr.bf16.mxu0 0
        %3304 = vmatpush2.bf16.msra.mxu0 0
        %3305 = vmatprep.subr.bf16.mxu0 0
        %3306 = vmatpush2.bf16.msra.mxu0 0
        %3307 = vmatprep.subr.bf16.mxu0 0
        %3308 = vmatpush2.bf16.msra.mxu0 0
        %3309 = vmatprep.subr.bf16.mxu0 0
        %3310 = vmatpush2.bf16.msra.mxu0 0
        %3311 = vmatprep.subr.bf16.mxu0 0
        %3312 = vmatpush2.bf16.msra.mxu0 0
        %3313 = vmatprep.subr.bf16.mxu0 0
        %3314 = vmatpush2.bf16.msra.mxu0 0
        %3315 = vmatprep.subr.bf16.mxu0 0
        %3316 = vmatpush2.bf16.msra.mxu0 0
        %3317 = vmatprep.subr.bf16.mxu0 0
        %3318 = vmatpush2.bf16.msra.mxu0 0
        %3319 = vmatprep.mubr.bf16.mxu0 0
        %3320 = vmatmul.mubr.bf16.gmra.mxu0 %v2736
        %v3321 = vpop.f32.mrf.mxu0
        %v3322 = vadd.f32 %v2677, %v3321
        %v3323 = vpop.f32.mrf.mxu0
        %v3324 = vpop.f32.mrf.mxu0
        %v3325 = vadd.f32 %v2682, %v3324
        %v3326 = vpop.f32.mrf.mxu0
        %3327 = vmatprep.mubr.bf16.mxu0 0
        %3328 = vmatmul.mubr.bf16.gmra.mxu0 %v2739
        %v3329 = vpop.f32.mrf.mxu0
        %v3330 = vadd.f32 %v2687, %v3329
        %v3331 = vpop.f32.mrf.mxu0
        %v3332 = vpop.f32.mrf.mxu0
        %v3333 = vadd.f32 %v2692, %v3332
        %v3334 = vpop.f32.mrf.mxu0
        %3335 = vmatprep.mubr.bf16.mxu0 0
        %3336 = vmatmul.mubr.bf16.gmra.mxu0 %v2742
        %v3337 = vpop.f32.mrf.mxu0
        %v3338 = vadd.f32 %v2697, %v3337
        %v3339 = vpop.f32.mrf.mxu0
        %v3340 = vpop.f32.mrf.mxu0
        %v3341 = vadd.f32 %v2702, %v3340
        %v3342 = vpop.f32.mrf.mxu0
        %3343 = vmatprep.mubr.bf16.mxu0 0
        %3344 = vmatmul.mubr.bf16.gmra.mxu0 %v2745
        %v3345 = vpop.f32.mrf.mxu0
        %v3346 = vadd.f32 %v2707, %v3345
        %v3347 = vpop.f32.mrf.mxu0
        %v3348 = vpop.f32.mrf.mxu0
        %v3349 = vadd.f32 %v2712, %v3348
        %v3350 = vpop.f32.mrf.mxu0
        %3351 = vdwg.mxu0
        %v3352 = vand.u32 %v2235, %v2748
        %3354 = vmatprep.subr.bf16.mxu0 0
        %3355 = vmatpush1.bf16.msra.mxu0 0
        %3356 = vmatprep.subr.bf16.mxu0 0
        %3357 = vmatpush1.bf16.msra.mxu0 0
        %3358 = vmatprep.subr.bf16.mxu0 0
        %3359 = vmatpush1.bf16.msra.mxu0 %v3352
        %3360 = vmatprep.subr.bf16.mxu0 0
        %3361 = vmatpush1.bf16.msra.mxu0 %v2616
        %3362 = vmatprep.subr.bf16.mxu0 0
        %3363 = vmatpush1.bf16.msra.mxu0 %v2567
        %3364 = vmatprep.subr.bf16.mxu0 0
        %3365 = vmatpush1.bf16.msra.mxu0 %v2464
        %3366 = vmatprep.subr.bf16.mxu0 0
        %3367 = vmatpush1.bf16.msra.mxu0 %v2361
        %3368 = vmatprep.subr.bf16.mxu0 0
        %3369 = vmatpush1.bf16.msra.mxu0 %v2258
        %3370 = vmatprep.subr.bf16.mxu0 0
        %3371 = vmatpush2.bf16.msra.mxu0 0
        %3372 = vmatprep.subr.bf16.mxu0 0
        %3373 = vmatpush2.bf16.msra.mxu0 0
        %3374 = vmatprep.subr.bf16.mxu0 0
        %3375 = vmatpush2.bf16.msra.mxu0 0
        %3376 = vmatprep.subr.bf16.mxu0 0
        %3377 = vmatpush2.bf16.msra.mxu0 0
        %3378 = vmatprep.subr.bf16.mxu0 0
        %3379 = vmatpush2.bf16.msra.mxu0 0
        %3380 = vmatprep.subr.bf16.mxu0 0
        %3381 = vmatpush2.bf16.msra.mxu0 0
        %3382 = vmatprep.subr.bf16.mxu0 0
        %3383 = vmatpush2.bf16.msra.mxu0 0
        %3384 = vmatprep.subr.bf16.mxu0 0
        %3385 = vmatpush2.bf16.msra.mxu0 0
        %3386 = vmatprep.mubr.bf16.mxu0 0
        %3387 = vmatmul.mubr.bf16.gmra.mxu0 %v2736
        %v3388 = vpop.f32.mrf.mxu0
        %v3389 = vadd.f32 %v2677, %v3388
        %v3390 = vpop.f32.mrf.mxu0
        %v3391 = vpop.f32.mrf.mxu0
        %v3392 = vadd.f32 %v2682, %v3391
        %v3393 = vpop.f32.mrf.mxu0
        %3394 = vmatprep.mubr.bf16.mxu0 0
        %3395 = vmatmul.mubr.bf16.gmra.mxu0 %v2739
        %v3396 = vpop.f32.mrf.mxu0
        %v3397 = vadd.f32 %v2687, %v3396
        %v3398 = vpop.f32.mrf.mxu0
        %v3399 = vpop.f32.mrf.mxu0
        %v3400 = vadd.f32 %v2692, %v3399
        %v3401 = vpop.f32.mrf.mxu0
        %3402 = vmatprep.mubr.bf16.mxu0 0
        %3403 = vmatmul.mubr.bf16.gmra.mxu0 %v2742
        %v3404 = vpop.f32.mrf.mxu0
        %v3405 = vadd.f32 %v2697, %v3404
        %v3406 = vpop.f32.mrf.mxu0
        %v3407 = vpop.f32.mrf.mxu0
        %v3408 = vadd.f32 %v2702, %v3407
        %v3409 = vpop.f32.mrf.mxu0
        %3410 = vmatprep.mubr.bf16.mxu0 0
        %3411 = vmatmul.mubr.bf16.gmra.mxu0 %v2745
        %v3412 = vpop.f32.mrf.mxu0
        %v3413 = vadd.f32 %v2707, %v3412
        %v3414 = vpop.f32.mrf.mxu0
        %v3415 = vpop.f32.mrf.mxu0
        %v3416 = vadd.f32 %v2712, %v3415
        %v3417 = vpop.f32.mrf.mxu0
        %3418 = vdwg.mxu0
        %v3419 = vand.u32 %v2236, %v2748
        %3421 = vmatprep.subr.bf16.mxu0 0
        %3422 = vmatpush1.bf16.msra.mxu0 0
        %3423 = vmatprep.subr.bf16.mxu0 0
        %3424 = vmatpush1.bf16.msra.mxu0 0
        %3425 = vmatprep.subr.bf16.mxu0 0
        %3426 = vmatpush1.bf16.msra.mxu0 %v3419
        %3427 = vmatprep.subr.bf16.mxu0 0
        %3428 = vmatpush1.bf16.msra.mxu0 %v2620
        %3429 = vmatprep.subr.bf16.mxu0 0
        %3430 = vmatpush1.bf16.msra.mxu0 %v2568
        %3431 = vmatprep.subr.bf16.mxu0 0
        %3432 = vmatpush1.bf16.msra.mxu0 %v2465
        %3433 = vmatprep.subr.bf16.mxu0 0
        %3434 = vmatpush1.bf16.msra.mxu0 %v2362
        %3435 = vmatprep.subr.bf16.mxu0 0
        %3436 = vmatpush1.bf16.msra.mxu0 %v2259
        %3437 = vmatprep.subr.bf16.mxu0 0
        %3438 = vmatpush2.bf16.msra.mxu0 0
        %3439 = vmatprep.subr.bf16.mxu0 0
        %3440 = vmatpush2.bf16.msra.mxu0 0
        %3441 = vmatprep.subr.bf16.mxu0 0
        %3442 = vmatpush2.bf16.msra.mxu0 0
        %3443 = vmatprep.subr.bf16.mxu0 0
        %3444 = vmatpush2.bf16.msra.mxu0 0
        %3445 = vmatprep.subr.bf16.mxu0 0
        %3446 = vmatpush2.bf16.msra.mxu0 0
        %3447 = vmatprep.subr.bf16.mxu0 0
        %3448 = vmatpush2.bf16.msra.mxu0 0
        %3449 = vmatprep.subr.bf16.mxu0 0
        %3450 = vmatpush2.bf16.msra.mxu0 0
        %3451 = vmatprep.subr.bf16.mxu0 0
        %3452 = vmatpush2.bf16.msra.mxu0 0
        %3453 = vmatprep.mubr.bf16.mxu0 0
        %3454 = vmatmul.mubr.bf16.gmra.mxu0 %v2736
        %v3455 = vpop.f32.mrf.mxu0
        %v3456 = vadd.f32 %v2677, %v3455
        %v3457 = vpop.f32.mrf.mxu0
        %v3458 = vpop.f32.mrf.mxu0
        %v3459 = vadd.f32 %v2682, %v3458
        %v3460 = vpop.f32.mrf.mxu0
        %3461 = vmatprep.mubr.bf16.mxu0 0
        %3462 = vmatmul.mubr.bf16.gmra.mxu0 %v2739
        %v3463 = vpop.f32.mrf.mxu0
        %v3464 = vadd.f32 %v2687, %v3463
        %v3465 = vpop.f32.mrf.mxu0
        %v3466 = vpop.f32.mrf.mxu0
        %v3467 = vadd.f32 %v2692, %v3466
        %v3468 = vpop.f32.mrf.mxu0
        %3469 = vmatprep.mubr.bf16.mxu0 0
        %3470 = vmatmul.mubr.bf16.gmra.mxu0 %v2742
        %v3471 = vpop.f32.mrf.mxu0
        %v3472 = vadd.f32 %v2697, %v3471
        %v3473 = vpop.f32.mrf.mxu0
        %v3474 = vpop.f32.mrf.mxu0
        %v3475 = vadd.f32 %v2702, %v3474
        %v3476 = vpop.f32.mrf.mxu0
        %3477 = vmatprep.mubr.bf16.mxu0 0
        %3478 = vmatmul.mubr.bf16.gmra.mxu0 %v2745
        %v3479 = vpop.f32.mrf.mxu0
        %v3480 = vadd.f32 %v2707, %v3479
        %v3481 = vpop.f32.mrf.mxu0
        %v3482 = vpop.f32.mrf.mxu0
        %v3483 = vadd.f32 %v2712, %v3482
        %v3484 = vpop.f32.mrf.mxu0
        %3485 = vdwg.mxu0
        %v3486 = vand.u32 %v2237, %v2748
        %3488 = vmatprep.subr.bf16.mxu0 0
        %3489 = vmatpush1.bf16.msra.mxu0 0
        %3490 = vmatprep.subr.bf16.mxu0 0
        %3491 = vmatpush1.bf16.msra.mxu0 0
        %3492 = vmatprep.subr.bf16.mxu0 0
        %3493 = vmatpush1.bf16.msra.mxu0 %v3486
        %3494 = vmatprep.subr.bf16.mxu0 0
        %3495 = vmatpush1.bf16.msra.mxu0 %v2624
        %3496 = vmatprep.subr.bf16.mxu0 0
        %3497 = vmatpush1.bf16.msra.mxu0 %v2569
        %3498 = vmatprep.subr.bf16.mxu0 0
        %3499 = vmatpush1.bf16.msra.mxu0 %v2466
        %3500 = vmatprep.subr.bf16.mxu0 0
        %3501 = vmatpush1.bf16.msra.mxu0 %v2363
        %3502 = vmatprep.subr.bf16.mxu0 0
        %3503 = vmatpush1.bf16.msra.mxu0 %v2260
        %3504 = vmatprep.subr.bf16.mxu0 0
        %3505 = vmatpush2.bf16.msra.mxu0 0
        %3506 = vmatprep.subr.bf16.mxu0 0
        %3507 = vmatpush2.bf16.msra.mxu0 0
        %3508 = vmatprep.subr.bf16.mxu0 0
        %3509 = vmatpush2.bf16.msra.mxu0 0
        %3510 = vmatprep.subr.bf16.mxu0 0
        %3511 = vmatpush2.bf16.msra.mxu0 0
        %3512 = vmatprep.subr.bf16.mxu0 0
        %3513 = vmatpush2.bf16.msra.mxu0 0
        %3514 = vmatprep.subr.bf16.mxu0 0
        %3515 = vmatpush2.bf16.msra.mxu0 0
        %3516 = vmatprep.subr.bf16.mxu0 0
        %3517 = vmatpush2.bf16.msra.mxu0 0
        %3518 = vmatprep.subr.bf16.mxu0 0
        %3519 = vmatpush2.bf16.msra.mxu0 0
        %3520 = vmatprep.mubr.bf16.mxu0 0
        %3521 = vmatmul.mubr.bf16.gmra.mxu0 %v2736
        %v3522 = vpop.f32.mrf.mxu0
        %v3523 = vadd.f32 %v2677, %v3522
        %v3524 = vpop.f32.mrf.mxu0
        %v3525 = vpop.f32.mrf.mxu0
        %v3526 = vadd.f32 %v2682, %v3525
        %v3527 = vpop.f32.mrf.mxu0
        %3528 = vmatprep.mubr.bf16.mxu0 0
        %3529 = vmatmul.mubr.bf16.gmra.mxu0 %v2739
        %v3530 = vpop.f32.mrf.mxu0
        %v3531 = vadd.f32 %v2687, %v3530
        %v3532 = vpop.f32.mrf.mxu0
        %v3533 = vpop.f32.mrf.mxu0
        %v3534 = vadd.f32 %v2692, %v3533
        %v3535 = vpop.f32.mrf.mxu0
        %3536 = vmatprep.mubr.bf16.mxu0 0
        %3537 = vmatmul.mubr.bf16.gmra.mxu0 %v2742
        %v3538 = vpop.f32.mrf.mxu0
        %v3539 = vadd.f32 %v2697, %v3538
        %v3540 = vpop.f32.mrf.mxu0
        %v3541 = vpop.f32.mrf.mxu0
        %v3542 = vadd.f32 %v2702, %v3541
        %v3543 = vpop.f32.mrf.mxu0
        %3544 = vmatprep.mubr.bf16.mxu0 0
        %3545 = vmatmul.mubr.bf16.gmra.mxu0 %v2745
        %v3546 = vpop.f32.mrf.mxu0
        %v3547 = vadd.f32 %v2707, %v3546
        %v3548 = vpop.f32.mrf.mxu0
        %v3549 = vpop.f32.mrf.mxu0
        %v3550 = vadd.f32 %v2712, %v3549
        %v3551 = vpop.f32.mrf.mxu0
        %3552 = vdwg.mxu0
        %v3553 = vand.u32 %v2238, %v2748
        %3555 = vmatprep.subr.bf16.mxu0 0
        %3556 = vmatpush1.bf16.msra.mxu0 0
        %3557 = vmatprep.subr.bf16.mxu0 0
        %3558 = vmatpush1.bf16.msra.mxu0 0
        %3559 = vmatprep.subr.bf16.mxu0 0
        %3560 = vmatpush1.bf16.msra.mxu0 %v3553
        %3561 = vmatprep.subr.bf16.mxu0 0
        %3562 = vmatpush1.bf16.msra.mxu0 %v2628
        %3563 = vmatprep.subr.bf16.mxu0 0
        %3564 = vmatpush1.bf16.msra.mxu0 %v2570
        %3565 = vmatprep.subr.bf16.mxu0 0
        %3566 = vmatpush1.bf16.msra.mxu0 %v2467
        %3567 = vmatprep.subr.bf16.mxu0 0
        %3568 = vmatpush1.bf16.msra.mxu0 %v2364
        %3569 = vmatprep.subr.bf16.mxu0 0
        %3570 = vmatpush1.bf16.msra.mxu0 %v2261
        %3571 = vmatprep.subr.bf16.mxu0 0
        %3572 = vmatpush2.bf16.msra.mxu0 0
        %3573 = vmatprep.subr.bf16.mxu0 0
        %3574 = vmatpush2.bf16.msra.mxu0 0
        %3575 = vmatprep.subr.bf16.mxu0 0
        %3576 = vmatpush2.bf16.msra.mxu0 0
        %3577 = vmatprep.subr.bf16.mxu0 0
        %3578 = vmatpush2.bf16.msra.mxu0 0
        %3579 = vmatprep.subr.bf16.mxu0 0
        %3580 = vmatpush2.bf16.msra.mxu0 0
        %3581 = vmatprep.subr.bf16.mxu0 0
        %3582 = vmatpush2.bf16.msra.mxu0 0
        %3583 = vmatprep.subr.bf16.mxu0 0
        %3584 = vmatpush2.bf16.msra.mxu0 0
        %3585 = vmatprep.subr.bf16.mxu0 0
        %3586 = vmatpush2.bf16.msra.mxu0 0
        %3587 = vmatprep.mubr.bf16.mxu0 0
        %3588 = vmatmul.mubr.bf16.gmra.mxu0 %v2736
        %v3589 = vpop.f32.mrf.mxu0
        %v3590 = vadd.f32 %v2677, %v3589
        %v3591 = vpop.f32.mrf.mxu0
        %v3592 = vpop.f32.mrf.mxu0
        %v3593 = vadd.f32 %v2682, %v3592
        %v3594 = vpop.f32.mrf.mxu0
        %3595 = vmatprep.mubr.bf16.mxu0 0
        %3596 = vmatmul.mubr.bf16.gmra.mxu0 %v2739
        %v3597 = vpop.f32.mrf.mxu0
        %v3598 = vadd.f32 %v2687, %v3597
        %v3599 = vpop.f32.mrf.mxu0
        %v3600 = vpop.f32.mrf.mxu0
        %v3601 = vadd.f32 %v2692, %v3600
        %v3602 = vpop.f32.mrf.mxu0
        %3603 = vmatprep.mubr.bf16.mxu0 0
        %3604 = vmatmul.mubr.bf16.gmra.mxu0 %v2742
        %v3605 = vpop.f32.mrf.mxu0
        %v3606 = vadd.f32 %v2697, %v3605
        %v3607 = vpop.f32.mrf.mxu0
        %v3608 = vpop.f32.mrf.mxu0
        %v3609 = vadd.f32 %v2702, %v3608
        %v3610 = vpop.f32.mrf.mxu0
        %3611 = vmatprep.mubr.bf16.mxu0 0
        %3612 = vmatmul.mubr.bf16.gmra.mxu0 %v2745
        %v3613 = vpop.f32.mrf.mxu0
        %v3614 = vadd.f32 %v2707, %v3613
        %v3615 = vpop.f32.mrf.mxu0
        %v3616 = vpop.f32.mrf.mxu0
        %v3617 = vadd.f32 %v2712, %v3616
        %v3618 = vpop.f32.mrf.mxu0
        %3619 = vdwg.mxu0
        %v3620 = vand.u32 %v2239, %v2748
        %3622 = vmatprep.subr.bf16.mxu0 0
        %3623 = vmatpush1.bf16.msra.mxu0 0
        %3624 = vmatprep.subr.bf16.mxu0 0
        %3625 = vmatpush1.bf16.msra.mxu0 0
        %3626 = vmatprep.subr.bf16.mxu0 0
        %3627 = vmatpush1.bf16.msra.mxu0 %v3620
        %3628 = vmatprep.subr.bf16.mxu0 0
        %3629 = vmatpush1.bf16.msra.mxu0 %v2632
        %3630 = vmatprep.subr.bf16.mxu0 0
        %3631 = vmatpush1.bf16.msra.mxu0 %v2571
        %3632 = vmatprep.subr.bf16.mxu0 0
        %3633 = vmatpush1.bf16.msra.mxu0 %v2468
        %3634 = vmatprep.subr.bf16.mxu0 0
        %3635 = vmatpush1.bf16.msra.mxu0 %v2365
        %3636 = vmatprep.subr.bf16.mxu0 0
        %3637 = vmatpush1.bf16.msra.mxu0 %v2262
        %3638 = vmatprep.subr.bf16.mxu0 0
        %3639 = vmatpush2.bf16.msra.mxu0 0
        %3640 = vmatprep.subr.bf16.mxu0 0
        %3641 = vmatpush2.bf16.msra.mxu0 0
        %3642 = vmatprep.subr.bf16.mxu0 0
        %3643 = vmatpush2.bf16.msra.mxu0 0
        %3644 = vmatprep.subr.bf16.mxu0 0
        %3645 = vmatpush2.bf16.msra.mxu0 0
        %3646 = vmatprep.subr.bf16.mxu0 0
        %3647 = vmatpush2.bf16.msra.mxu0 0
        %3648 = vmatprep.subr.bf16.mxu0 0
        %3649 = vmatpush2.bf16.msra.mxu0 0
        %3650 = vmatprep.subr.bf16.mxu0 0
        %3651 = vmatpush2.bf16.msra.mxu0 0
        %3652 = vmatprep.subr.bf16.mxu0 0
        %3653 = vmatpush2.bf16.msra.mxu0 0
        %3654 = vmatprep.mubr.bf16.mxu0 0
        %3655 = vmatmul.mubr.bf16.gmra.mxu0 %v2736
        %v3656 = vpop.f32.mrf.mxu0
        %v3657 = vadd.f32 %v2677, %v3656
        %v3658 = vpop.f32.mrf.mxu0
        %v3659 = vpop.f32.mrf.mxu0
        %v3660 = vadd.f32 %v2682, %v3659
        %v3661 = vpop.f32.mrf.mxu0
        %3662 = vmatprep.mubr.bf16.mxu0 0
        %3663 = vmatmul.mubr.bf16.gmra.mxu0 %v2739
        %v3664 = vpop.f32.mrf.mxu0
        %v3665 = vadd.f32 %v2687, %v3664
        %v3666 = vpop.f32.mrf.mxu0
        %v3667 = vpop.f32.mrf.mxu0
        %v3668 = vadd.f32 %v2692, %v3667
        %v3669 = vpop.f32.mrf.mxu0
        %3670 = vmatprep.mubr.bf16.mxu0 0
        %3671 = vmatmul.mubr.bf16.gmra.mxu0 %v2742
        %v3672 = vpop.f32.mrf.mxu0
        %v3673 = vadd.f32 %v2697, %v3672
        %v3674 = vpop.f32.mrf.mxu0
        %v3675 = vpop.f32.mrf.mxu0
        %v3676 = vadd.f32 %v2702, %v3675
        %v3677 = vpop.f32.mrf.mxu0
        %3678 = vmatprep.mubr.bf16.mxu0 0
        %3679 = vmatmul.mubr.bf16.gmra.mxu0 %v2745
        %v3680 = vpop.f32.mrf.mxu0
        %v3681 = vadd.f32 %v2707, %v3680
        %v3682 = vpop.f32.mrf.mxu0
        %v3683 = vpop.f32.mrf.mxu0
        %v3684 = vadd.f32 %v2712, %v3683
        %v3685 = vpop.f32.mrf.mxu0
        %3686 = vdwg.mxu0
        %v3687 = vand.u32 %v2240, %v2748
        %3689 = vmatprep.subr.bf16.mxu0 0
        %3690 = vmatpush1.bf16.msra.mxu0 0
        %3691 = vmatprep.subr.bf16.mxu0 0
        %3692 = vmatpush1.bf16.msra.mxu0 0
        %3693 = vmatprep.subr.bf16.mxu0 0
        %3694 = vmatpush1.bf16.msra.mxu0 %v3687
        %3695 = vmatprep.subr.bf16.mxu0 0
        %3696 = vmatpush1.bf16.msra.mxu0 %v2636
        %3697 = vmatprep.subr.bf16.mxu0 0
        %3698 = vmatpush1.bf16.msra.mxu0 %v2572
        %3699 = vmatprep.subr.bf16.mxu0 0
        %3700 = vmatpush1.bf16.msra.mxu0 %v2469
        %3701 = vmatprep.subr.bf16.mxu0 0
        %3702 = vmatpush1.bf16.msra.mxu0 %v2366
        %3703 = vmatprep.subr.bf16.mxu0 0
        %3704 = vmatpush1.bf16.msra.mxu0 %v2263
        %3705 = vmatprep.subr.bf16.mxu0 0
        %3706 = vmatpush2.bf16.msra.mxu0 0
        %3707 = vmatprep.subr.bf16.mxu0 0
        %3708 = vmatpush2.bf16.msra.mxu0 0
        %3709 = vmatprep.subr.bf16.mxu0 0
        %3710 = vmatpush2.bf16.msra.mxu0 0
        %3711 = vmatprep.subr.bf16.mxu0 0
        %3712 = vmatpush2.bf16.msra.mxu0 0
        %3713 = vmatprep.subr.bf16.mxu0 0
        %3714 = vmatpush2.bf16.msra.mxu0 0
        %3715 = vmatprep.subr.bf16.mxu0 0
        %3716 = vmatpush2.bf16.msra.mxu0 0
        %3717 = vmatprep.subr.bf16.mxu0 0
        %3718 = vmatpush2.bf16.msra.mxu0 0
        %3719 = vmatprep.subr.bf16.mxu0 0
        %3720 = vmatpush2.bf16.msra.mxu0 0
        %3721 = vmatprep.mubr.bf16.mxu0 0
        %3722 = vmatmul.mubr.bf16.gmra.mxu0 %v2736
        %v3723 = vpop.f32.mrf.mxu0
        %v3724 = vadd.f32 %v2677, %v3723
        %v3725 = vpop.f32.mrf.mxu0
        %v3726 = vpop.f32.mrf.mxu0
        %v3727 = vadd.f32 %v2682, %v3726
        %v3728 = vpop.f32.mrf.mxu0
        %3729 = vmatprep.mubr.bf16.mxu0 0
        %3730 = vmatmul.mubr.bf16.gmra.mxu0 %v2739
        %v3731 = vpop.f32.mrf.mxu0
        %v3732 = vadd.f32 %v2687, %v3731
        %v3733 = vpop.f32.mrf.mxu0
        %v3734 = vpop.f32.mrf.mxu0
        %v3735 = vadd.f32 %v2692, %v3734
        %v3736 = vpop.f32.mrf.mxu0
        %3737 = vmatprep.mubr.bf16.mxu0 0
        %3738 = vmatmul.mubr.bf16.gmra.mxu0 %v2742
        %v3739 = vpop.f32.mrf.mxu0
        %v3740 = vadd.f32 %v2697, %v3739
        %v3741 = vpop.f32.mrf.mxu0
        %v3742 = vpop.f32.mrf.mxu0
        %v3743 = vadd.f32 %v2702, %v3742
        %v3744 = vpop.f32.mrf.mxu0
        %3745 = vmatprep.mubr.bf16.mxu0 0
        %3746 = vmatmul.mubr.bf16.gmra.mxu0 %v2745
        %v3747 = vpop.f32.mrf.mxu0
        %v3748 = vadd.f32 %v2707, %v3747
        %v3749 = vpop.f32.mrf.mxu0
        %v3750 = vpop.f32.mrf.mxu0
        %v3751 = vadd.f32 %v2712, %v3750
        %v3752 = vpop.f32.mrf.mxu0
        %3753 = vdwg.mxu0
        %v3754 = vand.u32 %v2241, %v2748
        %3756 = vmatprep.subr.bf16.mxu0 0
        %3757 = vmatpush1.bf16.msra.mxu0 0
        %3758 = vmatprep.subr.bf16.mxu0 0
        %3759 = vmatpush1.bf16.msra.mxu0 0
        %3760 = vmatprep.subr.bf16.mxu0 0
        %3761 = vmatpush1.bf16.msra.mxu0 %v3754
        %3762 = vmatprep.subr.bf16.mxu0 0
        %3763 = vmatpush1.bf16.msra.mxu0 %v2640
        %3764 = vmatprep.subr.bf16.mxu0 0
        %3765 = vmatpush1.bf16.msra.mxu0 %v2573
        %3766 = vmatprep.subr.bf16.mxu0 0
        %3767 = vmatpush1.bf16.msra.mxu0 %v2470
        %3768 = vmatprep.subr.bf16.mxu0 0
        %3769 = vmatpush1.bf16.msra.mxu0 %v2367
        %3770 = vmatprep.subr.bf16.mxu0 0
        %3771 = vmatpush1.bf16.msra.mxu0 %v2264
        %3772 = vmatprep.subr.bf16.mxu0 0
        %3773 = vmatpush2.bf16.msra.mxu0 0
        %3774 = vmatprep.subr.bf16.mxu0 0
        %3775 = vmatpush2.bf16.msra.mxu0 0
        %3776 = vmatprep.subr.bf16.mxu0 0
        %3777 = vmatpush2.bf16.msra.mxu0 0
        %3778 = vmatprep.subr.bf16.mxu0 0
        %3779 = vmatpush2.bf16.msra.mxu0 0
        %3780 = vmatprep.subr.bf16.mxu0 0
        %3781 = vmatpush2.bf16.msra.mxu0 0
        %3782 = vmatprep.subr.bf16.mxu0 0
        %3783 = vmatpush2.bf16.msra.mxu0 0
        %3784 = vmatprep.subr.bf16.mxu0 0
        %3785 = vmatpush2.bf16.msra.mxu0 0
        %3786 = vmatprep.subr.bf16.mxu0 0
        %3787 = vmatpush2.bf16.msra.mxu0 0
        %3788 = vmatprep.mubr.bf16.mxu0 0
        %3789 = vmatmul.mubr.bf16.gmra.mxu0 %v2736
        %v3790 = vpop.f32.mrf.mxu0
        %v3791 = vadd.f32 %v2677, %v3790
        %v3792 = vpop.f32.mrf.mxu0
        %v3793 = vpop.f32.mrf.mxu0
        %v3794 = vadd.f32 %v2682, %v3793
        %v3795 = vpop.f32.mrf.mxu0
        %3796 = vmatprep.mubr.bf16.mxu0 0
        %3797 = vmatmul.mubr.bf16.gmra.mxu0 %v2739
        %v3798 = vpop.f32.mrf.mxu0
        %v3799 = vadd.f32 %v2687, %v3798
        %v3800 = vpop.f32.mrf.mxu0
        %v3801 = vpop.f32.mrf.mxu0
        %v3802 = vadd.f32 %v2692, %v3801
        %v3803 = vpop.f32.mrf.mxu0
        %3804 = vmatprep.mubr.bf16.mxu0 0
        %3805 = vmatmul.mubr.bf16.gmra.mxu0 %v2742
        %v3806 = vpop.f32.mrf.mxu0
        %v3807 = vadd.f32 %v2697, %v3806
        %v3808 = vpop.f32.mrf.mxu0
        %v3809 = vpop.f32.mrf.mxu0
        %v3810 = vadd.f32 %v2702, %v3809
        %v3811 = vpop.f32.mrf.mxu0
        %3812 = vmatprep.mubr.bf16.mxu0 0
        %3813 = vmatmul.mubr.bf16.gmra.mxu0 %v2745
        %v3814 = vpop.f32.mrf.mxu0
        %v3815 = vadd.f32 %v2707, %v3814
        %v3816 = vpop.f32.mrf.mxu0
        %v3817 = vpop.f32.mrf.mxu0
        %v3818 = vadd.f32 %v2712, %v3817
        %v3819 = vpop.f32.mrf.mxu0
        %3820 = vdwg.mxu0
        %v3821 = vand.u32 %v2242, %v2748
        %3823 = vmatprep.subr.bf16.mxu0 0
        %3824 = vmatpush1.bf16.msra.mxu0 0
        %3825 = vmatprep.subr.bf16.mxu0 0
        %3826 = vmatpush1.bf16.msra.mxu0 0
        %3827 = vmatprep.subr.bf16.mxu0 0
        %3828 = vmatpush1.bf16.msra.mxu0 %v3821
        %3829 = vmatprep.subr.bf16.mxu0 0
        %3830 = vmatpush1.bf16.msra.mxu0 %v2644
        %3831 = vmatprep.subr.bf16.mxu0 0
        %3832 = vmatpush1.bf16.msra.mxu0 %v2574
        %3833 = vmatprep.subr.bf16.mxu0 0
        %3834 = vmatpush1.bf16.msra.mxu0 %v2471
        %3835 = vmatprep.subr.bf16.mxu0 0
        %3836 = vmatpush1.bf16.msra.mxu0 %v2368
        %3837 = vmatprep.subr.bf16.mxu0 0
        %3838 = vmatpush1.bf16.msra.mxu0 %v2265
        %3839 = vmatprep.subr.bf16.mxu0 0
        %3840 = vmatpush2.bf16.msra.mxu0 0
        %3841 = vmatprep.subr.bf16.mxu0 0
        %3842 = vmatpush2.bf16.msra.mxu0 0
        %3843 = vmatprep.subr.bf16.mxu0 0
        %3844 = vmatpush2.bf16.msra.mxu0 0
        %3845 = vmatprep.subr.bf16.mxu0 0
        %3846 = vmatpush2.bf16.msra.mxu0 0
        %3847 = vmatprep.subr.bf16.mxu0 0
        %3848 = vmatpush2.bf16.msra.mxu0 0
        %3849 = vmatprep.subr.bf16.mxu0 0
        %3850 = vmatpush2.bf16.msra.mxu0 0
        %3851 = vmatprep.subr.bf16.mxu0 0
        %3852 = vmatpush2.bf16.msra.mxu0 0
        %3853 = vmatprep.subr.bf16.mxu0 0
        %3854 = vmatpush2.bf16.msra.mxu0 0
        %3855 = vmatprep.mubr.bf16.mxu0 0
        %3856 = vmatmul.mubr.bf16.gmra.mxu0 %v2736
        %v3857 = vpop.f32.mrf.mxu0
        %v3858 = vadd.f32 %v2677, %v3857
        %v3859 = vpop.f32.mrf.mxu0
        %v3860 = vpop.f32.mrf.mxu0
        %v3861 = vadd.f32 %v2682, %v3860
        %v3862 = vpop.f32.mrf.mxu0
        %3863 = vmatprep.mubr.bf16.mxu0 0
        %3864 = vmatmul.mubr.bf16.gmra.mxu0 %v2739
        %v3865 = vpop.f32.mrf.mxu0
        %v3866 = vadd.f32 %v2687, %v3865
        %v3867 = vpop.f32.mrf.mxu0
        %v3868 = vpop.f32.mrf.mxu0
        %v3869 = vadd.f32 %v2692, %v3868
        %v3870 = vpop.f32.mrf.mxu0
        %3871 = vmatprep.mubr.bf16.mxu0 0
        %3872 = vmatmul.mubr.bf16.gmra.mxu0 %v2742
        %v3873 = vpop.f32.mrf.mxu0
        %v3874 = vadd.f32 %v2697, %v3873
        %v3875 = vpop.f32.mrf.mxu0
        %v3876 = vpop.f32.mrf.mxu0
        %v3877 = vadd.f32 %v2702, %v3876
        %v3878 = vpop.f32.mrf.mxu0
        %3879 = vmatprep.mubr.bf16.mxu0 0
        %3880 = vmatmul.mubr.bf16.gmra.mxu0 %v2745
        %v3881 = vpop.f32.mrf.mxu0
        %v3882 = vadd.f32 %v2707, %v3881
        %v3883 = vpop.f32.mrf.mxu0
        %v3884 = vpop.f32.mrf.mxu0
        %v3885 = vadd.f32 %v2712, %v3884
        %v3886 = vpop.f32.mrf.mxu0
        %3887 = vdwg.mxu0
        %v3888 = vand.u32 %v2243, %v2748
        %3890 = vmatprep.subr.bf16.mxu0 0
        %3891 = vmatpush1.bf16.msra.mxu0 0
        %3892 = vmatprep.subr.bf16.mxu0 0
        %3893 = vmatpush1.bf16.msra.mxu0 0
        %3894 = vmatprep.subr.bf16.mxu0 0
        %3895 = vmatpush1.bf16.msra.mxu0 %v3888
        %3896 = vmatprep.subr.bf16.mxu0 0
        %3897 = vmatpush1.bf16.msra.mxu0 %v2648
        %3898 = vmatprep.subr.bf16.mxu0 0
        %3899 = vmatpush1.bf16.msra.mxu0 %v2575
        %3900 = vmatprep.subr.bf16.mxu0 0
        %3901 = vmatpush1.bf16.msra.mxu0 %v2472
        %3902 = vmatprep.subr.bf16.mxu0 0
        %3903 = vmatpush1.bf16.msra.mxu0 %v2369
        %3904 = vmatprep.subr.bf16.mxu0 0
        %3905 = vmatpush1.bf16.msra.mxu0 %v2266
        %3906 = vmatprep.subr.bf16.mxu0 0
        %3907 = vmatpush2.bf16.msra.mxu0 0
        %3908 = vmatprep.subr.bf16.mxu0 0
        %3909 = vmatpush2.bf16.msra.mxu0 0
        %3910 = vmatprep.subr.bf16.mxu0 0
        %3911 = vmatpush2.bf16.msra.mxu0 0
        %3912 = vmatprep.subr.bf16.mxu0 0
        %3913 = vmatpush2.bf16.msra.mxu0 0
        %3914 = vmatprep.subr.bf16.mxu0 0
        %3915 = vmatpush2.bf16.msra.mxu0 0
        %3916 = vmatprep.subr.bf16.mxu0 0
        %3917 = vmatpush2.bf16.msra.mxu0 0
        %3918 = vmatprep.subr.bf16.mxu0 0
        %3919 = vmatpush2.bf16.msra.mxu0 0
        %3920 = vmatprep.subr.bf16.mxu0 0
        %3921 = vmatpush2.bf16.msra.mxu0 0
        %3922 = vmatprep.mubr.bf16.mxu0 0
        %3923 = vmatmul.mubr.bf16.gmra.mxu0 %v2736
        %v3924 = vpop.f32.mrf.mxu0
        %v3925 = vadd.f32 %v2677, %v3924
        %v3926 = vpop.f32.mrf.mxu0
        %v3927 = vpop.f32.mrf.mxu0
        %v3928 = vadd.f32 %v2682, %v3927
        %v3929 = vpop.f32.mrf.mxu0
        %3930 = vmatprep.mubr.bf16.mxu0 0
        %3931 = vmatmul.mubr.bf16.gmra.mxu0 %v2739
        %v3932 = vpop.f32.mrf.mxu0
        %v3933 = vadd.f32 %v2687, %v3932
        %v3934 = vpop.f32.mrf.mxu0
        %v3935 = vpop.f32.mrf.mxu0
        %v3936 = vadd.f32 %v2692, %v3935
        %v3937 = vpop.f32.mrf.mxu0
        %3938 = vmatprep.mubr.bf16.mxu0 0
        %3939 = vmatmul.mubr.bf16.gmra.mxu0 %v2742
        %v3940 = vpop.f32.mrf.mxu0
        %v3941 = vadd.f32 %v2697, %v3940
        %v3942 = vpop.f32.mrf.mxu0
        %v3943 = vpop.f32.mrf.mxu0
        %v3944 = vadd.f32 %v2702, %v3943
        %v3945 = vpop.f32.mrf.mxu0
        %3946 = vmatprep.mubr.bf16.mxu0 0
        %3947 = vmatmul.mubr.bf16.gmra.mxu0 %v2745
        %v3948 = vpop.f32.mrf.mxu0
        %v3949 = vadd.f32 %v2707, %v3948
        %v3950 = vpop.f32.mrf.mxu0
        %v3951 = vpop.f32.mrf.mxu0
        %v3952 = vadd.f32 %v2712, %v3951
        %v3953 = vpop.f32.mrf.mxu0
        %3954 = vdwg.mxu0
        %v3955 = vand.u32 %v2244, %v2748
        %3957 = vmatprep.subr.bf16.mxu0 0
        %3958 = vmatpush1.bf16.msra.mxu0 0
        %3959 = vmatprep.subr.bf16.mxu0 0
        %3960 = vmatpush1.bf16.msra.mxu0 0
        %3961 = vmatprep.subr.bf16.mxu0 0
        %3962 = vmatpush1.bf16.msra.mxu0 %v3955
        %3963 = vmatprep.subr.bf16.mxu0 0
        %3964 = vmatpush1.bf16.msra.mxu0 %v2652
        %3965 = vmatprep.subr.bf16.mxu0 0
        %3966 = vmatpush1.bf16.msra.mxu0 %v2576
        %3967 = vmatprep.subr.bf16.mxu0 0
        %3968 = vmatpush1.bf16.msra.mxu0 %v2473
        %3969 = vmatprep.subr.bf16.mxu0 0
        %3970 = vmatpush1.bf16.msra.mxu0 %v2370
        %3971 = vmatprep.subr.bf16.mxu0 0
        %3972 = vmatpush1.bf16.msra.mxu0 %v2267
        %3973 = vmatprep.subr.bf16.mxu0 0
        %3974 = vmatpush2.bf16.msra.mxu0 0
        %3975 = vmatprep.subr.bf16.mxu0 0
        %3976 = vmatpush2.bf16.msra.mxu0 0
        %3977 = vmatprep.subr.bf16.mxu0 0
        %3978 = vmatpush2.bf16.msra.mxu0 0
        %3979 = vmatprep.subr.bf16.mxu0 0
        %3980 = vmatpush2.bf16.msra.mxu0 0
        %3981 = vmatprep.subr.bf16.mxu0 0
        %3982 = vmatpush2.bf16.msra.mxu0 0
        %3983 = vmatprep.subr.bf16.mxu0 0
        %3984 = vmatpush2.bf16.msra.mxu0 0
        %3985 = vmatprep.subr.bf16.mxu0 0
        %3986 = vmatpush2.bf16.msra.mxu0 0
        %3987 = vmatprep.subr.bf16.mxu0 0
        %3988 = vmatpush2.bf16.msra.mxu0 0
        %3989 = vmatprep.mubr.bf16.mxu0 0
        %3990 = vmatmul.mubr.bf16.gmra.mxu0 %v2736
        %v3991 = vpop.f32.mrf.mxu0
        %v3992 = vadd.f32 %v2677, %v3991
        %v3993 = vpop.f32.mrf.mxu0
        %v3994 = vpop.f32.mrf.mxu0
        %v3995 = vadd.f32 %v2682, %v3994
        %v3996 = vpop.f32.mrf.mxu0
        %3997 = vmatprep.mubr.bf16.mxu0 0
        %3998 = vmatmul.mubr.bf16.gmra.mxu0 %v2739
        %v3999 = vpop.f32.mrf.mxu0
        %v4000 = vadd.f32 %v2687, %v3999
        %v4001 = vpop.f32.mrf.mxu0
        %v4002 = vpop.f32.mrf.mxu0
        %v4003 = vadd.f32 %v2692, %v4002
        %v4004 = vpop.f32.mrf.mxu0
        %4005 = vmatprep.mubr.bf16.mxu0 0
        %4006 = vmatmul.mubr.bf16.gmra.mxu0 %v2742
        %v4007 = vpop.f32.mrf.mxu0
        %v4008 = vadd.f32 %v2697, %v4007
        %v4009 = vpop.f32.mrf.mxu0
        %v4010 = vpop.f32.mrf.mxu0
        %v4011 = vadd.f32 %v2702, %v4010
        %v4012 = vpop.f32.mrf.mxu0
        %4013 = vmatprep.mubr.bf16.mxu0 0
        %4014 = vmatmul.mubr.bf16.gmra.mxu0 %v2745
        %v4015 = vpop.f32.mrf.mxu0
        %v4016 = vadd.f32 %v2707, %v4015
        %v4017 = vpop.f32.mrf.mxu0
        %v4018 = vpop.f32.mrf.mxu0
        %v4019 = vadd.f32 %v2712, %v4018
        %v4020 = vpop.f32.mrf.mxu0
        %4021 = vdwg.mxu0
        %v4022 = vand.u32 %v2245, %v2748
        %4024 = vmatprep.subr.bf16.mxu0 0
        %4025 = vmatpush1.bf16.msra.mxu0 0
        %4026 = vmatprep.subr.bf16.mxu0 0
        %4027 = vmatpush1.bf16.msra.mxu0 0
        %4028 = vmatprep.subr.bf16.mxu0 0
        %4029 = vmatpush1.bf16.msra.mxu0 %v4022
        %4030 = vmatprep.subr.bf16.mxu0 0
        %4031 = vmatpush1.bf16.msra.mxu0 %v2656
        %4032 = vmatprep.subr.bf16.mxu0 0
        %4033 = vmatpush1.bf16.msra.mxu0 %v2577
        %4034 = vmatprep.subr.bf16.mxu0 0
        %4035 = vmatpush1.bf16.msra.mxu0 %v2474
        %4036 = vmatprep.subr.bf16.mxu0 0
        %4037 = vmatpush1.bf16.msra.mxu0 %v2371
        %4038 = vmatprep.subr.bf16.mxu0 0
        %4039 = vmatpush1.bf16.msra.mxu0 %v2268
        %4040 = vmatprep.subr.bf16.mxu0 0
        %4041 = vmatpush2.bf16.msra.mxu0 0
        %4042 = vmatprep.subr.bf16.mxu0 0
        %4043 = vmatpush2.bf16.msra.mxu0 0
        %4044 = vmatprep.subr.bf16.mxu0 0
        %4045 = vmatpush2.bf16.msra.mxu0 0
        %4046 = vmatprep.subr.bf16.mxu0 0
        %4047 = vmatpush2.bf16.msra.mxu0 0
        %4048 = vmatprep.subr.bf16.mxu0 0
        %4049 = vmatpush2.bf16.msra.mxu0 0
        %4050 = vmatprep.subr.bf16.mxu0 0
        %4051 = vmatpush2.bf16.msra.mxu0 0
        %4052 = vmatprep.subr.bf16.mxu0 0
        %4053 = vmatpush2.bf16.msra.mxu0 0
        %4054 = vmatprep.subr.bf16.mxu0 0
        %4055 = vmatpush2.bf16.msra.mxu0 0
        %4056 = vmatprep.mubr.bf16.mxu0 0
        %4057 = vmatmul.mubr.bf16.gmra.mxu0 %v2736
        %v4058 = vpop.f32.mrf.mxu0
        %v4059 = vadd.f32 %v2677, %v4058
        %v4060 = vpop.f32.mrf.mxu0
        %v4061 = vpop.f32.mrf.mxu0
        %v4062 = vadd.f32 %v2682, %v4061
        %v4063 = vpop.f32.mrf.mxu0
        %4064 = vmatprep.mubr.bf16.mxu0 0
        %4065 = vmatmul.mubr.bf16.gmra.mxu0 %v2739
        %v4066 = vpop.f32.mrf.mxu0
        %v4067 = vadd.f32 %v2687, %v4066
        %v4068 = vpop.f32.mrf.mxu0
        %v4069 = vpop.f32.mrf.mxu0
        %v4070 = vadd.f32 %v2692, %v4069
        %v4071 = vpop.f32.mrf.mxu0
        %4072 = vmatprep.mubr.bf16.mxu0 0
        %4073 = vmatmul.mubr.bf16.gmra.mxu0 %v2742
        %v4074 = vpop.f32.mrf.mxu0
        %v4075 = vadd.f32 %v2697, %v4074
        %v4076 = vpop.f32.mrf.mxu0
        %v4077 = vpop.f32.mrf.mxu0
        %v4078 = vadd.f32 %v2702, %v4077
        %v4079 = vpop.f32.mrf.mxu0
        %4080 = vmatprep.mubr.bf16.mxu0 0
        %4081 = vmatmul.mubr.bf16.gmra.mxu0 %v2745
        %v4082 = vpop.f32.mrf.mxu0
        %v4083 = vadd.f32 %v2707, %v4082
        %v4084 = vpop.f32.mrf.mxu0
        %v4085 = vpop.f32.mrf.mxu0
        %v4086 = vadd.f32 %v2712, %v4085
        %v4087 = vpop.f32.mrf.mxu0
        %4088 = vdwg.mxu0
        %v4089 = vmax.f32 %v2786, 0.0
        %v4090 = vmax.f32 %v2789, 0.0
        %v4091 = vmax.f32 %v2794, 0.0
        %v4092 = vmax.f32 %v2797, 0.0
        %v4093 = vmax.f32 %v2802, 0.0
        %v4094 = vmax.f32 %v2805, 0.0
        %v4095 = vmax.f32 %v2810, 0.0
        %v4096 = vmax.f32 %v2813, 0.0
        %v4097 = vmax.f32 %v2853, 0.0
        %v4098 = vmax.f32 %v2856, 0.0
        %v4099 = vmax.f32 %v2861, 0.0
        %v4100 = vmax.f32 %v2864, 0.0
        %v4101 = vmax.f32 %v2869, 0.0
        %v4102 = vmax.f32 %v2872, 0.0
        %v4103 = vmax.f32 %v2877, 0.0
        %v4104 = vmax.f32 %v2880, 0.0
        %v4105 = vmax.f32 %v2920, 0.0
        %v4106 = vmax.f32 %v2923, 0.0
        %v4107 = vmax.f32 %v2928, 0.0
        %v4108 = vmax.f32 %v2931, 0.0
        %v4109 = vmax.f32 %v2936, 0.0
        %v4110 = vmax.f32 %v2939, 0.0
        %v4111 = vmax.f32 %v2944, 0.0
        %v4112 = vmax.f32 %v2947, 0.0
        %v4113 = vmax.f32 %v2987, 0.0
        %v4114 = vmax.f32 %v2990, 0.0
        %v4115 = vmax.f32 %v2995, 0.0
        %v4116 = vmax.f32 %v2998, 0.0
        %v4117 = vmax.f32 %v3003, 0.0
        %v4118 = vmax.f32 %v3006, 0.0
        %v4119 = vmax.f32 %v3011, 0.0
        %v4120 = vmax.f32 %v3014, 0.0
        %v4121 = vmax.f32 %v3054, 0.0
        %v4122 = vmax.f32 %v3057, 0.0
        %v4123 = vmax.f32 %v3062, 0.0
        %v4124 = vmax.f32 %v3065, 0.0
        %v4125 = vmax.f32 %v3070, 0.0
        %v4126 = vmax.f32 %v3073, 0.0
        %v4127 = vmax.f32 %v3078, 0.0
        %v4128 = vmax.f32 %v3081, 0.0
        %v4129 = vmax.f32 %v3121, 0.0
        %v4130 = vmax.f32 %v3124, 0.0
        %v4131 = vmax.f32 %v3129, 0.0
        %v4132 = vmax.f32 %v3132, 0.0
        %v4133 = vmax.f32 %v3137, 0.0
        %v4134 = vmax.f32 %v3140, 0.0
        %v4135 = vmax.f32 %v3145, 0.0
        %v4136 = vmax.f32 %v3148, 0.0
        %v4137 = vmax.f32 %v3188, 0.0
        %v4138 = vmax.f32 %v3191, 0.0
        %v4139 = vmax.f32 %v3196, 0.0
        %v4140 = vmax.f32 %v3199, 0.0
        %v4141 = vmax.f32 %v3204, 0.0
        %v4142 = vmax.f32 %v3207, 0.0
        %v4143 = vmax.f32 %v3212, 0.0
        %v4144 = vmax.f32 %v3215, 0.0
        %v4145 = vmax.f32 %v3255, 0.0
        %v4146 = vmax.f32 %v3258, 0.0
        %v4147 = vmax.f32 %v3263, 0.0
        %v4148 = vmax.f32 %v3266, 0.0
        %v4149 = vmax.f32 %v3271, 0.0
        %v4150 = vmax.f32 %v3274, 0.0
        %v4151 = vmax.f32 %v3279, 0.0
        %v4152 = vmax.f32 %v3282, 0.0
        %v4153 = vmax.f32 %v3322, 0.0
        %v4154 = vmax.f32 %v3325, 0.0
        %v4155 = vmax.f32 %v3330, 0.0
        %v4156 = vmax.f32 %v3333, 0.0
        %v4157 = vmax.f32 %v3338, 0.0
        %v4158 = vmax.f32 %v3341, 0.0
        %v4159 = vmax.f32 %v3346, 0.0
        %v4160 = vmax.f32 %v3349, 0.0
        %v4161 = vmax.f32 %v3389, 0.0
        %v4162 = vmax.f32 %v3392, 0.0
        %v4163 = vmax.f32 %v3397, 0.0
        %v4164 = vmax.f32 %v3400, 0.0
        %v4165 = vmax.f32 %v3405, 0.0
        %v4166 = vmax.f32 %v3408, 0.0
        %v4167 = vmax.f32 %v3413, 0.0
        %v4168 = vmax.f32 %v3416, 0.0
        %v4169 = vmax.f32 %v3456, 0.0
        %v4170 = vmax.f32 %v3459, 0.0
        %v4171 = vmax.f32 %v3464, 0.0
        %v4172 = vmax.f32 %v3467, 0.0
        %v4173 = vmax.f32 %v3472, 0.0
        %v4174 = vmax.f32 %v3475, 0.0
        %v4175 = vmax.f32 %v3480, 0.0
        %v4176 = vmax.f32 %v3483, 0.0
        %v4177 = vmax.f32 %v3523, 0.0
        %v4178 = vmax.f32 %v3526, 0.0
        %v4179 = vmax.f32 %v3531, 0.0
        %v4180 = vmax.f32 %v3534, 0.0
        %v4181 = vmax.f32 %v3539, 0.0
        %v4182 = vmax.f32 %v3542, 0.0
        %v4183 = vmax.f32 %v3547, 0.0
        %v4184 = vmax.f32 %v3550, 0.0
        %v4185 = vmax.f32 %v3590, 0.0
        %v4186 = vmax.f32 %v3593, 0.0
        %v4187 = vmax.f32 %v3598, 0.0
        %v4188 = vmax.f32 %v3601, 0.0
        %v4189 = vmax.f32 %v3606, 0.0
        %v4190 = vmax.f32 %v3609, 0.0
        %v4191 = vmax.f32 %v3614, 0.0
        %v4192 = vmax.f32 %v3617, 0.0
        %v4193 = vmax.f32 %v3657, 0.0
        %v4194 = vmax.f32 %v3660, 0.0
        %v4195 = vmax.f32 %v3665, 0.0
        %v4196 = vmax.f32 %v3668, 0.0
        %v4197 = vmax.f32 %v3673, 0.0
        %v4198 = vmax.f32 %v3676, 0.0
        %v4199 = vmax.f32 %v3681, 0.0
        %v4200 = vmax.f32 %v3684, 0.0
        %v4201 = vmax.f32 %v3724, 0.0
        %v4202 = vmax.f32 %v3727, 0.0
        %v4203 = vmax.f32 %v3732, 0.0
        %v4204 = vmax.f32 %v3735, 0.0
        %v4205 = vmax.f32 %v3740, 0.0
        %v4206 = vmax.f32 %v3743, 0.0
        %v4207 = vmax.f32 %v3748, 0.0
        %v4208 = vmax.f32 %v3751, 0.0
        %v4209 = vmax.f32 %v3791, 0.0
        %v4210 = vmax.f32 %v3794, 0.0
        %v4211 = vmax.f32 %v3799, 0.0
        %v4212 = vmax.f32 %v3802, 0.0
        %v4213 = vmax.f32 %v3807, 0.0
        %v4214 = vmax.f32 %v3810, 0.0
        %v4215 = vmax.f32 %v3815, 0.0
        %v4216 = vmax.f32 %v3818, 0.0
        %v4217 = vmax.f32 %v3858, 0.0
        %v4218 = vmax.f32 %v3861, 0.0
        %v4219 = vmax.f32 %v3866, 0.0
        %v4220 = vmax.f32 %v3869, 0.0
        %v4221 = vmax.f32 %v3874, 0.0
        %v4222 = vmax.f32 %v3877, 0.0
        %v4223 = vmax.f32 %v3882, 0.0
        %v4224 = vmax.f32 %v3885, 0.0
        %v4225 = vmax.f32 %v3925, 0.0
        %v4226 = vmax.f32 %v3928, 0.0
        %v4227 = vmax.f32 %v3933, 0.0
        %v4228 = vmax.f32 %v3936, 0.0
        %v4229 = vmax.f32 %v3941, 0.0
        %v4230 = vmax.f32 %v3944, 0.0
        %v4231 = vmax.f32 %v3949, 0.0
        %v4232 = vmax.f32 %v3952, 0.0
        %v4233 = vmax.f32 %v3992, 0.0
        %v4234 = vmax.f32 %v3995, 0.0
        %v4235 = vmax.f32 %v4000, 0.0
        %v4236 = vmax.f32 %v4003, 0.0
        %v4237 = vmax.f32 %v4008, 0.0
        %v4238 = vmax.f32 %v4011, 0.0
        %v4239 = vmax.f32 %v4016, 0.0
        %v4240 = vmax.f32 %v4019, 0.0
        %v4241 = vmax.f32 %v4059, 0.0
        %v4242 = vmax.f32 %v4062, 0.0
        %v4243 = vmax.f32 %v4067, 0.0
        %v4244 = vmax.f32 %v4070, 0.0
        %v4245 = vmax.f32 %v4075, 0.0
        %v4246 = vmax.f32 %v4078, 0.0
        %v4247 = vmax.f32 %v4083, 0.0
        %v4248 = vmax.f32 %v4086, 0.0
        %v4249 = vpack.c.bf16 %v4090, %v4089
        %v4250 = vpack.c.bf16 %v4092, %v4091
        %v4251 = vpack.c.bf16 %v4094, %v4093
        %v4252 = vpack.c.bf16 %v4096, %v4095
        %v4253 = vpack.c.bf16 %v4098, %v4097
        %v4254 = vpack.c.bf16 %v4100, %v4099
        %v4255 = vpack.c.bf16 %v4102, %v4101
        %v4256 = vpack.c.bf16 %v4104, %v4103
        %v4257 = vpack.c.bf16 %v4106, %v4105
        %v4258 = vpack.c.bf16 %v4108, %v4107
        %v4259 = vpack.c.bf16 %v4110, %v4109
        %v4260 = vpack.c.bf16 %v4112, %v4111
        %v4261 = vpack.c.bf16 %v4114, %v4113
        %v4262 = vpack.c.bf16 %v4116, %v4115
        %v4263 = vpack.c.bf16 %v4118, %v4117
        %v4264 = vpack.c.bf16 %v4120, %v4119
        %v4265 = vpack.c.bf16 %v4122, %v4121
        %v4266 = vpack.c.bf16 %v4124, %v4123
        %v4267 = vpack.c.bf16 %v4126, %v4125
        %v4268 = vpack.c.bf16 %v4128, %v4127
        %v4269 = vpack.c.bf16 %v4130, %v4129
        %v4270 = vpack.c.bf16 %v4132, %v4131
        %v4271 = vpack.c.bf16 %v4134, %v4133
        %v4272 = vpack.c.bf16 %v4136, %v4135
        %v4273 = vpack.c.bf16 %v4138, %v4137
        %v4274 = vpack.c.bf16 %v4140, %v4139
        %v4275 = vpack.c.bf16 %v4142, %v4141
        %v4276 = vpack.c.bf16 %v4144, %v4143
        %v4277 = vpack.c.bf16 %v4146, %v4145
        %v4278 = vpack.c.bf16 %v4148, %v4147
        %v4279 = vpack.c.bf16 %v4150, %v4149
        %v4280 = vpack.c.bf16 %v4152, %v4151
        %v4281 = vpack.c.bf16 %v4154, %v4153
        %v4282 = vpack.c.bf16 %v4156, %v4155
        %v4283 = vpack.c.bf16 %v4158, %v4157
        %v4284 = vpack.c.bf16 %v4160, %v4159
        %v4285 = vpack.c.bf16 %v4162, %v4161
        %v4286 = vpack.c.bf16 %v4164, %v4163
        %v4287 = vpack.c.bf16 %v4166, %v4165
        %v4288 = vpack.c.bf16 %v4168, %v4167
        %v4289 = vpack.c.bf16 %v4170, %v4169
        %v4290 = vpack.c.bf16 %v4172, %v4171
        %v4291 = vpack.c.bf16 %v4174, %v4173
        %v4292 = vpack.c.bf16 %v4176, %v4175
        %v4293 = vpack.c.bf16 %v4178, %v4177
        %v4294 = vpack.c.bf16 %v4180, %v4179
        %v4295 = vpack.c.bf16 %v4182, %v4181
        %v4296 = vpack.c.bf16 %v4184, %v4183
        %v4297 = vpack.c.bf16 %v4186, %v4185
        %v4298 = vpack.c.bf16 %v4188, %v4187
        %v4299 = vpack.c.bf16 %v4190, %v4189
        %v4300 = vpack.c.bf16 %v4192, %v4191
        %v4301 = vpack.c.bf16 %v4194, %v4193
        %v4302 = vpack.c.bf16 %v4196, %v4195
        %v4303 = vpack.c.bf16 %v4198, %v4197
        %v4304 = vpack.c.bf16 %v4200, %v4199
        %v4305 = vpack.c.bf16 %v4202, %v4201
        %v4306 = vpack.c.bf16 %v4204, %v4203
        %v4307 = vpack.c.bf16 %v4206, %v4205
        %v4308 = vpack.c.bf16 %v4208, %v4207
        %v4309 = vpack.c.bf16 %v4210, %v4209
        %v4310 = vpack.c.bf16 %v4212, %v4211
        %v4311 = vpack.c.bf16 %v4214, %v4213
        %v4312 = vpack.c.bf16 %v4216, %v4215
        %v4313 = vpack.c.bf16 %v4218, %v4217
        %v4314 = vpack.c.bf16 %v4220, %v4219
        %v4315 = vpack.c.bf16 %v4222, %v4221
        %v4316 = vpack.c.bf16 %v4224, %v4223
        %v4317 = vpack.c.bf16 %v4226, %v4225
        %v4318 = vpack.c.bf16 %v4228, %v4227
        %v4319 = vpack.c.bf16 %v4230, %v4229
        %v4320 = vpack.c.bf16 %v4232, %v4231
        %v4321 = vpack.c.bf16 %v4234, %v4233
        %v4322 = vpack.c.bf16 %v4236, %v4235
        %v4323 = vpack.c.bf16 %v4238, %v4237
        %v4324 = vpack.c.bf16 %v4240, %v4239
        %v4325 = vpack.c.bf16 %v4242, %v4241
        %v4326 = vpack.c.bf16 %v4244, %v4243
        %v4327 = vpack.c.bf16 %v4246, %v4245
        %v4328 = vpack.c.bf16 %v4248, %v4247
        %v4329 = vld [vmem:[%s3] sm:$0xf]
        %v4330 = vld [vmem:[%s3 + $0x4] sm:$0xf]
        %v4331 = vld [vmem:[%s3 + $0x8] sm:$0xf]
        %v4332 = vld [vmem:[%s3 + $0xc] sm:$0xf]
        %v4333 = vld [vmem:[%s4] sm:$0xff]
        %v4334 = vld [vmem:[%s4 + $0x8] sm:$0xff]
        %v4335 = vld [vmem:[%s4 + $0x10] sm:$0xff]
        %v4336 = vld [vmem:[%s4 + $0x18] sm:$0xff]
        %4338 = vset.pattern.permute.xlu0 0
        %4339 = vperm.xlu0 %4338, %v4333
        %v4340 = vpop.permute.xlu0 %4339
        %4343 = vset.pattern.permute.xlu0 0
        %4344 = vperm.xlu0 %4343, %v4334
        %v4345 = vpop.permute.xlu0 %4344
        %4348 = vset.pattern.permute.xlu0 0
        %4349 = vperm.xlu0 %4348, %v4335
        %v4350 = vpop.permute.xlu0 %4349
        %4353 = vset.pattern.permute.xlu0 0
        %4354 = vperm.xlu0 %4353, %v4336
        %v4355 = vpop.permute.xlu0 %4354
        %v4361 = vunpack.c.l.b16 %v4329
        %v4362 = vunpack.c.l.b16 %v4330
        %v4363 = vunpack.c.l.b16 %v4331
        %v4364 = vunpack.c.l.b16 %v4332
        %v4365 = vpack.c.b16 %v4362, %v4361
        %v4366 = vpack.c.b16 %v4364, %v4363
        %vm4367 = vcmask 523264
        %v4369 = vsel %vm4367, %v4365, 0
        %v4372 = vsel %vm4367, %v4366, 0
        %4374 = vmatprep.subr.bf16.mxu0 0
        %4375 = vmatpush1.bf16.msra.mxu0 0
        %4376 = vmatprep.subr.bf16.mxu0 0
        %4377 = vmatpush1.bf16.msra.mxu0 0
        %4378 = vmatprep.subr.bf16.mxu0 0
        %4379 = vmatpush1.bf16.msra.mxu0 0
        %4380 = vmatprep.subr.bf16.mxu0 0
        %4381 = vmatpush1.bf16.msra.mxu0 0
        %4382 = vmatprep.subr.bf16.mxu0 0
        %4383 = vmatpush1.bf16.msra.mxu0 %v4252
        %4384 = vmatprep.subr.bf16.mxu0 0
        %4385 = vmatpush1.bf16.msra.mxu0 %v4251
        %4386 = vmatprep.subr.bf16.mxu0 0
        %4387 = vmatpush1.bf16.msra.mxu0 %v4250
        %4388 = vmatprep.subr.bf16.mxu0 0
        %4389 = vmatpush1.bf16.msra.mxu0 %v4249
        %4390 = vmatprep.subr.bf16.mxu0 0
        %4391 = vmatpush2.bf16.msra.mxu0 0
        %4392 = vmatprep.subr.bf16.mxu0 0
        %4393 = vmatpush2.bf16.msra.mxu0 0
        %4394 = vmatprep.subr.bf16.mxu0 0
        %4395 = vmatpush2.bf16.msra.mxu0 0
        %4396 = vmatprep.subr.bf16.mxu0 0
        %4397 = vmatpush2.bf16.msra.mxu0 0
        %4398 = vmatprep.subr.bf16.mxu0 0
        %4399 = vmatpush2.bf16.msra.mxu0 0
        %4400 = vmatprep.subr.bf16.mxu0 0
        %4401 = vmatpush2.bf16.msra.mxu0 0
        %4402 = vmatprep.subr.bf16.mxu0 0
        %4403 = vmatpush2.bf16.msra.mxu0 0
        %4404 = vmatprep.subr.bf16.mxu0 0
        %4405 = vmatpush2.bf16.msra.mxu0 0
        %4406 = vmatprep.mubr.bf16.mxu0 0
        %4407 = vmatmul.mubr.bf16.gmra.mxu0 %v4369
        %v4408 = vpop.f32.mrf.mxu0
        %v4409 = vadd.f32 %v4340, %v4408
        %v4410 = vpop.f32.mrf.mxu0
        %v4411 = vpop.f32.mrf.mxu0
        %v4412 = vadd.f32 %v4345, %v4411
        %v4413 = vpop.f32.mrf.mxu0
        %4414 = vmatprep.mubr.bf16.mxu0 0
        %4415 = vmatmul.mubr.bf16.gmra.mxu0 %v4372
        %v4416 = vpop.f32.mrf.mxu0
        %v4417 = vadd.f32 %v4350, %v4416
        %v4418 = vpop.f32.mrf.mxu0
        %v4419 = vpop.f32.mrf.mxu0
        %v4420 = vadd.f32 %v4355, %v4419
        %v4421 = vpop.f32.mrf.mxu0
        %4422 = vdwg.mxu0
        %4423 = vmatprep.subr.bf16.mxu0 0
        %4424 = vmatpush1.bf16.msra.mxu0 0
        %4425 = vmatprep.subr.bf16.mxu0 0
        %4426 = vmatpush1.bf16.msra.mxu0 0
        %4427 = vmatprep.subr.bf16.mxu0 0
        %4428 = vmatpush1.bf16.msra.mxu0 0
        %4429 = vmatprep.subr.bf16.mxu0 0
        %4430 = vmatpush1.bf16.msra.mxu0 0
        %4431 = vmatprep.subr.bf16.mxu0 0
        %4432 = vmatpush1.bf16.msra.mxu0 %v4256
        %4433 = vmatprep.subr.bf16.mxu0 0
        %4434 = vmatpush1.bf16.msra.mxu0 %v4255
        %4435 = vmatprep.subr.bf16.mxu0 0
        %4436 = vmatpush1.bf16.msra.mxu0 %v4254
        %4437 = vmatprep.subr.bf16.mxu0 0
        %4438 = vmatpush1.bf16.msra.mxu0 %v4253
        %4439 = vmatprep.subr.bf16.mxu0 0
        %4440 = vmatpush2.bf16.msra.mxu0 0
        %4441 = vmatprep.subr.bf16.mxu0 0
        %4442 = vmatpush2.bf16.msra.mxu0 0
        %4443 = vmatprep.subr.bf16.mxu0 0
        %4444 = vmatpush2.bf16.msra.mxu0 0
        %4445 = vmatprep.subr.bf16.mxu0 0
        %4446 = vmatpush2.bf16.msra.mxu0 0
        %4447 = vmatprep.subr.bf16.mxu0 0
        %4448 = vmatpush2.bf16.msra.mxu0 0
        %4449 = vmatprep.subr.bf16.mxu0 0
        %4450 = vmatpush2.bf16.msra.mxu0 0
        %4451 = vmatprep.subr.bf16.mxu0 0
        %4452 = vmatpush2.bf16.msra.mxu0 0
        %4453 = vmatprep.subr.bf16.mxu0 0
        %4454 = vmatpush2.bf16.msra.mxu0 0
        %4455 = vmatprep.mubr.bf16.mxu0 0
        %4456 = vmatmul.mubr.bf16.gmra.mxu0 %v4369
        %v4457 = vpop.f32.mrf.mxu0
        %v4458 = vadd.f32 %v4340, %v4457
        %v4459 = vpop.f32.mrf.mxu0
        %v4460 = vpop.f32.mrf.mxu0
        %v4461 = vadd.f32 %v4345, %v4460
        %v4462 = vpop.f32.mrf.mxu0
        %4463 = vmatprep.mubr.bf16.mxu0 0
        %4464 = vmatmul.mubr.bf16.gmra.mxu0 %v4372
        %v4465 = vpop.f32.mrf.mxu0
        %v4466 = vadd.f32 %v4350, %v4465
        %v4467 = vpop.f32.mrf.mxu0
        %v4468 = vpop.f32.mrf.mxu0
        %v4469 = vadd.f32 %v4355, %v4468
        %v4470 = vpop.f32.mrf.mxu0
        %4471 = vdwg.mxu0
        %4472 = vmatprep.subr.bf16.mxu0 0
        %4473 = vmatpush1.bf16.msra.mxu0 0
        %4474 = vmatprep.subr.bf16.mxu0 0
        %4475 = vmatpush1.bf16.msra.mxu0 0
        %4476 = vmatprep.subr.bf16.mxu0 0
        %4477 = vmatpush1.bf16.msra.mxu0 0
        %4478 = vmatprep.subr.bf16.mxu0 0
        %4479 = vmatpush1.bf16.msra.mxu0 0
        %4480 = vmatprep.subr.bf16.mxu0 0
        %4481 = vmatpush1.bf16.msra.mxu0 %v4260
        %4482 = vmatprep.subr.bf16.mxu0 0
        %4483 = vmatpush1.bf16.msra.mxu0 %v4259
        %4484 = vmatprep.subr.bf16.mxu0 0
        %4485 = vmatpush1.bf16.msra.mxu0 %v4258
        %4486 = vmatprep.subr.bf16.mxu0 0
        %4487 = vmatpush1.bf16.msra.mxu0 %v4257
        %4488 = vmatprep.subr.bf16.mxu0 0
        %4489 = vmatpush2.bf16.msra.mxu0 0
        %4490 = vmatprep.subr.bf16.mxu0 0
        %4491 = vmatpush2.bf16.msra.mxu0 0
        %4492 = vmatprep.subr.bf16.mxu0 0
        %4493 = vmatpush2.bf16.msra.mxu0 0
        %4494 = vmatprep.subr.bf16.mxu0 0
        %4495 = vmatpush2.bf16.msra.mxu0 0
        %4496 = vmatprep.subr.bf16.mxu0 0
        %4497 = vmatpush2.bf16.msra.mxu0 0
        %4498 = vmatprep.subr.bf16.mxu0 0
        %4499 = vmatpush2.bf16.msra.mxu0 0
        %4500 = vmatprep.subr.bf16.mxu0 0
        %4501 = vmatpush2.bf16.msra.mxu0 0
        %4502 = vmatprep.subr.bf16.mxu0 0
        %4503 = vmatpush2.bf16.msra.mxu0 0
        %4504 = vmatprep.mubr.bf16.mxu0 0
        %4505 = vmatmul.mubr.bf16.gmra.mxu0 %v4369
        %v4506 = vpop.f32.mrf.mxu0
        %v4507 = vadd.f32 %v4340, %v4506
        %v4508 = vpop.f32.mrf.mxu0
        %v4509 = vpop.f32.mrf.mxu0
        %v4510 = vadd.f32 %v4345, %v4509
        %v4511 = vpop.f32.mrf.mxu0
        %4512 = vmatprep.mubr.bf16.mxu0 0
        %4513 = vmatmul.mubr.bf16.gmra.mxu0 %v4372
        %v4514 = vpop.f32.mrf.mxu0
        %v4515 = vadd.f32 %v4350, %v4514
        %v4516 = vpop.f32.mrf.mxu0
        %v4517 = vpop.f32.mrf.mxu0
        %v4518 = vadd.f32 %v4355, %v4517
        %v4519 = vpop.f32.mrf.mxu0
        %4520 = vdwg.mxu0
        %4521 = vmatprep.subr.bf16.mxu0 0
        %4522 = vmatpush1.bf16.msra.mxu0 0
        %4523 = vmatprep.subr.bf16.mxu0 0
        %4524 = vmatpush1.bf16.msra.mxu0 0
        %4525 = vmatprep.subr.bf16.mxu0 0
        %4526 = vmatpush1.bf16.msra.mxu0 0
        %4527 = vmatprep.subr.bf16.mxu0 0
        %4528 = vmatpush1.bf16.msra.mxu0 0
        %4529 = vmatprep.subr.bf16.mxu0 0
        %4530 = vmatpush1.bf16.msra.mxu0 %v4264
        %4531 = vmatprep.subr.bf16.mxu0 0
        %4532 = vmatpush1.bf16.msra.mxu0 %v4263
        %4533 = vmatprep.subr.bf16.mxu0 0
        %4534 = vmatpush1.bf16.msra.mxu0 %v4262
        %4535 = vmatprep.subr.bf16.mxu0 0
        %4536 = vmatpush1.bf16.msra.mxu0 %v4261
        %4537 = vmatprep.subr.bf16.mxu0 0
        %4538 = vmatpush2.bf16.msra.mxu0 0
        %4539 = vmatprep.subr.bf16.mxu0 0
        %4540 = vmatpush2.bf16.msra.mxu0 0
        %4541 = vmatprep.subr.bf16.mxu0 0
        %4542 = vmatpush2.bf16.msra.mxu0 0
        %4543 = vmatprep.subr.bf16.mxu0 0
        %4544 = vmatpush2.bf16.msra.mxu0 0
        %4545 = vmatprep.subr.bf16.mxu0 0
        %4546 = vmatpush2.bf16.msra.mxu0 0
        %4547 = vmatprep.subr.bf16.mxu0 0
        %4548 = vmatpush2.bf16.msra.mxu0 0
        %4549 = vmatprep.subr.bf16.mxu0 0
        %4550 = vmatpush2.bf16.msra.mxu0 0
        %4551 = vmatprep.subr.bf16.mxu0 0
        %4552 = vmatpush2.bf16.msra.mxu0 0
        %4553 = vmatprep.mubr.bf16.mxu0 0
        %4554 = vmatmul.mubr.bf16.gmra.mxu0 %v4369
        %v4555 = vpop.f32.mrf.mxu0
        %v4556 = vadd.f32 %v4340, %v4555
        %v4557 = vpop.f32.mrf.mxu0
        %v4558 = vpop.f32.mrf.mxu0
        %v4559 = vadd.f32 %v4345, %v4558
        %v4560 = vpop.f32.mrf.mxu0
        %4561 = vmatprep.mubr.bf16.mxu0 0
        %4562 = vmatmul.mubr.bf16.gmra.mxu0 %v4372
        %v4563 = vpop.f32.mrf.mxu0
        %v4564 = vadd.f32 %v4350, %v4563
        %v4565 = vpop.f32.mrf.mxu0
        %v4566 = vpop.f32.mrf.mxu0
        %v4567 = vadd.f32 %v4355, %v4566
        %v4568 = vpop.f32.mrf.mxu0
        %4569 = vdwg.mxu0
        %4570 = vmatprep.subr.bf16.mxu0 0
        %4571 = vmatpush1.bf16.msra.mxu0 0
        %4572 = vmatprep.subr.bf16.mxu0 0
        %4573 = vmatpush1.bf16.msra.mxu0 0
        %4574 = vmatprep.subr.bf16.mxu0 0
        %4575 = vmatpush1.bf16.msra.mxu0 0
        %4576 = vmatprep.subr.bf16.mxu0 0
        %4577 = vmatpush1.bf16.msra.mxu0 0
        %4578 = vmatprep.subr.bf16.mxu0 0
        %4579 = vmatpush1.bf16.msra.mxu0 %v4268
        %4580 = vmatprep.subr.bf16.mxu0 0
        %4581 = vmatpush1.bf16.msra.mxu0 %v4267
        %4582 = vmatprep.subr.bf16.mxu0 0
        %4583 = vmatpush1.bf16.msra.mxu0 %v4266
        %4584 = vmatprep.subr.bf16.mxu0 0
        %4585 = vmatpush1.bf16.msra.mxu0 %v4265
        %4586 = vmatprep.subr.bf16.mxu0 0
        %4587 = vmatpush2.bf16.msra.mxu0 0
        %4588 = vmatprep.subr.bf16.mxu0 0
        %4589 = vmatpush2.bf16.msra.mxu0 0
        %4590 = vmatprep.subr.bf16.mxu0 0
        %4591 = vmatpush2.bf16.msra.mxu0 0
        %4592 = vmatprep.subr.bf16.mxu0 0
        %4593 = vmatpush2.bf16.msra.mxu0 0
        %4594 = vmatprep.subr.bf16.mxu0 0
        %4595 = vmatpush2.bf16.msra.mxu0 0
        %4596 = vmatprep.subr.bf16.mxu0 0
        %4597 = vmatpush2.bf16.msra.mxu0 0
        %4598 = vmatprep.subr.bf16.mxu0 0
        %4599 = vmatpush2.bf16.msra.mxu0 0
        %4600 = vmatprep.subr.bf16.mxu0 0
        %4601 = vmatpush2.bf16.msra.mxu0 0
        %4602 = vmatprep.mubr.bf16.mxu0 0
        %4603 = vmatmul.mubr.bf16.gmra.mxu0 %v4369
        %v4604 = vpop.f32.mrf.mxu0
        %v4605 = vadd.f32 %v4340, %v4604
        %v4606 = vpop.f32.mrf.mxu0
        %v4607 = vpop.f32.mrf.mxu0
        %v4608 = vadd.f32 %v4345, %v4607
        %v4609 = vpop.f32.mrf.mxu0
        %4610 = vmatprep.mubr.bf16.mxu0 0
        %4611 = vmatmul.mubr.bf16.gmra.mxu0 %v4372
        %v4612 = vpop.f32.mrf.mxu0
        %v4613 = vadd.f32 %v4350, %v4612
        %v4614 = vpop.f32.mrf.mxu0
        %v4615 = vpop.f32.mrf.mxu0
        %v4616 = vadd.f32 %v4355, %v4615
        %v4617 = vpop.f32.mrf.mxu0
        %4618 = vdwg.mxu0
        %4619 = vmatprep.subr.bf16.mxu0 0
        %4620 = vmatpush1.bf16.msra.mxu0 0
        %4621 = vmatprep.subr.bf16.mxu0 0
        %4622 = vmatpush1.bf16.msra.mxu0 0
        %4623 = vmatprep.subr.bf16.mxu0 0
        %4624 = vmatpush1.bf16.msra.mxu0 0
        %4625 = vmatprep.subr.bf16.mxu0 0
        %4626 = vmatpush1.bf16.msra.mxu0 0
        %4627 = vmatprep.subr.bf16.mxu0 0
        %4628 = vmatpush1.bf16.msra.mxu0 %v4272
        %4629 = vmatprep.subr.bf16.mxu0 0
        %4630 = vmatpush1.bf16.msra.mxu0 %v4271
        %4631 = vmatprep.subr.bf16.mxu0 0
        %4632 = vmatpush1.bf16.msra.mxu0 %v4270
        %4633 = vmatprep.subr.bf16.mxu0 0
        %4634 = vmatpush1.bf16.msra.mxu0 %v4269
        %4635 = vmatprep.subr.bf16.mxu0 0
        %4636 = vmatpush2.bf16.msra.mxu0 0
        %4637 = vmatprep.subr.bf16.mxu0 0
        %4638 = vmatpush2.bf16.msra.mxu0 0
        %4639 = vmatprep.subr.bf16.mxu0 0
        %4640 = vmatpush2.bf16.msra.mxu0 0
        %4641 = vmatprep.subr.bf16.mxu0 0
        %4642 = vmatpush2.bf16.msra.mxu0 0
        %4643 = vmatprep.subr.bf16.mxu0 0
        %4644 = vmatpush2.bf16.msra.mxu0 0
        %4645 = vmatprep.subr.bf16.mxu0 0
        %4646 = vmatpush2.bf16.msra.mxu0 0
        %4647 = vmatprep.subr.bf16.mxu0 0
        %4648 = vmatpush2.bf16.msra.mxu0 0
        %4649 = vmatprep.subr.bf16.mxu0 0
        %4650 = vmatpush2.bf16.msra.mxu0 0
        %4651 = vmatprep.mubr.bf16.mxu0 0
        %4652 = vmatmul.mubr.bf16.gmra.mxu0 %v4369
        %v4653 = vpop.f32.mrf.mxu0
        %v4654 = vadd.f32 %v4340, %v4653
        %v4655 = vpop.f32.mrf.mxu0
        %v4656 = vpop.f32.mrf.mxu0
        %v4657 = vadd.f32 %v4345, %v4656
        %v4658 = vpop.f32.mrf.mxu0
        %4659 = vmatprep.mubr.bf16.mxu0 0
        %4660 = vmatmul.mubr.bf16.gmra.mxu0 %v4372
        %v4661 = vpop.f32.mrf.mxu0
        %v4662 = vadd.f32 %v4350, %v4661
        %v4663 = vpop.f32.mrf.mxu0
        %v4664 = vpop.f32.mrf.mxu0
        %v4665 = vadd.f32 %v4355, %v4664
        %v4666 = vpop.f32.mrf.mxu0
        %4667 = vdwg.mxu0
        %4668 = vmatprep.subr.bf16.mxu0 0
        %4669 = vmatpush1.bf16.msra.mxu0 0
        %4670 = vmatprep.subr.bf16.mxu0 0
        %4671 = vmatpush1.bf16.msra.mxu0 0
        %4672 = vmatprep.subr.bf16.mxu0 0
        %4673 = vmatpush1.bf16.msra.mxu0 0
        %4674 = vmatprep.subr.bf16.mxu0 0
        %4675 = vmatpush1.bf16.msra.mxu0 0
        %4676 = vmatprep.subr.bf16.mxu0 0
        %4677 = vmatpush1.bf16.msra.mxu0 %v4276
        %4678 = vmatprep.subr.bf16.mxu0 0
        %4679 = vmatpush1.bf16.msra.mxu0 %v4275
        %4680 = vmatprep.subr.bf16.mxu0 0
        %4681 = vmatpush1.bf16.msra.mxu0 %v4274
        %4682 = vmatprep.subr.bf16.mxu0 0
        %4683 = vmatpush1.bf16.msra.mxu0 %v4273
        %4684 = vmatprep.subr.bf16.mxu0 0
        %4685 = vmatpush2.bf16.msra.mxu0 0
        %4686 = vmatprep.subr.bf16.mxu0 0
        %4687 = vmatpush2.bf16.msra.mxu0 0
        %4688 = vmatprep.subr.bf16.mxu0 0
        %4689 = vmatpush2.bf16.msra.mxu0 0
        %4690 = vmatprep.subr.bf16.mxu0 0
        %4691 = vmatpush2.bf16.msra.mxu0 0
        %4692 = vmatprep.subr.bf16.mxu0 0
        %4693 = vmatpush2.bf16.msra.mxu0 0
        %4694 = vmatprep.subr.bf16.mxu0 0
        %4695 = vmatpush2.bf16.msra.mxu0 0
        %4696 = vmatprep.subr.bf16.mxu0 0
        %4697 = vmatpush2.bf16.msra.mxu0 0
        %4698 = vmatprep.subr.bf16.mxu0 0
        %4699 = vmatpush2.bf16.msra.mxu0 0
        %4700 = vmatprep.mubr.bf16.mxu0 0
        %4701 = vmatmul.mubr.bf16.gmra.mxu0 %v4369
        %v4702 = vpop.f32.mrf.mxu0
        %v4703 = vadd.f32 %v4340, %v4702
        %v4704 = vpop.f32.mrf.mxu0
        %v4705 = vpop.f32.mrf.mxu0
        %v4706 = vadd.f32 %v4345, %v4705
        %v4707 = vpop.f32.mrf.mxu0
        %4708 = vmatprep.mubr.bf16.mxu0 0
        %4709 = vmatmul.mubr.bf16.gmra.mxu0 %v4372
        %v4710 = vpop.f32.mrf.mxu0
        %v4711 = vadd.f32 %v4350, %v4710
        %v4712 = vpop.f32.mrf.mxu0
        %v4713 = vpop.f32.mrf.mxu0
        %v4714 = vadd.f32 %v4355, %v4713
        %v4715 = vpop.f32.mrf.mxu0
        %4716 = vdwg.mxu0
        %4717 = vmatprep.subr.bf16.mxu0 0
        %4718 = vmatpush1.bf16.msra.mxu0 0
        %4719 = vmatprep.subr.bf16.mxu0 0
        %4720 = vmatpush1.bf16.msra.mxu0 0
        %4721 = vmatprep.subr.bf16.mxu0 0
        %4722 = vmatpush1.bf16.msra.mxu0 0
        %4723 = vmatprep.subr.bf16.mxu0 0
        %4724 = vmatpush1.bf16.msra.mxu0 0
        %4725 = vmatprep.subr.bf16.mxu0 0
        %4726 = vmatpush1.bf16.msra.mxu0 %v4280
        %4727 = vmatprep.subr.bf16.mxu0 0
        %4728 = vmatpush1.bf16.msra.mxu0 %v4279
        %4729 = vmatprep.subr.bf16.mxu0 0
        %4730 = vmatpush1.bf16.msra.mxu0 %v4278
        %4731 = vmatprep.subr.bf16.mxu0 0
        %4732 = vmatpush1.bf16.msra.mxu0 %v4277
        %4733 = vmatprep.subr.bf16.mxu0 0
        %4734 = vmatpush2.bf16.msra.mxu0 0
        %4735 = vmatprep.subr.bf16.mxu0 0
        %4736 = vmatpush2.bf16.msra.mxu0 0
        %4737 = vmatprep.subr.bf16.mxu0 0
        %4738 = vmatpush2.bf16.msra.mxu0 0
        %4739 = vmatprep.subr.bf16.mxu0 0
        %4740 = vmatpush2.bf16.msra.mxu0 0
        %4741 = vmatprep.subr.bf16.mxu0 0
        %4742 = vmatpush2.bf16.msra.mxu0 0
        %4743 = vmatprep.subr.bf16.mxu0 0
        %4744 = vmatpush2.bf16.msra.mxu0 0
        %4745 = vmatprep.subr.bf16.mxu0 0
        %4746 = vmatpush2.bf16.msra.mxu0 0
        %4747 = vmatprep.subr.bf16.mxu0 0
        %4748 = vmatpush2.bf16.msra.mxu0 0
        %4749 = vmatprep.mubr.bf16.mxu0 0
        %4750 = vmatmul.mubr.bf16.gmra.mxu0 %v4369
        %v4751 = vpop.f32.mrf.mxu0
        %v4752 = vadd.f32 %v4340, %v4751
        %v4753 = vpop.f32.mrf.mxu0
        %v4754 = vpop.f32.mrf.mxu0
        %v4755 = vadd.f32 %v4345, %v4754
        %v4756 = vpop.f32.mrf.mxu0
        %4757 = vmatprep.mubr.bf16.mxu0 0
        %4758 = vmatmul.mubr.bf16.gmra.mxu0 %v4372
        %v4759 = vpop.f32.mrf.mxu0
        %v4760 = vadd.f32 %v4350, %v4759
        %v4761 = vpop.f32.mrf.mxu0
        %v4762 = vpop.f32.mrf.mxu0
        %v4763 = vadd.f32 %v4355, %v4762
        %v4764 = vpop.f32.mrf.mxu0
        %4765 = vdwg.mxu0
        %4766 = vmatprep.subr.bf16.mxu0 0
        %4767 = vmatpush1.bf16.msra.mxu0 0
        %4768 = vmatprep.subr.bf16.mxu0 0
        %4769 = vmatpush1.bf16.msra.mxu0 0
        %4770 = vmatprep.subr.bf16.mxu0 0
        %4771 = vmatpush1.bf16.msra.mxu0 0
        %4772 = vmatprep.subr.bf16.mxu0 0
        %4773 = vmatpush1.bf16.msra.mxu0 0
        %4774 = vmatprep.subr.bf16.mxu0 0
        %4775 = vmatpush1.bf16.msra.mxu0 %v4284
        %4776 = vmatprep.subr.bf16.mxu0 0
        %4777 = vmatpush1.bf16.msra.mxu0 %v4283
        %4778 = vmatprep.subr.bf16.mxu0 0
        %4779 = vmatpush1.bf16.msra.mxu0 %v4282
        %4780 = vmatprep.subr.bf16.mxu0 0
        %4781 = vmatpush1.bf16.msra.mxu0 %v4281
        %4782 = vmatprep.subr.bf16.mxu0 0
        %4783 = vmatpush2.bf16.msra.mxu0 0
        %4784 = vmatprep.subr.bf16.mxu0 0
        %4785 = vmatpush2.bf16.msra.mxu0 0
        %4786 = vmatprep.subr.bf16.mxu0 0
        %4787 = vmatpush2.bf16.msra.mxu0 0
        %4788 = vmatprep.subr.bf16.mxu0 0
        %4789 = vmatpush2.bf16.msra.mxu0 0
        %4790 = vmatprep.subr.bf16.mxu0 0
        %4791 = vmatpush2.bf16.msra.mxu0 0
        %4792 = vmatprep.subr.bf16.mxu0 0
        %4793 = vmatpush2.bf16.msra.mxu0 0
        %4794 = vmatprep.subr.bf16.mxu0 0
        %4795 = vmatpush2.bf16.msra.mxu0 0
        %4796 = vmatprep.subr.bf16.mxu0 0
        %4797 = vmatpush2.bf16.msra.mxu0 0
        %4798 = vmatprep.mubr.bf16.mxu0 0
        %4799 = vmatmul.mubr.bf16.gmra.mxu0 %v4369
        %v4800 = vpop.f32.mrf.mxu0
        %v4801 = vadd.f32 %v4340, %v4800
        %v4802 = vpop.f32.mrf.mxu0
        %v4803 = vpop.f32.mrf.mxu0
        %v4804 = vadd.f32 %v4345, %v4803
        %v4805 = vpop.f32.mrf.mxu0
        %4806 = vmatprep.mubr.bf16.mxu0 0
        %4807 = vmatmul.mubr.bf16.gmra.mxu0 %v4372
        %v4808 = vpop.f32.mrf.mxu0
        %v4809 = vadd.f32 %v4350, %v4808
        %v4810 = vpop.f32.mrf.mxu0
        %v4811 = vpop.f32.mrf.mxu0
        %v4812 = vadd.f32 %v4355, %v4811
        %v4813 = vpop.f32.mrf.mxu0
        %4814 = vdwg.mxu0
        %4815 = vmatprep.subr.bf16.mxu0 0
        %4816 = vmatpush1.bf16.msra.mxu0 0
        %4817 = vmatprep.subr.bf16.mxu0 0
        %4818 = vmatpush1.bf16.msra.mxu0 0
        %4819 = vmatprep.subr.bf16.mxu0 0
        %4820 = vmatpush1.bf16.msra.mxu0 0
        %4821 = vmatprep.subr.bf16.mxu0 0
        %4822 = vmatpush1.bf16.msra.mxu0 0
        %4823 = vmatprep.subr.bf16.mxu0 0
        %4824 = vmatpush1.bf16.msra.mxu0 %v4288
        %4825 = vmatprep.subr.bf16.mxu0 0
        %4826 = vmatpush1.bf16.msra.mxu0 %v4287
        %4827 = vmatprep.subr.bf16.mxu0 0
        %4828 = vmatpush1.bf16.msra.mxu0 %v4286
        %4829 = vmatprep.subr.bf16.mxu0 0
        %4830 = vmatpush1.bf16.msra.mxu0 %v4285
        %4831 = vmatprep.subr.bf16.mxu0 0
        %4832 = vmatpush2.bf16.msra.mxu0 0
        %4833 = vmatprep.subr.bf16.mxu0 0
        %4834 = vmatpush2.bf16.msra.mxu0 0
        %4835 = vmatprep.subr.bf16.mxu0 0
        %4836 = vmatpush2.bf16.msra.mxu0 0
        %4837 = vmatprep.subr.bf16.mxu0 0
        %4838 = vmatpush2.bf16.msra.mxu0 0
        %4839 = vmatprep.subr.bf16.mxu0 0
        %4840 = vmatpush2.bf16.msra.mxu0 0
        %4841 = vmatprep.subr.bf16.mxu0 0
        %4842 = vmatpush2.bf16.msra.mxu0 0
        %4843 = vmatprep.subr.bf16.mxu0 0
        %4844 = vmatpush2.bf16.msra.mxu0 0
        %4845 = vmatprep.subr.bf16.mxu0 0
        %4846 = vmatpush2.bf16.msra.mxu0 0
        %4847 = vmatprep.mubr.bf16.mxu0 0
        %4848 = vmatmul.mubr.bf16.gmra.mxu0 %v4369
        %v4849 = vpop.f32.mrf.mxu0
        %v4850 = vadd.f32 %v4340, %v4849
        %v4851 = vpop.f32.mrf.mxu0
        %v4852 = vpop.f32.mrf.mxu0
        %v4853 = vadd.f32 %v4345, %v4852
        %v4854 = vpop.f32.mrf.mxu0
        %4855 = vmatprep.mubr.bf16.mxu0 0
        %4856 = vmatmul.mubr.bf16.gmra.mxu0 %v4372
        %v4857 = vpop.f32.mrf.mxu0
        %v4858 = vadd.f32 %v4350, %v4857
        %v4859 = vpop.f32.mrf.mxu0
        %v4860 = vpop.f32.mrf.mxu0
        %v4861 = vadd.f32 %v4355, %v4860
        %v4862 = vpop.f32.mrf.mxu0
        %4863 = vdwg.mxu0
        %4864 = vmatprep.subr.bf16.mxu0 0
        %4865 = vmatpush1.bf16.msra.mxu0 0
        %4866 = vmatprep.subr.bf16.mxu0 0
        %4867 = vmatpush1.bf16.msra.mxu0 0
        %4868 = vmatprep.subr.bf16.mxu0 0
        %4869 = vmatpush1.bf16.msra.mxu0 0
        %4870 = vmatprep.subr.bf16.mxu0 0
        %4871 = vmatpush1.bf16.msra.mxu0 0
        %4872 = vmatprep.subr.bf16.mxu0 0
        %4873 = vmatpush1.bf16.msra.mxu0 %v4292
        %4874 = vmatprep.subr.bf16.mxu0 0
        %4875 = vmatpush1.bf16.msra.mxu0 %v4291
        %4876 = vmatprep.subr.bf16.mxu0 0
        %4877 = vmatpush1.bf16.msra.mxu0 %v4290
        %4878 = vmatprep.subr.bf16.mxu0 0
        %4879 = vmatpush1.bf16.msra.mxu0 %v4289
        %4880 = vmatprep.subr.bf16.mxu0 0
        %4881 = vmatpush2.bf16.msra.mxu0 0
        %4882 = vmatprep.subr.bf16.mxu0 0
        %4883 = vmatpush2.bf16.msra.mxu0 0
        %4884 = vmatprep.subr.bf16.mxu0 0
        %4885 = vmatpush2.bf16.msra.mxu0 0
        %4886 = vmatprep.subr.bf16.mxu0 0
        %4887 = vmatpush2.bf16.msra.mxu0 0
        %4888 = vmatprep.subr.bf16.mxu0 0
        %4889 = vmatpush2.bf16.msra.mxu0 0
        %4890 = vmatprep.subr.bf16.mxu0 0
        %4891 = vmatpush2.bf16.msra.mxu0 0
        %4892 = vmatprep.subr.bf16.mxu0 0
        %4893 = vmatpush2.bf16.msra.mxu0 0
        %4894 = vmatprep.subr.bf16.mxu0 0
        %4895 = vmatpush2.bf16.msra.mxu0 0
        %4896 = vmatprep.mubr.bf16.mxu0 0
        %4897 = vmatmul.mubr.bf16.gmra.mxu0 %v4369
        %v4898 = vpop.f32.mrf.mxu0
        %v4899 = vadd.f32 %v4340, %v4898
        %v4900 = vpop.f32.mrf.mxu0
        %v4901 = vpop.f32.mrf.mxu0
        %v4902 = vadd.f32 %v4345, %v4901
        %v4903 = vpop.f32.mrf.mxu0
        %4904 = vmatprep.mubr.bf16.mxu0 0
        %4905 = vmatmul.mubr.bf16.gmra.mxu0 %v4372
        %v4906 = vpop.f32.mrf.mxu0
        %v4907 = vadd.f32 %v4350, %v4906
        %v4908 = vpop.f32.mrf.mxu0
        %v4909 = vpop.f32.mrf.mxu0
        %v4910 = vadd.f32 %v4355, %v4909
        %v4911 = vpop.f32.mrf.mxu0
        %4912 = vdwg.mxu0
        %4913 = vmatprep.subr.bf16.mxu0 0
        %4914 = vmatpush1.bf16.msra.mxu0 0
        %4915 = vmatprep.subr.bf16.mxu0 0
        %4916 = vmatpush1.bf16.msra.mxu0 0
        %4917 = vmatprep.subr.bf16.mxu0 0
        %4918 = vmatpush1.bf16.msra.mxu0 0
        %4919 = vmatprep.subr.bf16.mxu0 0
        %4920 = vmatpush1.bf16.msra.mxu0 0
        %4921 = vmatprep.subr.bf16.mxu0 0
        %4922 = vmatpush1.bf16.msra.mxu0 %v4296
        %4923 = vmatprep.subr.bf16.mxu0 0
        %4924 = vmatpush1.bf16.msra.mxu0 %v4295
        %4925 = vmatprep.subr.bf16.mxu0 0
        %4926 = vmatpush1.bf16.msra.mxu0 %v4294
        %4927 = vmatprep.subr.bf16.mxu0 0
        %4928 = vmatpush1.bf16.msra.mxu0 %v4293
        %4929 = vmatprep.subr.bf16.mxu0 0
        %4930 = vmatpush2.bf16.msra.mxu0 0
        %4931 = vmatprep.subr.bf16.mxu0 0
        %4932 = vmatpush2.bf16.msra.mxu0 0
        %4933 = vmatprep.subr.bf16.mxu0 0
        %4934 = vmatpush2.bf16.msra.mxu0 0
        %4935 = vmatprep.subr.bf16.mxu0 0
        %4936 = vmatpush2.bf16.msra.mxu0 0
        %4937 = vmatprep.subr.bf16.mxu0 0
        %4938 = vmatpush2.bf16.msra.mxu0 0
        %4939 = vmatprep.subr.bf16.mxu0 0
        %4940 = vmatpush2.bf16.msra.mxu0 0
        %4941 = vmatprep.subr.bf16.mxu0 0
        %4942 = vmatpush2.bf16.msra.mxu0 0
        %4943 = vmatprep.subr.bf16.mxu0 0
        %4944 = vmatpush2.bf16.msra.mxu0 0
        %4945 = vmatprep.mubr.bf16.mxu0 0
        %4946 = vmatmul.mubr.bf16.gmra.mxu0 %v4369
        %v4947 = vpop.f32.mrf.mxu0
        %v4948 = vadd.f32 %v4340, %v4947
        %v4949 = vpop.f32.mrf.mxu0
        %v4950 = vpop.f32.mrf.mxu0
        %v4951 = vadd.f32 %v4345, %v4950
        %v4952 = vpop.f32.mrf.mxu0
        %4953 = vmatprep.mubr.bf16.mxu0 0
        %4954 = vmatmul.mubr.bf16.gmra.mxu0 %v4372
        %v4955 = vpop.f32.mrf.mxu0
        %v4956 = vadd.f32 %v4350, %v4955
        %v4957 = vpop.f32.mrf.mxu0
        %v4958 = vpop.f32.mrf.mxu0
        %v4959 = vadd.f32 %v4355, %v4958
        %v4960 = vpop.f32.mrf.mxu0
        %4961 = vdwg.mxu0
        %4962 = vmatprep.subr.bf16.mxu0 0
        %4963 = vmatpush1.bf16.msra.mxu0 0
        %4964 = vmatprep.subr.bf16.mxu0 0
        %4965 = vmatpush1.bf16.msra.mxu0 0
        %4966 = vmatprep.subr.bf16.mxu0 0
        %4967 = vmatpush1.bf16.msra.mxu0 0
        %4968 = vmatprep.subr.bf16.mxu0 0
        %4969 = vmatpush1.bf16.msra.mxu0 0
        %4970 = vmatprep.subr.bf16.mxu0 0
        %4971 = vmatpush1.bf16.msra.mxu0 %v4300
        %4972 = vmatprep.subr.bf16.mxu0 0
        %4973 = vmatpush1.bf16.msra.mxu0 %v4299
        %4974 = vmatprep.subr.bf16.mxu0 0
        %4975 = vmatpush1.bf16.msra.mxu0 %v4298
        %4976 = vmatprep.subr.bf16.mxu0 0
        %4977 = vmatpush1.bf16.msra.mxu0 %v4297
        %4978 = vmatprep.subr.bf16.mxu0 0
        %4979 = vmatpush2.bf16.msra.mxu0 0
        %4980 = vmatprep.subr.bf16.mxu0 0
        %4981 = vmatpush2.bf16.msra.mxu0 0
        %4982 = vmatprep.subr.bf16.mxu0 0
        %4983 = vmatpush2.bf16.msra.mxu0 0
        %4984 = vmatprep.subr.bf16.mxu0 0
        %4985 = vmatpush2.bf16.msra.mxu0 0
        %4986 = vmatprep.subr.bf16.mxu0 0
        %4987 = vmatpush2.bf16.msra.mxu0 0
        %4988 = vmatprep.subr.bf16.mxu0 0
        %4989 = vmatpush2.bf16.msra.mxu0 0
        %4990 = vmatprep.subr.bf16.mxu0 0
        %4991 = vmatpush2.bf16.msra.mxu0 0
        %4992 = vmatprep.subr.bf16.mxu0 0
        %4993 = vmatpush2.bf16.msra.mxu0 0
        %4994 = vmatprep.mubr.bf16.mxu0 0
        %4995 = vmatmul.mubr.bf16.gmra.mxu0 %v4369
        %v4996 = vpop.f32.mrf.mxu0
        %v4997 = vadd.f32 %v4340, %v4996
        %v4998 = vpop.f32.mrf.mxu0
        %v4999 = vpop.f32.mrf.mxu0
        %v5000 = vadd.f32 %v4345, %v4999
        %v5001 = vpop.f32.mrf.mxu0
        %5002 = vmatprep.mubr.bf16.mxu0 0
        %5003 = vmatmul.mubr.bf16.gmra.mxu0 %v4372
        %v5004 = vpop.f32.mrf.mxu0
        %v5005 = vadd.f32 %v4350, %v5004
        %v5006 = vpop.f32.mrf.mxu0
        %v5007 = vpop.f32.mrf.mxu0
        %v5008 = vadd.f32 %v4355, %v5007
        %v5009 = vpop.f32.mrf.mxu0
        %5010 = vdwg.mxu0
        %5011 = vmatprep.subr.bf16.mxu0 0
        %5012 = vmatpush1.bf16.msra.mxu0 0
        %5013 = vmatprep.subr.bf16.mxu0 0
        %5014 = vmatpush1.bf16.msra.mxu0 0
        %5015 = vmatprep.subr.bf16.mxu0 0
        %5016 = vmatpush1.bf16.msra.mxu0 0
        %5017 = vmatprep.subr.bf16.mxu0 0
        %5018 = vmatpush1.bf16.msra.mxu0 0
        %5019 = vmatprep.subr.bf16.mxu0 0
        %5020 = vmatpush1.bf16.msra.mxu0 %v4304
        %5021 = vmatprep.subr.bf16.mxu0 0
        %5022 = vmatpush1.bf16.msra.mxu0 %v4303
        %5023 = vmatprep.subr.bf16.mxu0 0
        %5024 = vmatpush1.bf16.msra.mxu0 %v4302
        %5025 = vmatprep.subr.bf16.mxu0 0
        %5026 = vmatpush1.bf16.msra.mxu0 %v4301
        %5027 = vmatprep.subr.bf16.mxu0 0
        %5028 = vmatpush2.bf16.msra.mxu0 0
        %5029 = vmatprep.subr.bf16.mxu0 0
        %5030 = vmatpush2.bf16.msra.mxu0 0
        %5031 = vmatprep.subr.bf16.mxu0 0
        %5032 = vmatpush2.bf16.msra.mxu0 0
        %5033 = vmatprep.subr.bf16.mxu0 0
        %5034 = vmatpush2.bf16.msra.mxu0 0
        %5035 = vmatprep.subr.bf16.mxu0 0
        %5036 = vmatpush2.bf16.msra.mxu0 0
        %5037 = vmatprep.subr.bf16.mxu0 0
        %5038 = vmatpush2.bf16.msra.mxu0 0
        %5039 = vmatprep.subr.bf16.mxu0 0
        %5040 = vmatpush2.bf16.msra.mxu0 0
        %5041 = vmatprep.subr.bf16.mxu0 0
        %5042 = vmatpush2.bf16.msra.mxu0 0
        %5043 = vmatprep.mubr.bf16.mxu0 0
        %5044 = vmatmul.mubr.bf16.gmra.mxu0 %v4369
        %v5045 = vpop.f32.mrf.mxu0
        %v5046 = vadd.f32 %v4340, %v5045
        %v5047 = vpop.f32.mrf.mxu0
        %v5048 = vpop.f32.mrf.mxu0
        %v5049 = vadd.f32 %v4345, %v5048
        %v5050 = vpop.f32.mrf.mxu0
        %5051 = vmatprep.mubr.bf16.mxu0 0
        %5052 = vmatmul.mubr.bf16.gmra.mxu0 %v4372
        %v5053 = vpop.f32.mrf.mxu0
        %v5054 = vadd.f32 %v4350, %v5053
        %v5055 = vpop.f32.mrf.mxu0
        %v5056 = vpop.f32.mrf.mxu0
        %v5057 = vadd.f32 %v4355, %v5056
        %v5058 = vpop.f32.mrf.mxu0
        %5059 = vdwg.mxu0
        %5060 = vmatprep.subr.bf16.mxu0 0
        %5061 = vmatpush1.bf16.msra.mxu0 0
        %5062 = vmatprep.subr.bf16.mxu0 0
        %5063 = vmatpush1.bf16.msra.mxu0 0
        %5064 = vmatprep.subr.bf16.mxu0 0
        %5065 = vmatpush1.bf16.msra.mxu0 0
        %5066 = vmatprep.subr.bf16.mxu0 0
        %5067 = vmatpush1.bf16.msra.mxu0 0
        %5068 = vmatprep.subr.bf16.mxu0 0
        %5069 = vmatpush1.bf16.msra.mxu0 %v4308
        %5070 = vmatprep.subr.bf16.mxu0 0
        %5071 = vmatpush1.bf16.msra.mxu0 %v4307
        %5072 = vmatprep.subr.bf16.mxu0 0
        %5073 = vmatpush1.bf16.msra.mxu0 %v4306
        %5074 = vmatprep.subr.bf16.mxu0 0
        %5075 = vmatpush1.bf16.msra.mxu0 %v4305
        %5076 = vmatprep.subr.bf16.mxu0 0
        %5077 = vmatpush2.bf16.msra.mxu0 0
        %5078 = vmatprep.subr.bf16.mxu0 0
        %5079 = vmatpush2.bf16.msra.mxu0 0
        %5080 = vmatprep.subr.bf16.mxu0 0
        %5081 = vmatpush2.bf16.msra.mxu0 0
        %5082 = vmatprep.subr.bf16.mxu0 0
        %5083 = vmatpush2.bf16.msra.mxu0 0
        %5084 = vmatprep.subr.bf16.mxu0 0
        %5085 = vmatpush2.bf16.msra.mxu0 0
        %5086 = vmatprep.subr.bf16.mxu0 0
        %5087 = vmatpush2.bf16.msra.mxu0 0
        %5088 = vmatprep.subr.bf16.mxu0 0
        %5089 = vmatpush2.bf16.msra.mxu0 0
        %5090 = vmatprep.subr.bf16.mxu0 0
        %5091 = vmatpush2.bf16.msra.mxu0 0
        %5092 = vmatprep.mubr.bf16.mxu0 0
        %5093 = vmatmul.mubr.bf16.gmra.mxu0 %v4369
        %v5094 = vpop.f32.mrf.mxu0
        %v5095 = vadd.f32 %v4340, %v5094
        %v5096 = vpop.f32.mrf.mxu0
        %v5097 = vpop.f32.mrf.mxu0
        %v5098 = vadd.f32 %v4345, %v5097
        %v5099 = vpop.f32.mrf.mxu0
        %5100 = vmatprep.mubr.bf16.mxu0 0
        %5101 = vmatmul.mubr.bf16.gmra.mxu0 %v4372
        %v5102 = vpop.f32.mrf.mxu0
        %v5103 = vadd.f32 %v4350, %v5102
        %v5104 = vpop.f32.mrf.mxu0
        %v5105 = vpop.f32.mrf.mxu0
        %v5106 = vadd.f32 %v4355, %v5105
        %v5107 = vpop.f32.mrf.mxu0
        %5108 = vdwg.mxu0
        %5109 = vmatprep.subr.bf16.mxu0 0
        %5110 = vmatpush1.bf16.msra.mxu0 0
        %5111 = vmatprep.subr.bf16.mxu0 0
        %5112 = vmatpush1.bf16.msra.mxu0 0
        %5113 = vmatprep.subr.bf16.mxu0 0
        %5114 = vmatpush1.bf16.msra.mxu0 0
        %5115 = vmatprep.subr.bf16.mxu0 0
        %5116 = vmatpush1.bf16.msra.mxu0 0
        %5117 = vmatprep.subr.bf16.mxu0 0
        %5118 = vmatpush1.bf16.msra.mxu0 %v4312
        %5119 = vmatprep.subr.bf16.mxu0 0
        %5120 = vmatpush1.bf16.msra.mxu0 %v4311
        %5121 = vmatprep.subr.bf16.mxu0 0
        %5122 = vmatpush1.bf16.msra.mxu0 %v4310
        %5123 = vmatprep.subr.bf16.mxu0 0
        %5124 = vmatpush1.bf16.msra.mxu0 %v4309
        %5125 = vmatprep.subr.bf16.mxu0 0
        %5126 = vmatpush2.bf16.msra.mxu0 0
        %5127 = vmatprep.subr.bf16.mxu0 0
        %5128 = vmatpush2.bf16.msra.mxu0 0
        %5129 = vmatprep.subr.bf16.mxu0 0
        %5130 = vmatpush2.bf16.msra.mxu0 0
        %5131 = vmatprep.subr.bf16.mxu0 0
        %5132 = vmatpush2.bf16.msra.mxu0 0
        %5133 = vmatprep.subr.bf16.mxu0 0
        %5134 = vmatpush2.bf16.msra.mxu0 0
        %5135 = vmatprep.subr.bf16.mxu0 0
        %5136 = vmatpush2.bf16.msra.mxu0 0
        %5137 = vmatprep.subr.bf16.mxu0 0
        %5138 = vmatpush2.bf16.msra.mxu0 0
        %5139 = vmatprep.subr.bf16.mxu0 0
        %5140 = vmatpush2.bf16.msra.mxu0 0
        %5141 = vmatprep.mubr.bf16.mxu0 0
        %5142 = vmatmul.mubr.bf16.gmra.mxu0 %v4369
        %v5143 = vpop.f32.mrf.mxu0
        %v5144 = vadd.f32 %v4340, %v5143
        %v5145 = vpop.f32.mrf.mxu0
        %v5146 = vpop.f32.mrf.mxu0
        %v5147 = vadd.f32 %v4345, %v5146
        %v5148 = vpop.f32.mrf.mxu0
        %5149 = vmatprep.mubr.bf16.mxu0 0
        %5150 = vmatmul.mubr.bf16.gmra.mxu0 %v4372
        %v5151 = vpop.f32.mrf.mxu0
        %v5152 = vadd.f32 %v4350, %v5151
        %v5153 = vpop.f32.mrf.mxu0
        %v5154 = vpop.f32.mrf.mxu0
        %v5155 = vadd.f32 %v4355, %v5154
        %v5156 = vpop.f32.mrf.mxu0
        %5157 = vdwg.mxu0
        %5158 = vmatprep.subr.bf16.mxu0 0
        %5159 = vmatpush1.bf16.msra.mxu0 0
        %5160 = vmatprep.subr.bf16.mxu0 0
        %5161 = vmatpush1.bf16.msra.mxu0 0
        %5162 = vmatprep.subr.bf16.mxu0 0
        %5163 = vmatpush1.bf16.msra.mxu0 0
        %5164 = vmatprep.subr.bf16.mxu0 0
        %5165 = vmatpush1.bf16.msra.mxu0 0
        %5166 = vmatprep.subr.bf16.mxu0 0
        %5167 = vmatpush1.bf16.msra.mxu0 %v4316
        %5168 = vmatprep.subr.bf16.mxu0 0
        %5169 = vmatpush1.bf16.msra.mxu0 %v4315
        %5170 = vmatprep.subr.bf16.mxu0 0
        %5171 = vmatpush1.bf16.msra.mxu0 %v4314
        %5172 = vmatprep.subr.bf16.mxu0 0
        %5173 = vmatpush1.bf16.msra.mxu0 %v4313
        %5174 = vmatprep.subr.bf16.mxu0 0
        %5175 = vmatpush2.bf16.msra.mxu0 0
        %5176 = vmatprep.subr.bf16.mxu0 0
        %5177 = vmatpush2.bf16.msra.mxu0 0
        %5178 = vmatprep.subr.bf16.mxu0 0
        %5179 = vmatpush2.bf16.msra.mxu0 0
        %5180 = vmatprep.subr.bf16.mxu0 0
        %5181 = vmatpush2.bf16.msra.mxu0 0
        %5182 = vmatprep.subr.bf16.mxu0 0
        %5183 = vmatpush2.bf16.msra.mxu0 0
        %5184 = vmatprep.subr.bf16.mxu0 0
        %5185 = vmatpush2.bf16.msra.mxu0 0
        %5186 = vmatprep.subr.bf16.mxu0 0
        %5187 = vmatpush2.bf16.msra.mxu0 0
        %5188 = vmatprep.subr.bf16.mxu0 0
        %5189 = vmatpush2.bf16.msra.mxu0 0
        %5190 = vmatprep.mubr.bf16.mxu0 0
        %5191 = vmatmul.mubr.bf16.gmra.mxu0 %v4369
        %v5192 = vpop.f32.mrf.mxu0
        %v5193 = vadd.f32 %v4340, %v5192
        %v5194 = vpop.f32.mrf.mxu0
        %v5195 = vpop.f32.mrf.mxu0
        %v5196 = vadd.f32 %v4345, %v5195
        %v5197 = vpop.f32.mrf.mxu0
        %5198 = vmatprep.mubr.bf16.mxu0 0
        %5199 = vmatmul.mubr.bf16.gmra.mxu0 %v4372
        %v5200 = vpop.f32.mrf.mxu0
        %v5201 = vadd.f32 %v4350, %v5200
        %v5202 = vpop.f32.mrf.mxu0
        %v5203 = vpop.f32.mrf.mxu0
        %v5204 = vadd.f32 %v4355, %v5203
        %v5205 = vpop.f32.mrf.mxu0
        %5206 = vdwg.mxu0
        %5207 = vmatprep.subr.bf16.mxu0 0
        %5208 = vmatpush1.bf16.msra.mxu0 0
        %5209 = vmatprep.subr.bf16.mxu0 0
        %5210 = vmatpush1.bf16.msra.mxu0 0
        %5211 = vmatprep.subr.bf16.mxu0 0
        %5212 = vmatpush1.bf16.msra.mxu0 0
        %5213 = vmatprep.subr.bf16.mxu0 0
        %5214 = vmatpush1.bf16.msra.mxu0 0
        %5215 = vmatprep.subr.bf16.mxu0 0
        %5216 = vmatpush1.bf16.msra.mxu0 %v4320
        %5217 = vmatprep.subr.bf16.mxu0 0
        %5218 = vmatpush1.bf16.msra.mxu0 %v4319
        %5219 = vmatprep.subr.bf16.mxu0 0
        %5220 = vmatpush1.bf16.msra.mxu0 %v4318
        %5221 = vmatprep.subr.bf16.mxu0 0
        %5222 = vmatpush1.bf16.msra.mxu0 %v4317
        %5223 = vmatprep.subr.bf16.mxu0 0
        %5224 = vmatpush2.bf16.msra.mxu0 0
        %5225 = vmatprep.subr.bf16.mxu0 0
        %5226 = vmatpush2.bf16.msra.mxu0 0
        %5227 = vmatprep.subr.bf16.mxu0 0
        %5228 = vmatpush2.bf16.msra.mxu0 0
        %5229 = vmatprep.subr.bf16.mxu0 0
        %5230 = vmatpush2.bf16.msra.mxu0 0
        %5231 = vmatprep.subr.bf16.mxu0 0
        %5232 = vmatpush2.bf16.msra.mxu0 0
        %5233 = vmatprep.subr.bf16.mxu0 0
        %5234 = vmatpush2.bf16.msra.mxu0 0
        %5235 = vmatprep.subr.bf16.mxu0 0
        %5236 = vmatpush2.bf16.msra.mxu0 0
        %5237 = vmatprep.subr.bf16.mxu0 0
        %5238 = vmatpush2.bf16.msra.mxu0 0
        %5239 = vmatprep.mubr.bf16.mxu0 0
        %5240 = vmatmul.mubr.bf16.gmra.mxu0 %v4369
        %v5241 = vpop.f32.mrf.mxu0
        %v5242 = vadd.f32 %v4340, %v5241
        %v5243 = vpop.f32.mrf.mxu0
        %v5244 = vpop.f32.mrf.mxu0
        %v5245 = vadd.f32 %v4345, %v5244
        %v5246 = vpop.f32.mrf.mxu0
        %5247 = vmatprep.mubr.bf16.mxu0 0
        %5248 = vmatmul.mubr.bf16.gmra.mxu0 %v4372
        %v5249 = vpop.f32.mrf.mxu0
        %v5250 = vadd.f32 %v4350, %v5249
        %v5251 = vpop.f32.mrf.mxu0
        %v5252 = vpop.f32.mrf.mxu0
        %v5253 = vadd.f32 %v4355, %v5252
        %v5254 = vpop.f32.mrf.mxu0
        %5255 = vdwg.mxu0
        %5256 = vmatprep.subr.bf16.mxu0 0
        %5257 = vmatpush1.bf16.msra.mxu0 0
        %5258 = vmatprep.subr.bf16.mxu0 0
        %5259 = vmatpush1.bf16.msra.mxu0 0
        %5260 = vmatprep.subr.bf16.mxu0 0
        %5261 = vmatpush1.bf16.msra.mxu0 0
        %5262 = vmatprep.subr.bf16.mxu0 0
        %5263 = vmatpush1.bf16.msra.mxu0 0
        %5264 = vmatprep.subr.bf16.mxu0 0
        %5265 = vmatpush1.bf16.msra.mxu0 %v4324
        %5266 = vmatprep.subr.bf16.mxu0 0
        %5267 = vmatpush1.bf16.msra.mxu0 %v4323
        %5268 = vmatprep.subr.bf16.mxu0 0
        %5269 = vmatpush1.bf16.msra.mxu0 %v4322
        %5270 = vmatprep.subr.bf16.mxu0 0
        %5271 = vmatpush1.bf16.msra.mxu0 %v4321
        %5272 = vmatprep.subr.bf16.mxu0 0
        %5273 = vmatpush2.bf16.msra.mxu0 0
        %5274 = vmatprep.subr.bf16.mxu0 0
        %5275 = vmatpush2.bf16.msra.mxu0 0
        %5276 = vmatprep.subr.bf16.mxu0 0
        %5277 = vmatpush2.bf16.msra.mxu0 0
        %5278 = vmatprep.subr.bf16.mxu0 0
        %5279 = vmatpush2.bf16.msra.mxu0 0
        %5280 = vmatprep.subr.bf16.mxu0 0
        %5281 = vmatpush2.bf16.msra.mxu0 0
        %5282 = vmatprep.subr.bf16.mxu0 0
        %5283 = vmatpush2.bf16.msra.mxu0 0
        %5284 = vmatprep.subr.bf16.mxu0 0
        %5285 = vmatpush2.bf16.msra.mxu0 0
        %5286 = vmatprep.subr.bf16.mxu0 0
        %5287 = vmatpush2.bf16.msra.mxu0 0
        %5288 = vmatprep.mubr.bf16.mxu0 0
        %5289 = vmatmul.mubr.bf16.gmra.mxu0 %v4369
        %v5290 = vpop.f32.mrf.mxu0
        %v5291 = vadd.f32 %v4340, %v5290
        %v5292 = vpop.f32.mrf.mxu0
        %v5293 = vpop.f32.mrf.mxu0
        %v5294 = vadd.f32 %v4345, %v5293
        %v5295 = vpop.f32.mrf.mxu0
        %5296 = vmatprep.mubr.bf16.mxu0 0
        %5297 = vmatmul.mubr.bf16.gmra.mxu0 %v4372
        %v5298 = vpop.f32.mrf.mxu0
        %v5299 = vadd.f32 %v4350, %v5298
        %v5300 = vpop.f32.mrf.mxu0
        %v5301 = vpop.f32.mrf.mxu0
        %v5302 = vadd.f32 %v4355, %v5301
        %v5303 = vpop.f32.mrf.mxu0
        %5304 = vdwg.mxu0
        %5305 = vmatprep.subr.bf16.mxu0 0
        %5306 = vmatpush1.bf16.msra.mxu0 0
        %5307 = vmatprep.subr.bf16.mxu0 0
        %5308 = vmatpush1.bf16.msra.mxu0 0
        %5309 = vmatprep.subr.bf16.mxu0 0
        %5310 = vmatpush1.bf16.msra.mxu0 0
        %5311 = vmatprep.subr.bf16.mxu0 0
        %5312 = vmatpush1.bf16.msra.mxu0 0
        %5313 = vmatprep.subr.bf16.mxu0 0
        %5314 = vmatpush1.bf16.msra.mxu0 %v4328
        %5315 = vmatprep.subr.bf16.mxu0 0
        %5316 = vmatpush1.bf16.msra.mxu0 %v4327
        %5317 = vmatprep.subr.bf16.mxu0 0
        %5318 = vmatpush1.bf16.msra.mxu0 %v4326
        %5319 = vmatprep.subr.bf16.mxu0 0
        %5320 = vmatpush1.bf16.msra.mxu0 %v4325
        %5321 = vmatprep.subr.bf16.mxu0 0
        %5322 = vmatpush2.bf16.msra.mxu0 0
        %5323 = vmatprep.subr.bf16.mxu0 0
        %5324 = vmatpush2.bf16.msra.mxu0 0
        %5325 = vmatprep.subr.bf16.mxu0 0
        %5326 = vmatpush2.bf16.msra.mxu0 0
        %5327 = vmatprep.subr.bf16.mxu0 0
        %5328 = vmatpush2.bf16.msra.mxu0 0
        %5329 = vmatprep.subr.bf16.mxu0 0
        %5330 = vmatpush2.bf16.msra.mxu0 0
        %5331 = vmatprep.subr.bf16.mxu0 0
        %5332 = vmatpush2.bf16.msra.mxu0 0
        %5333 = vmatprep.subr.bf16.mxu0 0
        %5334 = vmatpush2.bf16.msra.mxu0 0
        %5335 = vmatprep.subr.bf16.mxu0 0
        %5336 = vmatpush2.bf16.msra.mxu0 0
        %5337 = vmatprep.mubr.bf16.mxu0 0
        %5338 = vmatmul.mubr.bf16.gmra.mxu0 %v4369
        %v5339 = vpop.f32.mrf.mxu0
        %v5340 = vadd.f32 %v4340, %v5339
        %v5341 = vpop.f32.mrf.mxu0
        %v5342 = vpop.f32.mrf.mxu0
        %v5343 = vadd.f32 %v4345, %v5342
        %v5344 = vpop.f32.mrf.mxu0
        %5345 = vmatprep.mubr.bf16.mxu0 0
        %5346 = vmatmul.mubr.bf16.gmra.mxu0 %v4372
        %v5347 = vpop.f32.mrf.mxu0
        %v5348 = vadd.f32 %v4350, %v5347
        %v5349 = vpop.f32.mrf.mxu0
        %v5350 = vpop.f32.mrf.mxu0
        %v5351 = vadd.f32 %v4355, %v5350
        %v5352 = vpop.f32.mrf.mxu0
        %5353 = vdwg.mxu0
        %v5354 = vmax.f32 %v4409, 0.0
        %v5355 = vmax.f32 %v4412, 0.0
        %v5356 = vmax.f32 %v4417, 0.0
        %v5357 = vmax.f32 %v4420, 0.0
        %v5358 = vmax.f32 %v4458, 0.0
        %v5359 = vmax.f32 %v4461, 0.0
        %v5360 = vmax.f32 %v4466, 0.0
        %v5361 = vmax.f32 %v4469, 0.0
        %v5362 = vmax.f32 %v4507, 0.0
        %v5363 = vmax.f32 %v4510, 0.0
        %v5364 = vmax.f32 %v4515, 0.0
        %v5365 = vmax.f32 %v4518, 0.0
        %v5366 = vmax.f32 %v4556, 0.0
        %v5367 = vmax.f32 %v4559, 0.0
        %v5368 = vmax.f32 %v4564, 0.0
        %v5369 = vmax.f32 %v4567, 0.0
        %v5370 = vmax.f32 %v4605, 0.0
        %v5371 = vmax.f32 %v4608, 0.0
        %v5372 = vmax.f32 %v4613, 0.0
        %v5373 = vmax.f32 %v4616, 0.0
        %v5374 = vmax.f32 %v4654, 0.0
        %v5375 = vmax.f32 %v4657, 0.0
        %v5376 = vmax.f32 %v4662, 0.0
        %v5377 = vmax.f32 %v4665, 0.0
        %v5378 = vmax.f32 %v4703, 0.0
        %v5379 = vmax.f32 %v4706, 0.0
        %v5380 = vmax.f32 %v4711, 0.0
        %v5381 = vmax.f32 %v4714, 0.0
        %v5382 = vmax.f32 %v4752, 0.0
        %v5383 = vmax.f32 %v4755, 0.0
        %v5384 = vmax.f32 %v4760, 0.0
        %v5385 = vmax.f32 %v4763, 0.0
        %v5386 = vmax.f32 %v4801, 0.0
        %v5387 = vmax.f32 %v4804, 0.0
        %v5388 = vmax.f32 %v4809, 0.0
        %v5389 = vmax.f32 %v4812, 0.0
        %v5390 = vmax.f32 %v4850, 0.0
        %v5391 = vmax.f32 %v4853, 0.0
        %v5392 = vmax.f32 %v4858, 0.0
        %v5393 = vmax.f32 %v4861, 0.0
        %v5394 = vmax.f32 %v4899, 0.0
        %v5395 = vmax.f32 %v4902, 0.0
        %v5396 = vmax.f32 %v4907, 0.0
        %v5397 = vmax.f32 %v4910, 0.0
        %v5398 = vmax.f32 %v4948, 0.0
        %v5399 = vmax.f32 %v4951, 0.0
        %v5400 = vmax.f32 %v4956, 0.0
        %v5401 = vmax.f32 %v4959, 0.0
        %v5402 = vmax.f32 %v4997, 0.0
        %v5403 = vmax.f32 %v5000, 0.0
        %v5404 = vmax.f32 %v5005, 0.0
        %v5405 = vmax.f32 %v5008, 0.0
        %v5406 = vmax.f32 %v5046, 0.0
        %v5407 = vmax.f32 %v5049, 0.0
        %v5408 = vmax.f32 %v5054, 0.0
        %v5409 = vmax.f32 %v5057, 0.0
        %v5410 = vmax.f32 %v5095, 0.0
        %v5411 = vmax.f32 %v5098, 0.0
        %v5412 = vmax.f32 %v5103, 0.0
        %v5413 = vmax.f32 %v5106, 0.0
        %v5414 = vmax.f32 %v5144, 0.0
        %v5415 = vmax.f32 %v5147, 0.0
        %v5416 = vmax.f32 %v5152, 0.0
        %v5417 = vmax.f32 %v5155, 0.0
        %v5418 = vmax.f32 %v5193, 0.0
        %v5419 = vmax.f32 %v5196, 0.0
        %v5420 = vmax.f32 %v5201, 0.0
        %v5421 = vmax.f32 %v5204, 0.0
        %v5422 = vmax.f32 %v5242, 0.0
        %v5423 = vmax.f32 %v5245, 0.0
        %v5424 = vmax.f32 %v5250, 0.0
        %v5425 = vmax.f32 %v5253, 0.0
        %v5426 = vmax.f32 %v5291, 0.0
        %v5427 = vmax.f32 %v5294, 0.0
        %v5428 = vmax.f32 %v5299, 0.0
        %v5429 = vmax.f32 %v5302, 0.0
        %v5430 = vmax.f32 %v5340, 0.0
        %v5431 = vmax.f32 %v5343, 0.0
        %v5432 = vmax.f32 %v5348, 0.0
        %v5433 = vmax.f32 %v5351, 0.0
        %v5434 = vlaneseq
        %v5435 = vand.u32 %v5434, 127
        %vm5436 = vcmp.ge.s32.totalorder %v5435, 2
        %vm5437 = vcmp.lt.s32.totalorder %v5435, 18
        %vm5438 = vmand %vm5436, %vm5437
        %s5439 = ssub.s32 %s309, 2
        %v5440 = vstv %s5439
        %v5441 = vadd.s32 %v5440, 1
        %v5442 = vadd.s32 %v5440, 2
        %v5443 = vadd.s32 %v5440, 3
        %v5444 = vadd.s32 %v5440, 4
        %v5445 = vadd.s32 %v5440, 5
        %v5446 = vadd.s32 %v5440, 6
        %v5447 = vadd.s32 %v5440, 7
        %v5448 = vadd.s32 %v5440, 8
        %v5449 = vadd.s32 %v5440, 9
        %v5450 = vadd.s32 %v5440, 10
        %v5451 = vadd.s32 %v5440, 11
        %v5452 = vadd.s32 %v5440, 12
        %v5453 = vadd.s32 %v5440, 13
        %v5454 = vadd.s32 %v5440, 14
        %v5455 = vadd.s32 %v5440, 15
        %v5456 = vadd.s32 %v5440, 16
        %v5457 = vadd.s32 %v5440, 17
        %v5458 = vadd.s32 %v5440, 18
        %v5459 = vadd.s32 %v5440, 19
        %vm5460 = vcmp.ge.s32.totalorder %v5440, 0
        %vm5461 = vcmp.ge.s32.totalorder %v5441, 0
        %vm5462 = vcmp.ge.s32.totalorder %v5442, 0
        %vm5463 = vcmp.ge.s32.totalorder %v5443, 0
        %vm5464 = vcmp.ge.s32.totalorder %v5444, 0
        %vm5465 = vcmp.ge.s32.totalorder %v5445, 0
        %vm5466 = vcmp.ge.s32.totalorder %v5446, 0
        %vm5467 = vcmp.ge.s32.totalorder %v5447, 0
        %vm5468 = vcmp.ge.s32.totalorder %v5448, 0
        %vm5469 = vcmp.ge.s32.totalorder %v5449, 0
        %vm5470 = vcmp.ge.s32.totalorder %v5450, 0
        %vm5471 = vcmp.ge.s32.totalorder %v5451, 0
        %vm5472 = vcmp.ge.s32.totalorder %v5452, 0
        %vm5473 = vcmp.ge.s32.totalorder %v5453, 0
        %vm5474 = vcmp.ge.s32.totalorder %v5454, 0
        %vm5475 = vcmp.ge.s32.totalorder %v5455, 0
        %vm5476 = vcmp.ge.s32.totalorder %v5456, 0
        %vm5477 = vcmp.ge.s32.totalorder %v5457, 0
        %vm5478 = vcmp.ge.s32.totalorder %v5458, 0
        %vm5479 = vcmp.ge.s32.totalorder %v5459, 0
        %vm5480 = vcmp.lt.s32.totalorder %v5440, 16
        %vm5481 = vcmp.lt.s32.totalorder %v5441, 16
        %vm5482 = vcmp.lt.s32.totalorder %v5442, 16
        %vm5483 = vcmp.lt.s32.totalorder %v5443, 16
        %vm5484 = vcmp.lt.s32.totalorder %v5444, 16
        %vm5485 = vcmp.lt.s32.totalorder %v5445, 16
        %vm5486 = vcmp.lt.s32.totalorder %v5446, 16
        %vm5487 = vcmp.lt.s32.totalorder %v5447, 16
        %vm5488 = vcmp.lt.s32.totalorder %v5448, 16
        %vm5489 = vcmp.lt.s32.totalorder %v5449, 16
        %vm5490 = vcmp.lt.s32.totalorder %v5450, 16
        %vm5491 = vcmp.lt.s32.totalorder %v5451, 16
        %vm5492 = vcmp.lt.s32.totalorder %v5452, 16
        %vm5493 = vcmp.lt.s32.totalorder %v5453, 16
        %vm5494 = vcmp.lt.s32.totalorder %v5454, 16
        %vm5495 = vcmp.lt.s32.totalorder %v5455, 16
        %vm5496 = vcmp.lt.s32.totalorder %v5456, 16
        %vm5497 = vcmp.lt.s32.totalorder %v5457, 16
        %vm5498 = vcmp.lt.s32.totalorder %v5458, 16
        %vm5499 = vcmp.lt.s32.totalorder %v5459, 16
        %vm5500 = vmand %vm5460, %vm5480
        %vm5501 = vmand %vm5461, %vm5481
        %vm5502 = vmand %vm5462, %vm5482
        %vm5503 = vmand %vm5463, %vm5483
        %vm5504 = vmand %vm5464, %vm5484
        %vm5505 = vmand %vm5465, %vm5485
        %vm5506 = vmand %vm5466, %vm5486
        %vm5507 = vmand %vm5467, %vm5487
        %vm5508 = vmand %vm5468, %vm5488
        %vm5509 = vmand %vm5469, %vm5489
        %vm5510 = vmand %vm5470, %vm5490
        %vm5511 = vmand %vm5471, %vm5491
        %vm5512 = vmand %vm5472, %vm5492
        %vm5513 = vmand %vm5473, %vm5493
        %vm5514 = vmand %vm5474, %vm5494
        %vm5515 = vmand %vm5475, %vm5495
        %vm5516 = vmand %vm5476, %vm5496
        %vm5517 = vmand %vm5477, %vm5497
        %vm5518 = vmand %vm5478, %vm5498
        %vm5519 = vmand %vm5479, %vm5499
        %v5520 = vsel %vm5500, 1, 0
        %v5521 = vsel %vm5501, 1, 0
        %v5522 = vsel %vm5502, 1, 0
        %v5523 = vsel %vm5503, 1, 0
        %v5524 = vsel %vm5504, 1, 0
        %v5525 = vsel %vm5505, 1, 0
        %v5526 = vsel %vm5506, 1, 0
        %v5527 = vsel %vm5507, 1, 0
        %v5528 = vsel %vm5508, 1, 0
        %v5529 = vsel %vm5509, 1, 0
        %v5530 = vsel %vm5510, 1, 0
        %v5531 = vsel %vm5511, 1, 0
        %v5532 = vsel %vm5512, 1, 0
        %v5533 = vsel %vm5513, 1, 0
        %v5534 = vsel %vm5514, 1, 0
        %v5535 = vsel %vm5515, 1, 0
        %v5536 = vsel %vm5516, 1, 0
        %v5537 = vsel %vm5517, 1, 0
        %v5538 = vsel %vm5518, 1, 0
        %v5539 = vsel %vm5519, 1, 0
        %vm5540 = vcmp.eq.s32.totalorder %v5520, 1
        %vm5541 = vcmp.eq.s32.totalorder %v5521, 1
        %vm5542 = vcmp.eq.s32.totalorder %v5522, 1
        %vm5543 = vcmp.eq.s32.totalorder %v5523, 1
        %vm5544 = vcmp.eq.s32.totalorder %v5524, 1
        %vm5545 = vcmp.eq.s32.totalorder %v5525, 1
        %vm5546 = vcmp.eq.s32.totalorder %v5526, 1
        %vm5547 = vcmp.eq.s32.totalorder %v5527, 1
        %vm5548 = vcmp.eq.s32.totalorder %v5528, 1
        %vm5549 = vcmp.eq.s32.totalorder %v5529, 1
        %vm5550 = vcmp.eq.s32.totalorder %v5530, 1
        %vm5551 = vcmp.eq.s32.totalorder %v5531, 1
        %vm5552 = vcmp.eq.s32.totalorder %v5532, 1
        %vm5553 = vcmp.eq.s32.totalorder %v5533, 1
        %vm5554 = vcmp.eq.s32.totalorder %v5534, 1
        %vm5555 = vcmp.eq.s32.totalorder %v5535, 1
        %vm5556 = vcmp.eq.s32.totalorder %v5536, 1
        %vm5557 = vcmp.eq.s32.totalorder %v5537, 1
        %vm5558 = vcmp.eq.s32.totalorder %v5538, 1
        %vm5559 = vcmp.eq.s32.totalorder %v5539, 1
        %v5560 = vsel %vm5438, 1, 0
        %vm5561 = vcmp.eq.s32.totalorder %v5560, 1
        %vm5562 = vmand %vm5540, %vm5561
        %vm5563 = vmand %vm5541, %vm5561
        %vm5564 = vmand %vm5542, %vm5561
        %vm5565 = vmand %vm5543, %vm5561
        %vm5566 = vmand %vm5544, %vm5561
        %vm5567 = vmand %vm5545, %vm5561
        %vm5568 = vmand %vm5546, %vm5561
        %vm5569 = vmand %vm5547, %vm5561
        %vm5570 = vmand %vm5548, %vm5561
        %vm5571 = vmand %vm5549, %vm5561
        %vm5572 = vmand %vm5550, %vm5561
        %vm5573 = vmand %vm5551, %vm5561
        %vm5574 = vmand %vm5552, %vm5561
        %vm5575 = vmand %vm5553, %vm5561
        %vm5576 = vmand %vm5554, %vm5561
        %vm5577 = vmand %vm5555, %vm5561
        %vm5578 = vmand %vm5556, %vm5561
        %vm5579 = vmand %vm5557, %vm5561
        %vm5580 = vmand %vm5558, %vm5561
        %vm5581 = vmand %vm5559, %vm5561
        %v5582 = vsel %vm5562, 1, 0
        %v5583 = vsel %vm5563, 1, 0
        %v5584 = vsel %vm5564, 1, 0
        %v5585 = vsel %vm5565, 1, 0
        %v5586 = vsel %vm5566, 1, 0
        %v5587 = vsel %vm5567, 1, 0
        %v5588 = vsel %vm5568, 1, 0
        %v5589 = vsel %vm5569, 1, 0
        %v5590 = vsel %vm5570, 1, 0
        %v5591 = vsel %vm5571, 1, 0
        %v5592 = vsel %vm5572, 1, 0
        %v5593 = vsel %vm5573, 1, 0
        %v5594 = vsel %vm5574, 1, 0
        %v5595 = vsel %vm5575, 1, 0
        %v5596 = vsel %vm5576, 1, 0
        %v5597 = vsel %vm5577, 1, 0
        %v5598 = vsel %vm5578, 1, 0
        %v5599 = vsel %vm5579, 1, 0
        %v5600 = vsel %vm5580, 1, 0
        %v5601 = vsel %vm5581, 1, 0
        %vm5602 = vcmp.eq.s32.totalorder %v5582, 1
        %vm5603 = vcmp.eq.s32.totalorder %v5583, 1
        %vm5604 = vcmp.eq.s32.totalorder %v5584, 1
        %vm5605 = vcmp.eq.s32.totalorder %v5585, 1
        %vm5606 = vcmp.eq.s32.totalorder %v5586, 1
        %vm5607 = vcmp.eq.s32.totalorder %v5587, 1
        %vm5608 = vcmp.eq.s32.totalorder %v5588, 1
        %vm5609 = vcmp.eq.s32.totalorder %v5589, 1
        %vm5610 = vcmp.eq.s32.totalorder %v5590, 1
        %vm5611 = vcmp.eq.s32.totalorder %v5591, 1
        %vm5612 = vcmp.eq.s32.totalorder %v5592, 1
        %vm5613 = vcmp.eq.s32.totalorder %v5593, 1
        %vm5614 = vcmp.eq.s32.totalorder %v5594, 1
        %vm5615 = vcmp.eq.s32.totalorder %v5595, 1
        %vm5616 = vcmp.eq.s32.totalorder %v5596, 1
        %vm5617 = vcmp.eq.s32.totalorder %v5597, 1
        %vm5618 = vcmp.eq.s32.totalorder %v5598, 1
        %vm5619 = vcmp.eq.s32.totalorder %v5599, 1
        %vm5620 = vcmp.eq.s32.totalorder %v5600, 1
        %vm5621 = vcmp.eq.s32.totalorder %v5601, 1
        %v5622 = vsel %vm5602, %v5354, 0.0
        %v5623 = vsel %vm5602, %v5355, 0.0
        %v5624 = vsel %vm5602, %v5356, 0.0
        %v5625 = vsel %vm5602, %v5357, 0.0
        %v5626 = vsel %vm5603, %v5358, 0.0
        %v5627 = vsel %vm5603, %v5359, 0.0
        %v5628 = vsel %vm5603, %v5360, 0.0
        %v5629 = vsel %vm5603, %v5361, 0.0
        %v5630 = vsel %vm5604, %v5362, 0.0
        %v5631 = vsel %vm5604, %v5363, 0.0
        %v5632 = vsel %vm5604, %v5364, 0.0
        %v5633 = vsel %vm5604, %v5365, 0.0
        %v5634 = vsel %vm5605, %v5366, 0.0
        %v5635 = vsel %vm5605, %v5367, 0.0
        %v5636 = vsel %vm5605, %v5368, 0.0
        %v5637 = vsel %vm5605, %v5369, 0.0
        %v5638 = vsel %vm5606, %v5370, 0.0
        %v5639 = vsel %vm5606, %v5371, 0.0
        %v5640 = vsel %vm5606, %v5372, 0.0
        %v5641 = vsel %vm5606, %v5373, 0.0
        %v5642 = vsel %vm5607, %v5374, 0.0
        %v5643 = vsel %vm5607, %v5375, 0.0
        %v5644 = vsel %vm5607, %v5376, 0.0
        %v5645 = vsel %vm5607, %v5377, 0.0
        %v5646 = vsel %vm5608, %v5378, 0.0
        %v5647 = vsel %vm5608, %v5379, 0.0
        %v5648 = vsel %vm5608, %v5380, 0.0
        %v5649 = vsel %vm5608, %v5381, 0.0
        %v5650 = vsel %vm5609, %v5382, 0.0
        %v5651 = vsel %vm5609, %v5383, 0.0
        %v5652 = vsel %vm5609, %v5384, 0.0
        %v5653 = vsel %vm5609, %v5385, 0.0
        %v5654 = vsel %vm5610, %v5386, 0.0
        %v5655 = vsel %vm5610, %v5387, 0.0
        %v5656 = vsel %vm5610, %v5388, 0.0
        %v5657 = vsel %vm5610, %v5389, 0.0
        %v5658 = vsel %vm5611, %v5390, 0.0
        %v5659 = vsel %vm5611, %v5391, 0.0
        %v5660 = vsel %vm5611, %v5392, 0.0
        %v5661 = vsel %vm5611, %v5393, 0.0
        %v5662 = vsel %vm5612, %v5394, 0.0
        %v5663 = vsel %vm5612, %v5395, 0.0
        %v5664 = vsel %vm5612, %v5396, 0.0
        %v5665 = vsel %vm5612, %v5397, 0.0
        %v5666 = vsel %vm5613, %v5398, 0.0
        %v5667 = vsel %vm5613, %v5399, 0.0
        %v5668 = vsel %vm5613, %v5400, 0.0
        %v5669 = vsel %vm5613, %v5401, 0.0
        %v5670 = vsel %vm5614, %v5402, 0.0
        %v5671 = vsel %vm5614, %v5403, 0.0
        %v5672 = vsel %vm5614, %v5404, 0.0
        %v5673 = vsel %vm5614, %v5405, 0.0
        %v5674 = vsel %vm5615, %v5406, 0.0
        %v5675 = vsel %vm5615, %v5407, 0.0
        %v5676 = vsel %vm5615, %v5408, 0.0
        %v5677 = vsel %vm5615, %v5409, 0.0
        %v5678 = vsel %vm5616, %v5410, 0.0
        %v5679 = vsel %vm5616, %v5411, 0.0
        %v5680 = vsel %vm5616, %v5412, 0.0
        %v5681 = vsel %vm5616, %v5413, 0.0
        %v5682 = vsel %vm5617, %v5414, 0.0
        %v5683 = vsel %vm5617, %v5415, 0.0
        %v5684 = vsel %vm5617, %v5416, 0.0
        %v5685 = vsel %vm5617, %v5417, 0.0
        %v5686 = vsel %vm5618, %v5418, 0.0
        %v5687 = vsel %vm5618, %v5419, 0.0
        %v5688 = vsel %vm5618, %v5420, 0.0
        %v5689 = vsel %vm5618, %v5421, 0.0
        %v5690 = vsel %vm5619, %v5422, 0.0
        %v5691 = vsel %vm5619, %v5423, 0.0
        %v5692 = vsel %vm5619, %v5424, 0.0
        %v5693 = vsel %vm5619, %v5425, 0.0
        %v5694 = vsel %vm5620, %v5426, 0.0
        %v5695 = vsel %vm5620, %v5427, 0.0
        %v5696 = vsel %vm5620, %v5428, 0.0
        %v5697 = vsel %vm5620, %v5429, 0.0
        %v5698 = vsel %vm5621, %v5430, 0.0
        %v5699 = vsel %vm5621, %v5431, 0.0
        %v5700 = vsel %vm5621, %v5432, 0.0
        %v5701 = vsel %vm5621, %v5433, 0.0
        %v5702 = vpack.c.bf16 %v5623, %v5622
        %v5703 = vpack.c.bf16 %v5625, %v5624
        %v5704 = vpack.c.bf16 %v5627, %v5626
        %v5705 = vpack.c.bf16 %v5629, %v5628
        %v5706 = vpack.c.bf16 %v5631, %v5630
        %v5707 = vpack.c.bf16 %v5633, %v5632
        %v5708 = vpack.c.bf16 %v5635, %v5634
        %v5709 = vpack.c.bf16 %v5637, %v5636
        %v5710 = vpack.c.bf16 %v5639, %v5638
        %v5711 = vpack.c.bf16 %v5641, %v5640
        %v5712 = vpack.c.bf16 %v5643, %v5642
        %v5713 = vpack.c.bf16 %v5645, %v5644
        %v5714 = vpack.c.bf16 %v5647, %v5646
        %v5715 = vpack.c.bf16 %v5649, %v5648
        %v5716 = vpack.c.bf16 %v5651, %v5650
        %v5717 = vpack.c.bf16 %v5653, %v5652
        %v5718 = vpack.c.bf16 %v5655, %v5654
        %v5719 = vpack.c.bf16 %v5657, %v5656
        %v5720 = vpack.c.bf16 %v5659, %v5658
        %v5721 = vpack.c.bf16 %v5661, %v5660
        %v5722 = vpack.c.bf16 %v5663, %v5662
        %v5723 = vpack.c.bf16 %v5665, %v5664
        %v5724 = vpack.c.bf16 %v5667, %v5666
        %v5725 = vpack.c.bf16 %v5669, %v5668
        %v5726 = vpack.c.bf16 %v5671, %v5670
        %v5727 = vpack.c.bf16 %v5673, %v5672
        %v5728 = vpack.c.bf16 %v5675, %v5674
        %v5729 = vpack.c.bf16 %v5677, %v5676
        %v5730 = vpack.c.bf16 %v5679, %v5678
        %v5731 = vpack.c.bf16 %v5681, %v5680
        %v5732 = vpack.c.bf16 %v5683, %v5682
        %v5733 = vpack.c.bf16 %v5685, %v5684
        %v5734 = vpack.c.bf16 %v5687, %v5686
        %v5735 = vpack.c.bf16 %v5689, %v5688
        %v5736 = vpack.c.bf16 %v5691, %v5690
        %v5737 = vpack.c.bf16 %v5693, %v5692
        %v5738 = vpack.c.bf16 %v5695, %v5694
        %v5739 = vpack.c.bf16 %v5697, %v5696
        %v5740 = vpack.c.bf16 %v5699, %v5698
        %v5741 = vpack.c.bf16 %v5701, %v5700
        %5782 = vrot.lane.b32.xlu0 %v5702, 127
        %v5783 = vpop.permute.xlu0 %5782
        %5784 = vrot.lane.b32.xlu0 %v5703, 127
        %v5785 = vpop.permute.xlu0 %5784
        %5786 = vrot.lane.b32.xlu0 %v5704, 127
        %v5787 = vpop.permute.xlu0 %5786
        %5788 = vrot.lane.b32.xlu0 %v5705, 127
        %v5789 = vpop.permute.xlu0 %5788
        %5790 = vrot.lane.b32.xlu0 %v5706, 127
        %v5791 = vpop.permute.xlu0 %5790
        %5792 = vrot.lane.b32.xlu0 %v5707, 127
        %v5793 = vpop.permute.xlu0 %5792
        %5794 = vrot.lane.b32.xlu0 %v5708, 127
        %v5795 = vpop.permute.xlu0 %5794
        %5796 = vrot.lane.b32.xlu0 %v5709, 127
        %v5797 = vpop.permute.xlu0 %5796
        %5798 = vrot.lane.b32.xlu0 %v5710, 127
        %v5799 = vpop.permute.xlu0 %5798
        %5800 = vrot.lane.b32.xlu0 %v5711, 127
        %v5801 = vpop.permute.xlu0 %5800
        %5802 = vrot.lane.b32.xlu0 %v5712, 127
        %v5803 = vpop.permute.xlu0 %5802
        %5804 = vrot.lane.b32.xlu0 %v5713, 127
        %v5805 = vpop.permute.xlu0 %5804
        %5806 = vrot.lane.b32.xlu0 %v5714, 127
        %v5807 = vpop.permute.xlu0 %5806
        %5808 = vrot.lane.b32.xlu0 %v5715, 127
        %v5809 = vpop.permute.xlu0 %5808
        %5810 = vrot.lane.b32.xlu0 %v5716, 127
        %v5811 = vpop.permute.xlu0 %5810
        %5812 = vrot.lane.b32.xlu0 %v5717, 127
        %v5813 = vpop.permute.xlu0 %5812
        %5814 = vrot.lane.b32.xlu0 %v5718, 127
        %v5815 = vpop.permute.xlu0 %5814
        %5816 = vrot.lane.b32.xlu0 %v5719, 127
        %v5817 = vpop.permute.xlu0 %5816
        %5818 = vrot.lane.b32.xlu0 %v5720, 127
        %v5819 = vpop.permute.xlu0 %5818
        %5820 = vrot.lane.b32.xlu0 %v5721, 127
        %v5821 = vpop.permute.xlu0 %5820
        %5822 = vrot.lane.b32.xlu0 %v5722, 127
        %v5823 = vpop.permute.xlu0 %5822
        %5824 = vrot.lane.b32.xlu0 %v5723, 127
        %v5825 = vpop.permute.xlu0 %5824
        %5826 = vrot.lane.b32.xlu0 %v5724, 127
        %v5827 = vpop.permute.xlu0 %5826
        %5828 = vrot.lane.b32.xlu0 %v5725, 127
        %v5829 = vpop.permute.xlu0 %5828
        %5830 = vrot.lane.b32.xlu0 %v5726, 127
        %v5831 = vpop.permute.xlu0 %5830
        %5832 = vrot.lane.b32.xlu0 %v5727, 127
        %v5833 = vpop.permute.xlu0 %5832
        %5834 = vrot.lane.b32.xlu0 %v5728, 127
        %v5835 = vpop.permute.xlu0 %5834
        %5836 = vrot.lane.b32.xlu0 %v5729, 127
        %v5837 = vpop.permute.xlu0 %5836
        %5838 = vrot.lane.b32.xlu0 %v5730, 127
        %v5839 = vpop.permute.xlu0 %5838
        %5840 = vrot.lane.b32.xlu0 %v5731, 127
        %v5841 = vpop.permute.xlu0 %5840
        %5842 = vrot.lane.b32.xlu0 %v5732, 127
        %v5843 = vpop.permute.xlu0 %5842
        %5844 = vrot.lane.b32.xlu0 %v5733, 127
        %v5845 = vpop.permute.xlu0 %5844
        %5846 = vrot.lane.b32.xlu0 %v5734, 127
        %v5847 = vpop.permute.xlu0 %5846
        %5848 = vrot.lane.b32.xlu0 %v5735, 127
        %v5849 = vpop.permute.xlu0 %5848
        %5850 = vrot.lane.b32.xlu0 %v5736, 127
        %v5851 = vpop.permute.xlu0 %5850
        %5852 = vrot.lane.b32.xlu0 %v5737, 127
        %v5853 = vpop.permute.xlu0 %5852
        %5854 = vrot.lane.b32.xlu0 %v5738, 127
        %v5855 = vpop.permute.xlu0 %5854
        %5856 = vrot.lane.b32.xlu0 %v5739, 127
        %v5857 = vpop.permute.xlu0 %5856
        %5858 = vrot.lane.b32.xlu0 %v5740, 127
        %v5859 = vpop.permute.xlu0 %5858
        %5860 = vrot.lane.b32.xlu0 %v5741, 127
        %v5861 = vpop.permute.xlu0 %5860
        %5902 = vrot.lane.b32.xlu0 %v5702, 126
        %v5903 = vpop.permute.xlu0 %5902
        %5904 = vrot.lane.b32.xlu0 %v5703, 126
        %v5905 = vpop.permute.xlu0 %5904
        %5906 = vrot.lane.b32.xlu0 %v5704, 126
        %v5907 = vpop.permute.xlu0 %5906
        %5908 = vrot.lane.b32.xlu0 %v5705, 126
        %v5909 = vpop.permute.xlu0 %5908
        %5910 = vrot.lane.b32.xlu0 %v5706, 126
        %v5911 = vpop.permute.xlu0 %5910
        %5912 = vrot.lane.b32.xlu0 %v5707, 126
        %v5913 = vpop.permute.xlu0 %5912
        %5914 = vrot.lane.b32.xlu0 %v5708, 126
        %v5915 = vpop.permute.xlu0 %5914
        %5916 = vrot.lane.b32.xlu0 %v5709, 126
        %v5917 = vpop.permute.xlu0 %5916
        %5918 = vrot.lane.b32.xlu0 %v5710, 126
        %v5919 = vpop.permute.xlu0 %5918
        %5920 = vrot.lane.b32.xlu0 %v5711, 126
        %v5921 = vpop.permute.xlu0 %5920
        %5922 = vrot.lane.b32.xlu0 %v5712, 126
        %v5923 = vpop.permute.xlu0 %5922
        %5924 = vrot.lane.b32.xlu0 %v5713, 126
        %v5925 = vpop.permute.xlu0 %5924
        %5926 = vrot.lane.b32.xlu0 %v5714, 126
        %v5927 = vpop.permute.xlu0 %5926
        %5928 = vrot.lane.b32.xlu0 %v5715, 126
        %v5929 = vpop.permute.xlu0 %5928
        %5930 = vrot.lane.b32.xlu0 %v5716, 126
        %v5931 = vpop.permute.xlu0 %5930
        %5932 = vrot.lane.b32.xlu0 %v5717, 126
        %v5933 = vpop.permute.xlu0 %5932
        %5934 = vrot.lane.b32.xlu0 %v5718, 126
        %v5935 = vpop.permute.xlu0 %5934
        %5936 = vrot.lane.b32.xlu0 %v5719, 126
        %v5937 = vpop.permute.xlu0 %5936
        %5938 = vrot.lane.b32.xlu0 %v5720, 126
        %v5939 = vpop.permute.xlu0 %5938
        %5940 = vrot.lane.b32.xlu0 %v5721, 126
        %v5941 = vpop.permute.xlu0 %5940
        %5942 = vrot.lane.b32.xlu0 %v5722, 126
        %v5943 = vpop.permute.xlu0 %5942
        %5944 = vrot.lane.b32.xlu0 %v5723, 126
        %v5945 = vpop.permute.xlu0 %5944
        %5946 = vrot.lane.b32.xlu0 %v5724, 126
        %v5947 = vpop.permute.xlu0 %5946
        %5948 = vrot.lane.b32.xlu0 %v5725, 126
        %v5949 = vpop.permute.xlu0 %5948
        %5950 = vrot.lane.b32.xlu0 %v5726, 126
        %v5951 = vpop.permute.xlu0 %5950
        %5952 = vrot.lane.b32.xlu0 %v5727, 126
        %v5953 = vpop.permute.xlu0 %5952
        %5954 = vrot.lane.b32.xlu0 %v5728, 126
        %v5955 = vpop.permute.xlu0 %5954
        %5956 = vrot.lane.b32.xlu0 %v5729, 126
        %v5957 = vpop.permute.xlu0 %5956
        %5958 = vrot.lane.b32.xlu0 %v5730, 126
        %v5959 = vpop.permute.xlu0 %5958
        %5960 = vrot.lane.b32.xlu0 %v5731, 126
        %v5961 = vpop.permute.xlu0 %5960
        %5962 = vrot.lane.b32.xlu0 %v5732, 126
        %v5963 = vpop.permute.xlu0 %5962
        %5964 = vrot.lane.b32.xlu0 %v5733, 126
        %v5965 = vpop.permute.xlu0 %5964
        %5966 = vrot.lane.b32.xlu0 %v5734, 126
        %v5967 = vpop.permute.xlu0 %5966
        %5968 = vrot.lane.b32.xlu0 %v5735, 126
        %v5969 = vpop.permute.xlu0 %5968
        %5970 = vrot.lane.b32.xlu0 %v5736, 126
        %v5971 = vpop.permute.xlu0 %5970
        %5972 = vrot.lane.b32.xlu0 %v5737, 126
        %v5973 = vpop.permute.xlu0 %5972
        %5974 = vrot.lane.b32.xlu0 %v5738, 126
        %v5975 = vpop.permute.xlu0 %5974
        %5976 = vrot.lane.b32.xlu0 %v5739, 126
        %v5977 = vpop.permute.xlu0 %5976
        %5978 = vrot.lane.b32.xlu0 %v5740, 126
        %v5979 = vpop.permute.xlu0 %5978
        %5980 = vrot.lane.b32.xlu0 %v5741, 126
        %v5981 = vpop.permute.xlu0 %5980
        %6022 = vrot.lane.b32.xlu0 %v5702, 125
        %v6023 = vpop.permute.xlu0 %6022
        %6024 = vrot.lane.b32.xlu0 %v5703, 125
        %v6025 = vpop.permute.xlu0 %6024
        %6026 = vrot.lane.b32.xlu0 %v5704, 125
        %v6027 = vpop.permute.xlu0 %6026
        %6028 = vrot.lane.b32.xlu0 %v5705, 125
        %v6029 = vpop.permute.xlu0 %6028
        %6030 = vrot.lane.b32.xlu0 %v5706, 125
        %v6031 = vpop.permute.xlu0 %6030
        %6032 = vrot.lane.b32.xlu0 %v5707, 125
        %v6033 = vpop.permute.xlu0 %6032
        %6034 = vrot.lane.b32.xlu0 %v5708, 125
        %v6035 = vpop.permute.xlu0 %6034
        %6036 = vrot.lane.b32.xlu0 %v5709, 125
        %v6037 = vpop.permute.xlu0 %6036
        %6038 = vrot.lane.b32.xlu0 %v5710, 125
        %v6039 = vpop.permute.xlu0 %6038
        %6040 = vrot.lane.b32.xlu0 %v5711, 125
        %v6041 = vpop.permute.xlu0 %6040
        %6042 = vrot.lane.b32.xlu0 %v5712, 125
        %v6043 = vpop.permute.xlu0 %6042
        %6044 = vrot.lane.b32.xlu0 %v5713, 125
        %v6045 = vpop.permute.xlu0 %6044
        %6046 = vrot.lane.b32.xlu0 %v5714, 125
        %v6047 = vpop.permute.xlu0 %6046
        %6048 = vrot.lane.b32.xlu0 %v5715, 125
        %v6049 = vpop.permute.xlu0 %6048
        %6050 = vrot.lane.b32.xlu0 %v5716, 125
        %v6051 = vpop.permute.xlu0 %6050
        %6052 = vrot.lane.b32.xlu0 %v5717, 125
        %v6053 = vpop.permute.xlu0 %6052
        %6054 = vrot.lane.b32.xlu0 %v5718, 125
        %v6055 = vpop.permute.xlu0 %6054
        %6056 = vrot.lane.b32.xlu0 %v5719, 125
        %v6057 = vpop.permute.xlu0 %6056
        %6058 = vrot.lane.b32.xlu0 %v5720, 125
        %v6059 = vpop.permute.xlu0 %6058
        %6060 = vrot.lane.b32.xlu0 %v5721, 125
        %v6061 = vpop.permute.xlu0 %6060
        %6062 = vrot.lane.b32.xlu0 %v5722, 125
        %v6063 = vpop.permute.xlu0 %6062
        %6064 = vrot.lane.b32.xlu0 %v5723, 125
        %v6065 = vpop.permute.xlu0 %6064
        %6066 = vrot.lane.b32.xlu0 %v5724, 125
        %v6067 = vpop.permute.xlu0 %6066
        %6068 = vrot.lane.b32.xlu0 %v5725, 125
        %v6069 = vpop.permute.xlu0 %6068
        %6070 = vrot.lane.b32.xlu0 %v5726, 125
        %v6071 = vpop.permute.xlu0 %6070
        %6072 = vrot.lane.b32.xlu0 %v5727, 125
        %v6073 = vpop.permute.xlu0 %6072
        %6074 = vrot.lane.b32.xlu0 %v5728, 125
        %v6075 = vpop.permute.xlu0 %6074
        %6076 = vrot.lane.b32.xlu0 %v5729, 125
        %v6077 = vpop.permute.xlu0 %6076
        %6078 = vrot.lane.b32.xlu0 %v5730, 125
        %v6079 = vpop.permute.xlu0 %6078
        %6080 = vrot.lane.b32.xlu0 %v5731, 125
        %v6081 = vpop.permute.xlu0 %6080
        %6082 = vrot.lane.b32.xlu0 %v5732, 125
        %v6083 = vpop.permute.xlu0 %6082
        %6084 = vrot.lane.b32.xlu0 %v5733, 125
        %v6085 = vpop.permute.xlu0 %6084
        %6086 = vrot.lane.b32.xlu0 %v5734, 125
        %v6087 = vpop.permute.xlu0 %6086
        %6088 = vrot.lane.b32.xlu0 %v5735, 125
        %v6089 = vpop.permute.xlu0 %6088
        %6090 = vrot.lane.b32.xlu0 %v5736, 125
        %v6091 = vpop.permute.xlu0 %6090
        %6092 = vrot.lane.b32.xlu0 %v5737, 125
        %v6093 = vpop.permute.xlu0 %6092
        %6094 = vrot.lane.b32.xlu0 %v5738, 125
        %v6095 = vpop.permute.xlu0 %6094
        %6096 = vrot.lane.b32.xlu0 %v5739, 125
        %v6097 = vpop.permute.xlu0 %6096
        %6098 = vrot.lane.b32.xlu0 %v5740, 125
        %v6099 = vpop.permute.xlu0 %6098
        %6100 = vrot.lane.b32.xlu0 %v5741, 125
        %v6101 = vpop.permute.xlu0 %6100
        %6142 = vrot.lane.b32.xlu0 %v5702, 124
        %v6143 = vpop.permute.xlu0 %6142
        %6144 = vrot.lane.b32.xlu0 %v5703, 124
        %v6145 = vpop.permute.xlu0 %6144
        %6146 = vrot.lane.b32.xlu0 %v5704, 124
        %v6147 = vpop.permute.xlu0 %6146
        %6148 = vrot.lane.b32.xlu0 %v5705, 124
        %v6149 = vpop.permute.xlu0 %6148
        %6150 = vrot.lane.b32.xlu0 %v5706, 124
        %v6151 = vpop.permute.xlu0 %6150
        %6152 = vrot.lane.b32.xlu0 %v5707, 124
        %v6153 = vpop.permute.xlu0 %6152
        %6154 = vrot.lane.b32.xlu0 %v5708, 124
        %v6155 = vpop.permute.xlu0 %6154
        %6156 = vrot.lane.b32.xlu0 %v5709, 124
        %v6157 = vpop.permute.xlu0 %6156
        %6158 = vrot.lane.b32.xlu0 %v5710, 124
        %v6159 = vpop.permute.xlu0 %6158
        %6160 = vrot.lane.b32.xlu0 %v5711, 124
        %v6161 = vpop.permute.xlu0 %6160
        %6162 = vrot.lane.b32.xlu0 %v5712, 124
        %v6163 = vpop.permute.xlu0 %6162
        %6164 = vrot.lane.b32.xlu0 %v5713, 124
        %v6165 = vpop.permute.xlu0 %6164
        %6166 = vrot.lane.b32.xlu0 %v5714, 124
        %v6167 = vpop.permute.xlu0 %6166
        %6168 = vrot.lane.b32.xlu0 %v5715, 124
        %v6169 = vpop.permute.xlu0 %6168
        %6170 = vrot.lane.b32.xlu0 %v5716, 124
        %v6171 = vpop.permute.xlu0 %6170
        %6172 = vrot.lane.b32.xlu0 %v5717, 124
        %v6173 = vpop.permute.xlu0 %6172
        %6174 = vrot.lane.b32.xlu0 %v5718, 124
        %v6175 = vpop.permute.xlu0 %6174
        %6176 = vrot.lane.b32.xlu0 %v5719, 124
        %v6177 = vpop.permute.xlu0 %6176
        %6178 = vrot.lane.b32.xlu0 %v5720, 124
        %v6179 = vpop.permute.xlu0 %6178
        %6180 = vrot.lane.b32.xlu0 %v5721, 124
        %v6181 = vpop.permute.xlu0 %6180
        %6182 = vrot.lane.b32.xlu0 %v5722, 124
        %v6183 = vpop.permute.xlu0 %6182
        %6184 = vrot.lane.b32.xlu0 %v5723, 124
        %v6185 = vpop.permute.xlu0 %6184
        %6186 = vrot.lane.b32.xlu0 %v5724, 124
        %v6187 = vpop.permute.xlu0 %6186
        %6188 = vrot.lane.b32.xlu0 %v5725, 124
        %v6189 = vpop.permute.xlu0 %6188
        %6190 = vrot.lane.b32.xlu0 %v5726, 124
        %v6191 = vpop.permute.xlu0 %6190
        %6192 = vrot.lane.b32.xlu0 %v5727, 124
        %v6193 = vpop.permute.xlu0 %6192
        %6194 = vrot.lane.b32.xlu0 %v5728, 124
        %v6195 = vpop.permute.xlu0 %6194
        %6196 = vrot.lane.b32.xlu0 %v5729, 124
        %v6197 = vpop.permute.xlu0 %6196
        %6198 = vrot.lane.b32.xlu0 %v5730, 124
        %v6199 = vpop.permute.xlu0 %6198
        %6200 = vrot.lane.b32.xlu0 %v5731, 124
        %v6201 = vpop.permute.xlu0 %6200
        %6202 = vrot.lane.b32.xlu0 %v5732, 124
        %v6203 = vpop.permute.xlu0 %6202
        %6204 = vrot.lane.b32.xlu0 %v5733, 124
        %v6205 = vpop.permute.xlu0 %6204
        %6206 = vrot.lane.b32.xlu0 %v5734, 124
        %v6207 = vpop.permute.xlu0 %6206
        %6208 = vrot.lane.b32.xlu0 %v5735, 124
        %v6209 = vpop.permute.xlu0 %6208
        %6210 = vrot.lane.b32.xlu0 %v5736, 124
        %v6211 = vpop.permute.xlu0 %6210
        %6212 = vrot.lane.b32.xlu0 %v5737, 124
        %v6213 = vpop.permute.xlu0 %6212
        %6214 = vrot.lane.b32.xlu0 %v5738, 124
        %v6215 = vpop.permute.xlu0 %6214
        %6216 = vrot.lane.b32.xlu0 %v5739, 124
        %v6217 = vpop.permute.xlu0 %6216
        %6218 = vrot.lane.b32.xlu0 %v5740, 124
        %v6219 = vpop.permute.xlu0 %6218
        %6220 = vrot.lane.b32.xlu0 %v5741, 124
        %v6221 = vpop.permute.xlu0 %6220
        %v6262 = vld [vmem:[%s5] sm:$0x11]
        %v6263 = vld [vmem:[%s5] sm:$0x11]
        %v6265 = vunpack.c.l.b16 %v6263
        %v6266 = vunpack.c.h.b16 %v6263
        %v6267 = vpack.c.b16 %v6265, %v6265
        %v6268 = vpack.c.b16 %v6266, %v6266
        %v6270 = vshrl.u32 %v6267, 16
        %v6273 = vshrl.u32 %v6268, 16
        %vm6276 = vcmask 261120
        %v6278 = vsel %vm6276, %v6273, 0
        %6280 = vmatprep.subr.bf16.mxu0 0
        %6281 = vmatpush1.bf16.msra.mxu0 %v6029
        %6282 = vmatprep.subr.bf16.mxu0 0
        %6283 = vmatpush1.bf16.msra.mxu0 %v6027
        %6284 = vmatprep.subr.bf16.mxu0 0
        %6285 = vmatpush1.bf16.msra.mxu0 %v5909
        %6286 = vmatprep.subr.bf16.mxu0 0
        %6287 = vmatpush1.bf16.msra.mxu0 %v5907
        %6288 = vmatprep.subr.bf16.mxu0 0
        %6289 = vmatpush1.bf16.msra.mxu0 %v5789
        %6290 = vmatprep.subr.bf16.mxu0 0
        %6291 = vmatpush1.bf16.msra.mxu0 %v5787
        %6292 = vmatprep.subr.bf16.mxu0 0
        %6293 = vmatpush1.bf16.msra.mxu0 %v5705
        %6294 = vmatprep.subr.bf16.mxu0 0
        %6295 = vmatpush1.bf16.msra.mxu0 %v5704
        %6296 = vmatprep.subr.bf16.mxu0 0
        %6297 = vmatpush2.bf16.msra.mxu0 0
        %6298 = vmatprep.subr.bf16.mxu0 0
        %6299 = vmatpush2.bf16.msra.mxu0 0
        %6300 = vmatprep.subr.bf16.mxu0 0
        %6301 = vmatpush2.bf16.msra.mxu0 0
        %6302 = vmatprep.subr.bf16.mxu0 0
        %6303 = vmatpush2.bf16.msra.mxu0 0
        %6304 = vmatprep.subr.bf16.mxu0 0
        %6305 = vmatpush2.bf16.msra.mxu0 0
        %6306 = vmatprep.subr.bf16.mxu0 0
        %6307 = vmatpush2.bf16.msra.mxu0 0
        %6308 = vmatprep.subr.bf16.mxu0 0
        %6309 = vmatpush2.bf16.msra.mxu0 %v6149
        %6310 = vmatprep.subr.bf16.mxu0 0
        %6311 = vmatpush2.bf16.msra.mxu0 %v6147
        %6312 = vmatprep.mubr.bf16.mxu0 %v6278
        %6313 = vmatmul.mubr.bf16.gmra.mxu0 %v6270
        %v6314 = vpop.f32.mrf.mxu0
        %v6315 = vadd.f32 0.0, %v6314
        %v6316 = vpop.f32.mrf.mxu0
        %v6317 = vpop.f32.mrf.mxu0
        %v6318 = vpop.f32.mrf.mxu0
        %6319 = vdwg.mxu0
        %6320 = vmatprep.subr.bf16.mxu0 0
        %6321 = vmatpush1.bf16.msra.mxu0 %v6033
        %6322 = vmatprep.subr.bf16.mxu0 0
        %6323 = vmatpush1.bf16.msra.mxu0 %v6031
        %6324 = vmatprep.subr.bf16.mxu0 0
        %6325 = vmatpush1.bf16.msra.mxu0 %v5913
        %6326 = vmatprep.subr.bf16.mxu0 0
        %6327 = vmatpush1.bf16.msra.mxu0 %v5911
        %6328 = vmatprep.subr.bf16.mxu0 0
        %6329 = vmatpush1.bf16.msra.mxu0 %v5793
        %6330 = vmatprep.subr.bf16.mxu0 0
        %6331 = vmatpush1.bf16.msra.mxu0 %v5791
        %6332 = vmatprep.subr.bf16.mxu0 0
        %6333 = vmatpush1.bf16.msra.mxu0 %v5707
        %6334 = vmatprep.subr.bf16.mxu0 0
        %6335 = vmatpush1.bf16.msra.mxu0 %v5706
        %6336 = vmatprep.subr.bf16.mxu0 0
        %6337 = vmatpush2.bf16.msra.mxu0 0
        %6338 = vmatprep.subr.bf16.mxu0 0
        %6339 = vmatpush2.bf16.msra.mxu0 0
        %6340 = vmatprep.subr.bf16.mxu0 0
        %6341 = vmatpush2.bf16.msra.mxu0 0
        %6342 = vmatprep.subr.bf16.mxu0 0
        %6343 = vmatpush2.bf16.msra.mxu0 0
        %6344 = vmatprep.subr.bf16.mxu0 0
        %6345 = vmatpush2.bf16.msra.mxu0 0
        %6346 = vmatprep.subr.bf16.mxu0 0
        %6347 = vmatpush2.bf16.msra.mxu0 0
        %6348 = vmatprep.subr.bf16.mxu0 0
        %6349 = vmatpush2.bf16.msra.mxu0 %v6153
        %6350 = vmatprep.subr.bf16.mxu0 0
        %6351 = vmatpush2.bf16.msra.mxu0 %v6151
        %6352 = vmatprep.mubr.bf16.mxu0 %v6278
        %6353 = vmatmul.mubr.bf16.gmra.mxu0 %v6270
        %v6354 = vpop.f32.mrf.mxu0
        %v6355 = vadd.f32 0.0, %v6354
        %v6356 = vpop.f32.mrf.mxu0
        %v6357 = vpop.f32.mrf.mxu0
        %v6358 = vpop.f32.mrf.mxu0
        %6359 = vdwg.mxu0
        %6360 = vmatprep.subr.bf16.mxu0 0
        %6361 = vmatpush1.bf16.msra.mxu0 %v6037
        %6362 = vmatprep.subr.bf16.mxu0 0
        %6363 = vmatpush1.bf16.msra.mxu0 %v6035
        %6364 = vmatprep.subr.bf16.mxu0 0
        %6365 = vmatpush1.bf16.msra.mxu0 %v5917
        %6366 = vmatprep.subr.bf16.mxu0 0
        %6367 = vmatpush1.bf16.msra.mxu0 %v5915
        %6368 = vmatprep.subr.bf16.mxu0 0
        %6369 = vmatpush1.bf16.msra.mxu0 %v5797
        %6370 = vmatprep.subr.bf16.mxu0 0
        %6371 = vmatpush1.bf16.msra.mxu0 %v5795
        %6372 = vmatprep.subr.bf16.mxu0 0
        %6373 = vmatpush1.bf16.msra.mxu0 %v5709
        %6374 = vmatprep.subr.bf16.mxu0 0
        %6375 = vmatpush1.bf16.msra.mxu0 %v5708
        %6376 = vmatprep.subr.bf16.mxu0 0
        %6377 = vmatpush2.bf16.msra.mxu0 0
        %6378 = vmatprep.subr.bf16.mxu0 0
        %6379 = vmatpush2.bf16.msra.mxu0 0
        %6380 = vmatprep.subr.bf16.mxu0 0
        %6381 = vmatpush2.bf16.msra.mxu0 0
        %6382 = vmatprep.subr.bf16.mxu0 0
        %6383 = vmatpush2.bf16.msra.mxu0 0
        %6384 = vmatprep.subr.bf16.mxu0 0
        %6385 = vmatpush2.bf16.msra.mxu0 0
        %6386 = vmatprep.subr.bf16.mxu0 0
        %6387 = vmatpush2.bf16.msra.mxu0 0
        %6388 = vmatprep.subr.bf16.mxu0 0
        %6389 = vmatpush2.bf16.msra.mxu0 %v6157
        %6390 = vmatprep.subr.bf16.mxu0 0
        %6391 = vmatpush2.bf16.msra.mxu0 %v6155
        %6392 = vmatprep.mubr.bf16.mxu0 %v6278
        %6393 = vmatmul.mubr.bf16.gmra.mxu0 %v6270
        %v6394 = vpop.f32.mrf.mxu0
        %v6395 = vadd.f32 0.0, %v6394
        %v6396 = vpop.f32.mrf.mxu0
        %v6397 = vpop.f32.mrf.mxu0
        %v6398 = vpop.f32.mrf.mxu0
        %6399 = vdwg.mxu0
        %6400 = vmatprep.subr.bf16.mxu0 0
        %6401 = vmatpush1.bf16.msra.mxu0 %v6041
        %6402 = vmatprep.subr.bf16.mxu0 0
        %6403 = vmatpush1.bf16.msra.mxu0 %v6039
        %6404 = vmatprep.subr.bf16.mxu0 0
        %6405 = vmatpush1.bf16.msra.mxu0 %v5921
        %6406 = vmatprep.subr.bf16.mxu0 0
        %6407 = vmatpush1.bf16.msra.mxu0 %v5919
        %6408 = vmatprep.subr.bf16.mxu0 0
        %6409 = vmatpush1.bf16.msra.mxu0 %v5801
        %6410 = vmatprep.subr.bf16.mxu0 0
        %6411 = vmatpush1.bf16.msra.mxu0 %v5799
        %6412 = vmatprep.subr.bf16.mxu0 0
        %6413 = vmatpush1.bf16.msra.mxu0 %v5711
        %6414 = vmatprep.subr.bf16.mxu0 0
        %6415 = vmatpush1.bf16.msra.mxu0 %v5710
        %6416 = vmatprep.subr.bf16.mxu0 0
        %6417 = vmatpush2.bf16.msra.mxu0 0
        %6418 = vmatprep.subr.bf16.mxu0 0
        %6419 = vmatpush2.bf16.msra.mxu0 0
        %6420 = vmatprep.subr.bf16.mxu0 0
        %6421 = vmatpush2.bf16.msra.mxu0 0
        %6422 = vmatprep.subr.bf16.mxu0 0
        %6423 = vmatpush2.bf16.msra.mxu0 0
        %6424 = vmatprep.subr.bf16.mxu0 0
        %6425 = vmatpush2.bf16.msra.mxu0 0
        %6426 = vmatprep.subr.bf16.mxu0 0
        %6427 = vmatpush2.bf16.msra.mxu0 0
        %6428 = vmatprep.subr.bf16.mxu0 0
        %6429 = vmatpush2.bf16.msra.mxu0 %v6161
        %6430 = vmatprep.subr.bf16.mxu0 0
        %6431 = vmatpush2.bf16.msra.mxu0 %v6159
        %6432 = vmatprep.mubr.bf16.mxu0 %v6278
        %6433 = vmatmul.mubr.bf16.gmra.mxu0 %v6270
        %v6434 = vpop.f32.mrf.mxu0
        %v6435 = vadd.f32 0.0, %v6434
        %v6436 = vpop.f32.mrf.mxu0
        %v6437 = vpop.f32.mrf.mxu0
        %v6438 = vpop.f32.mrf.mxu0
        %6439 = vdwg.mxu0
        %6440 = vmatprep.subr.bf16.mxu0 0
        %6441 = vmatpush1.bf16.msra.mxu0 %v6045
        %6442 = vmatprep.subr.bf16.mxu0 0
        %6443 = vmatpush1.bf16.msra.mxu0 %v6043
        %6444 = vmatprep.subr.bf16.mxu0 0
        %6445 = vmatpush1.bf16.msra.mxu0 %v5925
        %6446 = vmatprep.subr.bf16.mxu0 0
        %6447 = vmatpush1.bf16.msra.mxu0 %v5923
        %6448 = vmatprep.subr.bf16.mxu0 0
        %6449 = vmatpush1.bf16.msra.mxu0 %v5805
        %6450 = vmatprep.subr.bf16.mxu0 0
        %6451 = vmatpush1.bf16.msra.mxu0 %v5803
        %6452 = vmatprep.subr.bf16.mxu0 0
        %6453 = vmatpush1.bf16.msra.mxu0 %v5713
        %6454 = vmatprep.subr.bf16.mxu0 0
        %6455 = vmatpush1.bf16.msra.mxu0 %v5712
        %6456 = vmatprep.subr.bf16.mxu0 0
        %6457 = vmatpush2.bf16.msra.mxu0 0
        %6458 = vmatprep.subr.bf16.mxu0 0
        %6459 = vmatpush2.bf16.msra.mxu0 0
        %6460 = vmatprep.subr.bf16.mxu0 0
        %6461 = vmatpush2.bf16.msra.mxu0 0
        %6462 = vmatprep.subr.bf16.mxu0 0
        %6463 = vmatpush2.bf16.msra.mxu0 0
        %6464 = vmatprep.subr.bf16.mxu0 0
        %6465 = vmatpush2.bf16.msra.mxu0 0
        %6466 = vmatprep.subr.bf16.mxu0 0
        %6467 = vmatpush2.bf16.msra.mxu0 0
        %6468 = vmatprep.subr.bf16.mxu0 0
        %6469 = vmatpush2.bf16.msra.mxu0 %v6165
        %6470 = vmatprep.subr.bf16.mxu0 0
        %6471 = vmatpush2.bf16.msra.mxu0 %v6163
        %6472 = vmatprep.mubr.bf16.mxu0 %v6278
        %6473 = vmatmul.mubr.bf16.gmra.mxu0 %v6270
        %v6474 = vpop.f32.mrf.mxu0
        %v6475 = vadd.f32 0.0, %v6474
        %v6476 = vpop.f32.mrf.mxu0
        %v6477 = vpop.f32.mrf.mxu0
        %v6478 = vpop.f32.mrf.mxu0
        %6479 = vdwg.mxu0
        %6480 = vmatprep.subr.bf16.mxu0 0
        %6481 = vmatpush1.bf16.msra.mxu0 %v6049
        %6482 = vmatprep.subr.bf16.mxu0 0
        %6483 = vmatpush1.bf16.msra.mxu0 %v6047
        %6484 = vmatprep.subr.bf16.mxu0 0
        %6485 = vmatpush1.bf16.msra.mxu0 %v5929
        %6486 = vmatprep.subr.bf16.mxu0 0
        %6487 = vmatpush1.bf16.msra.mxu0 %v5927
        %6488 = vmatprep.subr.bf16.mxu0 0
        %6489 = vmatpush1.bf16.msra.mxu0 %v5809
        %6490 = vmatprep.subr.bf16.mxu0 0
        %6491 = vmatpush1.bf16.msra.mxu0 %v5807
        %6492 = vmatprep.subr.bf16.mxu0 0
        %6493 = vmatpush1.bf16.msra.mxu0 %v5715
        %6494 = vmatprep.subr.bf16.mxu0 0
        %6495 = vmatpush1.bf16.msra.mxu0 %v5714
        %6496 = vmatprep.subr.bf16.mxu0 0
        %6497 = vmatpush2.bf16.msra.mxu0 0
        %6498 = vmatprep.subr.bf16.mxu0 0
        %6499 = vmatpush2.bf16.msra.mxu0 0
        %6500 = vmatprep.subr.bf16.mxu0 0
        %6501 = vmatpush2.bf16.msra.mxu0 0
        %6502 = vmatprep.subr.bf16.mxu0 0
        %6503 = vmatpush2.bf16.msra.mxu0 0
        %6504 = vmatprep.subr.bf16.mxu0 0
        %6505 = vmatpush2.bf16.msra.mxu0 0
        %6506 = vmatprep.subr.bf16.mxu0 0
        %6507 = vmatpush2.bf16.msra.mxu0 0
        %6508 = vmatprep.subr.bf16.mxu0 0
        %6509 = vmatpush2.bf16.msra.mxu0 %v6169
        %6510 = vmatprep.subr.bf16.mxu0 0
        %6511 = vmatpush2.bf16.msra.mxu0 %v6167
        %6512 = vmatprep.mubr.bf16.mxu0 %v6278
        %6513 = vmatmul.mubr.bf16.gmra.mxu0 %v6270
        %v6514 = vpop.f32.mrf.mxu0
        %v6515 = vadd.f32 0.0, %v6514
        %v6516 = vpop.f32.mrf.mxu0
        %v6517 = vpop.f32.mrf.mxu0
        %v6518 = vpop.f32.mrf.mxu0
        %6519 = vdwg.mxu0
        %6520 = vmatprep.subr.bf16.mxu0 0
        %6521 = vmatpush1.bf16.msra.mxu0 %v6053
        %6522 = vmatprep.subr.bf16.mxu0 0
        %6523 = vmatpush1.bf16.msra.mxu0 %v6051
        %6524 = vmatprep.subr.bf16.mxu0 0
        %6525 = vmatpush1.bf16.msra.mxu0 %v5933
        %6526 = vmatprep.subr.bf16.mxu0 0
        %6527 = vmatpush1.bf16.msra.mxu0 %v5931
        %6528 = vmatprep.subr.bf16.mxu0 0
        %6529 = vmatpush1.bf16.msra.mxu0 %v5813
        %6530 = vmatprep.subr.bf16.mxu0 0
        %6531 = vmatpush1.bf16.msra.mxu0 %v5811
        %6532 = vmatprep.subr.bf16.mxu0 0
        %6533 = vmatpush1.bf16.msra.mxu0 %v5717
        %6534 = vmatprep.subr.bf16.mxu0 0
        %6535 = vmatpush1.bf16.msra.mxu0 %v5716
        %6536 = vmatprep.subr.bf16.mxu0 0
        %6537 = vmatpush2.bf16.msra.mxu0 0
        %6538 = vmatprep.subr.bf16.mxu0 0
        %6539 = vmatpush2.bf16.msra.mxu0 0
        %6540 = vmatprep.subr.bf16.mxu0 0
        %6541 = vmatpush2.bf16.msra.mxu0 0
        %6542 = vmatprep.subr.bf16.mxu0 0
        %6543 = vmatpush2.bf16.msra.mxu0 0
        %6544 = vmatprep.subr.bf16.mxu0 0
        %6545 = vmatpush2.bf16.msra.mxu0 0
        %6546 = vmatprep.subr.bf16.mxu0 0
        %6547 = vmatpush2.bf16.msra.mxu0 0
        %6548 = vmatprep.subr.bf16.mxu0 0
        %6549 = vmatpush2.bf16.msra.mxu0 %v6173
        %6550 = vmatprep.subr.bf16.mxu0 0
        %6551 = vmatpush2.bf16.msra.mxu0 %v6171
        %6552 = vmatprep.mubr.bf16.mxu0 %v6278
        %6553 = vmatmul.mubr.bf16.gmra.mxu0 %v6270
        %v6554 = vpop.f32.mrf.mxu0
        %v6555 = vadd.f32 0.0, %v6554
        %v6556 = vpop.f32.mrf.mxu0
        %v6557 = vpop.f32.mrf.mxu0
        %v6558 = vpop.f32.mrf.mxu0
        %6559 = vdwg.mxu0
        %6560 = vmatprep.subr.bf16.mxu0 0
        %6561 = vmatpush1.bf16.msra.mxu0 %v6057
        %6562 = vmatprep.subr.bf16.mxu0 0
        %6563 = vmatpush1.bf16.msra.mxu0 %v6055
        %6564 = vmatprep.subr.bf16.mxu0 0
        %6565 = vmatpush1.bf16.msra.mxu0 %v5937
        %6566 = vmatprep.subr.bf16.mxu0 0
        %6567 = vmatpush1.bf16.msra.mxu0 %v5935
        %6568 = vmatprep.subr.bf16.mxu0 0
        %6569 = vmatpush1.bf16.msra.mxu0 %v5817
        %6570 = vmatprep.subr.bf16.mxu0 0
        %6571 = vmatpush1.bf16.msra.mxu0 %v5815
        %6572 = vmatprep.subr.bf16.mxu0 0
        %6573 = vmatpush1.bf16.msra.mxu0 %v5719
        %6574 = vmatprep.subr.bf16.mxu0 0
        %6575 = vmatpush1.bf16.msra.mxu0 %v5718
        %6576 = vmatprep.subr.bf16.mxu0 0
        %6577 = vmatpush2.bf16.msra.mxu0 0
        %6578 = vmatprep.subr.bf16.mxu0 0
        %6579 = vmatpush2.bf16.msra.mxu0 0
        %6580 = vmatprep.subr.bf16.mxu0 0
        %6581 = vmatpush2.bf16.msra.mxu0 0
        %6582 = vmatprep.subr.bf16.mxu0 0
        %6583 = vmatpush2.bf16.msra.mxu0 0
        %6584 = vmatprep.subr.bf16.mxu0 0
        %6585 = vmatpush2.bf16.msra.mxu0 0
        %6586 = vmatprep.subr.bf16.mxu0 0
        %6587 = vmatpush2.bf16.msra.mxu0 0
        %6588 = vmatprep.subr.bf16.mxu0 0
        %6589 = vmatpush2.bf16.msra.mxu0 %v6177
        %6590 = vmatprep.subr.bf16.mxu0 0
        %6591 = vmatpush2.bf16.msra.mxu0 %v6175
        %6592 = vmatprep.mubr.bf16.mxu0 %v6278
        %6593 = vmatmul.mubr.bf16.gmra.mxu0 %v6270
        %v6594 = vpop.f32.mrf.mxu0
        %v6595 = vadd.f32 0.0, %v6594
        %v6596 = vpop.f32.mrf.mxu0
        %v6597 = vpop.f32.mrf.mxu0
        %v6598 = vpop.f32.mrf.mxu0
        %6599 = vdwg.mxu0
        %6600 = vmatprep.subr.bf16.mxu0 0
        %6601 = vmatpush1.bf16.msra.mxu0 %v6061
        %6602 = vmatprep.subr.bf16.mxu0 0
        %6603 = vmatpush1.bf16.msra.mxu0 %v6059
        %6604 = vmatprep.subr.bf16.mxu0 0
        %6605 = vmatpush1.bf16.msra.mxu0 %v5941
        %6606 = vmatprep.subr.bf16.mxu0 0
        %6607 = vmatpush1.bf16.msra.mxu0 %v5939
        %6608 = vmatprep.subr.bf16.mxu0 0
        %6609 = vmatpush1.bf16.msra.mxu0 %v5821
        %6610 = vmatprep.subr.bf16.mxu0 0
        %6611 = vmatpush1.bf16.msra.mxu0 %v5819
        %6612 = vmatprep.subr.bf16.mxu0 0
        %6613 = vmatpush1.bf16.msra.mxu0 %v5721
        %6614 = vmatprep.subr.bf16.mxu0 0
        %6615 = vmatpush1.bf16.msra.mxu0 %v5720
        %6616 = vmatprep.subr.bf16.mxu0 0
        %6617 = vmatpush2.bf16.msra.mxu0 0
        %6618 = vmatprep.subr.bf16.mxu0 0
        %6619 = vmatpush2.bf16.msra.mxu0 0
        %6620 = vmatprep.subr.bf16.mxu0 0
        %6621 = vmatpush2.bf16.msra.mxu0 0
        %6622 = vmatprep.subr.bf16.mxu0 0
        %6623 = vmatpush2.bf16.msra.mxu0 0
        %6624 = vmatprep.subr.bf16.mxu0 0
        %6625 = vmatpush2.bf16.msra.mxu0 0
        %6626 = vmatprep.subr.bf16.mxu0 0
        %6627 = vmatpush2.bf16.msra.mxu0 0
        %6628 = vmatprep.subr.bf16.mxu0 0
        %6629 = vmatpush2.bf16.msra.mxu0 %v6181
        %6630 = vmatprep.subr.bf16.mxu0 0
        %6631 = vmatpush2.bf16.msra.mxu0 %v6179
        %6632 = vmatprep.mubr.bf16.mxu0 %v6278
        %6633 = vmatmul.mubr.bf16.gmra.mxu0 %v6270
        %v6634 = vpop.f32.mrf.mxu0
        %v6635 = vadd.f32 0.0, %v6634
        %v6636 = vpop.f32.mrf.mxu0
        %v6637 = vpop.f32.mrf.mxu0
        %v6638 = vpop.f32.mrf.mxu0
        %6639 = vdwg.mxu0
        %6640 = vmatprep.subr.bf16.mxu0 0
        %6641 = vmatpush1.bf16.msra.mxu0 %v6065
        %6642 = vmatprep.subr.bf16.mxu0 0
        %6643 = vmatpush1.bf16.msra.mxu0 %v6063
        %6644 = vmatprep.subr.bf16.mxu0 0
        %6645 = vmatpush1.bf16.msra.mxu0 %v5945
        %6646 = vmatprep.subr.bf16.mxu0 0
        %6647 = vmatpush1.bf16.msra.mxu0 %v5943
        %6648 = vmatprep.subr.bf16.mxu0 0
        %6649 = vmatpush1.bf16.msra.mxu0 %v5825
        %6650 = vmatprep.subr.bf16.mxu0 0
        %6651 = vmatpush1.bf16.msra.mxu0 %v5823
        %6652 = vmatprep.subr.bf16.mxu0 0
        %6653 = vmatpush1.bf16.msra.mxu0 %v5723
        %6654 = vmatprep.subr.bf16.mxu0 0
        %6655 = vmatpush1.bf16.msra.mxu0 %v5722
        %6656 = vmatprep.subr.bf16.mxu0 0
        %6657 = vmatpush2.bf16.msra.mxu0 0
        %6658 = vmatprep.subr.bf16.mxu0 0
        %6659 = vmatpush2.bf16.msra.mxu0 0
        %6660 = vmatprep.subr.bf16.mxu0 0
        %6661 = vmatpush2.bf16.msra.mxu0 0
        %6662 = vmatprep.subr.bf16.mxu0 0
        %6663 = vmatpush2.bf16.msra.mxu0 0
        %6664 = vmatprep.subr.bf16.mxu0 0
        %6665 = vmatpush2.bf16.msra.mxu0 0
        %6666 = vmatprep.subr.bf16.mxu0 0
        %6667 = vmatpush2.bf16.msra.mxu0 0
        %6668 = vmatprep.subr.bf16.mxu0 0
        %6669 = vmatpush2.bf16.msra.mxu0 %v6185
        %6670 = vmatprep.subr.bf16.mxu0 0
        %6671 = vmatpush2.bf16.msra.mxu0 %v6183
        %6672 = vmatprep.mubr.bf16.mxu0 %v6278
        %6673 = vmatmul.mubr.bf16.gmra.mxu0 %v6270
        %v6674 = vpop.f32.mrf.mxu0
        %v6675 = vadd.f32 0.0, %v6674
        %v6676 = vpop.f32.mrf.mxu0
        %v6677 = vpop.f32.mrf.mxu0
        %v6678 = vpop.f32.mrf.mxu0
        %6679 = vdwg.mxu0
        %6680 = vmatprep.subr.bf16.mxu0 0
        %6681 = vmatpush1.bf16.msra.mxu0 %v6069
        %6682 = vmatprep.subr.bf16.mxu0 0
        %6683 = vmatpush1.bf16.msra.mxu0 %v6067
        %6684 = vmatprep.subr.bf16.mxu0 0
        %6685 = vmatpush1.bf16.msra.mxu0 %v5949
        %6686 = vmatprep.subr.bf16.mxu0 0
        %6687 = vmatpush1.bf16.msra.mxu0 %v5947
        %6688 = vmatprep.subr.bf16.mxu0 0
        %6689 = vmatpush1.bf16.msra.mxu0 %v5829
        %6690 = vmatprep.subr.bf16.mxu0 0
        %6691 = vmatpush1.bf16.msra.mxu0 %v5827
        %6692 = vmatprep.subr.bf16.mxu0 0
        %6693 = vmatpush1.bf16.msra.mxu0 %v5725
        %6694 = vmatprep.subr.bf16.mxu0 0
        %6695 = vmatpush1.bf16.msra.mxu0 %v5724
        %6696 = vmatprep.subr.bf16.mxu0 0
        %6697 = vmatpush2.bf16.msra.mxu0 0
        %6698 = vmatprep.subr.bf16.mxu0 0
        %6699 = vmatpush2.bf16.msra.mxu0 0
        %6700 = vmatprep.subr.bf16.mxu0 0
        %6701 = vmatpush2.bf16.msra.mxu0 0
        %6702 = vmatprep.subr.bf16.mxu0 0
        %6703 = vmatpush2.bf16.msra.mxu0 0
        %6704 = vmatprep.subr.bf16.mxu0 0
        %6705 = vmatpush2.bf16.msra.mxu0 0
        %6706 = vmatprep.subr.bf16.mxu0 0
        %6707 = vmatpush2.bf16.msra.mxu0 0
        %6708 = vmatprep.subr.bf16.mxu0 0
        %6709 = vmatpush2.bf16.msra.mxu0 %v6189
        %6710 = vmatprep.subr.bf16.mxu0 0
        %6711 = vmatpush2.bf16.msra.mxu0 %v6187
        %6712 = vmatprep.mubr.bf16.mxu0 %v6278
        %6713 = vmatmul.mubr.bf16.gmra.mxu0 %v6270
        %v6714 = vpop.f32.mrf.mxu0
        %v6715 = vadd.f32 0.0, %v6714
        %v6716 = vpop.f32.mrf.mxu0
        %v6717 = vpop.f32.mrf.mxu0
        %v6718 = vpop.f32.mrf.mxu0
        %6719 = vdwg.mxu0
        %6720 = vmatprep.subr.bf16.mxu0 0
        %6721 = vmatpush1.bf16.msra.mxu0 %v6073
        %6722 = vmatprep.subr.bf16.mxu0 0
        %6723 = vmatpush1.bf16.msra.mxu0 %v6071
        %6724 = vmatprep.subr.bf16.mxu0 0
        %6725 = vmatpush1.bf16.msra.mxu0 %v5953
        %6726 = vmatprep.subr.bf16.mxu0 0
        %6727 = vmatpush1.bf16.msra.mxu0 %v5951
        %6728 = vmatprep.subr.bf16.mxu0 0
        %6729 = vmatpush1.bf16.msra.mxu0 %v5833
        %6730 = vmatprep.subr.bf16.mxu0 0
        %6731 = vmatpush1.bf16.msra.mxu0 %v5831
        %6732 = vmatprep.subr.bf16.mxu0 0
        %6733 = vmatpush1.bf16.msra.mxu0 %v5727
        %6734 = vmatprep.subr.bf16.mxu0 0
        %6735 = vmatpush1.bf16.msra.mxu0 %v5726
        %6736 = vmatprep.subr.bf16.mxu0 0
        %6737 = vmatpush2.bf16.msra.mxu0 0
        %6738 = vmatprep.subr.bf16.mxu0 0
        %6739 = vmatpush2.bf16.msra.mxu0 0
        %6740 = vmatprep.subr.bf16.mxu0 0
        %6741 = vmatpush2.bf16.msra.mxu0 0
        %6742 = vmatprep.subr.bf16.mxu0 0
        %6743 = vmatpush2.bf16.msra.mxu0 0
        %6744 = vmatprep.subr.bf16.mxu0 0
        %6745 = vmatpush2.bf16.msra.mxu0 0
        %6746 = vmatprep.subr.bf16.mxu0 0
        %6747 = vmatpush2.bf16.msra.mxu0 0
        %6748 = vmatprep.subr.bf16.mxu0 0
        %6749 = vmatpush2.bf16.msra.mxu0 %v6193
        %6750 = vmatprep.subr.bf16.mxu0 0
        %6751 = vmatpush2.bf16.msra.mxu0 %v6191
        %6752 = vmatprep.mubr.bf16.mxu0 %v6278
        %6753 = vmatmul.mubr.bf16.gmra.mxu0 %v6270
        %v6754 = vpop.f32.mrf.mxu0
        %v6755 = vadd.f32 0.0, %v6754
        %v6756 = vpop.f32.mrf.mxu0
        %v6757 = vpop.f32.mrf.mxu0
        %v6758 = vpop.f32.mrf.mxu0
        %6759 = vdwg.mxu0
        %6760 = vmatprep.subr.bf16.mxu0 0
        %6761 = vmatpush1.bf16.msra.mxu0 %v6077
        %6762 = vmatprep.subr.bf16.mxu0 0
        %6763 = vmatpush1.bf16.msra.mxu0 %v6075
        %6764 = vmatprep.subr.bf16.mxu0 0
        %6765 = vmatpush1.bf16.msra.mxu0 %v5957
        %6766 = vmatprep.subr.bf16.mxu0 0
        %6767 = vmatpush1.bf16.msra.mxu0 %v5955
        %6768 = vmatprep.subr.bf16.mxu0 0
        %6769 = vmatpush1.bf16.msra.mxu0 %v5837
        %6770 = vmatprep.subr.bf16.mxu0 0
        %6771 = vmatpush1.bf16.msra.mxu0 %v5835
        %6772 = vmatprep.subr.bf16.mxu0 0
        %6773 = vmatpush1.bf16.msra.mxu0 %v5729
        %6774 = vmatprep.subr.bf16.mxu0 0
        %6775 = vmatpush1.bf16.msra.mxu0 %v5728
        %6776 = vmatprep.subr.bf16.mxu0 0
        %6777 = vmatpush2.bf16.msra.mxu0 0
        %6778 = vmatprep.subr.bf16.mxu0 0
        %6779 = vmatpush2.bf16.msra.mxu0 0
        %6780 = vmatprep.subr.bf16.mxu0 0
        %6781 = vmatpush2.bf16.msra.mxu0 0
        %6782 = vmatprep.subr.bf16.mxu0 0
        %6783 = vmatpush2.bf16.msra.mxu0 0
        %6784 = vmatprep.subr.bf16.mxu0 0
        %6785 = vmatpush2.bf16.msra.mxu0 0
        %6786 = vmatprep.subr.bf16.mxu0 0
        %6787 = vmatpush2.bf16.msra.mxu0 0
        %6788 = vmatprep.subr.bf16.mxu0 0
        %6789 = vmatpush2.bf16.msra.mxu0 %v6197
        %6790 = vmatprep.subr.bf16.mxu0 0
        %6791 = vmatpush2.bf16.msra.mxu0 %v6195
        %6792 = vmatprep.mubr.bf16.mxu0 %v6278
        %6793 = vmatmul.mubr.bf16.gmra.mxu0 %v6270
        %v6794 = vpop.f32.mrf.mxu0
        %v6795 = vadd.f32 0.0, %v6794
        %v6796 = vpop.f32.mrf.mxu0
        %v6797 = vpop.f32.mrf.mxu0
        %v6798 = vpop.f32.mrf.mxu0
        %6799 = vdwg.mxu0
        %6800 = vmatprep.subr.bf16.mxu0 0
        %6801 = vmatpush1.bf16.msra.mxu0 %v6081
        %6802 = vmatprep.subr.bf16.mxu0 0
        %6803 = vmatpush1.bf16.msra.mxu0 %v6079
        %6804 = vmatprep.subr.bf16.mxu0 0
        %6805 = vmatpush1.bf16.msra.mxu0 %v5961
        %6806 = vmatprep.subr.bf16.mxu0 0
        %6807 = vmatpush1.bf16.msra.mxu0 %v5959
        %6808 = vmatprep.subr.bf16.mxu0 0
        %6809 = vmatpush1.bf16.msra.mxu0 %v5841
        %6810 = vmatprep.subr.bf16.mxu0 0
        %6811 = vmatpush1.bf16.msra.mxu0 %v5839
        %6812 = vmatprep.subr.bf16.mxu0 0
        %6813 = vmatpush1.bf16.msra.mxu0 %v5731
        %6814 = vmatprep.subr.bf16.mxu0 0
        %6815 = vmatpush1.bf16.msra.mxu0 %v5730
        %6816 = vmatprep.subr.bf16.mxu0 0
        %6817 = vmatpush2.bf16.msra.mxu0 0
        %6818 = vmatprep.subr.bf16.mxu0 0
        %6819 = vmatpush2.bf16.msra.mxu0 0
        %6820 = vmatprep.subr.bf16.mxu0 0
        %6821 = vmatpush2.bf16.msra.mxu0 0
        %6822 = vmatprep.subr.bf16.mxu0 0
        %6823 = vmatpush2.bf16.msra.mxu0 0
        %6824 = vmatprep.subr.bf16.mxu0 0
        %6825 = vmatpush2.bf16.msra.mxu0 0
        %6826 = vmatprep.subr.bf16.mxu0 0
        %6827 = vmatpush2.bf16.msra.mxu0 0
        %6828 = vmatprep.subr.bf16.mxu0 0
        %6829 = vmatpush2.bf16.msra.mxu0 %v6201
        %6830 = vmatprep.subr.bf16.mxu0 0
        %6831 = vmatpush2.bf16.msra.mxu0 %v6199
        %6832 = vmatprep.mubr.bf16.mxu0 %v6278
        %6833 = vmatmul.mubr.bf16.gmra.mxu0 %v6270
        %v6834 = vpop.f32.mrf.mxu0
        %v6835 = vadd.f32 0.0, %v6834
        %v6836 = vpop.f32.mrf.mxu0
        %v6837 = vpop.f32.mrf.mxu0
        %v6838 = vpop.f32.mrf.mxu0
        %6839 = vdwg.mxu0
        %6840 = vmatprep.subr.bf16.mxu0 0
        %6841 = vmatpush1.bf16.msra.mxu0 %v6085
        %6842 = vmatprep.subr.bf16.mxu0 0
        %6843 = vmatpush1.bf16.msra.mxu0 %v6083
        %6844 = vmatprep.subr.bf16.mxu0 0
        %6845 = vmatpush1.bf16.msra.mxu0 %v5965
        %6846 = vmatprep.subr.bf16.mxu0 0
        %6847 = vmatpush1.bf16.msra.mxu0 %v5963
        %6848 = vmatprep.subr.bf16.mxu0 0
        %6849 = vmatpush1.bf16.msra.mxu0 %v5845
        %6850 = vmatprep.subr.bf16.mxu0 0
        %6851 = vmatpush1.bf16.msra.mxu0 %v5843
        %6852 = vmatprep.subr.bf16.mxu0 0
        %6853 = vmatpush1.bf16.msra.mxu0 %v5733
        %6854 = vmatprep.subr.bf16.mxu0 0
        %6855 = vmatpush1.bf16.msra.mxu0 %v5732
        %6856 = vmatprep.subr.bf16.mxu0 0
        %6857 = vmatpush2.bf16.msra.mxu0 0
        %6858 = vmatprep.subr.bf16.mxu0 0
        %6859 = vmatpush2.bf16.msra.mxu0 0
        %6860 = vmatprep.subr.bf16.mxu0 0
        %6861 = vmatpush2.bf16.msra.mxu0 0
        %6862 = vmatprep.subr.bf16.mxu0 0
        %6863 = vmatpush2.bf16.msra.mxu0 0
        %6864 = vmatprep.subr.bf16.mxu0 0
        %6865 = vmatpush2.bf16.msra.mxu0 0
        %6866 = vmatprep.subr.bf16.mxu0 0
        %6867 = vmatpush2.bf16.msra.mxu0 0
        %6868 = vmatprep.subr.bf16.mxu0 0
        %6869 = vmatpush2.bf16.msra.mxu0 %v6205
        %6870 = vmatprep.subr.bf16.mxu0 0
        %6871 = vmatpush2.bf16.msra.mxu0 %v6203
        %6872 = vmatprep.mubr.bf16.mxu0 %v6278
        %6873 = vmatmul.mubr.bf16.gmra.mxu0 %v6270
        %v6874 = vpop.f32.mrf.mxu0
        %v6875 = vadd.f32 0.0, %v6874
        %v6876 = vpop.f32.mrf.mxu0
        %v6877 = vpop.f32.mrf.mxu0
        %v6878 = vpop.f32.mrf.mxu0
        %6879 = vdwg.mxu0
        %6880 = vmatprep.subr.bf16.mxu0 0
        %6881 = vmatpush1.bf16.msra.mxu0 %v6089
        %6882 = vmatprep.subr.bf16.mxu0 0
        %6883 = vmatpush1.bf16.msra.mxu0 %v6087
        %6884 = vmatprep.subr.bf16.mxu0 0
        %6885 = vmatpush1.bf16.msra.mxu0 %v5969
        %6886 = vmatprep.subr.bf16.mxu0 0
        %6887 = vmatpush1.bf16.msra.mxu0 %v5967
        %6888 = vmatprep.subr.bf16.mxu0 0
        %6889 = vmatpush1.bf16.msra.mxu0 %v5849
        %6890 = vmatprep.subr.bf16.mxu0 0
        %6891 = vmatpush1.bf16.msra.mxu0 %v5847
        %6892 = vmatprep.subr.bf16.mxu0 0
        %6893 = vmatpush1.bf16.msra.mxu0 %v5735
        %6894 = vmatprep.subr.bf16.mxu0 0
        %6895 = vmatpush1.bf16.msra.mxu0 %v5734
        %6896 = vmatprep.subr.bf16.mxu0 0
        %6897 = vmatpush2.bf16.msra.mxu0 0
        %6898 = vmatprep.subr.bf16.mxu0 0
        %6899 = vmatpush2.bf16.msra.mxu0 0
        %6900 = vmatprep.subr.bf16.mxu0 0
        %6901 = vmatpush2.bf16.msra.mxu0 0
        %6902 = vmatprep.subr.bf16.mxu0 0
        %6903 = vmatpush2.bf16.msra.mxu0 0
        %6904 = vmatprep.subr.bf16.mxu0 0
        %6905 = vmatpush2.bf16.msra.mxu0 0
        %6906 = vmatprep.subr.bf16.mxu0 0
        %6907 = vmatpush2.bf16.msra.mxu0 0
        %6908 = vmatprep.subr.bf16.mxu0 0
        %6909 = vmatpush2.bf16.msra.mxu0 %v6209
        %6910 = vmatprep.subr.bf16.mxu0 0
        %6911 = vmatpush2.bf16.msra.mxu0 %v6207
        %6912 = vmatprep.mubr.bf16.mxu0 %v6278
        %6913 = vmatmul.mubr.bf16.gmra.mxu0 %v6270
        %v6914 = vpop.f32.mrf.mxu0
        %v6915 = vadd.f32 0.0, %v6914
        %v6916 = vpop.f32.mrf.mxu0
        %v6917 = vpop.f32.mrf.mxu0
        %v6918 = vpop.f32.mrf.mxu0
        %6919 = vdwg.mxu0
        %v6921 = vunpack.c.l.b16 %v6262
        %v6922 = vunpack.c.h.b16 %v6262
        %v6923 = vpack.c.b16 %v6921, %v6921
        %v6924 = vpack.c.b16 %v6922, %v6922
        %v6927 = vsel %vm6276, %v6924, 0
        %6929 = vmatprep.subr.bf16.mxu0 0
        %6930 = vmatpush1.bf16.msra.mxu0 %v6025
        %6931 = vmatprep.subr.bf16.mxu0 0
        %6932 = vmatpush1.bf16.msra.mxu0 %v6023
        %6933 = vmatprep.subr.bf16.mxu0 0
        %6934 = vmatpush1.bf16.msra.mxu0 %v5905
        %6935 = vmatprep.subr.bf16.mxu0 0
        %6936 = vmatpush1.bf16.msra.mxu0 %v5903
        %6937 = vmatprep.subr.bf16.mxu0 0
        %6938 = vmatpush1.bf16.msra.mxu0 %v5785
        %6939 = vmatprep.subr.bf16.mxu0 0
        %6940 = vmatpush1.bf16.msra.mxu0 %v5783
        %6941 = vmatprep.subr.bf16.mxu0 0
        %6942 = vmatpush1.bf16.msra.mxu0 %v5703
        %6943 = vmatprep.subr.bf16.mxu0 0
        %6944 = vmatpush1.bf16.msra.mxu0 %v5702
        %6945 = vmatprep.subr.bf16.mxu0 0
        %6946 = vmatpush2.bf16.msra.mxu0 0
        %6947 = vmatprep.subr.bf16.mxu0 0
        %6948 = vmatpush2.bf16.msra.mxu0 0
        %6949 = vmatprep.subr.bf16.mxu0 0
        %6950 = vmatpush2.bf16.msra.mxu0 0
        %6951 = vmatprep.subr.bf16.mxu0 0
        %6952 = vmatpush2.bf16.msra.mxu0 0
        %6953 = vmatprep.subr.bf16.mxu0 0
        %6954 = vmatpush2.bf16.msra.mxu0 0
        %6955 = vmatprep.subr.bf16.mxu0 0
        %6956 = vmatpush2.bf16.msra.mxu0 0
        %6957 = vmatprep.subr.bf16.mxu0 0
        %6958 = vmatpush2.bf16.msra.mxu0 %v6145
        %6959 = vmatprep.subr.bf16.mxu0 0
        %6960 = vmatpush2.bf16.msra.mxu0 %v6143
        %6961 = vmatprep.mubr.bf16.mxu0 %v6927
        %6962 = vmatmul.mubr.bf16.gmra.mxu0 %v6923
        %v6963 = vpop.f32.mrf.mxu0
        %v6964 = vadd.f32 %v6315, %v6963
        %v6965 = vpop.f32.mrf.mxu0
        %v6966 = vpop.f32.mrf.mxu0
        %v6967 = vpop.f32.mrf.mxu0
        %6968 = vdwg.mxu0
        %6969 = vmatprep.subr.bf16.mxu0 0
        %6970 = vmatpush1.bf16.msra.mxu0 %v6029
        %6971 = vmatprep.subr.bf16.mxu0 0
        %6972 = vmatpush1.bf16.msra.mxu0 %v6027
        %6973 = vmatprep.subr.bf16.mxu0 0
        %6974 = vmatpush1.bf16.msra.mxu0 %v5909
        %6975 = vmatprep.subr.bf16.mxu0 0
        %6976 = vmatpush1.bf16.msra.mxu0 %v5907
        %6977 = vmatprep.subr.bf16.mxu0 0
        %6978 = vmatpush1.bf16.msra.mxu0 %v5789
        %6979 = vmatprep.subr.bf16.mxu0 0
        %6980 = vmatpush1.bf16.msra.mxu0 %v5787
        %6981 = vmatprep.subr.bf16.mxu0 0
        %6982 = vmatpush1.bf16.msra.mxu0 %v5705
        %6983 = vmatprep.subr.bf16.mxu0 0
        %6984 = vmatpush1.bf16.msra.mxu0 %v5704
        %6985 = vmatprep.subr.bf16.mxu0 0
        %6986 = vmatpush2.bf16.msra.mxu0 0
        %6987 = vmatprep.subr.bf16.mxu0 0
        %6988 = vmatpush2.bf16.msra.mxu0 0
        %6989 = vmatprep.subr.bf16.mxu0 0
        %6990 = vmatpush2.bf16.msra.mxu0 0
        %6991 = vmatprep.subr.bf16.mxu0 0
        %6992 = vmatpush2.bf16.msra.mxu0 0
        %6993 = vmatprep.subr.bf16.mxu0 0
        %6994 = vmatpush2.bf16.msra.mxu0 0
        %6995 = vmatprep.subr.bf16.mxu0 0
        %6996 = vmatpush2.bf16.msra.mxu0 0
        %6997 = vmatprep.subr.bf16.mxu0 0
        %6998 = vmatpush2.bf16.msra.mxu0 %v6149
        %6999 = vmatprep.subr.bf16.mxu0 0
        %7000 = vmatpush2.bf16.msra.mxu0 %v6147
        %7001 = vmatprep.mubr.bf16.mxu0 %v6927
        %7002 = vmatmul.mubr.bf16.gmra.mxu0 %v6923
        %v7003 = vpop.f32.mrf.mxu0
        %v7004 = vadd.f32 %v6355, %v7003
        %v7005 = vpop.f32.mrf.mxu0
        %v7006 = vpop.f32.mrf.mxu0
        %v7007 = vpop.f32.mrf.mxu0
        %7008 = vdwg.mxu0
        %7009 = vmatprep.subr.bf16.mxu0 0
        %7010 = vmatpush1.bf16.msra.mxu0 %v6033
        %7011 = vmatprep.subr.bf16.mxu0 0
        %7012 = vmatpush1.bf16.msra.mxu0 %v6031
        %7013 = vmatprep.subr.bf16.mxu0 0
        %7014 = vmatpush1.bf16.msra.mxu0 %v5913
        %7015 = vmatprep.subr.bf16.mxu0 0
        %7016 = vmatpush1.bf16.msra.mxu0 %v5911
        %7017 = vmatprep.subr.bf16.mxu0 0
        %7018 = vmatpush1.bf16.msra.mxu0 %v5793
        %7019 = vmatprep.subr.bf16.mxu0 0
        %7020 = vmatpush1.bf16.msra.mxu0 %v5791
        %7021 = vmatprep.subr.bf16.mxu0 0
        %7022 = vmatpush1.bf16.msra.mxu0 %v5707
        %7023 = vmatprep.subr.bf16.mxu0 0
        %7024 = vmatpush1.bf16.msra.mxu0 %v5706
        %7025 = vmatprep.subr.bf16.mxu0 0
        %7026 = vmatpush2.bf16.msra.mxu0 0
        %7027 = vmatprep.subr.bf16.mxu0 0
        %7028 = vmatpush2.bf16.msra.mxu0 0
        %7029 = vmatprep.subr.bf16.mxu0 0
        %7030 = vmatpush2.bf16.msra.mxu0 0
        %7031 = vmatprep.subr.bf16.mxu0 0
        %7032 = vmatpush2.bf16.msra.mxu0 0
        %7033 = vmatprep.subr.bf16.mxu0 0
        %7034 = vmatpush2.bf16.msra.mxu0 0
        %7035 = vmatprep.subr.bf16.mxu0 0
        %7036 = vmatpush2.bf16.msra.mxu0 0
        %7037 = vmatprep.subr.bf16.mxu0 0
        %7038 = vmatpush2.bf16.msra.mxu0 %v6153
        %7039 = vmatprep.subr.bf16.mxu0 0
        %7040 = vmatpush2.bf16.msra.mxu0 %v6151
        %7041 = vmatprep.mubr.bf16.mxu0 %v6927
        %7042 = vmatmul.mubr.bf16.gmra.mxu0 %v6923
        %v7043 = vpop.f32.mrf.mxu0
        %v7044 = vadd.f32 %v6395, %v7043
        %v7045 = vpop.f32.mrf.mxu0
        %v7046 = vpop.f32.mrf.mxu0
        %v7047 = vpop.f32.mrf.mxu0
        %7048 = vdwg.mxu0
        %7049 = vmatprep.subr.bf16.mxu0 0
        %7050 = vmatpush1.bf16.msra.mxu0 %v6037
        %7051 = vmatprep.subr.bf16.mxu0 0
        %7052 = vmatpush1.bf16.msra.mxu0 %v6035
        %7053 = vmatprep.subr.bf16.mxu0 0
        %7054 = vmatpush1.bf16.msra.mxu0 %v5917
        %7055 = vmatprep.subr.bf16.mxu0 0
        %7056 = vmatpush1.bf16.msra.mxu0 %v5915
        %7057 = vmatprep.subr.bf16.mxu0 0
        %7058 = vmatpush1.bf16.msra.mxu0 %v5797
        %7059 = vmatprep.subr.bf16.mxu0 0
        %7060 = vmatpush1.bf16.msra.mxu0 %v5795
        %7061 = vmatprep.subr.bf16.mxu0 0
        %7062 = vmatpush1.bf16.msra.mxu0 %v5709
        %7063 = vmatprep.subr.bf16.mxu0 0
        %7064 = vmatpush1.bf16.msra.mxu0 %v5708
        %7065 = vmatprep.subr.bf16.mxu0 0
        %7066 = vmatpush2.bf16.msra.mxu0 0
        %7067 = vmatprep.subr.bf16.mxu0 0
        %7068 = vmatpush2.bf16.msra.mxu0 0
        %7069 = vmatprep.subr.bf16.mxu0 0
        %7070 = vmatpush2.bf16.msra.mxu0 0
        %7071 = vmatprep.subr.bf16.mxu0 0
        %7072 = vmatpush2.bf16.msra.mxu0 0
        %7073 = vmatprep.subr.bf16.mxu0 0
        %7074 = vmatpush2.bf16.msra.mxu0 0
        %7075 = vmatprep.subr.bf16.mxu0 0
        %7076 = vmatpush2.bf16.msra.mxu0 0
        %7077 = vmatprep.subr.bf16.mxu0 0
        %7078 = vmatpush2.bf16.msra.mxu0 %v6157
        %7079 = vmatprep.subr.bf16.mxu0 0
        %7080 = vmatpush2.bf16.msra.mxu0 %v6155
        %7081 = vmatprep.mubr.bf16.mxu0 %v6927
        %7082 = vmatmul.mubr.bf16.gmra.mxu0 %v6923
        %v7083 = vpop.f32.mrf.mxu0
        %v7084 = vadd.f32 %v6435, %v7083
        %v7085 = vpop.f32.mrf.mxu0
        %v7086 = vpop.f32.mrf.mxu0
        %v7087 = vpop.f32.mrf.mxu0
        %7088 = vdwg.mxu0
        %7089 = vmatprep.subr.bf16.mxu0 0
        %7090 = vmatpush1.bf16.msra.mxu0 %v6041
        %7091 = vmatprep.subr.bf16.mxu0 0
        %7092 = vmatpush1.bf16.msra.mxu0 %v6039
        %7093 = vmatprep.subr.bf16.mxu0 0
        %7094 = vmatpush1.bf16.msra.mxu0 %v5921
        %7095 = vmatprep.subr.bf16.mxu0 0
        %7096 = vmatpush1.bf16.msra.mxu0 %v5919
        %7097 = vmatprep.subr.bf16.mxu0 0
        %7098 = vmatpush1.bf16.msra.mxu0 %v5801
        %7099 = vmatprep.subr.bf16.mxu0 0
        %7100 = vmatpush1.bf16.msra.mxu0 %v5799
        %7101 = vmatprep.subr.bf16.mxu0 0
        %7102 = vmatpush1.bf16.msra.mxu0 %v5711
        %7103 = vmatprep.subr.bf16.mxu0 0
        %7104 = vmatpush1.bf16.msra.mxu0 %v5710
        %7105 = vmatprep.subr.bf16.mxu0 0
        %7106 = vmatpush2.bf16.msra.mxu0 0
        %7107 = vmatprep.subr.bf16.mxu0 0
        %7108 = vmatpush2.bf16.msra.mxu0 0
        %7109 = vmatprep.subr.bf16.mxu0 0
        %7110 = vmatpush2.bf16.msra.mxu0 0
        %7111 = vmatprep.subr.bf16.mxu0 0
        %7112 = vmatpush2.bf16.msra.mxu0 0
        %7113 = vmatprep.subr.bf16.mxu0 0
        %7114 = vmatpush2.bf16.msra.mxu0 0
        %7115 = vmatprep.subr.bf16.mxu0 0
        %7116 = vmatpush2.bf16.msra.mxu0 0
        %7117 = vmatprep.subr.bf16.mxu0 0
        %7118 = vmatpush2.bf16.msra.mxu0 %v6161
        %7119 = vmatprep.subr.bf16.mxu0 0
        %7120 = vmatpush2.bf16.msra.mxu0 %v6159
        %7121 = vmatprep.mubr.bf16.mxu0 %v6927
        %7122 = vmatmul.mubr.bf16.gmra.mxu0 %v6923
        %v7123 = vpop.f32.mrf.mxu0
        %v7124 = vadd.f32 %v6475, %v7123
        %v7125 = vpop.f32.mrf.mxu0
        %v7126 = vpop.f32.mrf.mxu0
        %v7127 = vpop.f32.mrf.mxu0
        %7128 = vdwg.mxu0
        %7129 = vmatprep.subr.bf16.mxu0 0
        %7130 = vmatpush1.bf16.msra.mxu0 %v6045
        %7131 = vmatprep.subr.bf16.mxu0 0
        %7132 = vmatpush1.bf16.msra.mxu0 %v6043
        %7133 = vmatprep.subr.bf16.mxu0 0
        %7134 = vmatpush1.bf16.msra.mxu0 %v5925
        %7135 = vmatprep.subr.bf16.mxu0 0
        %7136 = vmatpush1.bf16.msra.mxu0 %v5923
        %7137 = vmatprep.subr.bf16.mxu0 0
        %7138 = vmatpush1.bf16.msra.mxu0 %v5805
        %7139 = vmatprep.subr.bf16.mxu0 0
        %7140 = vmatpush1.bf16.msra.mxu0 %v5803
        %7141 = vmatprep.subr.bf16.mxu0 0
        %7142 = vmatpush1.bf16.msra.mxu0 %v5713
        %7143 = vmatprep.subr.bf16.mxu0 0
        %7144 = vmatpush1.bf16.msra.mxu0 %v5712
        %7145 = vmatprep.subr.bf16.mxu0 0
        %7146 = vmatpush2.bf16.msra.mxu0 0
        %7147 = vmatprep.subr.bf16.mxu0 0
        %7148 = vmatpush2.bf16.msra.mxu0 0
        %7149 = vmatprep.subr.bf16.mxu0 0
        %7150 = vmatpush2.bf16.msra.mxu0 0
        %7151 = vmatprep.subr.bf16.mxu0 0
        %7152 = vmatpush2.bf16.msra.mxu0 0
        %7153 = vmatprep.subr.bf16.mxu0 0
        %7154 = vmatpush2.bf16.msra.mxu0 0
        %7155 = vmatprep.subr.bf16.mxu0 0
        %7156 = vmatpush2.bf16.msra.mxu0 0
        %7157 = vmatprep.subr.bf16.mxu0 0
        %7158 = vmatpush2.bf16.msra.mxu0 %v6165
        %7159 = vmatprep.subr.bf16.mxu0 0
        %7160 = vmatpush2.bf16.msra.mxu0 %v6163
        %7161 = vmatprep.mubr.bf16.mxu0 %v6927
        %7162 = vmatmul.mubr.bf16.gmra.mxu0 %v6923
        %v7163 = vpop.f32.mrf.mxu0
        %v7164 = vadd.f32 %v6515, %v7163
        %v7165 = vpop.f32.mrf.mxu0
        %v7166 = vpop.f32.mrf.mxu0
        %v7167 = vpop.f32.mrf.mxu0
        %7168 = vdwg.mxu0
        %7169 = vmatprep.subr.bf16.mxu0 0
        %7170 = vmatpush1.bf16.msra.mxu0 %v6049
        %7171 = vmatprep.subr.bf16.mxu0 0
        %7172 = vmatpush1.bf16.msra.mxu0 %v6047
        %7173 = vmatprep.subr.bf16.mxu0 0
        %7174 = vmatpush1.bf16.msra.mxu0 %v5929
        %7175 = vmatprep.subr.bf16.mxu0 0
        %7176 = vmatpush1.bf16.msra.mxu0 %v5927
        %7177 = vmatprep.subr.bf16.mxu0 0
        %7178 = vmatpush1.bf16.msra.mxu0 %v5809
        %7179 = vmatprep.subr.bf16.mxu0 0
        %7180 = vmatpush1.bf16.msra.mxu0 %v5807
        %7181 = vmatprep.subr.bf16.mxu0 0
        %7182 = vmatpush1.bf16.msra.mxu0 %v5715
        %7183 = vmatprep.subr.bf16.mxu0 0
        %7184 = vmatpush1.bf16.msra.mxu0 %v5714
        %7185 = vmatprep.subr.bf16.mxu0 0
        %7186 = vmatpush2.bf16.msra.mxu0 0
        %7187 = vmatprep.subr.bf16.mxu0 0
        %7188 = vmatpush2.bf16.msra.mxu0 0
        %7189 = vmatprep.subr.bf16.mxu0 0
        %7190 = vmatpush2.bf16.msra.mxu0 0
        %7191 = vmatprep.subr.bf16.mxu0 0
        %7192 = vmatpush2.bf16.msra.mxu0 0
        %7193 = vmatprep.subr.bf16.mxu0 0
        %7194 = vmatpush2.bf16.msra.mxu0 0
        %7195 = vmatprep.subr.bf16.mxu0 0
        %7196 = vmatpush2.bf16.msra.mxu0 0
        %7197 = vmatprep.subr.bf16.mxu0 0
        %7198 = vmatpush2.bf16.msra.mxu0 %v6169
        %7199 = vmatprep.subr.bf16.mxu0 0
        %7200 = vmatpush2.bf16.msra.mxu0 %v6167
        %7201 = vmatprep.mubr.bf16.mxu0 %v6927
        %7202 = vmatmul.mubr.bf16.gmra.mxu0 %v6923
        %v7203 = vpop.f32.mrf.mxu0
        %v7204 = vadd.f32 %v6555, %v7203
        %v7205 = vpop.f32.mrf.mxu0
        %v7206 = vpop.f32.mrf.mxu0
        %v7207 = vpop.f32.mrf.mxu0
        %7208 = vdwg.mxu0
        %7209 = vmatprep.subr.bf16.mxu0 0
        %7210 = vmatpush1.bf16.msra.mxu0 %v6053
        %7211 = vmatprep.subr.bf16.mxu0 0
        %7212 = vmatpush1.bf16.msra.mxu0 %v6051
        %7213 = vmatprep.subr.bf16.mxu0 0
        %7214 = vmatpush1.bf16.msra.mxu0 %v5933
        %7215 = vmatprep.subr.bf16.mxu0 0
        %7216 = vmatpush1.bf16.msra.mxu0 %v5931
        %7217 = vmatprep.subr.bf16.mxu0 0
        %7218 = vmatpush1.bf16.msra.mxu0 %v5813
        %7219 = vmatprep.subr.bf16.mxu0 0
        %7220 = vmatpush1.bf16.msra.mxu0 %v5811
        %7221 = vmatprep.subr.bf16.mxu0 0
        %7222 = vmatpush1.bf16.msra.mxu0 %v5717
        %7223 = vmatprep.subr.bf16.mxu0 0
        %7224 = vmatpush1.bf16.msra.mxu0 %v5716
        %7225 = vmatprep.subr.bf16.mxu0 0
        %7226 = vmatpush2.bf16.msra.mxu0 0
        %7227 = vmatprep.subr.bf16.mxu0 0
        %7228 = vmatpush2.bf16.msra.mxu0 0
        %7229 = vmatprep.subr.bf16.mxu0 0
        %7230 = vmatpush2.bf16.msra.mxu0 0
        %7231 = vmatprep.subr.bf16.mxu0 0
        %7232 = vmatpush2.bf16.msra.mxu0 0
        %7233 = vmatprep.subr.bf16.mxu0 0
        %7234 = vmatpush2.bf16.msra.mxu0 0
        %7235 = vmatprep.subr.bf16.mxu0 0
        %7236 = vmatpush2.bf16.msra.mxu0 0
        %7237 = vmatprep.subr.bf16.mxu0 0
        %7238 = vmatpush2.bf16.msra.mxu0 %v6173
        %7239 = vmatprep.subr.bf16.mxu0 0
        %7240 = vmatpush2.bf16.msra.mxu0 %v6171
        %7241 = vmatprep.mubr.bf16.mxu0 %v6927
        %7242 = vmatmul.mubr.bf16.gmra.mxu0 %v6923
        %v7243 = vpop.f32.mrf.mxu0
        %v7244 = vadd.f32 %v6595, %v7243
        %v7245 = vpop.f32.mrf.mxu0
        %v7246 = vpop.f32.mrf.mxu0
        %v7247 = vpop.f32.mrf.mxu0
        %7248 = vdwg.mxu0
        %7249 = vmatprep.subr.bf16.mxu0 0
        %7250 = vmatpush1.bf16.msra.mxu0 %v6057
        %7251 = vmatprep.subr.bf16.mxu0 0
        %7252 = vmatpush1.bf16.msra.mxu0 %v6055
        %7253 = vmatprep.subr.bf16.mxu0 0
        %7254 = vmatpush1.bf16.msra.mxu0 %v5937
        %7255 = vmatprep.subr.bf16.mxu0 0
        %7256 = vmatpush1.bf16.msra.mxu0 %v5935
        %7257 = vmatprep.subr.bf16.mxu0 0
        %7258 = vmatpush1.bf16.msra.mxu0 %v5817
        %7259 = vmatprep.subr.bf16.mxu0 0
        %7260 = vmatpush1.bf16.msra.mxu0 %v5815
        %7261 = vmatprep.subr.bf16.mxu0 0
        %7262 = vmatpush1.bf16.msra.mxu0 %v5719
        %7263 = vmatprep.subr.bf16.mxu0 0
        %7264 = vmatpush1.bf16.msra.mxu0 %v5718
        %7265 = vmatprep.subr.bf16.mxu0 0
        %7266 = vmatpush2.bf16.msra.mxu0 0
        %7267 = vmatprep.subr.bf16.mxu0 0
        %7268 = vmatpush2.bf16.msra.mxu0 0
        %7269 = vmatprep.subr.bf16.mxu0 0
        %7270 = vmatpush2.bf16.msra.mxu0 0
        %7271 = vmatprep.subr.bf16.mxu0 0
        %7272 = vmatpush2.bf16.msra.mxu0 0
        %7273 = vmatprep.subr.bf16.mxu0 0
        %7274 = vmatpush2.bf16.msra.mxu0 0
        %7275 = vmatprep.subr.bf16.mxu0 0
        %7276 = vmatpush2.bf16.msra.mxu0 0
        %7277 = vmatprep.subr.bf16.mxu0 0
        %7278 = vmatpush2.bf16.msra.mxu0 %v6177
        %7279 = vmatprep.subr.bf16.mxu0 0
        %7280 = vmatpush2.bf16.msra.mxu0 %v6175
        %7281 = vmatprep.mubr.bf16.mxu0 %v6927
        %7282 = vmatmul.mubr.bf16.gmra.mxu0 %v6923
        %v7283 = vpop.f32.mrf.mxu0
        %v7284 = vadd.f32 %v6635, %v7283
        %v7285 = vpop.f32.mrf.mxu0
        %v7286 = vpop.f32.mrf.mxu0
        %v7287 = vpop.f32.mrf.mxu0
        %7288 = vdwg.mxu0
        %7289 = vmatprep.subr.bf16.mxu0 0
        %7290 = vmatpush1.bf16.msra.mxu0 %v6061
        %7291 = vmatprep.subr.bf16.mxu0 0
        %7292 = vmatpush1.bf16.msra.mxu0 %v6059
        %7293 = vmatprep.subr.bf16.mxu0 0
        %7294 = vmatpush1.bf16.msra.mxu0 %v5941
        %7295 = vmatprep.subr.bf16.mxu0 0
        %7296 = vmatpush1.bf16.msra.mxu0 %v5939
        %7297 = vmatprep.subr.bf16.mxu0 0
        %7298 = vmatpush1.bf16.msra.mxu0 %v5821
        %7299 = vmatprep.subr.bf16.mxu0 0
        %7300 = vmatpush1.bf16.msra.mxu0 %v5819
        %7301 = vmatprep.subr.bf16.mxu0 0
        %7302 = vmatpush1.bf16.msra.mxu0 %v5721
        %7303 = vmatprep.subr.bf16.mxu0 0
        %7304 = vmatpush1.bf16.msra.mxu0 %v5720
        %7305 = vmatprep.subr.bf16.mxu0 0
        %7306 = vmatpush2.bf16.msra.mxu0 0
        %7307 = vmatprep.subr.bf16.mxu0 0
        %7308 = vmatpush2.bf16.msra.mxu0 0
        %7309 = vmatprep.subr.bf16.mxu0 0
        %7310 = vmatpush2.bf16.msra.mxu0 0
        %7311 = vmatprep.subr.bf16.mxu0 0
        %7312 = vmatpush2.bf16.msra.mxu0 0
        %7313 = vmatprep.subr.bf16.mxu0 0
        %7314 = vmatpush2.bf16.msra.mxu0 0
        %7315 = vmatprep.subr.bf16.mxu0 0
        %7316 = vmatpush2.bf16.msra.mxu0 0
        %7317 = vmatprep.subr.bf16.mxu0 0
        %7318 = vmatpush2.bf16.msra.mxu0 %v6181
        %7319 = vmatprep.subr.bf16.mxu0 0
        %7320 = vmatpush2.bf16.msra.mxu0 %v6179
        %7321 = vmatprep.mubr.bf16.mxu0 %v6927
        %7322 = vmatmul.mubr.bf16.gmra.mxu0 %v6923
        %v7323 = vpop.f32.mrf.mxu0
        %v7324 = vadd.f32 %v6675, %v7323
        %v7325 = vpop.f32.mrf.mxu0
        %v7326 = vpop.f32.mrf.mxu0
        %v7327 = vpop.f32.mrf.mxu0
        %7328 = vdwg.mxu0
        %7329 = vmatprep.subr.bf16.mxu0 0
        %7330 = vmatpush1.bf16.msra.mxu0 %v6065
        %7331 = vmatprep.subr.bf16.mxu0 0
        %7332 = vmatpush1.bf16.msra.mxu0 %v6063
        %7333 = vmatprep.subr.bf16.mxu0 0
        %7334 = vmatpush1.bf16.msra.mxu0 %v5945
        %7335 = vmatprep.subr.bf16.mxu0 0
        %7336 = vmatpush1.bf16.msra.mxu0 %v5943
        %7337 = vmatprep.subr.bf16.mxu0 0
        %7338 = vmatpush1.bf16.msra.mxu0 %v5825
        %7339 = vmatprep.subr.bf16.mxu0 0
        %7340 = vmatpush1.bf16.msra.mxu0 %v5823
        %7341 = vmatprep.subr.bf16.mxu0 0
        %7342 = vmatpush1.bf16.msra.mxu0 %v5723
        %7343 = vmatprep.subr.bf16.mxu0 0
        %7344 = vmatpush1.bf16.msra.mxu0 %v5722
        %7345 = vmatprep.subr.bf16.mxu0 0
        %7346 = vmatpush2.bf16.msra.mxu0 0
        %7347 = vmatprep.subr.bf16.mxu0 0
        %7348 = vmatpush2.bf16.msra.mxu0 0
        %7349 = vmatprep.subr.bf16.mxu0 0
        %7350 = vmatpush2.bf16.msra.mxu0 0
        %7351 = vmatprep.subr.bf16.mxu0 0
        %7352 = vmatpush2.bf16.msra.mxu0 0
        %7353 = vmatprep.subr.bf16.mxu0 0
        %7354 = vmatpush2.bf16.msra.mxu0 0
        %7355 = vmatprep.subr.bf16.mxu0 0
        %7356 = vmatpush2.bf16.msra.mxu0 0
        %7357 = vmatprep.subr.bf16.mxu0 0
        %7358 = vmatpush2.bf16.msra.mxu0 %v6185
        %7359 = vmatprep.subr.bf16.mxu0 0
        %7360 = vmatpush2.bf16.msra.mxu0 %v6183
        %7361 = vmatprep.mubr.bf16.mxu0 %v6927
        %7362 = vmatmul.mubr.bf16.gmra.mxu0 %v6923
        %v7363 = vpop.f32.mrf.mxu0
        %v7364 = vadd.f32 %v6715, %v7363
        %v7365 = vpop.f32.mrf.mxu0
        %v7366 = vpop.f32.mrf.mxu0
        %v7367 = vpop.f32.mrf.mxu0
        %7368 = vdwg.mxu0
        %7369 = vmatprep.subr.bf16.mxu0 0
        %7370 = vmatpush1.bf16.msra.mxu0 %v6069
        %7371 = vmatprep.subr.bf16.mxu0 0
        %7372 = vmatpush1.bf16.msra.mxu0 %v6067
        %7373 = vmatprep.subr.bf16.mxu0 0
        %7374 = vmatpush1.bf16.msra.mxu0 %v5949
        %7375 = vmatprep.subr.bf16.mxu0 0
        %7376 = vmatpush1.bf16.msra.mxu0 %v5947
        %7377 = vmatprep.subr.bf16.mxu0 0
        %7378 = vmatpush1.bf16.msra.mxu0 %v5829
        %7379 = vmatprep.subr.bf16.mxu0 0
        %7380 = vmatpush1.bf16.msra.mxu0 %v5827
        %7381 = vmatprep.subr.bf16.mxu0 0
        %7382 = vmatpush1.bf16.msra.mxu0 %v5725
        %7383 = vmatprep.subr.bf16.mxu0 0
        %7384 = vmatpush1.bf16.msra.mxu0 %v5724
        %7385 = vmatprep.subr.bf16.mxu0 0
        %7386 = vmatpush2.bf16.msra.mxu0 0
        %7387 = vmatprep.subr.bf16.mxu0 0
        %7388 = vmatpush2.bf16.msra.mxu0 0
        %7389 = vmatprep.subr.bf16.mxu0 0
        %7390 = vmatpush2.bf16.msra.mxu0 0
        %7391 = vmatprep.subr.bf16.mxu0 0
        %7392 = vmatpush2.bf16.msra.mxu0 0
        %7393 = vmatprep.subr.bf16.mxu0 0
        %7394 = vmatpush2.bf16.msra.mxu0 0
        %7395 = vmatprep.subr.bf16.mxu0 0
        %7396 = vmatpush2.bf16.msra.mxu0 0
        %7397 = vmatprep.subr.bf16.mxu0 0
        %7398 = vmatpush2.bf16.msra.mxu0 %v6189
        %7399 = vmatprep.subr.bf16.mxu0 0
        %7400 = vmatpush2.bf16.msra.mxu0 %v6187
        %7401 = vmatprep.mubr.bf16.mxu0 %v6927
        %7402 = vmatmul.mubr.bf16.gmra.mxu0 %v6923
        %v7403 = vpop.f32.mrf.mxu0
        %v7404 = vadd.f32 %v6755, %v7403
        %v7405 = vpop.f32.mrf.mxu0
        %v7406 = vpop.f32.mrf.mxu0
        %v7407 = vpop.f32.mrf.mxu0
        %7408 = vdwg.mxu0
        %7409 = vmatprep.subr.bf16.mxu0 0
        %7410 = vmatpush1.bf16.msra.mxu0 %v6073
        %7411 = vmatprep.subr.bf16.mxu0 0
        %7412 = vmatpush1.bf16.msra.mxu0 %v6071
        %7413 = vmatprep.subr.bf16.mxu0 0
        %7414 = vmatpush1.bf16.msra.mxu0 %v5953
        %7415 = vmatprep.subr.bf16.mxu0 0
        %7416 = vmatpush1.bf16.msra.mxu0 %v5951
        %7417 = vmatprep.subr.bf16.mxu0 0
        %7418 = vmatpush1.bf16.msra.mxu0 %v5833
        %7419 = vmatprep.subr.bf16.mxu0 0
        %7420 = vmatpush1.bf16.msra.mxu0 %v5831
        %7421 = vmatprep.subr.bf16.mxu0 0
        %7422 = vmatpush1.bf16.msra.mxu0 %v5727
        %7423 = vmatprep.subr.bf16.mxu0 0
        %7424 = vmatpush1.bf16.msra.mxu0 %v5726
        %7425 = vmatprep.subr.bf16.mxu0 0
        %7426 = vmatpush2.bf16.msra.mxu0 0
        %7427 = vmatprep.subr.bf16.mxu0 0
        %7428 = vmatpush2.bf16.msra.mxu0 0
        %7429 = vmatprep.subr.bf16.mxu0 0
        %7430 = vmatpush2.bf16.msra.mxu0 0
        %7431 = vmatprep.subr.bf16.mxu0 0
        %7432 = vmatpush2.bf16.msra.mxu0 0
        %7433 = vmatprep.subr.bf16.mxu0 0
        %7434 = vmatpush2.bf16.msra.mxu0 0
        %7435 = vmatprep.subr.bf16.mxu0 0
        %7436 = vmatpush2.bf16.msra.mxu0 0
        %7437 = vmatprep.subr.bf16.mxu0 0
        %7438 = vmatpush2.bf16.msra.mxu0 %v6193
        %7439 = vmatprep.subr.bf16.mxu0 0
        %7440 = vmatpush2.bf16.msra.mxu0 %v6191
        %7441 = vmatprep.mubr.bf16.mxu0 %v6927
        %7442 = vmatmul.mubr.bf16.gmra.mxu0 %v6923
        %v7443 = vpop.f32.mrf.mxu0
        %v7444 = vadd.f32 %v6795, %v7443
        %v7445 = vpop.f32.mrf.mxu0
        %v7446 = vpop.f32.mrf.mxu0
        %v7447 = vpop.f32.mrf.mxu0
        %7448 = vdwg.mxu0
        %7449 = vmatprep.subr.bf16.mxu0 0
        %7450 = vmatpush1.bf16.msra.mxu0 %v6077
        %7451 = vmatprep.subr.bf16.mxu0 0
        %7452 = vmatpush1.bf16.msra.mxu0 %v6075
        %7453 = vmatprep.subr.bf16.mxu0 0
        %7454 = vmatpush1.bf16.msra.mxu0 %v5957
        %7455 = vmatprep.subr.bf16.mxu0 0
        %7456 = vmatpush1.bf16.msra.mxu0 %v5955
        %7457 = vmatprep.subr.bf16.mxu0 0
        %7458 = vmatpush1.bf16.msra.mxu0 %v5837
        %7459 = vmatprep.subr.bf16.mxu0 0
        %7460 = vmatpush1.bf16.msra.mxu0 %v5835
        %7461 = vmatprep.subr.bf16.mxu0 0
        %7462 = vmatpush1.bf16.msra.mxu0 %v5729
        %7463 = vmatprep.subr.bf16.mxu0 0
        %7464 = vmatpush1.bf16.msra.mxu0 %v5728
        %7465 = vmatprep.subr.bf16.mxu0 0
        %7466 = vmatpush2.bf16.msra.mxu0 0
        %7467 = vmatprep.subr.bf16.mxu0 0
        %7468 = vmatpush2.bf16.msra.mxu0 0
        %7469 = vmatprep.subr.bf16.mxu0 0
        %7470 = vmatpush2.bf16.msra.mxu0 0
        %7471 = vmatprep.subr.bf16.mxu0 0
        %7472 = vmatpush2.bf16.msra.mxu0 0
        %7473 = vmatprep.subr.bf16.mxu0 0
        %7474 = vmatpush2.bf16.msra.mxu0 0
        %7475 = vmatprep.subr.bf16.mxu0 0
        %7476 = vmatpush2.bf16.msra.mxu0 0
        %7477 = vmatprep.subr.bf16.mxu0 0
        %7478 = vmatpush2.bf16.msra.mxu0 %v6197
        %7479 = vmatprep.subr.bf16.mxu0 0
        %7480 = vmatpush2.bf16.msra.mxu0 %v6195
        %7481 = vmatprep.mubr.bf16.mxu0 %v6927
        %7482 = vmatmul.mubr.bf16.gmra.mxu0 %v6923
        %v7483 = vpop.f32.mrf.mxu0
        %v7484 = vadd.f32 %v6835, %v7483
        %v7485 = vpop.f32.mrf.mxu0
        %v7486 = vpop.f32.mrf.mxu0
        %v7487 = vpop.f32.mrf.mxu0
        %7488 = vdwg.mxu0
        %7489 = vmatprep.subr.bf16.mxu0 0
        %7490 = vmatpush1.bf16.msra.mxu0 %v6081
        %7491 = vmatprep.subr.bf16.mxu0 0
        %7492 = vmatpush1.bf16.msra.mxu0 %v6079
        %7493 = vmatprep.subr.bf16.mxu0 0
        %7494 = vmatpush1.bf16.msra.mxu0 %v5961
        %7495 = vmatprep.subr.bf16.mxu0 0
        %7496 = vmatpush1.bf16.msra.mxu0 %v5959
        %7497 = vmatprep.subr.bf16.mxu0 0
        %7498 = vmatpush1.bf16.msra.mxu0 %v5841
        %7499 = vmatprep.subr.bf16.mxu0 0
        %7500 = vmatpush1.bf16.msra.mxu0 %v5839
        %7501 = vmatprep.subr.bf16.mxu0 0
        %7502 = vmatpush1.bf16.msra.mxu0 %v5731
        %7503 = vmatprep.subr.bf16.mxu0 0
        %7504 = vmatpush1.bf16.msra.mxu0 %v5730
        %7505 = vmatprep.subr.bf16.mxu0 0
        %7506 = vmatpush2.bf16.msra.mxu0 0
        %7507 = vmatprep.subr.bf16.mxu0 0
        %7508 = vmatpush2.bf16.msra.mxu0 0
        %7509 = vmatprep.subr.bf16.mxu0 0
        %7510 = vmatpush2.bf16.msra.mxu0 0
        %7511 = vmatprep.subr.bf16.mxu0 0
        %7512 = vmatpush2.bf16.msra.mxu0 0
        %7513 = vmatprep.subr.bf16.mxu0 0
        %7514 = vmatpush2.bf16.msra.mxu0 0
        %7515 = vmatprep.subr.bf16.mxu0 0
        %7516 = vmatpush2.bf16.msra.mxu0 0
        %7517 = vmatprep.subr.bf16.mxu0 0
        %7518 = vmatpush2.bf16.msra.mxu0 %v6201
        %7519 = vmatprep.subr.bf16.mxu0 0
        %7520 = vmatpush2.bf16.msra.mxu0 %v6199
        %7521 = vmatprep.mubr.bf16.mxu0 %v6927
        %7522 = vmatmul.mubr.bf16.gmra.mxu0 %v6923
        %v7523 = vpop.f32.mrf.mxu0
        %v7524 = vadd.f32 %v6875, %v7523
        %v7525 = vpop.f32.mrf.mxu0
        %v7526 = vpop.f32.mrf.mxu0
        %v7527 = vpop.f32.mrf.mxu0
        %7528 = vdwg.mxu0
        %7529 = vmatprep.subr.bf16.mxu0 0
        %7530 = vmatpush1.bf16.msra.mxu0 %v6085
        %7531 = vmatprep.subr.bf16.mxu0 0
        %7532 = vmatpush1.bf16.msra.mxu0 %v6083
        %7533 = vmatprep.subr.bf16.mxu0 0
        %7534 = vmatpush1.bf16.msra.mxu0 %v5965
        %7535 = vmatprep.subr.bf16.mxu0 0
        %7536 = vmatpush1.bf16.msra.mxu0 %v5963
        %7537 = vmatprep.subr.bf16.mxu0 0
        %7538 = vmatpush1.bf16.msra.mxu0 %v5845
        %7539 = vmatprep.subr.bf16.mxu0 0
        %7540 = vmatpush1.bf16.msra.mxu0 %v5843
        %7541 = vmatprep.subr.bf16.mxu0 0
        %7542 = vmatpush1.bf16.msra.mxu0 %v5733
        %7543 = vmatprep.subr.bf16.mxu0 0
        %7544 = vmatpush1.bf16.msra.mxu0 %v5732
        %7545 = vmatprep.subr.bf16.mxu0 0
        %7546 = vmatpush2.bf16.msra.mxu0 0
        %7547 = vmatprep.subr.bf16.mxu0 0
        %7548 = vmatpush2.bf16.msra.mxu0 0
        %7549 = vmatprep.subr.bf16.mxu0 0
        %7550 = vmatpush2.bf16.msra.mxu0 0
        %7551 = vmatprep.subr.bf16.mxu0 0
        %7552 = vmatpush2.bf16.msra.mxu0 0
        %7553 = vmatprep.subr.bf16.mxu0 0
        %7554 = vmatpush2.bf16.msra.mxu0 0
        %7555 = vmatprep.subr.bf16.mxu0 0
        %7556 = vmatpush2.bf16.msra.mxu0 0
        %7557 = vmatprep.subr.bf16.mxu0 0
        %7558 = vmatpush2.bf16.msra.mxu0 %v6205
        %7559 = vmatprep.subr.bf16.mxu0 0
        %7560 = vmatpush2.bf16.msra.mxu0 %v6203
        %7561 = vmatprep.mubr.bf16.mxu0 %v6927
        %7562 = vmatmul.mubr.bf16.gmra.mxu0 %v6923
        %v7563 = vpop.f32.mrf.mxu0
        %v7564 = vadd.f32 %v6915, %v7563
        %v7565 = vpop.f32.mrf.mxu0
        %v7566 = vpop.f32.mrf.mxu0
        %v7567 = vpop.f32.mrf.mxu0
        %7568 = vdwg.mxu0
        %v7569 = vld [vmem:[%s5] sm:$0x22]
        %v7571 = vunpack.c.l.b16 %v7569
        %v7572 = vunpack.c.h.b16 %v7569
        %v7573 = vpack.c.b16 %v7571, %v7571
        %v7574 = vpack.c.b16 %v7572, %v7572
        %v7575 = vrot.slane %v7573, 1
        %v7576 = vrot.slane %v7574, 1
        %v7579 = vsel %vm6276, %v7576, 0
        %7581 = vmatprep.subr.bf16.mxu0 0
        %7582 = vmatpush1.bf16.msra.mxu0 %v6033
        %7583 = vmatprep.subr.bf16.mxu0 0
        %7584 = vmatpush1.bf16.msra.mxu0 %v6031
        %7585 = vmatprep.subr.bf16.mxu0 0
        %7586 = vmatpush1.bf16.msra.mxu0 %v5913
        %7587 = vmatprep.subr.bf16.mxu0 0
        %7588 = vmatpush1.bf16.msra.mxu0 %v5911
        %7589 = vmatprep.subr.bf16.mxu0 0
        %7590 = vmatpush1.bf16.msra.mxu0 %v5793
        %7591 = vmatprep.subr.bf16.mxu0 0
        %7592 = vmatpush1.bf16.msra.mxu0 %v5791
        %7593 = vmatprep.subr.bf16.mxu0 0
        %7594 = vmatpush1.bf16.msra.mxu0 %v5707
        %7595 = vmatprep.subr.bf16.mxu0 0
        %7596 = vmatpush1.bf16.msra.mxu0 %v5706
        %7597 = vmatprep.subr.bf16.mxu0 0
        %7598 = vmatpush2.bf16.msra.mxu0 0
        %7599 = vmatprep.subr.bf16.mxu0 0
        %7600 = vmatpush2.bf16.msra.mxu0 0
        %7601 = vmatprep.subr.bf16.mxu0 0
        %7602 = vmatpush2.bf16.msra.mxu0 0
        %7603 = vmatprep.subr.bf16.mxu0 0
        %7604 = vmatpush2.bf16.msra.mxu0 0
        %7605 = vmatprep.subr.bf16.mxu0 0
        %7606 = vmatpush2.bf16.msra.mxu0 0
        %7607 = vmatprep.subr.bf16.mxu0 0
        %7608 = vmatpush2.bf16.msra.mxu0 0
        %7609 = vmatprep.subr.bf16.mxu0 0
        %7610 = vmatpush2.bf16.msra.mxu0 %v6153
        %7611 = vmatprep.subr.bf16.mxu0 0
        %7612 = vmatpush2.bf16.msra.mxu0 %v6151
        %7613 = vmatprep.mubr.bf16.mxu0 %v7579
        %7614 = vmatmul.mubr.bf16.gmra.mxu0 %v7575
        %v7615 = vpop.f32.mrf.mxu0
        %v7616 = vadd.f32 0.0, %v7615
        %v7617 = vpop.f32.mrf.mxu0
        %v7618 = vpop.f32.mrf.mxu0
        %v7619 = vpop.f32.mrf.mxu0
        %7620 = vdwg.mxu0
        %7621 = vmatprep.subr.bf16.mxu0 0
        %7622 = vmatpush1.bf16.msra.mxu0 %v6037
        %7623 = vmatprep.subr.bf16.mxu0 0
        %7624 = vmatpush1.bf16.msra.mxu0 %v6035
        %7625 = vmatprep.subr.bf16.mxu0 0
        %7626 = vmatpush1.bf16.msra.mxu0 %v5917
        %7627 = vmatprep.subr.bf16.mxu0 0
        %7628 = vmatpush1.bf16.msra.mxu0 %v5915
        %7629 = vmatprep.subr.bf16.mxu0 0
        %7630 = vmatpush1.bf16.msra.mxu0 %v5797
        %7631 = vmatprep.subr.bf16.mxu0 0
        %7632 = vmatpush1.bf16.msra.mxu0 %v5795
        %7633 = vmatprep.subr.bf16.mxu0 0
        %7634 = vmatpush1.bf16.msra.mxu0 %v5709
        %7635 = vmatprep.subr.bf16.mxu0 0
        %7636 = vmatpush1.bf16.msra.mxu0 %v5708
        %7637 = vmatprep.subr.bf16.mxu0 0
        %7638 = vmatpush2.bf16.msra.mxu0 0
        %7639 = vmatprep.subr.bf16.mxu0 0
        %7640 = vmatpush2.bf16.msra.mxu0 0
        %7641 = vmatprep.subr.bf16.mxu0 0
        %7642 = vmatpush2.bf16.msra.mxu0 0
        %7643 = vmatprep.subr.bf16.mxu0 0
        %7644 = vmatpush2.bf16.msra.mxu0 0
        %7645 = vmatprep.subr.bf16.mxu0 0
        %7646 = vmatpush2.bf16.msra.mxu0 0
        %7647 = vmatprep.subr.bf16.mxu0 0
        %7648 = vmatpush2.bf16.msra.mxu0 0
        %7649 = vmatprep.subr.bf16.mxu0 0
        %7650 = vmatpush2.bf16.msra.mxu0 %v6157
        %7651 = vmatprep.subr.bf16.mxu0 0
        %7652 = vmatpush2.bf16.msra.mxu0 %v6155
        %7653 = vmatprep.mubr.bf16.mxu0 %v7579
        %7654 = vmatmul.mubr.bf16.gmra.mxu0 %v7575
        %v7655 = vpop.f32.mrf.mxu0
        %v7656 = vadd.f32 0.0, %v7655
        %v7657 = vpop.f32.mrf.mxu0
        %v7658 = vpop.f32.mrf.mxu0
        %v7659 = vpop.f32.mrf.mxu0
        %7660 = vdwg.mxu0
        %7661 = vmatprep.subr.bf16.mxu0 0
        %7662 = vmatpush1.bf16.msra.mxu0 %v6041
        %7663 = vmatprep.subr.bf16.mxu0 0
        %7664 = vmatpush1.bf16.msra.mxu0 %v6039
        %7665 = vmatprep.subr.bf16.mxu0 0
        %7666 = vmatpush1.bf16.msra.mxu0 %v5921
        %7667 = vmatprep.subr.bf16.mxu0 0
        %7668 = vmatpush1.bf16.msra.mxu0 %v5919
        %7669 = vmatprep.subr.bf16.mxu0 0
        %7670 = vmatpush1.bf16.msra.mxu0 %v5801
        %7671 = vmatprep.subr.bf16.mxu0 0
        %7672 = vmatpush1.bf16.msra.mxu0 %v5799
        %7673 = vmatprep.subr.bf16.mxu0 0
        %7674 = vmatpush1.bf16.msra.mxu0 %v5711
        %7675 = vmatprep.subr.bf16.mxu0 0
        %7676 = vmatpush1.bf16.msra.mxu0 %v5710
        %7677 = vmatprep.subr.bf16.mxu0 0
        %7678 = vmatpush2.bf16.msra.mxu0 0
        %7679 = vmatprep.subr.bf16.mxu0 0
        %7680 = vmatpush2.bf16.msra.mxu0 0
        %7681 = vmatprep.subr.bf16.mxu0 0
        %7682 = vmatpush2.bf16.msra.mxu0 0
        %7683 = vmatprep.subr.bf16.mxu0 0
        %7684 = vmatpush2.bf16.msra.mxu0 0
        %7685 = vmatprep.subr.bf16.mxu0 0
        %7686 = vmatpush2.bf16.msra.mxu0 0
        %7687 = vmatprep.subr.bf16.mxu0 0
        %7688 = vmatpush2.bf16.msra.mxu0 0
        %7689 = vmatprep.subr.bf16.mxu0 0
        %7690 = vmatpush2.bf16.msra.mxu0 %v6161
        %7691 = vmatprep.subr.bf16.mxu0 0
        %7692 = vmatpush2.bf16.msra.mxu0 %v6159
        %7693 = vmatprep.mubr.bf16.mxu0 %v7579
        %7694 = vmatmul.mubr.bf16.gmra.mxu0 %v7575
        %v7695 = vpop.f32.mrf.mxu0
        %v7696 = vadd.f32 0.0, %v7695
        %v7697 = vpop.f32.mrf.mxu0
        %v7698 = vpop.f32.mrf.mxu0
        %v7699 = vpop.f32.mrf.mxu0
        %7700 = vdwg.mxu0
        %7701 = vmatprep.subr.bf16.mxu0 0
        %7702 = vmatpush1.bf16.msra.mxu0 %v6045
        %7703 = vmatprep.subr.bf16.mxu0 0
        %7704 = vmatpush1.bf16.msra.mxu0 %v6043
        %7705 = vmatprep.subr.bf16.mxu0 0
        %7706 = vmatpush1.bf16.msra.mxu0 %v5925
        %7707 = vmatprep.subr.bf16.mxu0 0
        %7708 = vmatpush1.bf16.msra.mxu0 %v5923
        %7709 = vmatprep.subr.bf16.mxu0 0
        %7710 = vmatpush1.bf16.msra.mxu0 %v5805
        %7711 = vmatprep.subr.bf16.mxu0 0
        %7712 = vmatpush1.bf16.msra.mxu0 %v5803
        %7713 = vmatprep.subr.bf16.mxu0 0
        %7714 = vmatpush1.bf16.msra.mxu0 %v5713
        %7715 = vmatprep.subr.bf16.mxu0 0
        %7716 = vmatpush1.bf16.msra.mxu0 %v5712
        %7717 = vmatprep.subr.bf16.mxu0 0
        %7718 = vmatpush2.bf16.msra.mxu0 0
        %7719 = vmatprep.subr.bf16.mxu0 0
        %7720 = vmatpush2.bf16.msra.mxu0 0
        %7721 = vmatprep.subr.bf16.mxu0 0
        %7722 = vmatpush2.bf16.msra.mxu0 0
        %7723 = vmatprep.subr.bf16.mxu0 0
        %7724 = vmatpush2.bf16.msra.mxu0 0
        %7725 = vmatprep.subr.bf16.mxu0 0
        %7726 = vmatpush2.bf16.msra.mxu0 0
        %7727 = vmatprep.subr.bf16.mxu0 0
        %7728 = vmatpush2.bf16.msra.mxu0 0
        %7729 = vmatprep.subr.bf16.mxu0 0
        %7730 = vmatpush2.bf16.msra.mxu0 %v6165
        %7731 = vmatprep.subr.bf16.mxu0 0
        %7732 = vmatpush2.bf16.msra.mxu0 %v6163
        %7733 = vmatprep.mubr.bf16.mxu0 %v7579
        %7734 = vmatmul.mubr.bf16.gmra.mxu0 %v7575
        %v7735 = vpop.f32.mrf.mxu0
        %v7736 = vadd.f32 0.0, %v7735
        %v7737 = vpop.f32.mrf.mxu0
        %v7738 = vpop.f32.mrf.mxu0
        %v7739 = vpop.f32.mrf.mxu0
        %7740 = vdwg.mxu0
        %7741 = vmatprep.subr.bf16.mxu0 0
        %7742 = vmatpush1.bf16.msra.mxu0 %v6049
        %7743 = vmatprep.subr.bf16.mxu0 0
        %7744 = vmatpush1.bf16.msra.mxu0 %v6047
        %7745 = vmatprep.subr.bf16.mxu0 0
        %7746 = vmatpush1.bf16.msra.mxu0 %v5929
        %7747 = vmatprep.subr.bf16.mxu0 0
        %7748 = vmatpush1.bf16.msra.mxu0 %v5927
        %7749 = vmatprep.subr.bf16.mxu0 0
        %7750 = vmatpush1.bf16.msra.mxu0 %v5809
        %7751 = vmatprep.subr.bf16.mxu0 0
        %7752 = vmatpush1.bf16.msra.mxu0 %v5807
        %7753 = vmatprep.subr.bf16.mxu0 0
        %7754 = vmatpush1.bf16.msra.mxu0 %v5715
        %7755 = vmatprep.subr.bf16.mxu0 0
        %7756 = vmatpush1.bf16.msra.mxu0 %v5714
        %7757 = vmatprep.subr.bf16.mxu0 0
        %7758 = vmatpush2.bf16.msra.mxu0 0
        %7759 = vmatprep.subr.bf16.mxu0 0
        %7760 = vmatpush2.bf16.msra.mxu0 0
        %7761 = vmatprep.subr.bf16.mxu0 0
        %7762 = vmatpush2.bf16.msra.mxu0 0
        %7763 = vmatprep.subr.bf16.mxu0 0
        %7764 = vmatpush2.bf16.msra.mxu0 0
        %7765 = vmatprep.subr.bf16.mxu0 0
        %7766 = vmatpush2.bf16.msra.mxu0 0
        %7767 = vmatprep.subr.bf16.mxu0 0
        %7768 = vmatpush2.bf16.msra.mxu0 0
        %7769 = vmatprep.subr.bf16.mxu0 0
        %7770 = vmatpush2.bf16.msra.mxu0 %v6169
        %7771 = vmatprep.subr.bf16.mxu0 0
        %7772 = vmatpush2.bf16.msra.mxu0 %v6167
        %7773 = vmatprep.mubr.bf16.mxu0 %v7579
        %7774 = vmatmul.mubr.bf16.gmra.mxu0 %v7575
        %v7775 = vpop.f32.mrf.mxu0
        %v7776 = vadd.f32 0.0, %v7775
        %v7777 = vpop.f32.mrf.mxu0
        %v7778 = vpop.f32.mrf.mxu0
        %v7779 = vpop.f32.mrf.mxu0
        %7780 = vdwg.mxu0
        %7781 = vmatprep.subr.bf16.mxu0 0
        %7782 = vmatpush1.bf16.msra.mxu0 %v6053
        %7783 = vmatprep.subr.bf16.mxu0 0
        %7784 = vmatpush1.bf16.msra.mxu0 %v6051
        %7785 = vmatprep.subr.bf16.mxu0 0
        %7786 = vmatpush1.bf16.msra.mxu0 %v5933
        %7787 = vmatprep.subr.bf16.mxu0 0
        %7788 = vmatpush1.bf16.msra.mxu0 %v5931
        %7789 = vmatprep.subr.bf16.mxu0 0
        %7790 = vmatpush1.bf16.msra.mxu0 %v5813
        %7791 = vmatprep.subr.bf16.mxu0 0
        %7792 = vmatpush1.bf16.msra.mxu0 %v5811
        %7793 = vmatprep.subr.bf16.mxu0 0
        %7794 = vmatpush1.bf16.msra.mxu0 %v5717
        %7795 = vmatprep.subr.bf16.mxu0 0
        %7796 = vmatpush1.bf16.msra.mxu0 %v5716
        %7797 = vmatprep.subr.bf16.mxu0 0
        %7798 = vmatpush2.bf16.msra.mxu0 0
        %7799 = vmatprep.subr.bf16.mxu0 0
        %7800 = vmatpush2.bf16.msra.mxu0 0
        %7801 = vmatprep.subr.bf16.mxu0 0
        %7802 = vmatpush2.bf16.msra.mxu0 0
        %7803 = vmatprep.subr.bf16.mxu0 0
        %7804 = vmatpush2.bf16.msra.mxu0 0
        %7805 = vmatprep.subr.bf16.mxu0 0
        %7806 = vmatpush2.bf16.msra.mxu0 0
        %7807 = vmatprep.subr.bf16.mxu0 0
        %7808 = vmatpush2.bf16.msra.mxu0 0
        %7809 = vmatprep.subr.bf16.mxu0 0
        %7810 = vmatpush2.bf16.msra.mxu0 %v6173
        %7811 = vmatprep.subr.bf16.mxu0 0
        %7812 = vmatpush2.bf16.msra.mxu0 %v6171
        %7813 = vmatprep.mubr.bf16.mxu0 %v7579
        %7814 = vmatmul.mubr.bf16.gmra.mxu0 %v7575
        %v7815 = vpop.f32.mrf.mxu0
        %v7816 = vadd.f32 0.0, %v7815
        %v7817 = vpop.f32.mrf.mxu0
        %v7818 = vpop.f32.mrf.mxu0
        %v7819 = vpop.f32.mrf.mxu0
        %7820 = vdwg.mxu0
        %7821 = vmatprep.subr.bf16.mxu0 0
        %7822 = vmatpush1.bf16.msra.mxu0 %v6057
        %7823 = vmatprep.subr.bf16.mxu0 0
        %7824 = vmatpush1.bf16.msra.mxu0 %v6055
        %7825 = vmatprep.subr.bf16.mxu0 0
        %7826 = vmatpush1.bf16.msra.mxu0 %v5937
        %7827 = vmatprep.subr.bf16.mxu0 0
        %7828 = vmatpush1.bf16.msra.mxu0 %v5935
        %7829 = vmatprep.subr.bf16.mxu0 0
        %7830 = vmatpush1.bf16.msra.mxu0 %v5817
        %7831 = vmatprep.subr.bf16.mxu0 0
        %7832 = vmatpush1.bf16.msra.mxu0 %v5815
        %7833 = vmatprep.subr.bf16.mxu0 0
        %7834 = vmatpush1.bf16.msra.mxu0 %v5719
        %7835 = vmatprep.subr.bf16.mxu0 0
        %7836 = vmatpush1.bf16.msra.mxu0 %v5718
        %7837 = vmatprep.subr.bf16.mxu0 0
        %7838 = vmatpush2.bf16.msra.mxu0 0
        %7839 = vmatprep.subr.bf16.mxu0 0
        %7840 = vmatpush2.bf16.msra.mxu0 0
        %7841 = vmatprep.subr.bf16.mxu0 0
        %7842 = vmatpush2.bf16.msra.mxu0 0
        %7843 = vmatprep.subr.bf16.mxu0 0
        %7844 = vmatpush2.bf16.msra.mxu0 0
        %7845 = vmatprep.subr.bf16.mxu0 0
        %7846 = vmatpush2.bf16.msra.mxu0 0
        %7847 = vmatprep.subr.bf16.mxu0 0
        %7848 = vmatpush2.bf16.msra.mxu0 0
        %7849 = vmatprep.subr.bf16.mxu0 0
        %7850 = vmatpush2.bf16.msra.mxu0 %v6177
        %7851 = vmatprep.subr.bf16.mxu0 0
        %7852 = vmatpush2.bf16.msra.mxu0 %v6175
        %7853 = vmatprep.mubr.bf16.mxu0 %v7579
        %7854 = vmatmul.mubr.bf16.gmra.mxu0 %v7575
        %v7855 = vpop.f32.mrf.mxu0
        %v7856 = vadd.f32 0.0, %v7855
        %v7857 = vpop.f32.mrf.mxu0
        %v7858 = vpop.f32.mrf.mxu0
        %v7859 = vpop.f32.mrf.mxu0
        %7860 = vdwg.mxu0
        %7861 = vmatprep.subr.bf16.mxu0 0
        %7862 = vmatpush1.bf16.msra.mxu0 %v6061
        %7863 = vmatprep.subr.bf16.mxu0 0
        %7864 = vmatpush1.bf16.msra.mxu0 %v6059
        %7865 = vmatprep.subr.bf16.mxu0 0
        %7866 = vmatpush1.bf16.msra.mxu0 %v5941
        %7867 = vmatprep.subr.bf16.mxu0 0
        %7868 = vmatpush1.bf16.msra.mxu0 %v5939
        %7869 = vmatprep.subr.bf16.mxu0 0
        %7870 = vmatpush1.bf16.msra.mxu0 %v5821
        %7871 = vmatprep.subr.bf16.mxu0 0
        %7872 = vmatpush1.bf16.msra.mxu0 %v5819
        %7873 = vmatprep.subr.bf16.mxu0 0
        %7874 = vmatpush1.bf16.msra.mxu0 %v5721
        %7875 = vmatprep.subr.bf16.mxu0 0
        %7876 = vmatpush1.bf16.msra.mxu0 %v5720
        %7877 = vmatprep.subr.bf16.mxu0 0
        %7878 = vmatpush2.bf16.msra.mxu0 0
        %7879 = vmatprep.subr.bf16.mxu0 0
        %7880 = vmatpush2.bf16.msra.mxu0 0
        %7881 = vmatprep.subr.bf16.mxu0 0
        %7882 = vmatpush2.bf16.msra.mxu0 0
        %7883 = vmatprep.subr.bf16.mxu0 0
        %7884 = vmatpush2.bf16.msra.mxu0 0
        %7885 = vmatprep.subr.bf16.mxu0 0
        %7886 = vmatpush2.bf16.msra.mxu0 0
        %7887 = vmatprep.subr.bf16.mxu0 0
        %7888 = vmatpush2.bf16.msra.mxu0 0
        %7889 = vmatprep.subr.bf16.mxu0 0
        %7890 = vmatpush2.bf16.msra.mxu0 %v6181
        %7891 = vmatprep.subr.bf16.mxu0 0
        %7892 = vmatpush2.bf16.msra.mxu0 %v6179
        %7893 = vmatprep.mubr.bf16.mxu0 %v7579
        %7894 = vmatmul.mubr.bf16.gmra.mxu0 %v7575
        %v7895 = vpop.f32.mrf.mxu0
        %v7896 = vadd.f32 0.0, %v7895
        %v7897 = vpop.f32.mrf.mxu0
        %v7898 = vpop.f32.mrf.mxu0
        %v7899 = vpop.f32.mrf.mxu0
        %7900 = vdwg.mxu0
        %7901 = vmatprep.subr.bf16.mxu0 0
        %7902 = vmatpush1.bf16.msra.mxu0 %v6065
        %7903 = vmatprep.subr.bf16.mxu0 0
        %7904 = vmatpush1.bf16.msra.mxu0 %v6063
        %7905 = vmatprep.subr.bf16.mxu0 0
        %7906 = vmatpush1.bf16.msra.mxu0 %v5945
        %7907 = vmatprep.subr.bf16.mxu0 0
        %7908 = vmatpush1.bf16.msra.mxu0 %v5943
        %7909 = vmatprep.subr.bf16.mxu0 0
        %7910 = vmatpush1.bf16.msra.mxu0 %v5825
        %7911 = vmatprep.subr.bf16.mxu0 0
        %7912 = vmatpush1.bf16.msra.mxu0 %v5823
        %7913 = vmatprep.subr.bf16.mxu0 0
        %7914 = vmatpush1.bf16.msra.mxu0 %v5723
        %7915 = vmatprep.subr.bf16.mxu0 0
        %7916 = vmatpush1.bf16.msra.mxu0 %v5722
        %7917 = vmatprep.subr.bf16.mxu0 0
        %7918 = vmatpush2.bf16.msra.mxu0 0
        %7919 = vmatprep.subr.bf16.mxu0 0
        %7920 = vmatpush2.bf16.msra.mxu0 0
        %7921 = vmatprep.subr.bf16.mxu0 0
        %7922 = vmatpush2.bf16.msra.mxu0 0
        %7923 = vmatprep.subr.bf16.mxu0 0
        %7924 = vmatpush2.bf16.msra.mxu0 0
        %7925 = vmatprep.subr.bf16.mxu0 0
        %7926 = vmatpush2.bf16.msra.mxu0 0
        %7927 = vmatprep.subr.bf16.mxu0 0
        %7928 = vmatpush2.bf16.msra.mxu0 0
        %7929 = vmatprep.subr.bf16.mxu0 0
        %7930 = vmatpush2.bf16.msra.mxu0 %v6185
        %7931 = vmatprep.subr.bf16.mxu0 0
        %7932 = vmatpush2.bf16.msra.mxu0 %v6183
        %7933 = vmatprep.mubr.bf16.mxu0 %v7579
        %7934 = vmatmul.mubr.bf16.gmra.mxu0 %v7575
        %v7935 = vpop.f32.mrf.mxu0
        %v7936 = vadd.f32 0.0, %v7935
        %v7937 = vpop.f32.mrf.mxu0
        %v7938 = vpop.f32.mrf.mxu0
        %v7939 = vpop.f32.mrf.mxu0
        %7940 = vdwg.mxu0
        %7941 = vmatprep.subr.bf16.mxu0 0
        %7942 = vmatpush1.bf16.msra.mxu0 %v6069
        %7943 = vmatprep.subr.bf16.mxu0 0
        %7944 = vmatpush1.bf16.msra.mxu0 %v6067
        %7945 = vmatprep.subr.bf16.mxu0 0
        %7946 = vmatpush1.bf16.msra.mxu0 %v5949
        %7947 = vmatprep.subr.bf16.mxu0 0
        %7948 = vmatpush1.bf16.msra.mxu0 %v5947
        %7949 = vmatprep.subr.bf16.mxu0 0
        %7950 = vmatpush1.bf16.msra.mxu0 %v5829
        %7951 = vmatprep.subr.bf16.mxu0 0
        %7952 = vmatpush1.bf16.msra.mxu0 %v5827
        %7953 = vmatprep.subr.bf16.mxu0 0
        %7954 = vmatpush1.bf16.msra.mxu0 %v5725
        %7955 = vmatprep.subr.bf16.mxu0 0
        %7956 = vmatpush1.bf16.msra.mxu0 %v5724
        %7957 = vmatprep.subr.bf16.mxu0 0
        %7958 = vmatpush2.bf16.msra.mxu0 0
        %7959 = vmatprep.subr.bf16.mxu0 0
        %7960 = vmatpush2.bf16.msra.mxu0 0
        %7961 = vmatprep.subr.bf16.mxu0 0
        %7962 = vmatpush2.bf16.msra.mxu0 0
        %7963 = vmatprep.subr.bf16.mxu0 0
        %7964 = vmatpush2.bf16.msra.mxu0 0
        %7965 = vmatprep.subr.bf16.mxu0 0
        %7966 = vmatpush2.bf16.msra.mxu0 0
        %7967 = vmatprep.subr.bf16.mxu0 0
        %7968 = vmatpush2.bf16.msra.mxu0 0
        %7969 = vmatprep.subr.bf16.mxu0 0
        %7970 = vmatpush2.bf16.msra.mxu0 %v6189
        %7971 = vmatprep.subr.bf16.mxu0 0
        %7972 = vmatpush2.bf16.msra.mxu0 %v6187
        %7973 = vmatprep.mubr.bf16.mxu0 %v7579
        %7974 = vmatmul.mubr.bf16.gmra.mxu0 %v7575
        %v7975 = vpop.f32.mrf.mxu0
        %v7976 = vadd.f32 0.0, %v7975
        %v7977 = vpop.f32.mrf.mxu0
        %v7978 = vpop.f32.mrf.mxu0
        %v7979 = vpop.f32.mrf.mxu0
        %7980 = vdwg.mxu0
        %7981 = vmatprep.subr.bf16.mxu0 0
        %7982 = vmatpush1.bf16.msra.mxu0 %v6073
        %7983 = vmatprep.subr.bf16.mxu0 0
        %7984 = vmatpush1.bf16.msra.mxu0 %v6071
        %7985 = vmatprep.subr.bf16.mxu0 0
        %7986 = vmatpush1.bf16.msra.mxu0 %v5953
        %7987 = vmatprep.subr.bf16.mxu0 0
        %7988 = vmatpush1.bf16.msra.mxu0 %v5951
        %7989 = vmatprep.subr.bf16.mxu0 0
        %7990 = vmatpush1.bf16.msra.mxu0 %v5833
        %7991 = vmatprep.subr.bf16.mxu0 0
        %7992 = vmatpush1.bf16.msra.mxu0 %v5831
        %7993 = vmatprep.subr.bf16.mxu0 0
        %7994 = vmatpush1.bf16.msra.mxu0 %v5727
        %7995 = vmatprep.subr.bf16.mxu0 0
        %7996 = vmatpush1.bf16.msra.mxu0 %v5726
        %7997 = vmatprep.subr.bf16.mxu0 0
        %7998 = vmatpush2.bf16.msra.mxu0 0
        %7999 = vmatprep.subr.bf16.mxu0 0
        %8000 = vmatpush2.bf16.msra.mxu0 0
        %8001 = vmatprep.subr.bf16.mxu0 0
        %8002 = vmatpush2.bf16.msra.mxu0 0
        %8003 = vmatprep.subr.bf16.mxu0 0
        %8004 = vmatpush2.bf16.msra.mxu0 0
        %8005 = vmatprep.subr.bf16.mxu0 0
        %8006 = vmatpush2.bf16.msra.mxu0 0
        %8007 = vmatprep.subr.bf16.mxu0 0
        %8008 = vmatpush2.bf16.msra.mxu0 0
        %8009 = vmatprep.subr.bf16.mxu0 0
        %8010 = vmatpush2.bf16.msra.mxu0 %v6193
        %8011 = vmatprep.subr.bf16.mxu0 0
        %8012 = vmatpush2.bf16.msra.mxu0 %v6191
        %8013 = vmatprep.mubr.bf16.mxu0 %v7579
        %8014 = vmatmul.mubr.bf16.gmra.mxu0 %v7575
        %v8015 = vpop.f32.mrf.mxu0
        %v8016 = vadd.f32 0.0, %v8015
        %v8017 = vpop.f32.mrf.mxu0
        %v8018 = vpop.f32.mrf.mxu0
        %v8019 = vpop.f32.mrf.mxu0
        %8020 = vdwg.mxu0
        %8021 = vmatprep.subr.bf16.mxu0 0
        %8022 = vmatpush1.bf16.msra.mxu0 %v6077
        %8023 = vmatprep.subr.bf16.mxu0 0
        %8024 = vmatpush1.bf16.msra.mxu0 %v6075
        %8025 = vmatprep.subr.bf16.mxu0 0
        %8026 = vmatpush1.bf16.msra.mxu0 %v5957
        %8027 = vmatprep.subr.bf16.mxu0 0
        %8028 = vmatpush1.bf16.msra.mxu0 %v5955
        %8029 = vmatprep.subr.bf16.mxu0 0
        %8030 = vmatpush1.bf16.msra.mxu0 %v5837
        %8031 = vmatprep.subr.bf16.mxu0 0
        %8032 = vmatpush1.bf16.msra.mxu0 %v5835
        %8033 = vmatprep.subr.bf16.mxu0 0
        %8034 = vmatpush1.bf16.msra.mxu0 %v5729
        %8035 = vmatprep.subr.bf16.mxu0 0
        %8036 = vmatpush1.bf16.msra.mxu0 %v5728
        %8037 = vmatprep.subr.bf16.mxu0 0
        %8038 = vmatpush2.bf16.msra.mxu0 0
        %8039 = vmatprep.subr.bf16.mxu0 0
        %8040 = vmatpush2.bf16.msra.mxu0 0
        %8041 = vmatprep.subr.bf16.mxu0 0
        %8042 = vmatpush2.bf16.msra.mxu0 0
        %8043 = vmatprep.subr.bf16.mxu0 0
        %8044 = vmatpush2.bf16.msra.mxu0 0
        %8045 = vmatprep.subr.bf16.mxu0 0
        %8046 = vmatpush2.bf16.msra.mxu0 0
        %8047 = vmatprep.subr.bf16.mxu0 0
        %8048 = vmatpush2.bf16.msra.mxu0 0
        %8049 = vmatprep.subr.bf16.mxu0 0
        %8050 = vmatpush2.bf16.msra.mxu0 %v6197
        %8051 = vmatprep.subr.bf16.mxu0 0
        %8052 = vmatpush2.bf16.msra.mxu0 %v6195
        %8053 = vmatprep.mubr.bf16.mxu0 %v7579
        %8054 = vmatmul.mubr.bf16.gmra.mxu0 %v7575
        %v8055 = vpop.f32.mrf.mxu0
        %v8056 = vadd.f32 0.0, %v8055
        %v8057 = vpop.f32.mrf.mxu0
        %v8058 = vpop.f32.mrf.mxu0
        %v8059 = vpop.f32.mrf.mxu0
        %8060 = vdwg.mxu0
        %8061 = vmatprep.subr.bf16.mxu0 0
        %8062 = vmatpush1.bf16.msra.mxu0 %v6081
        %8063 = vmatprep.subr.bf16.mxu0 0
        %8064 = vmatpush1.bf16.msra.mxu0 %v6079
        %8065 = vmatprep.subr.bf16.mxu0 0
        %8066 = vmatpush1.bf16.msra.mxu0 %v5961
        %8067 = vmatprep.subr.bf16.mxu0 0
        %8068 = vmatpush1.bf16.msra.mxu0 %v5959
        %8069 = vmatprep.subr.bf16.mxu0 0
        %8070 = vmatpush1.bf16.msra.mxu0 %v5841
        %8071 = vmatprep.subr.bf16.mxu0 0
        %8072 = vmatpush1.bf16.msra.mxu0 %v5839
        %8073 = vmatprep.subr.bf16.mxu0 0
        %8074 = vmatpush1.bf16.msra.mxu0 %v5731
        %8075 = vmatprep.subr.bf16.mxu0 0
        %8076 = vmatpush1.bf16.msra.mxu0 %v5730
        %8077 = vmatprep.subr.bf16.mxu0 0
        %8078 = vmatpush2.bf16.msra.mxu0 0
        %8079 = vmatprep.subr.bf16.mxu0 0
        %8080 = vmatpush2.bf16.msra.mxu0 0
        %8081 = vmatprep.subr.bf16.mxu0 0
        %8082 = vmatpush2.bf16.msra.mxu0 0
        %8083 = vmatprep.subr.bf16.mxu0 0
        %8084 = vmatpush2.bf16.msra.mxu0 0
        %8085 = vmatprep.subr.bf16.mxu0 0
        %8086 = vmatpush2.bf16.msra.mxu0 0
        %8087 = vmatprep.subr.bf16.mxu0 0
        %8088 = vmatpush2.bf16.msra.mxu0 0
        %8089 = vmatprep.subr.bf16.mxu0 0
        %8090 = vmatpush2.bf16.msra.mxu0 %v6201
        %8091 = vmatprep.subr.bf16.mxu0 0
        %8092 = vmatpush2.bf16.msra.mxu0 %v6199
        %8093 = vmatprep.mubr.bf16.mxu0 %v7579
        %8094 = vmatmul.mubr.bf16.gmra.mxu0 %v7575
        %v8095 = vpop.f32.mrf.mxu0
        %v8096 = vadd.f32 0.0, %v8095
        %v8097 = vpop.f32.mrf.mxu0
        %v8098 = vpop.f32.mrf.mxu0
        %v8099 = vpop.f32.mrf.mxu0
        %8100 = vdwg.mxu0
        %8101 = vmatprep.subr.bf16.mxu0 0
        %8102 = vmatpush1.bf16.msra.mxu0 %v6085
        %8103 = vmatprep.subr.bf16.mxu0 0
        %8104 = vmatpush1.bf16.msra.mxu0 %v6083
        %8105 = vmatprep.subr.bf16.mxu0 0
        %8106 = vmatpush1.bf16.msra.mxu0 %v5965
        %8107 = vmatprep.subr.bf16.mxu0 0
        %8108 = vmatpush1.bf16.msra.mxu0 %v5963
        %8109 = vmatprep.subr.bf16.mxu0 0
        %8110 = vmatpush1.bf16.msra.mxu0 %v5845
        %8111 = vmatprep.subr.bf16.mxu0 0
        %8112 = vmatpush1.bf16.msra.mxu0 %v5843
        %8113 = vmatprep.subr.bf16.mxu0 0
        %8114 = vmatpush1.bf16.msra.mxu0 %v5733
        %8115 = vmatprep.subr.bf16.mxu0 0
        %8116 = vmatpush1.bf16.msra.mxu0 %v5732
        %8117 = vmatprep.subr.bf16.mxu0 0
        %8118 = vmatpush2.bf16.msra.mxu0 0
        %8119 = vmatprep.subr.bf16.mxu0 0
        %8120 = vmatpush2.bf16.msra.mxu0 0
        %8121 = vmatprep.subr.bf16.mxu0 0
        %8122 = vmatpush2.bf16.msra.mxu0 0
        %8123 = vmatprep.subr.bf16.mxu0 0
        %8124 = vmatpush2.bf16.msra.mxu0 0
        %8125 = vmatprep.subr.bf16.mxu0 0
        %8126 = vmatpush2.bf16.msra.mxu0 0
        %8127 = vmatprep.subr.bf16.mxu0 0
        %8128 = vmatpush2.bf16.msra.mxu0 0
        %8129 = vmatprep.subr.bf16.mxu0 0
        %8130 = vmatpush2.bf16.msra.mxu0 %v6205
        %8131 = vmatprep.subr.bf16.mxu0 0
        %8132 = vmatpush2.bf16.msra.mxu0 %v6203
        %8133 = vmatprep.mubr.bf16.mxu0 %v7579
        %8134 = vmatmul.mubr.bf16.gmra.mxu0 %v7575
        %v8135 = vpop.f32.mrf.mxu0
        %v8136 = vadd.f32 0.0, %v8135
        %v8137 = vpop.f32.mrf.mxu0
        %v8138 = vpop.f32.mrf.mxu0
        %v8139 = vpop.f32.mrf.mxu0
        %8140 = vdwg.mxu0
        %8141 = vmatprep.subr.bf16.mxu0 0
        %8142 = vmatpush1.bf16.msra.mxu0 %v6089
        %8143 = vmatprep.subr.bf16.mxu0 0
        %8144 = vmatpush1.bf16.msra.mxu0 %v6087
        %8145 = vmatprep.subr.bf16.mxu0 0
        %8146 = vmatpush1.bf16.msra.mxu0 %v5969
        %8147 = vmatprep.subr.bf16.mxu0 0
        %8148 = vmatpush1.bf16.msra.mxu0 %v5967
        %8149 = vmatprep.subr.bf16.mxu0 0
        %8150 = vmatpush1.bf16.msra.mxu0 %v5849
        %8151 = vmatprep.subr.bf16.mxu0 0
        %8152 = vmatpush1.bf16.msra.mxu0 %v5847
        %8153 = vmatprep.subr.bf16.mxu0 0
        %8154 = vmatpush1.bf16.msra.mxu0 %v5735
        %8155 = vmatprep.subr.bf16.mxu0 0
        %8156 = vmatpush1.bf16.msra.mxu0 %v5734
        %8157 = vmatprep.subr.bf16.mxu0 0
        %8158 = vmatpush2.bf16.msra.mxu0 0
        %8159 = vmatprep.subr.bf16.mxu0 0
        %8160 = vmatpush2.bf16.msra.mxu0 0
        %8161 = vmatprep.subr.bf16.mxu0 0
        %8162 = vmatpush2.bf16.msra.mxu0 0
        %8163 = vmatprep.subr.bf16.mxu0 0
        %8164 = vmatpush2.bf16.msra.mxu0 0
        %8165 = vmatprep.subr.bf16.mxu0 0
        %8166 = vmatpush2.bf16.msra.mxu0 0
        %8167 = vmatprep.subr.bf16.mxu0 0
        %8168 = vmatpush2.bf16.msra.mxu0 0
        %8169 = vmatprep.subr.bf16.mxu0 0
        %8170 = vmatpush2.bf16.msra.mxu0 %v6209
        %8171 = vmatprep.subr.bf16.mxu0 0
        %8172 = vmatpush2.bf16.msra.mxu0 %v6207
        %8173 = vmatprep.mubr.bf16.mxu0 %v7579
        %8174 = vmatmul.mubr.bf16.gmra.mxu0 %v7575
        %v8175 = vpop.f32.mrf.mxu0
        %v8176 = vadd.f32 0.0, %v8175
        %v8177 = vpop.f32.mrf.mxu0
        %v8178 = vpop.f32.mrf.mxu0
        %v8179 = vpop.f32.mrf.mxu0
        %8180 = vdwg.mxu0
        %8181 = vmatprep.subr.bf16.mxu0 0
        %8182 = vmatpush1.bf16.msra.mxu0 %v6093
        %8183 = vmatprep.subr.bf16.mxu0 0
        %8184 = vmatpush1.bf16.msra.mxu0 %v6091
        %8185 = vmatprep.subr.bf16.mxu0 0
        %8186 = vmatpush1.bf16.msra.mxu0 %v5973
        %8187 = vmatprep.subr.bf16.mxu0 0
        %8188 = vmatpush1.bf16.msra.mxu0 %v5971
        %8189 = vmatprep.subr.bf16.mxu0 0
        %8190 = vmatpush1.bf16.msra.mxu0 %v5853
        %8191 = vmatprep.subr.bf16.mxu0 0
        %8192 = vmatpush1.bf16.msra.mxu0 %v5851
        %8193 = vmatprep.subr.bf16.mxu0 0
        %8194 = vmatpush1.bf16.msra.mxu0 %v5737
        %8195 = vmatprep.subr.bf16.mxu0 0
        %8196 = vmatpush1.bf16.msra.mxu0 %v5736
        %8197 = vmatprep.subr.bf16.mxu0 0
        %8198 = vmatpush2.bf16.msra.mxu0 0
        %8199 = vmatprep.subr.bf16.mxu0 0
        %8200 = vmatpush2.bf16.msra.mxu0 0
        %8201 = vmatprep.subr.bf16.mxu0 0
        %8202 = vmatpush2.bf16.msra.mxu0 0
        %8203 = vmatprep.subr.bf16.mxu0 0
        %8204 = vmatpush2.bf16.msra.mxu0 0
        %8205 = vmatprep.subr.bf16.mxu0 0
        %8206 = vmatpush2.bf16.msra.mxu0 0
        %8207 = vmatprep.subr.bf16.mxu0 0
        %8208 = vmatpush2.bf16.msra.mxu0 0
        %8209 = vmatprep.subr.bf16.mxu0 0
        %8210 = vmatpush2.bf16.msra.mxu0 %v6213
        %8211 = vmatprep.subr.bf16.mxu0 0
        %8212 = vmatpush2.bf16.msra.mxu0 %v6211
        %8213 = vmatprep.mubr.bf16.mxu0 %v7579
        %8214 = vmatmul.mubr.bf16.gmra.mxu0 %v7575
        %v8215 = vpop.f32.mrf.mxu0
        %v8216 = vadd.f32 0.0, %v8215
        %v8217 = vpop.f32.mrf.mxu0
        %v8218 = vpop.f32.mrf.mxu0
        %v8219 = vpop.f32.mrf.mxu0
        %8220 = vdwg.mxu0
        %v8221 = vadd.f32 %v6964, %v7616
        %v8222 = vadd.f32 %v7004, %v7656
        %v8223 = vadd.f32 %v7044, %v7696
        %v8224 = vadd.f32 %v7084, %v7736
        %v8225 = vadd.f32 %v7124, %v7776
        %v8226 = vadd.f32 %v7164, %v7816
        %v8227 = vadd.f32 %v7204, %v7856
        %v8228 = vadd.f32 %v7244, %v7896
        %v8229 = vadd.f32 %v7284, %v7936
        %v8230 = vadd.f32 %v7324, %v7976
        %v8231 = vadd.f32 %v7364, %v8016
        %v8232 = vadd.f32 %v7404, %v8056
        %v8233 = vadd.f32 %v7444, %v8096
        %v8234 = vadd.f32 %v7484, %v8136
        %v8235 = vadd.f32 %v7524, %v8176
        %v8236 = vadd.f32 %v7564, %v8216
        %v8237 = vld [vmem:[%s5] sm:$0x22]
        %v8239 = vunpack.c.l.b16 %v8237
        %v8240 = vunpack.c.h.b16 %v8237
        %v8241 = vpack.c.b16 %v8239, %v8239
        %v8242 = vpack.c.b16 %v8240, %v8240
        %v8244 = vshrl.u32 %v8241, 16
        %v8246 = vrot.slane %v8244, 1
        %v8248 = vshrl.u32 %v8242, 16
        %v8250 = vrot.slane %v8248, 1
        %v8253 = vsel %vm6276, %v8250, 0
        %8255 = vmatprep.subr.bf16.mxu0 0
        %8256 = vmatpush1.bf16.msra.mxu0 %v6037
        %8257 = vmatprep.subr.bf16.mxu0 0
        %8258 = vmatpush1.bf16.msra.mxu0 %v6035
        %8259 = vmatprep.subr.bf16.mxu0 0
        %8260 = vmatpush1.bf16.msra.mxu0 %v5917
        %8261 = vmatprep.subr.bf16.mxu0 0
        %8262 = vmatpush1.bf16.msra.mxu0 %v5915
        %8263 = vmatprep.subr.bf16.mxu0 0
        %8264 = vmatpush1.bf16.msra.mxu0 %v5797
        %8265 = vmatprep.subr.bf16.mxu0 0
        %8266 = vmatpush1.bf16.msra.mxu0 %v5795
        %8267 = vmatprep.subr.bf16.mxu0 0
        %8268 = vmatpush1.bf16.msra.mxu0 %v5709
        %8269 = vmatprep.subr.bf16.mxu0 0
        %8270 = vmatpush1.bf16.msra.mxu0 %v5708
        %8271 = vmatprep.subr.bf16.mxu0 0
        %8272 = vmatpush2.bf16.msra.mxu0 0
        %8273 = vmatprep.subr.bf16.mxu0 0
        %8274 = vmatpush2.bf16.msra.mxu0 0
        %8275 = vmatprep.subr.bf16.mxu0 0
        %8276 = vmatpush2.bf16.msra.mxu0 0
        %8277 = vmatprep.subr.bf16.mxu0 0
        %8278 = vmatpush2.bf16.msra.mxu0 0
        %8279 = vmatprep.subr.bf16.mxu0 0
        %8280 = vmatpush2.bf16.msra.mxu0 0
        %8281 = vmatprep.subr.bf16.mxu0 0
        %8282 = vmatpush2.bf16.msra.mxu0 0
        %8283 = vmatprep.subr.bf16.mxu0 0
        %8284 = vmatpush2.bf16.msra.mxu0 %v6157
        %8285 = vmatprep.subr.bf16.mxu0 0
        %8286 = vmatpush2.bf16.msra.mxu0 %v6155
        %8287 = vmatprep.mubr.bf16.mxu0 %v8253
        %8288 = vmatmul.mubr.bf16.gmra.mxu0 %v8246
        %v8289 = vpop.f32.mrf.mxu0
        %v8290 = vadd.f32 0.0, %v8289
        %v8291 = vpop.f32.mrf.mxu0
        %v8292 = vpop.f32.mrf.mxu0
        %v8293 = vpop.f32.mrf.mxu0
        %8294 = vdwg.mxu0
        %8295 = vmatprep.subr.bf16.mxu0 0
        %8296 = vmatpush1.bf16.msra.mxu0 %v6041
        %8297 = vmatprep.subr.bf16.mxu0 0
        %8298 = vmatpush1.bf16.msra.mxu0 %v6039
        %8299 = vmatprep.subr.bf16.mxu0 0
        %8300 = vmatpush1.bf16.msra.mxu0 %v5921
        %8301 = vmatprep.subr.bf16.mxu0 0
        %8302 = vmatpush1.bf16.msra.mxu0 %v5919
        %8303 = vmatprep.subr.bf16.mxu0 0
        %8304 = vmatpush1.bf16.msra.mxu0 %v5801
        %8305 = vmatprep.subr.bf16.mxu0 0
        %8306 = vmatpush1.bf16.msra.mxu0 %v5799
        %8307 = vmatprep.subr.bf16.mxu0 0
        %8308 = vmatpush1.bf16.msra.mxu0 %v5711
        %8309 = vmatprep.subr.bf16.mxu0 0
        %8310 = vmatpush1.bf16.msra.mxu0 %v5710
        %8311 = vmatprep.subr.bf16.mxu0 0
        %8312 = vmatpush2.bf16.msra.mxu0 0
        %8313 = vmatprep.subr.bf16.mxu0 0
        %8314 = vmatpush2.bf16.msra.mxu0 0
        %8315 = vmatprep.subr.bf16.mxu0 0
        %8316 = vmatpush2.bf16.msra.mxu0 0
        %8317 = vmatprep.subr.bf16.mxu0 0
        %8318 = vmatpush2.bf16.msra.mxu0 0
        %8319 = vmatprep.subr.bf16.mxu0 0
        %8320 = vmatpush2.bf16.msra.mxu0 0
        %8321 = vmatprep.subr.bf16.mxu0 0
        %8322 = vmatpush2.bf16.msra.mxu0 0
        %8323 = vmatprep.subr.bf16.mxu0 0
        %8324 = vmatpush2.bf16.msra.mxu0 %v6161
        %8325 = vmatprep.subr.bf16.mxu0 0
        %8326 = vmatpush2.bf16.msra.mxu0 %v6159
        %8327 = vmatprep.mubr.bf16.mxu0 %v8253
        %8328 = vmatmul.mubr.bf16.gmra.mxu0 %v8246
        %v8329 = vpop.f32.mrf.mxu0
        %v8330 = vadd.f32 0.0, %v8329
        %v8331 = vpop.f32.mrf.mxu0
        %v8332 = vpop.f32.mrf.mxu0
        %v8333 = vpop.f32.mrf.mxu0
        %8334 = vdwg.mxu0
        %8335 = vmatprep.subr.bf16.mxu0 0
        %8336 = vmatpush1.bf16.msra.mxu0 %v6045
        %8337 = vmatprep.subr.bf16.mxu0 0
        %8338 = vmatpush1.bf16.msra.mxu0 %v6043
        %8339 = vmatprep.subr.bf16.mxu0 0
        %8340 = vmatpush1.bf16.msra.mxu0 %v5925
        %8341 = vmatprep.subr.bf16.mxu0 0
        %8342 = vmatpush1.bf16.msra.mxu0 %v5923
        %8343 = vmatprep.subr.bf16.mxu0 0
        %8344 = vmatpush1.bf16.msra.mxu0 %v5805
        %8345 = vmatprep.subr.bf16.mxu0 0
        %8346 = vmatpush1.bf16.msra.mxu0 %v5803
        %8347 = vmatprep.subr.bf16.mxu0 0
        %8348 = vmatpush1.bf16.msra.mxu0 %v5713
        %8349 = vmatprep.subr.bf16.mxu0 0
        %8350 = vmatpush1.bf16.msra.mxu0 %v5712
        %8351 = vmatprep.subr.bf16.mxu0 0
        %8352 = vmatpush2.bf16.msra.mxu0 0
        %8353 = vmatprep.subr.bf16.mxu0 0
        %8354 = vmatpush2.bf16.msra.mxu0 0
        %8355 = vmatprep.subr.bf16.mxu0 0
        %8356 = vmatpush2.bf16.msra.mxu0 0
        %8357 = vmatprep.subr.bf16.mxu0 0
        %8358 = vmatpush2.bf16.msra.mxu0 0
        %8359 = vmatprep.subr.bf16.mxu0 0
        %8360 = vmatpush2.bf16.msra.mxu0 0
        %8361 = vmatprep.subr.bf16.mxu0 0
        %8362 = vmatpush2.bf16.msra.mxu0 0
        %8363 = vmatprep.subr.bf16.mxu0 0
        %8364 = vmatpush2.bf16.msra.mxu0 %v6165
        %8365 = vmatprep.subr.bf16.mxu0 0
        %8366 = vmatpush2.bf16.msra.mxu0 %v6163
        %8367 = vmatprep.mubr.bf16.mxu0 %v8253
        %8368 = vmatmul.mubr.bf16.gmra.mxu0 %v8246
        %v8369 = vpop.f32.mrf.mxu0
        %v8370 = vadd.f32 0.0, %v8369
        %v8371 = vpop.f32.mrf.mxu0
        %v8372 = vpop.f32.mrf.mxu0
        %v8373 = vpop.f32.mrf.mxu0
        %8374 = vdwg.mxu0
        %8375 = vmatprep.subr.bf16.mxu0 0
        %8376 = vmatpush1.bf16.msra.mxu0 %v6049
        %8377 = vmatprep.subr.bf16.mxu0 0
        %8378 = vmatpush1.bf16.msra.mxu0 %v6047
        %8379 = vmatprep.subr.bf16.mxu0 0
        %8380 = vmatpush1.bf16.msra.mxu0 %v5929
        %8381 = vmatprep.subr.bf16.mxu0 0
        %8382 = vmatpush1.bf16.msra.mxu0 %v5927
        %8383 = vmatprep.subr.bf16.mxu0 0
        %8384 = vmatpush1.bf16.msra.mxu0 %v5809
        %8385 = vmatprep.subr.bf16.mxu0 0
        %8386 = vmatpush1.bf16.msra.mxu0 %v5807
        %8387 = vmatprep.subr.bf16.mxu0 0
        %8388 = vmatpush1.bf16.msra.mxu0 %v5715
        %8389 = vmatprep.subr.bf16.mxu0 0
        %8390 = vmatpush1.bf16.msra.mxu0 %v5714
        %8391 = vmatprep.subr.bf16.mxu0 0
        %8392 = vmatpush2.bf16.msra.mxu0 0
        %8393 = vmatprep.subr.bf16.mxu0 0
        %8394 = vmatpush2.bf16.msra.mxu0 0
        %8395 = vmatprep.subr.bf16.mxu0 0
        %8396 = vmatpush2.bf16.msra.mxu0 0
        %8397 = vmatprep.subr.bf16.mxu0 0
        %8398 = vmatpush2.bf16.msra.mxu0 0
        %8399 = vmatprep.subr.bf16.mxu0 0
        %8400 = vmatpush2.bf16.msra.mxu0 0
        %8401 = vmatprep.subr.bf16.mxu0 0
        %8402 = vmatpush2.bf16.msra.mxu0 0
        %8403 = vmatprep.subr.bf16.mxu0 0
        %8404 = vmatpush2.bf16.msra.mxu0 %v6169
        %8405 = vmatprep.subr.bf16.mxu0 0
        %8406 = vmatpush2.bf16.msra.mxu0 %v6167
        %8407 = vmatprep.mubr.bf16.mxu0 %v8253
        %8408 = vmatmul.mubr.bf16.gmra.mxu0 %v8246
        %v8409 = vpop.f32.mrf.mxu0
        %v8410 = vadd.f32 0.0, %v8409
        %v8411 = vpop.f32.mrf.mxu0
        %v8412 = vpop.f32.mrf.mxu0
        %v8413 = vpop.f32.mrf.mxu0
        %8414 = vdwg.mxu0
        %8415 = vmatprep.subr.bf16.mxu0 0
        %8416 = vmatpush1.bf16.msra.mxu0 %v6053
        %8417 = vmatprep.subr.bf16.mxu0 0
        %8418 = vmatpush1.bf16.msra.mxu0 %v6051
        %8419 = vmatprep.subr.bf16.mxu0 0
        %8420 = vmatpush1.bf16.msra.mxu0 %v5933
        %8421 = vmatprep.subr.bf16.mxu0 0
        %8422 = vmatpush1.bf16.msra.mxu0 %v5931
        %8423 = vmatprep.subr.bf16.mxu0 0
        %8424 = vmatpush1.bf16.msra.mxu0 %v5813
        %8425 = vmatprep.subr.bf16.mxu0 0
        %8426 = vmatpush1.bf16.msra.mxu0 %v5811
        %8427 = vmatprep.subr.bf16.mxu0 0
        %8428 = vmatpush1.bf16.msra.mxu0 %v5717
        %8429 = vmatprep.subr.bf16.mxu0 0
        %8430 = vmatpush1.bf16.msra.mxu0 %v5716
        %8431 = vmatprep.subr.bf16.mxu0 0
        %8432 = vmatpush2.bf16.msra.mxu0 0
        %8433 = vmatprep.subr.bf16.mxu0 0
        %8434 = vmatpush2.bf16.msra.mxu0 0
        %8435 = vmatprep.subr.bf16.mxu0 0
        %8436 = vmatpush2.bf16.msra.mxu0 0
        %8437 = vmatprep.subr.bf16.mxu0 0
        %8438 = vmatpush2.bf16.msra.mxu0 0
        %8439 = vmatprep.subr.bf16.mxu0 0
        %8440 = vmatpush2.bf16.msra.mxu0 0
        %8441 = vmatprep.subr.bf16.mxu0 0
        %8442 = vmatpush2.bf16.msra.mxu0 0
        %8443 = vmatprep.subr.bf16.mxu0 0
        %8444 = vmatpush2.bf16.msra.mxu0 %v6173
        %8445 = vmatprep.subr.bf16.mxu0 0
        %8446 = vmatpush2.bf16.msra.mxu0 %v6171
        %8447 = vmatprep.mubr.bf16.mxu0 %v8253
        %8448 = vmatmul.mubr.bf16.gmra.mxu0 %v8246
        %v8449 = vpop.f32.mrf.mxu0
        %v8450 = vadd.f32 0.0, %v8449
        %v8451 = vpop.f32.mrf.mxu0
        %v8452 = vpop.f32.mrf.mxu0
        %v8453 = vpop.f32.mrf.mxu0
        %8454 = vdwg.mxu0
        %8455 = vmatprep.subr.bf16.mxu0 0
        %8456 = vmatpush1.bf16.msra.mxu0 %v6057
        %8457 = vmatprep.subr.bf16.mxu0 0
        %8458 = vmatpush1.bf16.msra.mxu0 %v6055
        %8459 = vmatprep.subr.bf16.mxu0 0
        %8460 = vmatpush1.bf16.msra.mxu0 %v5937
        %8461 = vmatprep.subr.bf16.mxu0 0
        %8462 = vmatpush1.bf16.msra.mxu0 %v5935
        %8463 = vmatprep.subr.bf16.mxu0 0
        %8464 = vmatpush1.bf16.msra.mxu0 %v5817
        %8465 = vmatprep.subr.bf16.mxu0 0
        %8466 = vmatpush1.bf16.msra.mxu0 %v5815
        %8467 = vmatprep.subr.bf16.mxu0 0
        %8468 = vmatpush1.bf16.msra.mxu0 %v5719
        %8469 = vmatprep.subr.bf16.mxu0 0
        %8470 = vmatpush1.bf16.msra.mxu0 %v5718
        %8471 = vmatprep.subr.bf16.mxu0 0
        %8472 = vmatpush2.bf16.msra.mxu0 0
        %8473 = vmatprep.subr.bf16.mxu0 0
        %8474 = vmatpush2.bf16.msra.mxu0 0
        %8475 = vmatprep.subr.bf16.mxu0 0
        %8476 = vmatpush2.bf16.msra.mxu0 0
        %8477 = vmatprep.subr.bf16.mxu0 0
        %8478 = vmatpush2.bf16.msra.mxu0 0
        %8479 = vmatprep.subr.bf16.mxu0 0
        %8480 = vmatpush2.bf16.msra.mxu0 0
        %8481 = vmatprep.subr.bf16.mxu0 0
        %8482 = vmatpush2.bf16.msra.mxu0 0
        %8483 = vmatprep.subr.bf16.mxu0 0
        %8484 = vmatpush2.bf16.msra.mxu0 %v6177
        %8485 = vmatprep.subr.bf16.mxu0 0
        %8486 = vmatpush2.bf16.msra.mxu0 %v6175
        %8487 = vmatprep.mubr.bf16.mxu0 %v8253
        %8488 = vmatmul.mubr.bf16.gmra.mxu0 %v8246
        %v8489 = vpop.f32.mrf.mxu0
        %v8490 = vadd.f32 0.0, %v8489
        %v8491 = vpop.f32.mrf.mxu0
        %v8492 = vpop.f32.mrf.mxu0
        %v8493 = vpop.f32.mrf.mxu0
        %8494 = vdwg.mxu0
        %8495 = vmatprep.subr.bf16.mxu0 0
        %8496 = vmatpush1.bf16.msra.mxu0 %v6061
        %8497 = vmatprep.subr.bf16.mxu0 0
        %8498 = vmatpush1.bf16.msra.mxu0 %v6059
        %8499 = vmatprep.subr.bf16.mxu0 0
        %8500 = vmatpush1.bf16.msra.mxu0 %v5941
        %8501 = vmatprep.subr.bf16.mxu0 0
        %8502 = vmatpush1.bf16.msra.mxu0 %v5939
        %8503 = vmatprep.subr.bf16.mxu0 0
        %8504 = vmatpush1.bf16.msra.mxu0 %v5821
        %8505 = vmatprep.subr.bf16.mxu0 0
        %8506 = vmatpush1.bf16.msra.mxu0 %v5819
        %8507 = vmatprep.subr.bf16.mxu0 0
        %8508 = vmatpush1.bf16.msra.mxu0 %v5721
        %8509 = vmatprep.subr.bf16.mxu0 0
        %8510 = vmatpush1.bf16.msra.mxu0 %v5720
        %8511 = vmatprep.subr.bf16.mxu0 0
        %8512 = vmatpush2.bf16.msra.mxu0 0
        %8513 = vmatprep.subr.bf16.mxu0 0
        %8514 = vmatpush2.bf16.msra.mxu0 0
        %8515 = vmatprep.subr.bf16.mxu0 0
        %8516 = vmatpush2.bf16.msra.mxu0 0
        %8517 = vmatprep.subr.bf16.mxu0 0
        %8518 = vmatpush2.bf16.msra.mxu0 0
        %8519 = vmatprep.subr.bf16.mxu0 0
        %8520 = vmatpush2.bf16.msra.mxu0 0
        %8521 = vmatprep.subr.bf16.mxu0 0
        %8522 = vmatpush2.bf16.msra.mxu0 0
        %8523 = vmatprep.subr.bf16.mxu0 0
        %8524 = vmatpush2.bf16.msra.mxu0 %v6181
        %8525 = vmatprep.subr.bf16.mxu0 0
        %8526 = vmatpush2.bf16.msra.mxu0 %v6179
        %8527 = vmatprep.mubr.bf16.mxu0 %v8253
        %8528 = vmatmul.mubr.bf16.gmra.mxu0 %v8246
        %v8529 = vpop.f32.mrf.mxu0
        %v8530 = vadd.f32 0.0, %v8529
        %v8531 = vpop.f32.mrf.mxu0
        %v8532 = vpop.f32.mrf.mxu0
        %v8533 = vpop.f32.mrf.mxu0
        %8534 = vdwg.mxu0
        %8535 = vmatprep.subr.bf16.mxu0 0
        %8536 = vmatpush1.bf16.msra.mxu0 %v6065
        %8537 = vmatprep.subr.bf16.mxu0 0
        %8538 = vmatpush1.bf16.msra.mxu0 %v6063
        %8539 = vmatprep.subr.bf16.mxu0 0
        %8540 = vmatpush1.bf16.msra.mxu0 %v5945
        %8541 = vmatprep.subr.bf16.mxu0 0
        %8542 = vmatpush1.bf16.msra.mxu0 %v5943
        %8543 = vmatprep.subr.bf16.mxu0 0
        %8544 = vmatpush1.bf16.msra.mxu0 %v5825
        %8545 = vmatprep.subr.bf16.mxu0 0
        %8546 = vmatpush1.bf16.msra.mxu0 %v5823
        %8547 = vmatprep.subr.bf16.mxu0 0
        %8548 = vmatpush1.bf16.msra.mxu0 %v5723
        %8549 = vmatprep.subr.bf16.mxu0 0
        %8550 = vmatpush1.bf16.msra.mxu0 %v5722
        %8551 = vmatprep.subr.bf16.mxu0 0
        %8552 = vmatpush2.bf16.msra.mxu0 0
        %8553 = vmatprep.subr.bf16.mxu0 0
        %8554 = vmatpush2.bf16.msra.mxu0 0
        %8555 = vmatprep.subr.bf16.mxu0 0
        %8556 = vmatpush2.bf16.msra.mxu0 0
        %8557 = vmatprep.subr.bf16.mxu0 0
        %8558 = vmatpush2.bf16.msra.mxu0 0
        %8559 = vmatprep.subr.bf16.mxu0 0
        %8560 = vmatpush2.bf16.msra.mxu0 0
        %8561 = vmatprep.subr.bf16.mxu0 0
        %8562 = vmatpush2.bf16.msra.mxu0 0
        %8563 = vmatprep.subr.bf16.mxu0 0
        %8564 = vmatpush2.bf16.msra.mxu0 %v6185
        %8565 = vmatprep.subr.bf16.mxu0 0
        %8566 = vmatpush2.bf16.msra.mxu0 %v6183
        %8567 = vmatprep.mubr.bf16.mxu0 %v8253
        %8568 = vmatmul.mubr.bf16.gmra.mxu0 %v8246
        %v8569 = vpop.f32.mrf.mxu0
        %v8570 = vadd.f32 0.0, %v8569
        %v8571 = vpop.f32.mrf.mxu0
        %v8572 = vpop.f32.mrf.mxu0
        %v8573 = vpop.f32.mrf.mxu0
        %8574 = vdwg.mxu0
        %8575 = vmatprep.subr.bf16.mxu0 0
        %8576 = vmatpush1.bf16.msra.mxu0 %v6069
        %8577 = vmatprep.subr.bf16.mxu0 0
        %8578 = vmatpush1.bf16.msra.mxu0 %v6067
        %8579 = vmatprep.subr.bf16.mxu0 0
        %8580 = vmatpush1.bf16.msra.mxu0 %v5949
        %8581 = vmatprep.subr.bf16.mxu0 0
        %8582 = vmatpush1.bf16.msra.mxu0 %v5947
        %8583 = vmatprep.subr.bf16.mxu0 0
        %8584 = vmatpush1.bf16.msra.mxu0 %v5829
        %8585 = vmatprep.subr.bf16.mxu0 0
        %8586 = vmatpush1.bf16.msra.mxu0 %v5827
        %8587 = vmatprep.subr.bf16.mxu0 0
        %8588 = vmatpush1.bf16.msra.mxu0 %v5725
        %8589 = vmatprep.subr.bf16.mxu0 0
        %8590 = vmatpush1.bf16.msra.mxu0 %v5724
        %8591 = vmatprep.subr.bf16.mxu0 0
        %8592 = vmatpush2.bf16.msra.mxu0 0
        %8593 = vmatprep.subr.bf16.mxu0 0
        %8594 = vmatpush2.bf16.msra.mxu0 0
        %8595 = vmatprep.subr.bf16.mxu0 0
        %8596 = vmatpush2.bf16.msra.mxu0 0
        %8597 = vmatprep.subr.bf16.mxu0 0
        %8598 = vmatpush2.bf16.msra.mxu0 0
        %8599 = vmatprep.subr.bf16.mxu0 0
        %8600 = vmatpush2.bf16.msra.mxu0 0
        %8601 = vmatprep.subr.bf16.mxu0 0
        %8602 = vmatpush2.bf16.msra.mxu0 0
        %8603 = vmatprep.subr.bf16.mxu0 0
        %8604 = vmatpush2.bf16.msra.mxu0 %v6189
        %8605 = vmatprep.subr.bf16.mxu0 0
        %8606 = vmatpush2.bf16.msra.mxu0 %v6187
        %8607 = vmatprep.mubr.bf16.mxu0 %v8253
        %8608 = vmatmul.mubr.bf16.gmra.mxu0 %v8246
        %v8609 = vpop.f32.mrf.mxu0
        %v8610 = vadd.f32 0.0, %v8609
        %v8611 = vpop.f32.mrf.mxu0
        %v8612 = vpop.f32.mrf.mxu0
        %v8613 = vpop.f32.mrf.mxu0
        %8614 = vdwg.mxu0
        %8615 = vmatprep.subr.bf16.mxu0 0
        %8616 = vmatpush1.bf16.msra.mxu0 %v6073
        %8617 = vmatprep.subr.bf16.mxu0 0
        %8618 = vmatpush1.bf16.msra.mxu0 %v6071
        %8619 = vmatprep.subr.bf16.mxu0 0
        %8620 = vmatpush1.bf16.msra.mxu0 %v5953
        %8621 = vmatprep.subr.bf16.mxu0 0
        %8622 = vmatpush1.bf16.msra.mxu0 %v5951
        %8623 = vmatprep.subr.bf16.mxu0 0
        %8624 = vmatpush1.bf16.msra.mxu0 %v5833
        %8625 = vmatprep.subr.bf16.mxu0 0
        %8626 = vmatpush1.bf16.msra.mxu0 %v5831
        %8627 = vmatprep.subr.bf16.mxu0 0
        %8628 = vmatpush1.bf16.msra.mxu0 %v5727
        %8629 = vmatprep.subr.bf16.mxu0 0
        %8630 = vmatpush1.bf16.msra.mxu0 %v5726
        %8631 = vmatprep.subr.bf16.mxu0 0
        %8632 = vmatpush2.bf16.msra.mxu0 0
        %8633 = vmatprep.subr.bf16.mxu0 0
        %8634 = vmatpush2.bf16.msra.mxu0 0
        %8635 = vmatprep.subr.bf16.mxu0 0
        %8636 = vmatpush2.bf16.msra.mxu0 0
        %8637 = vmatprep.subr.bf16.mxu0 0
        %8638 = vmatpush2.bf16.msra.mxu0 0
        %8639 = vmatprep.subr.bf16.mxu0 0
        %8640 = vmatpush2.bf16.msra.mxu0 0
        %8641 = vmatprep.subr.bf16.mxu0 0
        %8642 = vmatpush2.bf16.msra.mxu0 0
        %8643 = vmatprep.subr.bf16.mxu0 0
        %8644 = vmatpush2.bf16.msra.mxu0 %v6193
        %8645 = vmatprep.subr.bf16.mxu0 0
        %8646 = vmatpush2.bf16.msra.mxu0 %v6191
        %8647 = vmatprep.mubr.bf16.mxu0 %v8253
        %8648 = vmatmul.mubr.bf16.gmra.mxu0 %v8246
        %v8649 = vpop.f32.mrf.mxu0
        %v8650 = vadd.f32 0.0, %v8649
        %v8651 = vpop.f32.mrf.mxu0
        %v8652 = vpop.f32.mrf.mxu0
        %v8653 = vpop.f32.mrf.mxu0
        %8654 = vdwg.mxu0
        %8655 = vmatprep.subr.bf16.mxu0 0
        %8656 = vmatpush1.bf16.msra.mxu0 %v6077
        %8657 = vmatprep.subr.bf16.mxu0 0
        %8658 = vmatpush1.bf16.msra.mxu0 %v6075
        %8659 = vmatprep.subr.bf16.mxu0 0
        %8660 = vmatpush1.bf16.msra.mxu0 %v5957
        %8661 = vmatprep.subr.bf16.mxu0 0
        %8662 = vmatpush1.bf16.msra.mxu0 %v5955
        %8663 = vmatprep.subr.bf16.mxu0 0
        %8664 = vmatpush1.bf16.msra.mxu0 %v5837
        %8665 = vmatprep.subr.bf16.mxu0 0
        %8666 = vmatpush1.bf16.msra.mxu0 %v5835
        %8667 = vmatprep.subr.bf16.mxu0 0
        %8668 = vmatpush1.bf16.msra.mxu0 %v5729
        %8669 = vmatprep.subr.bf16.mxu0 0
        %8670 = vmatpush1.bf16.msra.mxu0 %v5728
        %8671 = vmatprep.subr.bf16.mxu0 0
        %8672 = vmatpush2.bf16.msra.mxu0 0
        %8673 = vmatprep.subr.bf16.mxu0 0
        %8674 = vmatpush2.bf16.msra.mxu0 0
        %8675 = vmatprep.subr.bf16.mxu0 0
        %8676 = vmatpush2.bf16.msra.mxu0 0
        %8677 = vmatprep.subr.bf16.mxu0 0
        %8678 = vmatpush2.bf16.msra.mxu0 0
        %8679 = vmatprep.subr.bf16.mxu0 0
        %8680 = vmatpush2.bf16.msra.mxu0 0
        %8681 = vmatprep.subr.bf16.mxu0 0
        %8682 = vmatpush2.bf16.msra.mxu0 0
        %8683 = vmatprep.subr.bf16.mxu0 0
        %8684 = vmatpush2.bf16.msra.mxu0 %v6197
        %8685 = vmatprep.subr.bf16.mxu0 0
        %8686 = vmatpush2.bf16.msra.mxu0 %v6195
        %8687 = vmatprep.mubr.bf16.mxu0 %v8253
        %8688 = vmatmul.mubr.bf16.gmra.mxu0 %v8246
        %v8689 = vpop.f32.mrf.mxu0
        %v8690 = vadd.f32 0.0, %v8689
        %v8691 = vpop.f32.mrf.mxu0
        %v8692 = vpop.f32.mrf.mxu0
        %v8693 = vpop.f32.mrf.mxu0
        %8694 = vdwg.mxu0
        %8695 = vmatprep.subr.bf16.mxu0 0
        %8696 = vmatpush1.bf16.msra.mxu0 %v6081
        %8697 = vmatprep.subr.bf16.mxu0 0
        %8698 = vmatpush1.bf16.msra.mxu0 %v6079
        %8699 = vmatprep.subr.bf16.mxu0 0
        %8700 = vmatpush1.bf16.msra.mxu0 %v5961
        %8701 = vmatprep.subr.bf16.mxu0 0
        %8702 = vmatpush1.bf16.msra.mxu0 %v5959
        %8703 = vmatprep.subr.bf16.mxu0 0
        %8704 = vmatpush1.bf16.msra.mxu0 %v5841
        %8705 = vmatprep.subr.bf16.mxu0 0
        %8706 = vmatpush1.bf16.msra.mxu0 %v5839
        %8707 = vmatprep.subr.bf16.mxu0 0
        %8708 = vmatpush1.bf16.msra.mxu0 %v5731
        %8709 = vmatprep.subr.bf16.mxu0 0
        %8710 = vmatpush1.bf16.msra.mxu0 %v5730
        %8711 = vmatprep.subr.bf16.mxu0 0
        %8712 = vmatpush2.bf16.msra.mxu0 0
        %8713 = vmatprep.subr.bf16.mxu0 0
        %8714 = vmatpush2.bf16.msra.mxu0 0
        %8715 = vmatprep.subr.bf16.mxu0 0
        %8716 = vmatpush2.bf16.msra.mxu0 0
        %8717 = vmatprep.subr.bf16.mxu0 0
        %8718 = vmatpush2.bf16.msra.mxu0 0
        %8719 = vmatprep.subr.bf16.mxu0 0
        %8720 = vmatpush2.bf16.msra.mxu0 0
        %8721 = vmatprep.subr.bf16.mxu0 0
        %8722 = vmatpush2.bf16.msra.mxu0 0
        %8723 = vmatprep.subr.bf16.mxu0 0
        %8724 = vmatpush2.bf16.msra.mxu0 %v6201
        %8725 = vmatprep.subr.bf16.mxu0 0
        %8726 = vmatpush2.bf16.msra.mxu0 %v6199
        %8727 = vmatprep.mubr.bf16.mxu0 %v8253
        %8728 = vmatmul.mubr.bf16.gmra.mxu0 %v8246
        %v8729 = vpop.f32.mrf.mxu0
        %v8730 = vadd.f32 0.0, %v8729
        %v8731 = vpop.f32.mrf.mxu0
        %v8732 = vpop.f32.mrf.mxu0
        %v8733 = vpop.f32.mrf.mxu0
        %8734 = vdwg.mxu0
        %8735 = vmatprep.subr.bf16.mxu0 0
        %8736 = vmatpush1.bf16.msra.mxu0 %v6085
        %8737 = vmatprep.subr.bf16.mxu0 0
        %8738 = vmatpush1.bf16.msra.mxu0 %v6083
        %8739 = vmatprep.subr.bf16.mxu0 0
        %8740 = vmatpush1.bf16.msra.mxu0 %v5965
        %8741 = vmatprep.subr.bf16.mxu0 0
        %8742 = vmatpush1.bf16.msra.mxu0 %v5963
        %8743 = vmatprep.subr.bf16.mxu0 0
        %8744 = vmatpush1.bf16.msra.mxu0 %v5845
        %8745 = vmatprep.subr.bf16.mxu0 0
        %8746 = vmatpush1.bf16.msra.mxu0 %v5843
        %8747 = vmatprep.subr.bf16.mxu0 0
        %8748 = vmatpush1.bf16.msra.mxu0 %v5733
        %8749 = vmatprep.subr.bf16.mxu0 0
        %8750 = vmatpush1.bf16.msra.mxu0 %v5732
        %8751 = vmatprep.subr.bf16.mxu0 0
        %8752 = vmatpush2.bf16.msra.mxu0 0
        %8753 = vmatprep.subr.bf16.mxu0 0
        %8754 = vmatpush2.bf16.msra.mxu0 0
        %8755 = vmatprep.subr.bf16.mxu0 0
        %8756 = vmatpush2.bf16.msra.mxu0 0
        %8757 = vmatprep.subr.bf16.mxu0 0
        %8758 = vmatpush2.bf16.msra.mxu0 0
        %8759 = vmatprep.subr.bf16.mxu0 0
        %8760 = vmatpush2.bf16.msra.mxu0 0
        %8761 = vmatprep.subr.bf16.mxu0 0
        %8762 = vmatpush2.bf16.msra.mxu0 0
        %8763 = vmatprep.subr.bf16.mxu0 0
        %8764 = vmatpush2.bf16.msra.mxu0 %v6205
        %8765 = vmatprep.subr.bf16.mxu0 0
        %8766 = vmatpush2.bf16.msra.mxu0 %v6203
        %8767 = vmatprep.mubr.bf16.mxu0 %v8253
        %8768 = vmatmul.mubr.bf16.gmra.mxu0 %v8246
        %v8769 = vpop.f32.mrf.mxu0
        %v8770 = vadd.f32 0.0, %v8769
        %v8771 = vpop.f32.mrf.mxu0
        %v8772 = vpop.f32.mrf.mxu0
        %v8773 = vpop.f32.mrf.mxu0
        %8774 = vdwg.mxu0
        %8775 = vmatprep.subr.bf16.mxu0 0
        %8776 = vmatpush1.bf16.msra.mxu0 %v6089
        %8777 = vmatprep.subr.bf16.mxu0 0
        %8778 = vmatpush1.bf16.msra.mxu0 %v6087
        %8779 = vmatprep.subr.bf16.mxu0 0
        %8780 = vmatpush1.bf16.msra.mxu0 %v5969
        %8781 = vmatprep.subr.bf16.mxu0 0
        %8782 = vmatpush1.bf16.msra.mxu0 %v5967
        %8783 = vmatprep.subr.bf16.mxu0 0
        %8784 = vmatpush1.bf16.msra.mxu0 %v5849
        %8785 = vmatprep.subr.bf16.mxu0 0
        %8786 = vmatpush1.bf16.msra.mxu0 %v5847
        %8787 = vmatprep.subr.bf16.mxu0 0
        %8788 = vmatpush1.bf16.msra.mxu0 %v5735
        %8789 = vmatprep.subr.bf16.mxu0 0
        %8790 = vmatpush1.bf16.msra.mxu0 %v5734
        %8791 = vmatprep.subr.bf16.mxu0 0
        %8792 = vmatpush2.bf16.msra.mxu0 0
        %8793 = vmatprep.subr.bf16.mxu0 0
        %8794 = vmatpush2.bf16.msra.mxu0 0
        %8795 = vmatprep.subr.bf16.mxu0 0
        %8796 = vmatpush2.bf16.msra.mxu0 0
        %8797 = vmatprep.subr.bf16.mxu0 0
        %8798 = vmatpush2.bf16.msra.mxu0 0
        %8799 = vmatprep.subr.bf16.mxu0 0
        %8800 = vmatpush2.bf16.msra.mxu0 0
        %8801 = vmatprep.subr.bf16.mxu0 0
        %8802 = vmatpush2.bf16.msra.mxu0 0
        %8803 = vmatprep.subr.bf16.mxu0 0
        %8804 = vmatpush2.bf16.msra.mxu0 %v6209
        %8805 = vmatprep.subr.bf16.mxu0 0
        %8806 = vmatpush2.bf16.msra.mxu0 %v6207
        %8807 = vmatprep.mubr.bf16.mxu0 %v8253
        %8808 = vmatmul.mubr.bf16.gmra.mxu0 %v8246
        %v8809 = vpop.f32.mrf.mxu0
        %v8810 = vadd.f32 0.0, %v8809
        %v8811 = vpop.f32.mrf.mxu0
        %v8812 = vpop.f32.mrf.mxu0
        %v8813 = vpop.f32.mrf.mxu0
        %8814 = vdwg.mxu0
        %8815 = vmatprep.subr.bf16.mxu0 0
        %8816 = vmatpush1.bf16.msra.mxu0 %v6093
        %8817 = vmatprep.subr.bf16.mxu0 0
        %8818 = vmatpush1.bf16.msra.mxu0 %v6091
        %8819 = vmatprep.subr.bf16.mxu0 0
        %8820 = vmatpush1.bf16.msra.mxu0 %v5973
        %8821 = vmatprep.subr.bf16.mxu0 0
        %8822 = vmatpush1.bf16.msra.mxu0 %v5971
        %8823 = vmatprep.subr.bf16.mxu0 0
        %8824 = vmatpush1.bf16.msra.mxu0 %v5853
        %8825 = vmatprep.subr.bf16.mxu0 0
        %8826 = vmatpush1.bf16.msra.mxu0 %v5851
        %8827 = vmatprep.subr.bf16.mxu0 0
        %8828 = vmatpush1.bf16.msra.mxu0 %v5737
        %8829 = vmatprep.subr.bf16.mxu0 0
        %8830 = vmatpush1.bf16.msra.mxu0 %v5736
        %8831 = vmatprep.subr.bf16.mxu0 0
        %8832 = vmatpush2.bf16.msra.mxu0 0
        %8833 = vmatprep.subr.bf16.mxu0 0
        %8834 = vmatpush2.bf16.msra.mxu0 0
        %8835 = vmatprep.subr.bf16.mxu0 0
        %8836 = vmatpush2.bf16.msra.mxu0 0
        %8837 = vmatprep.subr.bf16.mxu0 0
        %8838 = vmatpush2.bf16.msra.mxu0 0
        %8839 = vmatprep.subr.bf16.mxu0 0
        %8840 = vmatpush2.bf16.msra.mxu0 0
        %8841 = vmatprep.subr.bf16.mxu0 0
        %8842 = vmatpush2.bf16.msra.mxu0 0
        %8843 = vmatprep.subr.bf16.mxu0 0
        %8844 = vmatpush2.bf16.msra.mxu0 %v6213
        %8845 = vmatprep.subr.bf16.mxu0 0
        %8846 = vmatpush2.bf16.msra.mxu0 %v6211
        %8847 = vmatprep.mubr.bf16.mxu0 %v8253
        %8848 = vmatmul.mubr.bf16.gmra.mxu0 %v8246
        %v8849 = vpop.f32.mrf.mxu0
        %v8850 = vadd.f32 0.0, %v8849
        %v8851 = vpop.f32.mrf.mxu0
        %v8852 = vpop.f32.mrf.mxu0
        %v8853 = vpop.f32.mrf.mxu0
        %8854 = vdwg.mxu0
        %8855 = vmatprep.subr.bf16.mxu0 0
        %8856 = vmatpush1.bf16.msra.mxu0 %v6097
        %8857 = vmatprep.subr.bf16.mxu0 0
        %8858 = vmatpush1.bf16.msra.mxu0 %v6095
        %8859 = vmatprep.subr.bf16.mxu0 0
        %8860 = vmatpush1.bf16.msra.mxu0 %v5977
        %8861 = vmatprep.subr.bf16.mxu0 0
        %8862 = vmatpush1.bf16.msra.mxu0 %v5975
        %8863 = vmatprep.subr.bf16.mxu0 0
        %8864 = vmatpush1.bf16.msra.mxu0 %v5857
        %8865 = vmatprep.subr.bf16.mxu0 0
        %8866 = vmatpush1.bf16.msra.mxu0 %v5855
        %8867 = vmatprep.subr.bf16.mxu0 0
        %8868 = vmatpush1.bf16.msra.mxu0 %v5739
        %8869 = vmatprep.subr.bf16.mxu0 0
        %8870 = vmatpush1.bf16.msra.mxu0 %v5738
        %8871 = vmatprep.subr.bf16.mxu0 0
        %8872 = vmatpush2.bf16.msra.mxu0 0
        %8873 = vmatprep.subr.bf16.mxu0 0
        %8874 = vmatpush2.bf16.msra.mxu0 0
        %8875 = vmatprep.subr.bf16.mxu0 0
        %8876 = vmatpush2.bf16.msra.mxu0 0
        %8877 = vmatprep.subr.bf16.mxu0 0
        %8878 = vmatpush2.bf16.msra.mxu0 0
        %8879 = vmatprep.subr.bf16.mxu0 0
        %8880 = vmatpush2.bf16.msra.mxu0 0
        %8881 = vmatprep.subr.bf16.mxu0 0
        %8882 = vmatpush2.bf16.msra.mxu0 0
        %8883 = vmatprep.subr.bf16.mxu0 0
        %8884 = vmatpush2.bf16.msra.mxu0 %v6217
        %8885 = vmatprep.subr.bf16.mxu0 0
        %8886 = vmatpush2.bf16.msra.mxu0 %v6215
        %8887 = vmatprep.mubr.bf16.mxu0 %v8253
        %8888 = vmatmul.mubr.bf16.gmra.mxu0 %v8246
        %v8889 = vpop.f32.mrf.mxu0
        %v8890 = vadd.f32 0.0, %v8889
        %v8891 = vpop.f32.mrf.mxu0
        %v8892 = vpop.f32.mrf.mxu0
        %v8893 = vpop.f32.mrf.mxu0
        %8894 = vdwg.mxu0
        %v8895 = vadd.f32 %v8221, %v8290
        %v8896 = vadd.f32 %v8222, %v8330
        %v8897 = vadd.f32 %v8223, %v8370
        %v8898 = vadd.f32 %v8224, %v8410
        %v8899 = vadd.f32 %v8225, %v8450
        %v8900 = vadd.f32 %v8226, %v8490
        %v8901 = vadd.f32 %v8227, %v8530
        %v8902 = vadd.f32 %v8228, %v8570
        %v8903 = vadd.f32 %v8229, %v8610
        %v8904 = vadd.f32 %v8230, %v8650
        %v8905 = vadd.f32 %v8231, %v8690
        %v8906 = vadd.f32 %v8232, %v8730
        %v8907 = vadd.f32 %v8233, %v8770
        %v8908 = vadd.f32 %v8234, %v8810
        %v8909 = vadd.f32 %v8235, %v8850
        %v8910 = vadd.f32 %v8236, %v8890
        %v8911 = vld [vmem:[%s5] sm:$0x44]
        %v8913 = vunpack.c.l.b16 %v8911
        %v8914 = vunpack.c.h.b16 %v8911
        %v8915 = vpack.c.b16 %v8913, %v8913
        %v8916 = vpack.c.b16 %v8914, %v8914
        %v8917 = vrot.slane %v8915, 2
        %v8918 = vrot.slane %v8916, 2
        %v8921 = vsel %vm6276, %v8918, 0
        %8923 = vmatprep.subr.bf16.mxu0 0
        %8924 = vmatpush1.bf16.msra.mxu0 %v6041
        %8925 = vmatprep.subr.bf16.mxu0 0
        %8926 = vmatpush1.bf16.msra.mxu0 %v6039
        %8927 = vmatprep.subr.bf16.mxu0 0
        %8928 = vmatpush1.bf16.msra.mxu0 %v5921
        %8929 = vmatprep.subr.bf16.mxu0 0
        %8930 = vmatpush1.bf16.msra.mxu0 %v5919
        %8931 = vmatprep.subr.bf16.mxu0 0
        %8932 = vmatpush1.bf16.msra.mxu0 %v5801
        %8933 = vmatprep.subr.bf16.mxu0 0
        %8934 = vmatpush1.bf16.msra.mxu0 %v5799
        %8935 = vmatprep.subr.bf16.mxu0 0
        %8936 = vmatpush1.bf16.msra.mxu0 %v5711
        %8937 = vmatprep.subr.bf16.mxu0 0
        %8938 = vmatpush1.bf16.msra.mxu0 %v5710
        %8939 = vmatprep.subr.bf16.mxu0 0
        %8940 = vmatpush2.bf16.msra.mxu0 0
        %8941 = vmatprep.subr.bf16.mxu0 0
        %8942 = vmatpush2.bf16.msra.mxu0 0
        %8943 = vmatprep.subr.bf16.mxu0 0
        %8944 = vmatpush2.bf16.msra.mxu0 0
        %8945 = vmatprep.subr.bf16.mxu0 0
        %8946 = vmatpush2.bf16.msra.mxu0 0
        %8947 = vmatprep.subr.bf16.mxu0 0
        %8948 = vmatpush2.bf16.msra.mxu0 0
        %8949 = vmatprep.subr.bf16.mxu0 0
        %8950 = vmatpush2.bf16.msra.mxu0 0
        %8951 = vmatprep.subr.bf16.mxu0 0
        %8952 = vmatpush2.bf16.msra.mxu0 %v6161
        %8953 = vmatprep.subr.bf16.mxu0 0
        %8954 = vmatpush2.bf16.msra.mxu0 %v6159
        %8955 = vmatprep.mubr.bf16.mxu0 %v8921
        %8956 = vmatmul.mubr.bf16.gmra.mxu0 %v8917
        %v8957 = vpop.f32.mrf.mxu0
        %v8958 = vadd.f32 0.0, %v8957
        %v8959 = vpop.f32.mrf.mxu0
        %v8960 = vpop.f32.mrf.mxu0
        %v8961 = vpop.f32.mrf.mxu0
        %8962 = vdwg.mxu0
        %8963 = vmatprep.subr.bf16.mxu0 0
        %8964 = vmatpush1.bf16.msra.mxu0 %v6045
        %8965 = vmatprep.subr.bf16.mxu0 0
        %8966 = vmatpush1.bf16.msra.mxu0 %v6043
        %8967 = vmatprep.subr.bf16.mxu0 0
        %8968 = vmatpush1.bf16.msra.mxu0 %v5925
        %8969 = vmatprep.subr.bf16.mxu0 0
        %8970 = vmatpush1.bf16.msra.mxu0 %v5923
        %8971 = vmatprep.subr.bf16.mxu0 0
        %8972 = vmatpush1.bf16.msra.mxu0 %v5805
        %8973 = vmatprep.subr.bf16.mxu0 0
        %8974 = vmatpush1.bf16.msra.mxu0 %v5803
        %8975 = vmatprep.subr.bf16.mxu0 0
        %8976 = vmatpush1.bf16.msra.mxu0 %v5713
        %8977 = vmatprep.subr.bf16.mxu0 0
        %8978 = vmatpush1.bf16.msra.mxu0 %v5712
        %8979 = vmatprep.subr.bf16.mxu0 0
        %8980 = vmatpush2.bf16.msra.mxu0 0
        %8981 = vmatprep.subr.bf16.mxu0 0
        %8982 = vmatpush2.bf16.msra.mxu0 0
        %8983 = vmatprep.subr.bf16.mxu0 0
        %8984 = vmatpush2.bf16.msra.mxu0 0
        %8985 = vmatprep.subr.bf16.mxu0 0
        %8986 = vmatpush2.bf16.msra.mxu0 0
        %8987 = vmatprep.subr.bf16.mxu0 0
        %8988 = vmatpush2.bf16.msra.mxu0 0
        %8989 = vmatprep.subr.bf16.mxu0 0
        %8990 = vmatpush2.bf16.msra.mxu0 0
        %8991 = vmatprep.subr.bf16.mxu0 0
        %8992 = vmatpush2.bf16.msra.mxu0 %v6165
        %8993 = vmatprep.subr.bf16.mxu0 0
        %8994 = vmatpush2.bf16.msra.mxu0 %v6163
        %8995 = vmatprep.mubr.bf16.mxu0 %v8921
        %8996 = vmatmul.mubr.bf16.gmra.mxu0 %v8917
        %v8997 = vpop.f32.mrf.mxu0
        %v8998 = vadd.f32 0.0, %v8997
        %v8999 = vpop.f32.mrf.mxu0
        %v9000 = vpop.f32.mrf.mxu0
        %v9001 = vpop.f32.mrf.mxu0
        %9002 = vdwg.mxu0
        %9003 = vmatprep.subr.bf16.mxu0 0
        %9004 = vmatpush1.bf16.msra.mxu0 %v6049
        %9005 = vmatprep.subr.bf16.mxu0 0
        %9006 = vmatpush1.bf16.msra.mxu0 %v6047
        %9007 = vmatprep.subr.bf16.mxu0 0
        %9008 = vmatpush1.bf16.msra.mxu0 %v5929
        %9009 = vmatprep.subr.bf16.mxu0 0
        %9010 = vmatpush1.bf16.msra.mxu0 %v5927
        %9011 = vmatprep.subr.bf16.mxu0 0
        %9012 = vmatpush1.bf16.msra.mxu0 %v5809
        %9013 = vmatprep.subr.bf16.mxu0 0
        %9014 = vmatpush1.bf16.msra.mxu0 %v5807
        %9015 = vmatprep.subr.bf16.mxu0 0
        %9016 = vmatpush1.bf16.msra.mxu0 %v5715
        %9017 = vmatprep.subr.bf16.mxu0 0
        %9018 = vmatpush1.bf16.msra.mxu0 %v5714
        %9019 = vmatprep.subr.bf16.mxu0 0
        %9020 = vmatpush2.bf16.msra.mxu0 0
        %9021 = vmatprep.subr.bf16.mxu0 0
        %9022 = vmatpush2.bf16.msra.mxu0 0
        %9023 = vmatprep.subr.bf16.mxu0 0
        %9024 = vmatpush2.bf16.msra.mxu0 0
        %9025 = vmatprep.subr.bf16.mxu0 0
        %9026 = vmatpush2.bf16.msra.mxu0 0
        %9027 = vmatprep.subr.bf16.mxu0 0
        %9028 = vmatpush2.bf16.msra.mxu0 0
        %9029 = vmatprep.subr.bf16.mxu0 0
        %9030 = vmatpush2.bf16.msra.mxu0 0
        %9031 = vmatprep.subr.bf16.mxu0 0
        %9032 = vmatpush2.bf16.msra.mxu0 %v6169
        %9033 = vmatprep.subr.bf16.mxu0 0
        %9034 = vmatpush2.bf16.msra.mxu0 %v6167
        %9035 = vmatprep.mubr.bf16.mxu0 %v8921
        %9036 = vmatmul.mubr.bf16.gmra.mxu0 %v8917
        %v9037 = vpop.f32.mrf.mxu0
        %v9038 = vadd.f32 0.0, %v9037
        %v9039 = vpop.f32.mrf.mxu0
        %v9040 = vpop.f32.mrf.mxu0
        %v9041 = vpop.f32.mrf.mxu0
        %9042 = vdwg.mxu0
        %9043 = vmatprep.subr.bf16.mxu0 0
        %9044 = vmatpush1.bf16.msra.mxu0 %v6053
        %9045 = vmatprep.subr.bf16.mxu0 0
        %9046 = vmatpush1.bf16.msra.mxu0 %v6051
        %9047 = vmatprep.subr.bf16.mxu0 0
        %9048 = vmatpush1.bf16.msra.mxu0 %v5933
        %9049 = vmatprep.subr.bf16.mxu0 0
        %9050 = vmatpush1.bf16.msra.mxu0 %v5931
        %9051 = vmatprep.subr.bf16.mxu0 0
        %9052 = vmatpush1.bf16.msra.mxu0 %v5813
        %9053 = vmatprep.subr.bf16.mxu0 0
        %9054 = vmatpush1.bf16.msra.mxu0 %v5811
        %9055 = vmatprep.subr.bf16.mxu0 0
        %9056 = vmatpush1.bf16.msra.mxu0 %v5717
        %9057 = vmatprep.subr.bf16.mxu0 0
        %9058 = vmatpush1.bf16.msra.mxu0 %v5716
        %9059 = vmatprep.subr.bf16.mxu0 0
        %9060 = vmatpush2.bf16.msra.mxu0 0
        %9061 = vmatprep.subr.bf16.mxu0 0
        %9062 = vmatpush2.bf16.msra.mxu0 0
        %9063 = vmatprep.subr.bf16.mxu0 0
        %9064 = vmatpush2.bf16.msra.mxu0 0
        %9065 = vmatprep.subr.bf16.mxu0 0
        %9066 = vmatpush2.bf16.msra.mxu0 0
        %9067 = vmatprep.subr.bf16.mxu0 0
        %9068 = vmatpush2.bf16.msra.mxu0 0
        %9069 = vmatprep.subr.bf16.mxu0 0
        %9070 = vmatpush2.bf16.msra.mxu0 0
        %9071 = vmatprep.subr.bf16.mxu0 0
        %9072 = vmatpush2.bf16.msra.mxu0 %v6173
        %9073 = vmatprep.subr.bf16.mxu0 0
        %9074 = vmatpush2.bf16.msra.mxu0 %v6171
        %9075 = vmatprep.mubr.bf16.mxu0 %v8921
        %9076 = vmatmul.mubr.bf16.gmra.mxu0 %v8917
        %v9077 = vpop.f32.mrf.mxu0
        %v9078 = vadd.f32 0.0, %v9077
        %v9079 = vpop.f32.mrf.mxu0
        %v9080 = vpop.f32.mrf.mxu0
        %v9081 = vpop.f32.mrf.mxu0
        %9082 = vdwg.mxu0
        %9083 = vmatprep.subr.bf16.mxu0 0
        %9084 = vmatpush1.bf16.msra.mxu0 %v6057
        %9085 = vmatprep.subr.bf16.mxu0 0
        %9086 = vmatpush1.bf16.msra.mxu0 %v6055
        %9087 = vmatprep.subr.bf16.mxu0 0
        %9088 = vmatpush1.bf16.msra.mxu0 %v5937
        %9089 = vmatprep.subr.bf16.mxu0 0
        %9090 = vmatpush1.bf16.msra.mxu0 %v5935
        %9091 = vmatprep.subr.bf16.mxu0 0
        %9092 = vmatpush1.bf16.msra.mxu0 %v5817
        %9093 = vmatprep.subr.bf16.mxu0 0
        %9094 = vmatpush1.bf16.msra.mxu0 %v5815
        %9095 = vmatprep.subr.bf16.mxu0 0
        %9096 = vmatpush1.bf16.msra.mxu0 %v5719
        %9097 = vmatprep.subr.bf16.mxu0 0
        %9098 = vmatpush1.bf16.msra.mxu0 %v5718
        %9099 = vmatprep.subr.bf16.mxu0 0
        %9100 = vmatpush2.bf16.msra.mxu0 0
        %9101 = vmatprep.subr.bf16.mxu0 0
        %9102 = vmatpush2.bf16.msra.mxu0 0
        %9103 = vmatprep.subr.bf16.mxu0 0
        %9104 = vmatpush2.bf16.msra.mxu0 0
        %9105 = vmatprep.subr.bf16.mxu0 0
        %9106 = vmatpush2.bf16.msra.mxu0 0
        %9107 = vmatprep.subr.bf16.mxu0 0
        %9108 = vmatpush2.bf16.msra.mxu0 0
        %9109 = vmatprep.subr.bf16.mxu0 0
        %9110 = vmatpush2.bf16.msra.mxu0 0
        %9111 = vmatprep.subr.bf16.mxu0 0
        %9112 = vmatpush2.bf16.msra.mxu0 %v6177
        %9113 = vmatprep.subr.bf16.mxu0 0
        %9114 = vmatpush2.bf16.msra.mxu0 %v6175
        %9115 = vmatprep.mubr.bf16.mxu0 %v8921
        %9116 = vmatmul.mubr.bf16.gmra.mxu0 %v8917
        %v9117 = vpop.f32.mrf.mxu0
        %v9118 = vadd.f32 0.0, %v9117
        %v9119 = vpop.f32.mrf.mxu0
        %v9120 = vpop.f32.mrf.mxu0
        %v9121 = vpop.f32.mrf.mxu0
        %9122 = vdwg.mxu0
        %9123 = vmatprep.subr.bf16.mxu0 0
        %9124 = vmatpush1.bf16.msra.mxu0 %v6061
        %9125 = vmatprep.subr.bf16.mxu0 0
        %9126 = vmatpush1.bf16.msra.mxu0 %v6059
        %9127 = vmatprep.subr.bf16.mxu0 0
        %9128 = vmatpush1.bf16.msra.mxu0 %v5941
        %9129 = vmatprep.subr.bf16.mxu0 0
        %9130 = vmatpush1.bf16.msra.mxu0 %v5939
        %9131 = vmatprep.subr.bf16.mxu0 0
        %9132 = vmatpush1.bf16.msra.mxu0 %v5821
        %9133 = vmatprep.subr.bf16.mxu0 0
        %9134 = vmatpush1.bf16.msra.mxu0 %v5819
        %9135 = vmatprep.subr.bf16.mxu0 0
        %9136 = vmatpush1.bf16.msra.mxu0 %v5721
        %9137 = vmatprep.subr.bf16.mxu0 0
        %9138 = vmatpush1.bf16.msra.mxu0 %v5720
        %9139 = vmatprep.subr.bf16.mxu0 0
        %9140 = vmatpush2.bf16.msra.mxu0 0
        %9141 = vmatprep.subr.bf16.mxu0 0
        %9142 = vmatpush2.bf16.msra.mxu0 0
        %9143 = vmatprep.subr.bf16.mxu0 0
        %9144 = vmatpush2.bf16.msra.mxu0 0
        %9145 = vmatprep.subr.bf16.mxu0 0
        %9146 = vmatpush2.bf16.msra.mxu0 0
        %9147 = vmatprep.subr.bf16.mxu0 0
        %9148 = vmatpush2.bf16.msra.mxu0 0
        %9149 = vmatprep.subr.bf16.mxu0 0
        %9150 = vmatpush2.bf16.msra.mxu0 0
        %9151 = vmatprep.subr.bf16.mxu0 0
        %9152 = vmatpush2.bf16.msra.mxu0 %v6181
        %9153 = vmatprep.subr.bf16.mxu0 0
        %9154 = vmatpush2.bf16.msra.mxu0 %v6179
        %9155 = vmatprep.mubr.bf16.mxu0 %v8921
        %9156 = vmatmul.mubr.bf16.gmra.mxu0 %v8917
        %v9157 = vpop.f32.mrf.mxu0
        %v9158 = vadd.f32 0.0, %v9157
        %v9159 = vpop.f32.mrf.mxu0
        %v9160 = vpop.f32.mrf.mxu0
        %v9161 = vpop.f32.mrf.mxu0
        %9162 = vdwg.mxu0
        %9163 = vmatprep.subr.bf16.mxu0 0
        %9164 = vmatpush1.bf16.msra.mxu0 %v6065
        %9165 = vmatprep.subr.bf16.mxu0 0
        %9166 = vmatpush1.bf16.msra.mxu0 %v6063
        %9167 = vmatprep.subr.bf16.mxu0 0
        %9168 = vmatpush1.bf16.msra.mxu0 %v5945
        %9169 = vmatprep.subr.bf16.mxu0 0
        %9170 = vmatpush1.bf16.msra.mxu0 %v5943
        %9171 = vmatprep.subr.bf16.mxu0 0
        %9172 = vmatpush1.bf16.msra.mxu0 %v5825
        %9173 = vmatprep.subr.bf16.mxu0 0
        %9174 = vmatpush1.bf16.msra.mxu0 %v5823
        %9175 = vmatprep.subr.bf16.mxu0 0
        %9176 = vmatpush1.bf16.msra.mxu0 %v5723
        %9177 = vmatprep.subr.bf16.mxu0 0
        %9178 = vmatpush1.bf16.msra.mxu0 %v5722
        %9179 = vmatprep.subr.bf16.mxu0 0
        %9180 = vmatpush2.bf16.msra.mxu0 0
        %9181 = vmatprep.subr.bf16.mxu0 0
        %9182 = vmatpush2.bf16.msra.mxu0 0
        %9183 = vmatprep.subr.bf16.mxu0 0
        %9184 = vmatpush2.bf16.msra.mxu0 0
        %9185 = vmatprep.subr.bf16.mxu0 0
        %9186 = vmatpush2.bf16.msra.mxu0 0
        %9187 = vmatprep.subr.bf16.mxu0 0
        %9188 = vmatpush2.bf16.msra.mxu0 0
        %9189 = vmatprep.subr.bf16.mxu0 0
        %9190 = vmatpush2.bf16.msra.mxu0 0
        %9191 = vmatprep.subr.bf16.mxu0 0
        %9192 = vmatpush2.bf16.msra.mxu0 %v6185
        %9193 = vmatprep.subr.bf16.mxu0 0
        %9194 = vmatpush2.bf16.msra.mxu0 %v6183
        %9195 = vmatprep.mubr.bf16.mxu0 %v8921
        %9196 = vmatmul.mubr.bf16.gmra.mxu0 %v8917
        %v9197 = vpop.f32.mrf.mxu0
        %v9198 = vadd.f32 0.0, %v9197
        %v9199 = vpop.f32.mrf.mxu0
        %v9200 = vpop.f32.mrf.mxu0
        %v9201 = vpop.f32.mrf.mxu0
        %9202 = vdwg.mxu0
        %9203 = vmatprep.subr.bf16.mxu0 0
        %9204 = vmatpush1.bf16.msra.mxu0 %v6069
        %9205 = vmatprep.subr.bf16.mxu0 0
        %9206 = vmatpush1.bf16.msra.mxu0 %v6067
        %9207 = vmatprep.subr.bf16.mxu0 0
        %9208 = vmatpush1.bf16.msra.mxu0 %v5949
        %9209 = vmatprep.subr.bf16.mxu0 0
        %9210 = vmatpush1.bf16.msra.mxu0 %v5947
        %9211 = vmatprep.subr.bf16.mxu0 0
        %9212 = vmatpush1.bf16.msra.mxu0 %v5829
        %9213 = vmatprep.subr.bf16.mxu0 0
        %9214 = vmatpush1.bf16.msra.mxu0 %v5827
        %9215 = vmatprep.subr.bf16.mxu0 0
        %9216 = vmatpush1.bf16.msra.mxu0 %v5725
        %9217 = vmatprep.subr.bf16.mxu0 0
        %9218 = vmatpush1.bf16.msra.mxu0 %v5724
        %9219 = vmatprep.subr.bf16.mxu0 0
        %9220 = vmatpush2.bf16.msra.mxu0 0
        %9221 = vmatprep.subr.bf16.mxu0 0
        %9222 = vmatpush2.bf16.msra.mxu0 0
        %9223 = vmatprep.subr.bf16.mxu0 0
        %9224 = vmatpush2.bf16.msra.mxu0 0
        %9225 = vmatprep.subr.bf16.mxu0 0
        %9226 = vmatpush2.bf16.msra.mxu0 0
        %9227 = vmatprep.subr.bf16.mxu0 0
        %9228 = vmatpush2.bf16.msra.mxu0 0
        %9229 = vmatprep.subr.bf16.mxu0 0
        %9230 = vmatpush2.bf16.msra.mxu0 0
        %9231 = vmatprep.subr.bf16.mxu0 0
        %9232 = vmatpush2.bf16.msra.mxu0 %v6189
        %9233 = vmatprep.subr.bf16.mxu0 0
        %9234 = vmatpush2.bf16.msra.mxu0 %v6187
        %9235 = vmatprep.mubr.bf16.mxu0 %v8921
        %9236 = vmatmul.mubr.bf16.gmra.mxu0 %v8917
        %v9237 = vpop.f32.mrf.mxu0
        %v9238 = vadd.f32 0.0, %v9237
        %v9239 = vpop.f32.mrf.mxu0
        %v9240 = vpop.f32.mrf.mxu0
        %v9241 = vpop.f32.mrf.mxu0
        %9242 = vdwg.mxu0
        %9243 = vmatprep.subr.bf16.mxu0 0
        %9244 = vmatpush1.bf16.msra.mxu0 %v6073
        %9245 = vmatprep.subr.bf16.mxu0 0
        %9246 = vmatpush1.bf16.msra.mxu0 %v6071
        %9247 = vmatprep.subr.bf16.mxu0 0
        %9248 = vmatpush1.bf16.msra.mxu0 %v5953
        %9249 = vmatprep.subr.bf16.mxu0 0
        %9250 = vmatpush1.bf16.msra.mxu0 %v5951
        %9251 = vmatprep.subr.bf16.mxu0 0
        %9252 = vmatpush1.bf16.msra.mxu0 %v5833
        %9253 = vmatprep.subr.bf16.mxu0 0
        %9254 = vmatpush1.bf16.msra.mxu0 %v5831
        %9255 = vmatprep.subr.bf16.mxu0 0
        %9256 = vmatpush1.bf16.msra.mxu0 %v5727
        %9257 = vmatprep.subr.bf16.mxu0 0
        %9258 = vmatpush1.bf16.msra.mxu0 %v5726
        %9259 = vmatprep.subr.bf16.mxu0 0
        %9260 = vmatpush2.bf16.msra.mxu0 0
        %9261 = vmatprep.subr.bf16.mxu0 0
        %9262 = vmatpush2.bf16.msra.mxu0 0
        %9263 = vmatprep.subr.bf16.mxu0 0
        %9264 = vmatpush2.bf16.msra.mxu0 0
        %9265 = vmatprep.subr.bf16.mxu0 0
        %9266 = vmatpush2.bf16.msra.mxu0 0
        %9267 = vmatprep.subr.bf16.mxu0 0
        %9268 = vmatpush2.bf16.msra.mxu0 0
        %9269 = vmatprep.subr.bf16.mxu0 0
        %9270 = vmatpush2.bf16.msra.mxu0 0
        %9271 = vmatprep.subr.bf16.mxu0 0
        %9272 = vmatpush2.bf16.msra.mxu0 %v6193
        %9273 = vmatprep.subr.bf16.mxu0 0
        %9274 = vmatpush2.bf16.msra.mxu0 %v6191
        %9275 = vmatprep.mubr.bf16.mxu0 %v8921
        %9276 = vmatmul.mubr.bf16.gmra.mxu0 %v8917
        %v9277 = vpop.f32.mrf.mxu0
        %v9278 = vadd.f32 0.0, %v9277
        %v9279 = vpop.f32.mrf.mxu0
        %v9280 = vpop.f32.mrf.mxu0
        %v9281 = vpop.f32.mrf.mxu0
        %9282 = vdwg.mxu0
        %9283 = vmatprep.subr.bf16.mxu0 0
        %9284 = vmatpush1.bf16.msra.mxu0 %v6077
        %9285 = vmatprep.subr.bf16.mxu0 0
        %9286 = vmatpush1.bf16.msra.mxu0 %v6075
        %9287 = vmatprep.subr.bf16.mxu0 0
        %9288 = vmatpush1.bf16.msra.mxu0 %v5957
        %9289 = vmatprep.subr.bf16.mxu0 0
        %9290 = vmatpush1.bf16.msra.mxu0 %v5955
        %9291 = vmatprep.subr.bf16.mxu0 0
        %9292 = vmatpush1.bf16.msra.mxu0 %v5837
        %9293 = vmatprep.subr.bf16.mxu0 0
        %9294 = vmatpush1.bf16.msra.mxu0 %v5835
        %9295 = vmatprep.subr.bf16.mxu0 0
        %9296 = vmatpush1.bf16.msra.mxu0 %v5729
        %9297 = vmatprep.subr.bf16.mxu0 0
        %9298 = vmatpush1.bf16.msra.mxu0 %v5728
        %9299 = vmatprep.subr.bf16.mxu0 0
        %9300 = vmatpush2.bf16.msra.mxu0 0
        %9301 = vmatprep.subr.bf16.mxu0 0
        %9302 = vmatpush2.bf16.msra.mxu0 0
        %9303 = vmatprep.subr.bf16.mxu0 0
        %9304 = vmatpush2.bf16.msra.mxu0 0
        %9305 = vmatprep.subr.bf16.mxu0 0
        %9306 = vmatpush2.bf16.msra.mxu0 0
        %9307 = vmatprep.subr.bf16.mxu0 0
        %9308 = vmatpush2.bf16.msra.mxu0 0
        %9309 = vmatprep.subr.bf16.mxu0 0
        %9310 = vmatpush2.bf16.msra.mxu0 0
        %9311 = vmatprep.subr.bf16.mxu0 0
        %9312 = vmatpush2.bf16.msra.mxu0 %v6197
        %9313 = vmatprep.subr.bf16.mxu0 0
        %9314 = vmatpush2.bf16.msra.mxu0 %v6195
        %9315 = vmatprep.mubr.bf16.mxu0 %v8921
        %9316 = vmatmul.mubr.bf16.gmra.mxu0 %v8917
        %v9317 = vpop.f32.mrf.mxu0
        %v9318 = vadd.f32 0.0, %v9317
        %v9319 = vpop.f32.mrf.mxu0
        %v9320 = vpop.f32.mrf.mxu0
        %v9321 = vpop.f32.mrf.mxu0
        %9322 = vdwg.mxu0
        %9323 = vmatprep.subr.bf16.mxu0 0
        %9324 = vmatpush1.bf16.msra.mxu0 %v6081
        %9325 = vmatprep.subr.bf16.mxu0 0
        %9326 = vmatpush1.bf16.msra.mxu0 %v6079
        %9327 = vmatprep.subr.bf16.mxu0 0
        %9328 = vmatpush1.bf16.msra.mxu0 %v5961
        %9329 = vmatprep.subr.bf16.mxu0 0
        %9330 = vmatpush1.bf16.msra.mxu0 %v5959
        %9331 = vmatprep.subr.bf16.mxu0 0
        %9332 = vmatpush1.bf16.msra.mxu0 %v5841
        %9333 = vmatprep.subr.bf16.mxu0 0
        %9334 = vmatpush1.bf16.msra.mxu0 %v5839
        %9335 = vmatprep.subr.bf16.mxu0 0
        %9336 = vmatpush1.bf16.msra.mxu0 %v5731
        %9337 = vmatprep.subr.bf16.mxu0 0
        %9338 = vmatpush1.bf16.msra.mxu0 %v5730
        %9339 = vmatprep.subr.bf16.mxu0 0
        %9340 = vmatpush2.bf16.msra.mxu0 0
        %9341 = vmatprep.subr.bf16.mxu0 0
        %9342 = vmatpush2.bf16.msra.mxu0 0
        %9343 = vmatprep.subr.bf16.mxu0 0
        %9344 = vmatpush2.bf16.msra.mxu0 0
        %9345 = vmatprep.subr.bf16.mxu0 0
        %9346 = vmatpush2.bf16.msra.mxu0 0
        %9347 = vmatprep.subr.bf16.mxu0 0
        %9348 = vmatpush2.bf16.msra.mxu0 0
        %9349 = vmatprep.subr.bf16.mxu0 0
        %9350 = vmatpush2.bf16.msra.mxu0 0
        %9351 = vmatprep.subr.bf16.mxu0 0
        %9352 = vmatpush2.bf16.msra.mxu0 %v6201
        %9353 = vmatprep.subr.bf16.mxu0 0
        %9354 = vmatpush2.bf16.msra.mxu0 %v6199
        %9355 = vmatprep.mubr.bf16.mxu0 %v8921
        %9356 = vmatmul.mubr.bf16.gmra.mxu0 %v8917
        %v9357 = vpop.f32.mrf.mxu0
        %v9358 = vadd.f32 0.0, %v9357
        %v9359 = vpop.f32.mrf.mxu0
        %v9360 = vpop.f32.mrf.mxu0
        %v9361 = vpop.f32.mrf.mxu0
        %9362 = vdwg.mxu0
        %9363 = vmatprep.subr.bf16.mxu0 0
        %9364 = vmatpush1.bf16.msra.mxu0 %v6085
        %9365 = vmatprep.subr.bf16.mxu0 0
        %9366 = vmatpush1.bf16.msra.mxu0 %v6083
        %9367 = vmatprep.subr.bf16.mxu0 0
        %9368 = vmatpush1.bf16.msra.mxu0 %v5965
        %9369 = vmatprep.subr.bf16.mxu0 0
        %9370 = vmatpush1.bf16.msra.mxu0 %v5963
        %9371 = vmatprep.subr.bf16.mxu0 0
        %9372 = vmatpush1.bf16.msra.mxu0 %v5845
        %9373 = vmatprep.subr.bf16.mxu0 0
        %9374 = vmatpush1.bf16.msra.mxu0 %v5843
        %9375 = vmatprep.subr.bf16.mxu0 0
        %9376 = vmatpush1.bf16.msra.mxu0 %v5733
        %9377 = vmatprep.subr.bf16.mxu0 0
        %9378 = vmatpush1.bf16.msra.mxu0 %v5732
        %9379 = vmatprep.subr.bf16.mxu0 0
        %9380 = vmatpush2.bf16.msra.mxu0 0
        %9381 = vmatprep.subr.bf16.mxu0 0
        %9382 = vmatpush2.bf16.msra.mxu0 0
        %9383 = vmatprep.subr.bf16.mxu0 0
        %9384 = vmatpush2.bf16.msra.mxu0 0
        %9385 = vmatprep.subr.bf16.mxu0 0
        %9386 = vmatpush2.bf16.msra.mxu0 0
        %9387 = vmatprep.subr.bf16.mxu0 0
        %9388 = vmatpush2.bf16.msra.mxu0 0
        %9389 = vmatprep.subr.bf16.mxu0 0
        %9390 = vmatpush2.bf16.msra.mxu0 0
        %9391 = vmatprep.subr.bf16.mxu0 0
        %9392 = vmatpush2.bf16.msra.mxu0 %v6205
        %9393 = vmatprep.subr.bf16.mxu0 0
        %9394 = vmatpush2.bf16.msra.mxu0 %v6203
        %9395 = vmatprep.mubr.bf16.mxu0 %v8921
        %9396 = vmatmul.mubr.bf16.gmra.mxu0 %v8917
        %v9397 = vpop.f32.mrf.mxu0
        %v9398 = vadd.f32 0.0, %v9397
        %v9399 = vpop.f32.mrf.mxu0
        %v9400 = vpop.f32.mrf.mxu0
        %v9401 = vpop.f32.mrf.mxu0
        %9402 = vdwg.mxu0
        %9403 = vmatprep.subr.bf16.mxu0 0
        %9404 = vmatpush1.bf16.msra.mxu0 %v6089
        %9405 = vmatprep.subr.bf16.mxu0 0
        %9406 = vmatpush1.bf16.msra.mxu0 %v6087
        %9407 = vmatprep.subr.bf16.mxu0 0
        %9408 = vmatpush1.bf16.msra.mxu0 %v5969
        %9409 = vmatprep.subr.bf16.mxu0 0
        %9410 = vmatpush1.bf16.msra.mxu0 %v5967
        %9411 = vmatprep.subr.bf16.mxu0 0
        %9412 = vmatpush1.bf16.msra.mxu0 %v5849
        %9413 = vmatprep.subr.bf16.mxu0 0
        %9414 = vmatpush1.bf16.msra.mxu0 %v5847
        %9415 = vmatprep.subr.bf16.mxu0 0
        %9416 = vmatpush1.bf16.msra.mxu0 %v5735
        %9417 = vmatprep.subr.bf16.mxu0 0
        %9418 = vmatpush1.bf16.msra.mxu0 %v5734
        %9419 = vmatprep.subr.bf16.mxu0 0
        %9420 = vmatpush2.bf16.msra.mxu0 0
        %9421 = vmatprep.subr.bf16.mxu0 0
        %9422 = vmatpush2.bf16.msra.mxu0 0
        %9423 = vmatprep.subr.bf16.mxu0 0
        %9424 = vmatpush2.bf16.msra.mxu0 0
        %9425 = vmatprep.subr.bf16.mxu0 0
        %9426 = vmatpush2.bf16.msra.mxu0 0
        %9427 = vmatprep.subr.bf16.mxu0 0
        %9428 = vmatpush2.bf16.msra.mxu0 0
        %9429 = vmatprep.subr.bf16.mxu0 0
        %9430 = vmatpush2.bf16.msra.mxu0 0
        %9431 = vmatprep.subr.bf16.mxu0 0
        %9432 = vmatpush2.bf16.msra.mxu0 %v6209
        %9433 = vmatprep.subr.bf16.mxu0 0
        %9434 = vmatpush2.bf16.msra.mxu0 %v6207
        %9435 = vmatprep.mubr.bf16.mxu0 %v8921
        %9436 = vmatmul.mubr.bf16.gmra.mxu0 %v8917
        %v9437 = vpop.f32.mrf.mxu0
        %v9438 = vadd.f32 0.0, %v9437
        %v9439 = vpop.f32.mrf.mxu0
        %v9440 = vpop.f32.mrf.mxu0
        %v9441 = vpop.f32.mrf.mxu0
        %9442 = vdwg.mxu0
        %9443 = vmatprep.subr.bf16.mxu0 0
        %9444 = vmatpush1.bf16.msra.mxu0 %v6093
        %9445 = vmatprep.subr.bf16.mxu0 0
        %9446 = vmatpush1.bf16.msra.mxu0 %v6091
        %9447 = vmatprep.subr.bf16.mxu0 0
        %9448 = vmatpush1.bf16.msra.mxu0 %v5973
        %9449 = vmatprep.subr.bf16.mxu0 0
        %9450 = vmatpush1.bf16.msra.mxu0 %v5971
        %9451 = vmatprep.subr.bf16.mxu0 0
        %9452 = vmatpush1.bf16.msra.mxu0 %v5853
        %9453 = vmatprep.subr.bf16.mxu0 0
        %9454 = vmatpush1.bf16.msra.mxu0 %v5851
        %9455 = vmatprep.subr.bf16.mxu0 0
        %9456 = vmatpush1.bf16.msra.mxu0 %v5737
        %9457 = vmatprep.subr.bf16.mxu0 0
        %9458 = vmatpush1.bf16.msra.mxu0 %v5736
        %9459 = vmatprep.subr.bf16.mxu0 0
        %9460 = vmatpush2.bf16.msra.mxu0 0
        %9461 = vmatprep.subr.bf16.mxu0 0
        %9462 = vmatpush2.bf16.msra.mxu0 0
        %9463 = vmatprep.subr.bf16.mxu0 0
        %9464 = vmatpush2.bf16.msra.mxu0 0
        %9465 = vmatprep.subr.bf16.mxu0 0
        %9466 = vmatpush2.bf16.msra.mxu0 0
        %9467 = vmatprep.subr.bf16.mxu0 0
        %9468 = vmatpush2.bf16.msra.mxu0 0
        %9469 = vmatprep.subr.bf16.mxu0 0
        %9470 = vmatpush2.bf16.msra.mxu0 0
        %9471 = vmatprep.subr.bf16.mxu0 0
        %9472 = vmatpush2.bf16.msra.mxu0 %v6213
        %9473 = vmatprep.subr.bf16.mxu0 0
        %9474 = vmatpush2.bf16.msra.mxu0 %v6211
        %9475 = vmatprep.mubr.bf16.mxu0 %v8921
        %9476 = vmatmul.mubr.bf16.gmra.mxu0 %v8917
        %v9477 = vpop.f32.mrf.mxu0
        %v9478 = vadd.f32 0.0, %v9477
        %v9479 = vpop.f32.mrf.mxu0
        %v9480 = vpop.f32.mrf.mxu0
        %v9481 = vpop.f32.mrf.mxu0
        %9482 = vdwg.mxu0
        %9483 = vmatprep.subr.bf16.mxu0 0
        %9484 = vmatpush1.bf16.msra.mxu0 %v6097
        %9485 = vmatprep.subr.bf16.mxu0 0
        %9486 = vmatpush1.bf16.msra.mxu0 %v6095
        %9487 = vmatprep.subr.bf16.mxu0 0
        %9488 = vmatpush1.bf16.msra.mxu0 %v5977
        %9489 = vmatprep.subr.bf16.mxu0 0
        %9490 = vmatpush1.bf16.msra.mxu0 %v5975
        %9491 = vmatprep.subr.bf16.mxu0 0
        %9492 = vmatpush1.bf16.msra.mxu0 %v5857
        %9493 = vmatprep.subr.bf16.mxu0 0
        %9494 = vmatpush1.bf16.msra.mxu0 %v5855
        %9495 = vmatprep.subr.bf16.mxu0 0
        %9496 = vmatpush1.bf16.msra.mxu0 %v5739
        %9497 = vmatprep.subr.bf16.mxu0 0
        %9498 = vmatpush1.bf16.msra.mxu0 %v5738
        %9499 = vmatprep.subr.bf16.mxu0 0
        %9500 = vmatpush2.bf16.msra.mxu0 0
        %9501 = vmatprep.subr.bf16.mxu0 0
        %9502 = vmatpush2.bf16.msra.mxu0 0
        %9503 = vmatprep.subr.bf16.mxu0 0
        %9504 = vmatpush2.bf16.msra.mxu0 0
        %9505 = vmatprep.subr.bf16.mxu0 0
        %9506 = vmatpush2.bf16.msra.mxu0 0
        %9507 = vmatprep.subr.bf16.mxu0 0
        %9508 = vmatpush2.bf16.msra.mxu0 0
        %9509 = vmatprep.subr.bf16.mxu0 0
        %9510 = vmatpush2.bf16.msra.mxu0 0
        %9511 = vmatprep.subr.bf16.mxu0 0
        %9512 = vmatpush2.bf16.msra.mxu0 %v6217
        %9513 = vmatprep.subr.bf16.mxu0 0
        %9514 = vmatpush2.bf16.msra.mxu0 %v6215
        %9515 = vmatprep.mubr.bf16.mxu0 %v8921
        %9516 = vmatmul.mubr.bf16.gmra.mxu0 %v8917
        %v9517 = vpop.f32.mrf.mxu0
        %v9518 = vadd.f32 0.0, %v9517
        %v9519 = vpop.f32.mrf.mxu0
        %v9520 = vpop.f32.mrf.mxu0
        %v9521 = vpop.f32.mrf.mxu0
        %9522 = vdwg.mxu0
        %9523 = vmatprep.subr.bf16.mxu0 0
        %9524 = vmatpush1.bf16.msra.mxu0 %v6101
        %9525 = vmatprep.subr.bf16.mxu0 0
        %9526 = vmatpush1.bf16.msra.mxu0 %v6099
        %9527 = vmatprep.subr.bf16.mxu0 0
        %9528 = vmatpush1.bf16.msra.mxu0 %v5981
        %9529 = vmatprep.subr.bf16.mxu0 0
        %9530 = vmatpush1.bf16.msra.mxu0 %v5979
        %9531 = vmatprep.subr.bf16.mxu0 0
        %9532 = vmatpush1.bf16.msra.mxu0 %v5861
        %9533 = vmatprep.subr.bf16.mxu0 0
        %9534 = vmatpush1.bf16.msra.mxu0 %v5859
        %9535 = vmatprep.subr.bf16.mxu0 0
        %9536 = vmatpush1.bf16.msra.mxu0 %v5741
        %9537 = vmatprep.subr.bf16.mxu0 0
        %9538 = vmatpush1.bf16.msra.mxu0 %v5740
        %9539 = vmatprep.subr.bf16.mxu0 0
        %9540 = vmatpush2.bf16.msra.mxu0 0
        %9541 = vmatprep.subr.bf16.mxu0 0
        %9542 = vmatpush2.bf16.msra.mxu0 0
        %9543 = vmatprep.subr.bf16.mxu0 0
        %9544 = vmatpush2.bf16.msra.mxu0 0
        %9545 = vmatprep.subr.bf16.mxu0 0
        %9546 = vmatpush2.bf16.msra.mxu0 0
        %9547 = vmatprep.subr.bf16.mxu0 0
        %9548 = vmatpush2.bf16.msra.mxu0 0
        %9549 = vmatprep.subr.bf16.mxu0 0
        %9550 = vmatpush2.bf16.msra.mxu0 0
        %9551 = vmatprep.subr.bf16.mxu0 0
        %9552 = vmatpush2.bf16.msra.mxu0 %v6221
        %9553 = vmatprep.subr.bf16.mxu0 0
        %9554 = vmatpush2.bf16.msra.mxu0 %v6219
        %9555 = vmatprep.mubr.bf16.mxu0 %v8921
        %9556 = vmatmul.mubr.bf16.gmra.mxu0 %v8917
        %v9557 = vpop.f32.mrf.mxu0
        %v9558 = vadd.f32 0.0, %v9557
        %v9559 = vpop.f32.mrf.mxu0
        %v9560 = vpop.f32.mrf.mxu0
        %v9561 = vpop.f32.mrf.mxu0
        %9562 = vdwg.mxu0
        %v9563 = vadd.f32 %v8895, %v8958
        %v9564 = vadd.f32 %v8896, %v8998
        %v9565 = vadd.f32 %v8897, %v9038
        %v9566 = vadd.f32 %v8898, %v9078
        %v9567 = vadd.f32 %v8899, %v9118
        %v9568 = vadd.f32 %v8900, %v9158
        %v9569 = vadd.f32 %v8901, %v9198
        %v9570 = vadd.f32 %v8902, %v9238
        %v9571 = vadd.f32 %v8903, %v9278
        %v9572 = vadd.f32 %v8904, %v9318
        %v9573 = vadd.f32 %v8905, %v9358
        %v9574 = vadd.f32 %v8906, %v9398
        %v9575 = vadd.f32 %v8907, %v9438
        %v9576 = vadd.f32 %v8908, %v9478
        %v9577 = vadd.f32 %v8909, %v9518
        %v9578 = vadd.f32 %v8910, %v9558
        %v9579 = vld [vmem:[#allocation2] sm:$0x1]
        %s9580 = vtos %v9579
        %v9581 = vstv %s9580
        %v9582 = vadd.f32 %v9563, %v9581
        %v9583 = vadd.f32 %v9564, %v9581
        %v9584 = vadd.f32 %v9565, %v9581
        %v9585 = vadd.f32 %v9566, %v9581
        %v9586 = vadd.f32 %v9567, %v9581
        %v9587 = vadd.f32 %v9568, %v9581
        %v9588 = vadd.f32 %v9569, %v9581
        %v9589 = vadd.f32 %v9570, %v9581
        %v9590 = vadd.f32 %v9571, %v9581
        %v9591 = vadd.f32 %v9572, %v9581
        %v9592 = vadd.f32 %v9573, %v9581
        %v9593 = vadd.f32 %v9574, %v9581
        %v9594 = vadd.f32 %v9575, %v9581
        %v9595 = vadd.f32 %v9576, %v9581
        %v9596 = vadd.f32 %v9577, %v9581
        %v9597 = vadd.f32 %v9578, %v9581
        %v9614 = vrot.slane %v9583, 7
        %vm9615 = vcmask 1041409
        %v9616 = vsel %vm9615, %v9614, %v9582
        %v9617 = vrot.slane %v9584, 6
        %vm9618 = vcmask 1042434
        %v9619 = vsel %vm9618, %v9617, %v9616
        %v9620 = vrot.slane %v9585, 5
        %vm9621 = vcmask 1043459
        %v9622 = vsel %vm9621, %v9620, %v9619
        %v9623 = vrot.slane %v9586, 4
        %vm9624 = vcmask 1044484
        %v9625 = vsel %vm9624, %v9623, %v9622
        %v9626 = vrot.slane %v9587, 3
        %vm9627 = vcmask 1045509
        %v9628 = vsel %vm9627, %v9626, %v9625
        %v9629 = vrot.slane %v9588, 2
        %vm9630 = vcmask 1046534
        %v9631 = vsel %vm9630, %v9629, %v9628
        %v9632 = vrot.slane %v9589, 1
        %vm9633 = vcmask 1047559
        %v9634 = vsel %vm9633, %v9632, %v9631
        %v9635 = vrot.slane %v9591, 7
        %v9636 = vsel %vm9615, %v9635, %v9590
        %v9637 = vrot.slane %v9592, 6
        %v9638 = vsel %vm9618, %v9637, %v9636
        %v9639 = vrot.slane %v9593, 5
        %v9640 = vsel %vm9621, %v9639, %v9638
        %v9641 = vrot.slane %v9594, 4
        %v9642 = vsel %vm9624, %v9641, %v9640
        %v9643 = vrot.slane %v9595, 3
        %v9644 = vsel %vm9627, %v9643, %v9642
        %v9645 = vrot.slane %v9596, 2
        %v9646 = vsel %vm9630, %v9645, %v9644
        %v9647 = vrot.slane %v9597, 1
        %v9648 = vsel %vm9633, %v9647, %v9646
        %vm9651 = vcmask 130048
        %9652 = vst.msk [vmem:[%s297] sm:$0xff] %vm9651, %v9634
        %9653 = vst.msk [vmem:[%s297 + $0x8] sm:$0xff] %vm9651, %v9648
        %s9654 = sand.u32 %s199, 1
        %s9655 = scalar_lea.sflag [#allocation4], %s9654
        %s9656 = sand.u32 %s199, 1
        %s9657 = smul.addr %s9656, 16
        %s9658 = scalar_lea.vmem [#allocation3], %s9657
        // Predicated region
        $region49: #{srcnn_forward.1} parent=47 // pred_check
          %p9659 = pneg %p209
        $region50: #{srcnn_forward.1} parent=47 // pred_check_branch
          %9661 = sbr.rel (%p9659) target = $region52
        $region51: #{srcnn_forward.1} parent=47 // pred_region
          %s9662 = smul.u32 2, %s28
          %s9664 = ssub.s32 256, 256
          %9665 = vsyncadd %s9655, %s9664
          %s9666 = smul.addr %s27, 2
          %s9667 = sadd.s32 %s9662, %s9666
          %s9668 = smul.addr %s9667, 128
          %s9669 = scalar_lea.hbm %s7, %s9668
          %s9670 = sshll.u32 %s9658, 4
          %s9671 = int_to_ptr.vmem [resolvable:$true] %s9670
          %9676 = dma.vmem_to_hbm [thread:$0]  %s9671, 256, %s9669, %s9655, 128, 128, 8
        $region52: #{srcnn_forward.1} parent=47 // pred_fallthru
          _
      $region48: #{srcnn_forward.1} parent=5 // pred_fallthru
        _
      %p9677 = scmp.le.s32.totalorder 2, %s18
      // Predicated region
      $region53: #{srcnn_forward.1} parent=5 // pred_check
        %p9678 = pneg %p9677
      $region54: #{srcnn_forward.1} parent=5 // pred_check_branch
        %9680 = sbr.rel (%p9678) target = $region56
      $region55: #{srcnn_forward.1} parent=5 // pred_region
        %s9681 = ssub.s32 %s18, 2
        // Predicated region
        $region57: #{srcnn_forward.1} parent=55 // pred_check
          %p9682 = pneg %p215
        $region58: #{srcnn_forward.1} parent=55 // pred_check_branch
          %9684 = sbr.rel (%p9682) target = $region60
        $region59: #{srcnn_forward.1} parent=55 // pred_region
          %s9685 = sand.u32 %s200, 1
          %s9686 = scalar_lea.sflag [#allocation4], %s9685
          %s9687 = sand.u32 %s200, 1
          %s9688 = smul.addr %s9687, 16
          %s9689 = scalar_lea.vmem [#allocation3], %s9688
          %9690 = dma.done %s9686, 256
        $region60: #{srcnn_forward.1} parent=55 // pred_fallthru
          _
      $region56: #{srcnn_forward.1} parent=5 // pred_fallthru
        _
    $region6: #{srcnn_forward.1} parent=1 // loop_footer
      %s22 = sadd.s32 1, %s18
    $region7: #{srcnn_forward.1} parent=1 // loop_footer_branch
      %17 = sbr.rel target = $region3
    $region8: #{srcnn_forward.1} parent=1 // loop_exit
      _
    %9691 = vsyncpa [#allocation4], 1
    %s9692 = scalar_lea.sflag [#allocation4], 1
    %9693 = vsyncpa %s9692, 1

</llo_original>
